<compile_context>
chip_gen: v7x
topology: tpu7x:2x2x1
jax: 0.10.0
libtpu: 0.0.40
codegen_flags: <defaults>
</compile_context>

<pallas_src>
from functools import partial

import numpy as np
import jax
import jax.numpy as jnp
from jax.experimental import pallas as pl
from jax.experimental.pallas import tpu as pltpu


# ----------------------------------------------------------------------------
# Host-side static matrices (plain numpy, built at trace time from shapes)
# ----------------------------------------------------------------------------
def _avgpool_matrix(H, W, p):
    """A (Hp*Wp, H*W): pooled = A @ x (entries 0 or 1/p^2)."""
    Hp, Wp = H // p, W // p
    A = np.zeros((Hp * Wp, H * W), dtype=np.float32)
    for hp in range(Hp):
        for wp in range(Wp):
            r = hp * Wp + wp
            for dy in range(p):
                for dx in range(p):
                    A[r, (hp * p + dy) * W + (wp * p + dx)] = 1.0 / (p * p)
    return A


def _linear_interp_matrix(in_size, out_size):
    """Rows: output index, cols: input index; align_corners=True semantics."""
    M = np.zeros((out_size, in_size), dtype=np.float32)
    for i in range(out_size):
        src = 0.0 if out_size == 1 else i * (in_size - 1) / (out_size - 1)
        i0 = min(int(np.floor(src)), in_size - 1)
        frac = src - i0
        i1 = min(i0 + 1, in_size - 1)
        M[i, i0] += 1.0 - frac
        M[i, i1] += frac
    return M


def _bilinear_matrix(Hp, Wp, H, W):
    """M (H*W, Hp*Wp): up = M @ y, bilinear with align_corners=True."""
    wh = _linear_interp_matrix(Hp, H)            # (H, Hp)
    ww = _linear_interp_matrix(Wp, W)            # (W, Wp)
    return np.einsum("Hh,Ww->HWhw", wh, ww).reshape(H * W, Hp * Wp).astype(np.float32)


def _shifted_upsample_matrices(H, W, Hp, Wp):
    """SM (9, H*W, Hp*Wp): SM_t = Shift_t @ Upsample (zero-padded 3x3 taps folded
    with the bilinear matrix).  Per-image -- no block-diagonal kron anywhere."""
    M = _bilinear_matrix(Hp, Wp, H, W)
    SM = np.zeros((9, H * W, Hp * Wp), dtype=np.float32)
    for t in range(9):
        dy, dx = t // 3 - 1, t % 3 - 1            # kh-major tap order
        for h in range(H):
            for w in range(W):
                hs, ws = h + dy, w + dx
                if 0 <= hs < H and 0 <= ws < W:
                    SM[t, h * W + w, :] = M[hs * W + ws, :]
    return SM


def _mxu_target_rows():
    """128 MXU rows on v5-class chips, 256 on v6e/v7x (perf-review item)."""
    try:
        kind = jax.devices()[0].device_kind.lower()
    except Exception:
        return 256
    return 256 if ("v6" in kind or "v7" in kind) else 128


def _pick_batch_block(B, HpWp, target_rows):
    """Largest divisor of B with Bblk*HpWp <= target_rows (row fill of the packed
    channel matmuls), capped at B//2 so the grid has >= 2 parallel steps and a
    v7x megacore keeps both TensorCores busy."""
    cap = max(1, target_rows // max(HpWp, 1))
    if B >= 2:
        cap = min(cap, B // 2)
    cap = max(cap, 1)
    best = 1
    for cand in range(1, min(B, cap) + 1):
        if B % cand == 0:
            best = cand
    return best


def _const_spec(shape):
    """BlockSpec for a grid-invariant operand: same block every step, and
    single-buffered when pipeline_mode is available (saves VMEM on v7x)."""
    n = len(shape)
    index_map = lambda i: (0,) * n
    try:
        return pl.BlockSpec(shape, index_map, pipeline_mode=pl.Buffered(1))
    except (TypeError, AttributeError, ValueError):
        return pl.BlockSpec(shape, index_map)


# ----------------------------------------------------------------------------
# Pallas kernel: full ScaleBlock forward for one block of Bblk images
# ----------------------------------------------------------------------------
def _scale_block_kernel(x_ref, a_ref, w1_ref, b1_ref, sm_ref, w2_ref, b2_ref,
                        o_ref, acc_ref):
    bf16, f32 = jnp.bfloat16, jnp.float32
    bblk, hw, _ = x_ref.shape
    hpwp = a_ref.shape[0]

    # ---- AvgPool2d(p): per-image spatial matmul with the (HpWp, HW) matrix ----
    # (A could also be replaced by p^2 strided-row VPU adds; kept as a tiny
    #  matmul since it is ~4% of the FLOPs and A is only HpWp*HW bf16 bytes.)
    A = a_ref[...]
    pooled = jnp.concatenate(
        [jnp.dot(A, x_ref[b], preferred_element_type=f32) for b in range(bblk)],
        axis=0).astype(bf16)                                   # (bblk*HpWp, C_in)

    # ---- Conv2d(512,256,k=1) + bias + ReLU on batch-packed rows ----
    y = jnp.dot(pooled, w1_ref[...], preferred_element_type=f32)
    y = jnp.maximum(y + b1_ref[...], 0.0).astype(bf16)         # (bblk*HpWp, C_mid)

    # ---- Upsample + Conv2d(256,256,k=3,pad=1), reassociated:
    #      out_b = sum_t SM_t @ (y_b @ W2_t), accumulated in f32 VMEM scratch.
    #      Channel contraction (y @ W2_t) stays on packed rows; the spatial
    #      matmul SM_t @ z_b is per image (statically unrolled). ----
    acc_ref[...] = jnp.zeros_like(acc_ref)
    for t in range(9):                                         # statically unrolled
        z = jnp.dot(y, w2_ref[t], preferred_element_type=f32).astype(bf16)
        smt = sm_ref[t]                                        # (HW, HpWp)
        for b in range(bblk):
            acc_ref[b] += jnp.dot(smt, z[b * hpwp:(b + 1) * hpwp, :],
                                  preferred_element_type=f32)

    b2v = b2_ref[...]
    for b in range(bblk):
        o_ref[b] = jnp.maximum(acc_ref[b] + b2v, 0.0).astype(o_ref.dtype)


# ----------------------------------------------------------------------------
# Wrapper (jitted so the NCHW <-> channels-last plumbing fuses with neighbors)
# ----------------------------------------------------------------------------
@partial(jax.jit, static_argnames=("pool_size",))
def scale_block_forward(x_nchw, w1, b1, w2, b2, pool_size):
    """x_nchw: (B, 512, H, W) float32.  Returns (B, 256, H, W) float32."""
    B, c_in, H, W = x_nchw.shape
    c_mid = w1.shape[0]            # 256
    c_out = w2.shape[0]            # 256
    p = pool_size
    assert H % p == 0 and W % p == 0, "ScaleBlock assumes pool_size divides H and W"
    Hp, Wp = H // p, W // p
    HW, HpWp = H * W, Hp * Wp

    bblk = _pick_batch_block(B, HpWp, _mxu_target_rows())
    n_blocks = B // bblk

    # ---- per-image static matrices (no kron / no block-diagonal blow-up) ----
    bf16 = jnp.bfloat16
    A = jnp.asarray(_avgpool_matrix(H, W, p), dtype=bf16)                    # (HpWp, HW)
    SM = jnp.asarray(_shifted_upsample_matrices(H, W, Hp, Wp), dtype=bf16)   # (9, HW, HpWp)
    w1m = jnp.asarray(w1[:, :, 0, 0].T, dtype=bf16)                          # (c_in, c_mid)
    b1m = b1.astype(jnp.float32).reshape(1, c_mid)
    # tap-major (kh, kw): W2_t = w2[:, :, kh, kw].T, stacked to (9, c_mid, c_out)
    w2t = jnp.transpose(w2, (2, 3, 1, 0)).reshape(9, c_mid, c_out).astype(bf16)
    b2m = b2.astype(jnp.float32).reshape(1, c_out)

    # channels-last rows (lane-dense), bf16 MXU operand.
    x_rows = jnp.transpose(x_nchw, (0, 2, 3, 1)).reshape(B, HW, c_in).astype(bf16)

    flops = 2 * B * (HpWp * HW * c_in               # avg-pool
                     + HpWp * c_in * c_mid          # 1x1 conv
                     + 9 * HpWp * c_mid * c_out     # per-tap channel contraction
                     + 9 * HW * HpWp * c_out)       # per-tap upsample+shift
    const_bytes = int(A.size + SM.size + w1m.size + w2t.size) * 2 + (c_mid + c_out) * 4
    bytes_accessed = B * HW * (c_in + c_out) * 2 + const_bytes

    # Explicit VMEM budget: double-buffered x/out blocks + invariant constants
    # + the f32 accumulator, with 2x headroom.  v5e's scoped default is only
    # 16 MiB; clamp to 64 MiB so we never exceed v7x physical VMEM.
    vmem_need = (2 * bblk * HW * (c_in + c_out) * 2 + const_bytes
                 + bblk * HW * c_out * 4)
    vmem_limit = int(min(max(2 * vmem_need, 32 * 2**20), 64 * 2**20))

    out_rows = pl.pallas_call(
        _scale_block_kernel,
        out_shape=jax.ShapeDtypeStruct((B, HW, c_out), jnp.bfloat16),
        grid=(n_blocks,),
        in_specs=[
            pl.BlockSpec((bblk, HW, c_in), lambda i: (i, 0, 0)),
            _const_spec((HpWp, HW)),          # A          (per-image)
            _const_spec((c_in, c_mid)),       # W1
            _const_spec((1, c_mid)),          # b1
            _const_spec((9, HW, HpWp)),       # SM taps    (per-image)
            _const_spec((9, c_mid, c_out)),   # W2 taps
            _const_spec((1, c_out)),          # b2
        ],
        out_specs=pl.BlockSpec((bblk, HW, c_out), lambda i: (i, 0, 0)),
        scratch_shapes=[pltpu.VMEM((bblk, HW, c_out), jnp.float32)],
        compiler_params=pltpu.CompilerParams(
            dimension_semantics=("parallel",),
            vmem_limit_bytes=vmem_limit),
        cost_estimate=pl.CostEstimate(
            flops=flops, transcendentals=0, bytes_accessed=bytes_accessed),
    )(x_rows, A, w1m, b1m, SM, w2t, b2m)

    # NOTE: for production H,W on v7x (64 MiB VMEM), add a second grid axis that
    # tiles SM / the output over HW rows so SM streams from HBM instead of
    # being fully VMEM-resident.  The NCHW layout below is required by the
    # module spec; the transpose runs on bf16 and the f32 cast happens last.
    out = jnp.transpose(out_rows.reshape(B, H, W, c_out), (0, 3, 1, 2))
    return out.astype(jnp.float32)


# ----------------------------------------------------------------------------
# Pure-JAX f32 reference (sanity check)
# ----------------------------------------------------------------------------
def scale_block_reference(x, w1, b1, w2, b2, p):
    B, C, H, W = x.shape
    Hp, Wp = H // p, W // p
    xp = x.reshape(B, C, Hp, p, Wp, p).mean(axis=(3, 5))
    y = jnp.einsum("bchw,oc->bohw", xp, w1[:, :, 0, 0]) + b1[None, :, None, None]
    y = jnp.maximum(y, 0.0)
    wh = jnp.asarray(_linear_interp_matrix(Hp, H))
    ww = jnp.asarray(_linear_interp_matrix(Wp, W))
    up = jnp.einsum("Hh,bchw,Ww->bcHW", wh, y, ww)
    out = jax.lax.conv_general_dilated(
        up, w2, window_strides=(1, 1), padding=((1, 1), (1, 1)),
        dimension_numbers=("NCHW", "OIHW", "NCHW"))
    out = out + b2[None, :, None, None]
    return jnp.maximum(out, 0.0)


# ----------------------------------------------------------------------------
if __name__ == "__main__":
    # Channels fixed by the module (512 -> 256); small spatial / batch for demo.
    B, C_IN, H, W = 8, 512, 8, 8
    C_MID = C_OUT = 256
    POOL = 2

    key = jax.random.PRNGKey(0)
    kx, k1, k2, k3, k4 = jax.random.split(key, 5)

    x = jax.random.normal(kx, (B, C_IN, H, W), dtype=jnp.float32)
    w1 = jax.random.normal(k1, (C_MID, C_IN, 1, 1), dtype=jnp.float32) * 0.05
    b1 = jax.random.normal(k2, (C_MID,), dtype=jnp.float32) * 0.05
    w2 = jax.random.normal(k3, (C_OUT, C_MID, 3, 3), dtype=jnp.float32) * 0.05
    b2 = jax.random.normal(k4, (C_OUT,), dtype=jnp.float32) * 0.05

    out = jax.block_until_ready(scale_block_forward(x, w1, b1, w2, b2,
                                                    pool_size=POOL))
    ref = jax.block_until_ready(scale_block_reference(x, w1, b1, w2, b2, POOL))

    assert out.shape == (B, C_OUT, H, W)
    max_diff = float(jnp.max(jnp.abs(out - ref)))
    # bf16 MXU operands / bf16 writeback with f32 accumulation vs an all-f32 ref.
    assert bool(jnp.allclose(out, ref, rtol=2e-2, atol=2e-2)), \
        f"max abs diff {max_diff}"

    print("KERNEL_OK")
</pallas_src>

<mosaic_0001>
module attributes {stable_mosaic.version = 11 : i64} {
  func.func @_scale_block_kernel(%arg0: i32, %arg1: memref<4x64x512xbf16, #tpu.memory_space<vmem>>, %arg2: memref<16x64xbf16, #tpu.memory_space<vmem>>, %arg3: memref<512x256xbf16, #tpu.memory_space<vmem>>, %arg4: memref<1x256xf32, #tpu.memory_space<vmem>>, %arg5: memref<9x64x16xbf16, #tpu.memory_space<vmem>>, %arg6: memref<9x256x256xbf16, #tpu.memory_space<vmem>>, %arg7: memref<1x256xf32, #tpu.memory_space<vmem>>, %arg8: memref<4x64x256xbf16, #tpu.memory_space<vmem>>, %arg9: memref<4x64x256xf32, #tpu.memory_space<vmem>>) attributes {dimension_semantics = [#tpu.dimension_semantics<parallel>], iteration_bounds = array<i64: 2>, scalar_prefetch = 0 : i64, scratch_operands = 1 : i64, tpu.core_type = #tpu.core_type<tc>, window_params = [{transform_indices = @transform_0, window_bounds = array<i64: 4, 64, 512>}, {pipeline_mode = #tpu.pipeline_mode<synchronous>, transform_indices = @transform_1, window_bounds = array<i64: 16, 64>}, {pipeline_mode = #tpu.pipeline_mode<synchronous>, transform_indices = @transform_2, window_bounds = array<i64: 512, 256>}, {pipeline_mode = #tpu.pipeline_mode<synchronous>, transform_indices = @transform_3, window_bounds = array<i64: 1, 256>}, {pipeline_mode = #tpu.pipeline_mode<synchronous>, transform_indices = @transform_4, window_bounds = array<i64: 9, 64, 16>}, {pipeline_mode = #tpu.pipeline_mode<synchronous>, transform_indices = @transform_5, window_bounds = array<i64: 9, 256, 256>}, {pipeline_mode = #tpu.pipeline_mode<synchronous>, transform_indices = @transform_6, window_bounds = array<i64: 1, 256>}, {transform_indices = @transform_7, window_bounds = array<i64: 4, 64, 256>}]} {
    %c0 = arith.constant 0 : index
    %c0_0 = arith.constant 0 : index
    %0 = vector.load %arg2[%c0, %c0_0] : memref<16x64xbf16, #tpu.memory_space<vmem>>, vector<16x64xbf16>
    %c0_1 = arith.constant 0 : index
    %c0_2 = arith.constant 0 : index
    %c0_3 = arith.constant 0 : index
    %1 = vector.load %arg1[%c0_1, %c0_2, %c0_3] : memref<4x64x512xbf16, #tpu.memory_space<vmem>>, vector<1x64x512xbf16>
    %2 = vector.shape_cast %1 : vector<1x64x512xbf16> to vector<64x512xbf16>
    %cst = arith.constant dense<0.000000e+00> : vector<16x512xf32>
    %3 = tpu.matmul %0, %2, %cst {dimension_numbers = #tpu.dot_dimension_numbers<[1], [0], [0], [1], [0, 0, 1, 1], [], []>} : vector<16x64xbf16>, vector<64x512xbf16>, vector<16x512xf32> -> vector<16x512xf32>
    %c1 = arith.constant 1 : index
    %c0_4 = arith.constant 0 : index
    %c0_5 = arith.constant 0 : index
    %4 = vector.load %arg1[%c1, %c0_4, %c0_5] : memref<4x64x512xbf16, #tpu.memory_space<vmem>>, vector<1x64x512xbf16>
    %5 = vector.shape_cast %4 : vector<1x64x512xbf16> to vector<64x512xbf16>
    %cst_6 = arith.constant dense<0.000000e+00> : vector<16x512xf32>
    %6 = tpu.matmul %0, %5, %cst_6 {dimension_numbers = #tpu.dot_dimension_numbers<[1], [0], [0], [1], [0, 0, 1, 1], [], []>} : vector<16x64xbf16>, vector<64x512xbf16>, vector<16x512xf32> -> vector<16x512xf32>
    %c2 = arith.constant 2 : index
    %c0_7 = arith.constant 0 : index
    %c0_8 = arith.constant 0 : index
    %7 = vector.load %arg1[%c2, %c0_7, %c0_8] : memref<4x64x512xbf16, #tpu.memory_space<vmem>>, vector<1x64x512xbf16>
    %8 = vector.shape_cast %7 : vector<1x64x512xbf16> to vector<64x512xbf16>
    %cst_9 = arith.constant dense<0.000000e+00> : vector<16x512xf32>
    %9 = tpu.matmul %0, %8, %cst_9 {dimension_numbers = #tpu.dot_dimension_numbers<[1], [0], [0], [1], [0, 0, 1, 1], [], []>} : vector<16x64xbf16>, vector<64x512xbf16>, vector<16x512xf32> -> vector<16x512xf32>
    %c3 = arith.constant 3 : index
    %c0_10 = arith.constant 0 : index
    %c0_11 = arith.constant 0 : index
    %10 = vector.load %arg1[%c3, %c0_10, %c0_11] : memref<4x64x512xbf16, #tpu.memory_space<vmem>>, vector<1x64x512xbf16>
    %11 = vector.shape_cast %10 : vector<1x64x512xbf16> to vector<64x512xbf16>
    %cst_12 = arith.constant dense<0.000000e+00> : vector<16x512xf32>
    %12 = tpu.matmul %0, %11, %cst_12 {dimension_numbers = #tpu.dot_dimension_numbers<[1], [0], [0], [1], [0, 0, 1, 1], [], []>} : vector<16x64xbf16>, vector<64x512xbf16>, vector<16x512xf32> -> vector<16x512xf32>
    %13 = tpu.concatenate %3, %6, %9, %12 in 0 : vector<16x512xf32>, vector<16x512xf32>, vector<16x512xf32>, vector<16x512xf32> -> vector<64x512xf32>
    %14 = arith.truncf %13 : vector<64x512xf32> to vector<64x512xbf16>
    %c0_13 = arith.constant 0 : index
    %c0_14 = arith.constant 0 : index
    %15 = vector.load %arg3[%c0_13, %c0_14] : memref<512x256xbf16, #tpu.memory_space<vmem>>, vector<512x256xbf16>
    %cst_15 = arith.constant dense<0.000000e+00> : vector<64x256xf32>
    %16 = tpu.matmul %14, %15, %cst_15 {dimension_numbers = #tpu.dot_dimension_numbers<[1], [0], [0], [1], [0, 0, 1, 1], [], []>} : vector<64x512xbf16>, vector<512x256xbf16>, vector<64x256xf32> -> vector<64x256xf32>
    %c0_16 = arith.constant 0 : index
    %c0_17 = arith.constant 0 : index
    %17 = vector.load %arg4[%c0_16, %c0_17] : memref<1x256xf32, #tpu.memory_space<vmem>>, vector<1x256xf32>
    %18 = vector.broadcast %17 : vector<1x256xf32> to vector<64x256xf32>
    %19 = arith.addf %16, %18 : vector<64x256xf32>
    %cst_18 = arith.constant 0.000000e+00 : f32
    %20 = vector.broadcast %cst_18 : f32 to vector<64x256xf32>
    %21 = arith.maximumf %19, %20 : vector<64x256xf32>
    %22 = arith.truncf %21 : vector<64x256xf32> to vector<64x256xbf16>
    %cst_19 = arith.constant 0.000000e+00 : f32
    %23 = vector.broadcast %cst_19 : f32 to vector<4x64x256xf32>
    %c0_20 = arith.constant 0 : index
    %c0_21 = arith.constant 0 : index
    %c0_22 = arith.constant 0 : index
    %24 = vector.load %arg9[%c0_20, %c0_21, %c0_22] : memref<4x64x256xf32, #tpu.memory_space<vmem>>, vector<4x64x256xf32>
    tpu.vector_store %arg9[%c0_20, %c0_21, %c0_22], %23 {strides = array<i32>} : memref<4x64x256xf32, #tpu.memory_space<vmem>>, vector<4x64x256xf32>,
    %c0_23 = arith.constant 0 : index
    %c0_24 = arith.constant 0 : index
    %c0_25 = arith.constant 0 : index
    %25 = vector.load %arg6[%c0_23, %c0_24, %c0_25] : memref<9x256x256xbf16, #tpu.memory_space<vmem>>, vector<1x256x256xbf16>
    %26 = vector.shape_cast %25 : vector<1x256x256xbf16> to vector<256x256xbf16>
    %cst_26 = arith.constant dense<0.000000e+00> : vector<64x256xf32>
    %27 = tpu.matmul %22, %26, %cst_26 {dimension_numbers = #tpu.dot_dimension_numbers<[1], [0], [0], [1], [0, 0, 1, 1], [], []>} : vector<64x256xbf16>, vector<256x256xbf16>, vector<64x256xf32> -> vector<64x256xf32>
    %28 = arith.truncf %27 : vector<64x256xf32> to vector<64x256xbf16>
    %c0_27 = arith.constant 0 : index
    %c0_28 = arith.constant 0 : index
    %c0_29 = arith.constant 0 : index
    %29 = vector.load %arg5[%c0_27, %c0_28, %c0_29] : memref<9x64x16xbf16, #tpu.memory_space<vmem>>, vector<1x64x16xbf16>
    %30 = vector.shape_cast %29 : vector<1x64x16xbf16> to vector<64x16xbf16>
    %c0_30 = arith.constant 0 : index
    %c0_31 = arith.constant 0 : index
    %c0_32 = arith.constant 0 : index
    %31 = vector.load %arg9[%c0_30, %c0_31, %c0_32] : memref<4x64x256xf32, #tpu.memory_space<vmem>>, vector<1x64x256xf32>
    %32 = vector.shape_cast %31 : vector<1x64x256xf32> to vector<64x256xf32>
    %33 = vector.extract_strided_slice %28 {offsets = [0, 0], sizes = [16, 256], strides = [1, 1]} : vector<64x256xbf16> to vector<16x256xbf16>
    %cst_33 = arith.constant dense<0.000000e+00> : vector<64x256xf32>
    %34 = tpu.matmul %30, %33, %cst_33 {dimension_numbers = #tpu.dot_dimension_numbers<[1], [0], [0], [1], [0, 0, 1, 1], [], []>} : vector<64x16xbf16>, vector<16x256xbf16>, vector<64x256xf32> -> vector<64x256xf32>
    %35 = arith.addf %32, %34 : vector<64x256xf32>
    %c0_34 = arith.constant 0 : index
    %c0_35 = arith.constant 0 : index
    %c0_36 = arith.constant 0 : index
    %36 = vector.load %arg9[%c0_34, %c0_35, %c0_36] : memref<4x64x256xf32, #tpu.memory_space<vmem>>, vector<1x64x256xf32>
    %37 = vector.shape_cast %36 : vector<1x64x256xf32> to vector<64x256xf32>
    %38 = vector.shape_cast %35 : vector<64x256xf32> to vector<1x64x256xf32>
    tpu.vector_store %arg9[%c0_34, %c0_35, %c0_36], %38 {strides = array<i32>} : memref<4x64x256xf32, #tpu.memory_space<vmem>>, vector<1x64x256xf32>,
    %c1_37 = arith.constant 1 : index
    %c0_38 = arith.constant 0 : index
    %c0_39 = arith.constant 0 : index
    %39 = vector.load %arg9[%c1_37, %c0_38, %c0_39] : memref<4x64x256xf32, #tpu.memory_space<vmem>>, vector<1x64x256xf32>
    %40 = vector.shape_cast %39 : vector<1x64x256xf32> to vector<64x256xf32>
    %41 = vector.extract_strided_slice %28 {offsets = [16, 0], sizes = [16, 256], strides = [1, 1]} : vector<64x256xbf16> to vector<16x256xbf16>
    %cst_40 = arith.constant dense<0.000000e+00> : vector<64x256xf32>
    %42 = tpu.matmul %30, %41, %cst_40 {dimension_numbers = #tpu.dot_dimension_numbers<[1], [0], [0], [1], [0, 0, 1, 1], [], []>} : vector<64x16xbf16>, vector<16x256xbf16>, vector<64x256xf32> -> vector<64x256xf32>
    %43 = arith.addf %40, %42 : vector<64x256xf32>
    %c1_41 = arith.constant 1 : index
    %c0_42 = arith.constant 0 : index
    %c0_43 = arith.constant 0 : index
    %44 = vector.load %arg9[%c1_41, %c0_42, %c0_43] : memref<4x64x256xf32, #tpu.memory_space<vmem>>, vector<1x64x256xf32>
    %45 = vector.shape_cast %44 : vector<1x64x256xf32> to vector<64x256xf32>
    %46 = vector.shape_cast %43 : vector<64x256xf32> to vector<1x64x256xf32>
    tpu.vector_store %arg9[%c1_41, %c0_42, %c0_43], %46 {strides = array<i32>} : memref<4x64x256xf32, #tpu.memory_space<vmem>>, vector<1x64x256xf32>,
    %c2_44 = arith.constant 2 : index
    %c0_45 = arith.constant 0 : index
    %c0_46 = arith.constant 0 : index
    %47 = vector.load %arg9[%c2_44, %c0_45, %c0_46] : memref<4x64x256xf32, #tpu.memory_space<vmem>>, vector<1x64x256xf32>
    %48 = vector.shape_cast %47 : vector<1x64x256xf32> to vector<64x256xf32>
    %49 = vector.extract_strided_slice %28 {offsets = [32, 0], sizes = [16, 256], strides = [1, 1]} : vector<64x256xbf16> to vector<16x256xbf16>
    %cst_47 = arith.constant dense<0.000000e+00> : vector<64x256xf32>
    %50 = tpu.matmul %30, %49, %cst_47 {dimension_numbers = #tpu.dot_dimension_numbers<[1], [0], [0], [1], [0, 0, 1, 1], [], []>} : vector<64x16xbf16>, vector<16x256xbf16>, vector<64x256xf32> -> vector<64x256xf32>
    %51 = arith.addf %48, %50 : vector<64x256xf32>
    %c2_48 = arith.constant 2 : index
    %c0_49 = arith.constant 0 : index
    %c0_50 = arith.constant 0 : index
    %52 = vector.load %arg9[%c2_48, %c0_49, %c0_50] : memref<4x64x256xf32, #tpu.memory_space<vmem>>, vector<1x64x256xf32>
    %53 = vector.shape_cast %52 : vector<1x64x256xf32> to vector<64x256xf32>
    %54 = vector.shape_cast %51 : vector<64x256xf32> to vector<1x64x256xf32>
    tpu.vector_store %arg9[%c2_48, %c0_49, %c0_50], %54 {strides = array<i32>} : memref<4x64x256xf32, #tpu.memory_space<vmem>>, vector<1x64x256xf32>,
    %c3_51 = arith.constant 3 : index
    %c0_52 = arith.constant 0 : index
    %c0_53 = arith.constant 0 : index
    %55 = vector.load %arg9[%c3_51, %c0_52, %c0_53] : memref<4x64x256xf32, #tpu.memory_space<vmem>>, vector<1x64x256xf32>
    %56 = vector.shape_cast %55 : vector<1x64x256xf32> to vector<64x256xf32>
    %57 = vector.extract_strided_slice %28 {offsets = [48, 0], sizes = [16, 256], strides = [1, 1]} : vector<64x256xbf16> to vector<16x256xbf16>
    %cst_54 = arith.constant dense<0.000000e+00> : vector<64x256xf32>
    %58 = tpu.matmul %30, %57, %cst_54 {dimension_numbers = #tpu.dot_dimension_numbers<[1], [0], [0], [1], [0, 0, 1, 1], [], []>} : vector<64x16xbf16>, vector<16x256xbf16>, vector<64x256xf32> -> vector<64x256xf32>
    %59 = arith.addf %56, %58 : vector<64x256xf32>
    %c3_55 = arith.constant 3 : index
    %c0_56 = arith.constant 0 : index
    %c0_57 = arith.constant 0 : index
    %60 = vector.load %arg9[%c3_55, %c0_56, %c0_57] : memref<4x64x256xf32, #tpu.memory_space<vmem>>, vector<1x64x256xf32>
    %61 = vector.shape_cast %60 : vector<1x64x256xf32> to vector<64x256xf32>
    %62 = vector.shape_cast %59 : vector<64x256xf32> to vector<1x64x256xf32>
    tpu.vector_store %arg9[%c3_55, %c0_56, %c0_57], %62 {strides = array<i32>} : memref<4x64x256xf32, #tpu.memory_space<vmem>>, vector<1x64x256xf32>,
    %c1_58 = arith.constant 1 : index
    %c0_59 = arith.constant 0 : index
    %c0_60 = arith.constant 0 : index
    %63 = vector.load %arg6[%c1_58, %c0_59, %c0_60] : memref<9x256x256xbf16, #tpu.memory_space<vmem>>, vector<1x256x256xbf16>
    %64 = vector.shape_cast %63 : vector<1x256x256xbf16> to vector<256x256xbf16>
    %cst_61 = arith.constant dense<0.000000e+00> : vector<64x256xf32>
    %65 = tpu.matmul %22, %64, %cst_61 {dimension_numbers = #tpu.dot_dimension_numbers<[1], [0], [0], [1], [0, 0, 1, 1], [], []>} : vector<64x256xbf16>, vector<256x256xbf16>, vector<64x256xf32> -> vector<64x256xf32>
    %66 = arith.truncf %65 : vector<64x256xf32> to vector<64x256xbf16>
    %c1_62 = arith.constant 1 : index
    %c0_63 = arith.constant 0 : index
    %c0_64 = arith.constant 0 : index
    %67 = vector.load %arg5[%c1_62, %c0_63, %c0_64] : memref<9x64x16xbf16, #tpu.memory_space<vmem>>, vector<1x64x16xbf16>
    %68 = vector.shape_cast %67 : vector<1x64x16xbf16> to vector<64x16xbf16>
    %c0_65 = arith.constant 0 : index
    %c0_66 = arith.constant 0 : index
    %c0_67 = arith.constant 0 : index
    %69 = vector.load %arg9[%c0_65, %c0_66, %c0_67] : memref<4x64x256xf32, #tpu.memory_space<vmem>>, vector<1x64x256xf32>
    %70 = vector.shape_cast %69 : vector<1x64x256xf32> to vector<64x256xf32>
    %71 = vector.extract_strided_slice %66 {offsets = [0, 0], sizes = [16, 256], strides = [1, 1]} : vector<64x256xbf16> to vector<16x256xbf16>
    %cst_68 = arith.constant dense<0.000000e+00> : vector<64x256xf32>
    %72 = tpu.matmul %68, %71, %cst_68 {dimension_numbers = #tpu.dot_dimension_numbers<[1], [0], [0], [1], [0, 0, 1, 1], [], []>} : vector<64x16xbf16>, vector<16x256xbf16>, vector<64x256xf32> -> vector<64x256xf32>
    %73 = arith.addf %70, %72 : vector<64x256xf32>
    %c0_69 = arith.constant 0 : index
    %c0_70 = arith.constant 0 : index
    %c0_71 = arith.constant 0 : index
    %74 = vector.load %arg9[%c0_69, %c0_70, %c0_71] : memref<4x64x256xf32, #tpu.memory_space<vmem>>, vector<1x64x256xf32>
    %75 = vector.shape_cast %74 : vector<1x64x256xf32> to vector<64x256xf32>
    %76 = vector.shape_cast %73 : vector<64x256xf32> to vector<1x64x256xf32>
    tpu.vector_store %arg9[%c0_69, %c0_70, %c0_71], %76 {strides = array<i32>} : memref<4x64x256xf32, #tpu.memory_space<vmem>>, vector<1x64x256xf32>,
    %c1_72 = arith.constant 1 : index
    %c0_73 = arith.constant 0 : index
    %c0_74 = arith.constant 0 : index
    %77 = vector.load %arg9[%c1_72, %c0_73, %c0_74] : memref<4x64x256xf32, #tpu.memory_space<vmem>>, vector<1x64x256xf32>
    %78 = vector.shape_cast %77 : vector<1x64x256xf32> to vector<64x256xf32>
    %79 = vector.extract_strided_slice %66 {offsets = [16, 0], sizes = [16, 256], strides = [1, 1]} : vector<64x256xbf16> to vector<16x256xbf16>
    %cst_75 = arith.constant dense<0.000000e+00> : vector<64x256xf32>
    %80 = tpu.matmul %68, %79, %cst_75 {dimension_numbers = #tpu.dot_dimension_numbers<[1], [0], [0], [1], [0, 0, 1, 1], [], []>} : vector<64x16xbf16>, vector<16x256xbf16>, vector<64x256xf32> -> vector<64x256xf32>
    %81 = arith.addf %78, %80 : vector<64x256xf32>
    %c1_76 = arith.constant 1 : index
    %c0_77 = arith.constant 0 : index
    %c0_78 = arith.constant 0 : index
    %82 = vector.load %arg9[%c1_76, %c0_77, %c0_78] : memref<4x64x256xf32, #tpu.memory_space<vmem>>, vector<1x64x256xf32>
    %83 = vector.shape_cast %82 : vector<1x64x256xf32> to vector<64x256xf32>
    %84 = vector.shape_cast %81 : vector<64x256xf32> to vector<1x64x256xf32>
    tpu.vector_store %arg9[%c1_76, %c0_77, %c0_78], %84 {strides = array<i32>} : memref<4x64x256xf32, #tpu.memory_space<vmem>>, vector<1x64x256xf32>,
    %c2_79 = arith.constant 2 : index
    %c0_80 = arith.constant 0 : index
    %c0_81 = arith.constant 0 : index
    %85 = vector.load %arg9[%c2_79, %c0_80, %c0_81] : memref<4x64x256xf32, #tpu.memory_space<vmem>>, vector<1x64x256xf32>
    %86 = vector.shape_cast %85 : vector<1x64x256xf32> to vector<64x256xf32>
    %87 = vector.extract_strided_slice %66 {offsets = [32, 0], sizes = [16, 256], strides = [1, 1]} : vector<64x256xbf16> to vector<16x256xbf16>
    %cst_82 = arith.constant dense<0.000000e+00> : vector<64x256xf32>
    %88 = tpu.matmul %68, %87, %cst_82 {dimension_numbers = #tpu.dot_dimension_numbers<[1], [0], [0], [1], [0, 0, 1, 1], [], []>} : vector<64x16xbf16>, vector<16x256xbf16>, vector<64x256xf32> -> vector<64x256xf32>
    %89 = arith.addf %86, %88 : vector<64x256xf32>
    %c2_83 = arith.constant 2 : index
    %c0_84 = arith.constant 0 : index
    %c0_85 = arith.constant 0 : index
    %90 = vector.load %arg9[%c2_83, %c0_84, %c0_85] : memref<4x64x256xf32, #tpu.memory_space<vmem>>, vector<1x64x256xf32>
    %91 = vector.shape_cast %90 : vector<1x64x256xf32> to vector<64x256xf32>
    %92 = vector.shape_cast %89 : vector<64x256xf32> to vector<1x64x256xf32>
    tpu.vector_store %arg9[%c2_83, %c0_84, %c0_85], %92 {strides = array<i32>} : memref<4x64x256xf32, #tpu.memory_space<vmem>>, vector<1x64x256xf32>,
    %c3_86 = arith.constant 3 : index
    %c0_87 = arith.constant 0 : index
    %c0_88 = arith.constant 0 : index
    %93 = vector.load %arg9[%c3_86, %c0_87, %c0_88] : memref<4x64x256xf32, #tpu.memory_space<vmem>>, vector<1x64x256xf32>
    %94 = vector.shape_cast %93 : vector<1x64x256xf32> to vector<64x256xf32>
    %95 = vector.extract_strided_slice %66 {offsets = [48, 0], sizes = [16, 256], strides = [1, 1]} : vector<64x256xbf16> to vector<16x256xbf16>
    %cst_89 = arith.constant dense<0.000000e+00> : vector<64x256xf32>
    %96 = tpu.matmul %68, %95, %cst_89 {dimension_numbers = #tpu.dot_dimension_numbers<[1], [0], [0], [1], [0, 0, 1, 1], [], []>} : vector<64x16xbf16>, vector<16x256xbf16>, vector<64x256xf32> -> vector<64x256xf32>
    %97 = arith.addf %94, %96 : vector<64x256xf32>
    %c3_90 = arith.constant 3 : index
    %c0_91 = arith.constant 0 : index
    %c0_92 = arith.constant 0 : index
    %98 = vector.load %arg9[%c3_90, %c0_91, %c0_92] : memref<4x64x256xf32, #tpu.memory_space<vmem>>, vector<1x64x256xf32>
    %99 = vector.shape_cast %98 : vector<1x64x256xf32> to vector<64x256xf32>
    %100 = vector.shape_cast %97 : vector<64x256xf32> to vector<1x64x256xf32>
    tpu.vector_store %arg9[%c3_90, %c0_91, %c0_92], %100 {strides = array<i32>} : memref<4x64x256xf32, #tpu.memory_space<vmem>>, vector<1x64x256xf32>,
    %c2_93 = arith.constant 2 : index
    %c0_94 = arith.constant 0 : index
    %c0_95 = arith.constant 0 : index
    %101 = vector.load %arg6[%c2_93, %c0_94, %c0_95] : memref<9x256x256xbf16, #tpu.memory_space<vmem>>, vector<1x256x256xbf16>
    %102 = vector.shape_cast %101 : vector<1x256x256xbf16> to vector<256x256xbf16>
    %cst_96 = arith.constant dense<0.000000e+00> : vector<64x256xf32>
    %103 = tpu.matmul %22, %102, %cst_96 {dimension_numbers = #tpu.dot_dimension_numbers<[1], [0], [0], [1], [0, 0, 1, 1], [], []>} : vector<64x256xbf16>, vector<256x256xbf16>, vector<64x256xf32> -> vector<64x256xf32>
    %104 = arith.truncf %103 : vector<64x256xf32> to vector<64x256xbf16>
    %c2_97 = arith.constant 2 : index
    %c0_98 = arith.constant 0 : index
    %c0_99 = arith.constant 0 : index
    %105 = vector.load %arg5[%c2_97, %c0_98, %c0_99] : memref<9x64x16xbf16, #tpu.memory_space<vmem>>, vector<1x64x16xbf16>
    %106 = vector.shape_cast %105 : vector<1x64x16xbf16> to vector<64x16xbf16>
    %c0_100 = arith.constant 0 : index
    %c0_101 = arith.constant 0 : index
    %c0_102 = arith.constant 0 : index
    %107 = vector.load %arg9[%c0_100, %c0_101, %c0_102] : memref<4x64x256xf32, #tpu.memory_space<vmem>>, vector<1x64x256xf32>
    %108 = vector.shape_cast %107 : vector<1x64x256xf32> to vector<64x256xf32>
    %109 = vector.extract_strided_slice %104 {offsets = [0, 0], sizes = [16, 256], strides = [1, 1]} : vector<64x256xbf16> to vector<16x256xbf16>
    %cst_103 = arith.constant dense<0.000000e+00> : vector<64x256xf32>
    %110 = tpu.matmul %106, %109, %cst_103 {dimension_numbers = #tpu.dot_dimension_numbers<[1], [0], [0], [1], [0, 0, 1, 1], [], []>} : vector<64x16xbf16>, vector<16x256xbf16>, vector<64x256xf32> -> vector<64x256xf32>
    %111 = arith.addf %108, %110 : vector<64x256xf32>
    %c0_104 = arith.constant 0 : index
    %c0_105 = arith.constant 0 : index
    %c0_106 = arith.constant 0 : index
    %112 = vector.load %arg9[%c0_104, %c0_105, %c0_106] : memref<4x64x256xf32, #tpu.memory_space<vmem>>, vector<1x64x256xf32>
    %113 = vector.shape_cast %112 : vector<1x64x256xf32> to vector<64x256xf32>
    %114 = vector.shape_cast %111 : vector<64x256xf32> to vector<1x64x256xf32>
    tpu.vector_store %arg9[%c0_104, %c0_105, %c0_106], %114 {strides = array<i32>} : memref<4x64x256xf32, #tpu.memory_space<vmem>>, vector<1x64x256xf32>,
    %c1_107 = arith.constant 1 : index
    %c0_108 = arith.constant 0 : index
    %c0_109 = arith.constant 0 : index
    %115 = vector.load %arg9[%c1_107, %c0_108, %c0_109] : memref<4x64x256xf32, #tpu.memory_space<vmem>>, vector<1x64x256xf32>
    %116 = vector.shape_cast %115 : vector<1x64x256xf32> to vector<64x256xf32>
    %117 = vector.extract_strided_slice %104 {offsets = [16, 0], sizes = [16, 256], strides = [1, 1]} : vector<64x256xbf16> to vector<16x256xbf16>
    %cst_110 = arith.constant dense<0.000000e+00> : vector<64x256xf32>
    %118 = tpu.matmul %106, %117, %cst_110 {dimension_numbers = #tpu.dot_dimension_numbers<[1], [0], [0], [1], [0, 0, 1, 1], [], []>} : vector<64x16xbf16>, vector<16x256xbf16>, vector<64x256xf32> -> vector<64x256xf32>
    %119 = arith.addf %116, %118 : vector<64x256xf32>
    %c1_111 = arith.constant 1 : index
    %c0_112 = arith.constant 0 : index
    %c0_113 = arith.constant 0 : index
    %120 = vector.load %arg9[%c1_111, %c0_112, %c0_113] : memref<4x64x256xf32, #tpu.memory_space<vmem>>, vector<1x64x256xf32>
    %121 = vector.shape_cast %120 : vector<1x64x256xf32> to vector<64x256xf32>
    %122 = vector.shape_cast %119 : vector<64x256xf32> to vector<1x64x256xf32>
    tpu.vector_store %arg9[%c1_111, %c0_112, %c0_113], %122 {strides = array<i32>} : memref<4x64x256xf32, #tpu.memory_space<vmem>>, vector<1x64x256xf32>,
    %c2_114 = arith.constant 2 : index
    %c0_115 = arith.constant 0 : index
    %c0_116 = arith.constant 0 : index
    %123 = vector.load %arg9[%c2_114, %c0_115, %c0_116] : memref<4x64x256xf32, #tpu.memory_space<vmem>>, vector<1x64x256xf32>
    %124 = vector.shape_cast %123 : vector<1x64x256xf32> to vector<64x256xf32>
    %125 = vector.extract_strided_slice %104 {offsets = [32, 0], sizes = [16, 256], strides = [1, 1]} : vector<64x256xbf16> to vector<16x256xbf16>
    %cst_117 = arith.constant dense<0.000000e+00> : vector<64x256xf32>
    %126 = tpu.matmul %106, %125, %cst_117 {dimension_numbers = #tpu.dot_dimension_numbers<[1], [0], [0], [1], [0, 0, 1, 1], [], []>} : vector<64x16xbf16>, vector<16x256xbf16>, vector<64x256xf32> -> vector<64x256xf32>
    %127 = arith.addf %124, %126 : vector<64x256xf32>
    %c2_118 = arith.constant 2 : index
    %c0_119 = arith.constant 0 : index
    %c0_120 = arith.constant 0 : index
    %128 = vector.load %arg9[%c2_118, %c0_119, %c0_120] : memref<4x64x256xf32, #tpu.memory_space<vmem>>, vector<1x64x256xf32>
    %129 = vector.shape_cast %128 : vector<1x64x256xf32> to vector<64x256xf32>
    %130 = vector.shape_cast %127 : vector<64x256xf32> to vector<1x64x256xf32>
    tpu.vector_store %arg9[%c2_118, %c0_119, %c0_120], %130 {strides = array<i32>} : memref<4x64x256xf32, #tpu.memory_space<vmem>>, vector<1x64x256xf32>,
    %c3_121 = arith.constant 3 : index
    %c0_122 = arith.constant 0 : index
    %c0_123 = arith.constant 0 : index
    %131 = vector.load %arg9[%c3_121, %c0_122, %c0_123] : memref<4x64x256xf32, #tpu.memory_space<vmem>>, vector<1x64x256xf32>
    %132 = vector.shape_cast %131 : vector<1x64x256xf32> to vector<64x256xf32>
    %133 = vector.extract_strided_slice %104 {offsets = [48, 0], sizes = [16, 256], strides = [1, 1]} : vector<64x256xbf16> to vector<16x256xbf16>
    %cst_124 = arith.constant dense<0.000000e+00> : vector<64x256xf32>
    %134 = tpu.matmul %106, %133, %cst_124 {dimension_numbers = #tpu.dot_dimension_numbers<[1], [0], [0], [1], [0, 0, 1, 1], [], []>} : vector<64x16xbf16>, vector<16x256xbf16>, vector<64x256xf32> -> vector<64x256xf32>
    %135 = arith.addf %132, %134 : vector<64x256xf32>
    %c3_125 = arith.constant 3 : index
    %c0_126 = arith.constant 0 : index
    %c0_127 = arith.constant 0 : index
    %136 = vector.load %arg9[%c3_125, %c0_126, %c0_127] : memref<4x64x256xf32, #tpu.memory_space<vmem>>, vector<1x64x256xf32>
    %137 = vector.shape_cast %136 : vector<1x64x256xf32> to vector<64x256xf32>
    %138 = vector.shape_cast %135 : vector<64x256xf32> to vector<1x64x256xf32>
    tpu.vector_store %arg9[%c3_125, %c0_126, %c0_127], %138 {strides = array<i32>} : memref<4x64x256xf32, #tpu.memory_space<vmem>>, vector<1x64x256xf32>,
    %c3_128 = arith.constant 3 : index
    %c0_129 = arith.constant 0 : index
    %c0_130 = arith.constant 0 : index
    %139 = vector.load %arg6[%c3_128, %c0_129, %c0_130] : memref<9x256x256xbf16, #tpu.memory_space<vmem>>, vector<1x256x256xbf16>
    %140 = vector.shape_cast %139 : vector<1x256x256xbf16> to vector<256x256xbf16>
    %cst_131 = arith.constant dense<0.000000e+00> : vector<64x256xf32>
    %141 = tpu.matmul %22, %140, %cst_131 {dimension_numbers = #tpu.dot_dimension_numbers<[1], [0], [0], [1], [0, 0, 1, 1], [], []>} : vector<64x256xbf16>, vector<256x256xbf16>, vector<64x256xf32> -> vector<64x256xf32>
    %142 = arith.truncf %141 : vector<64x256xf32> to vector<64x256xbf16>
    %c3_132 = arith.constant 3 : index
    %c0_133 = arith.constant 0 : index
    %c0_134 = arith.constant 0 : index
    %143 = vector.load %arg5[%c3_132, %c0_133, %c0_134] : memref<9x64x16xbf16, #tpu.memory_space<vmem>>, vector<1x64x16xbf16>
    %144 = vector.shape_cast %143 : vector<1x64x16xbf16> to vector<64x16xbf16>
    %c0_135 = arith.constant 0 : index
    %c0_136 = arith.constant 0 : index
    %c0_137 = arith.constant 0 : index
    %145 = vector.load %arg9[%c0_135, %c0_136, %c0_137] : memref<4x64x256xf32, #tpu.memory_space<vmem>>, vector<1x64x256xf32>
    %146 = vector.shape_cast %145 : vector<1x64x256xf32> to vector<64x256xf32>
    %147 = vector.extract_strided_slice %142 {offsets = [0, 0], sizes = [16, 256], strides = [1, 1]} : vector<64x256xbf16> to vector<16x256xbf16>
    %cst_138 = arith.constant dense<0.000000e+00> : vector<64x256xf32>
    %148 = tpu.matmul %144, %147, %cst_138 {dimension_numbers = #tpu.dot_dimension_numbers<[1], [0], [0], [1], [0, 0, 1, 1], [], []>} : vector<64x16xbf16>, vector<16x256xbf16>, vector<64x256xf32> -> vector<64x256xf32>
    %149 = arith.addf %146, %148 : vector<64x256xf32>
    %c0_139 = arith.constant 0 : index
    %c0_140 = arith.constant 0 : index
    %c0_141 = arith.constant 0 : index
    %150 = vector.load %arg9[%c0_139, %c0_140, %c0_141] : memref<4x64x256xf32, #tpu.memory_space<vmem>>, vector<1x64x256xf32>
    %151 = vector.shape_cast %150 : vector<1x64x256xf32> to vector<64x256xf32>
    %152 = vector.shape_cast %149 : vector<64x256xf32> to vector<1x64x256xf32>
    tpu.vector_store %arg9[%c0_139, %c0_140, %c0_141], %152 {strides = array<i32>} : memref<4x64x256xf32, #tpu.memory_space<vmem>>, vector<1x64x256xf32>,
    %c1_142 = arith.constant 1 : index
    %c0_143 = arith.constant 0 : index
    %c0_144 = arith.constant 0 : index
    %153 = vector.load %arg9[%c1_142, %c0_143, %c0_144] : memref<4x64x256xf32, #tpu.memory_space<vmem>>, vector<1x64x256xf32>
    %154 = vector.shape_cast %153 : vector<1x64x256xf32> to vector<64x256xf32>
    %155 = vector.extract_strided_slice %142 {offsets = [16, 0], sizes = [16, 256], strides = [1, 1]} : vector<64x256xbf16> to vector<16x256xbf16>
    %cst_145 = arith.constant dense<0.000000e+00> : vector<64x256xf32>
    %156 = tpu.matmul %144, %155, %cst_145 {dimension_numbers = #tpu.dot_dimension_numbers<[1], [0], [0], [1], [0, 0, 1, 1], [], []>} : vector<64x16xbf16>, vector<16x256xbf16>, vector<64x256xf32> -> vector<64x256xf32>
    %157 = arith.addf %154, %156 : vector<64x256xf32>
    %c1_146 = arith.constant 1 : index
    %c0_147 = arith.constant 0 : index
    %c0_148 = arith.constant 0 : index
    %158 = vector.load %arg9[%c1_146, %c0_147, %c0_148] : memref<4x64x256xf32, #tpu.memory_space<vmem>>, vector<1x64x256xf32>
    %159 = vector.shape_cast %158 : vector<1x64x256xf32> to vector<64x256xf32>
    %160 = vector.shape_cast %157 : vector<64x256xf32> to vector<1x64x256xf32>
    tpu.vector_store %arg9[%c1_146, %c0_147, %c0_148], %160 {strides = array<i32>} : memref<4x64x256xf32, #tpu.memory_space<vmem>>, vector<1x64x256xf32>,
    %c2_149 = arith.constant 2 : index
    %c0_150 = arith.constant 0 : index
    %c0_151 = arith.constant 0 : index
    %161 = vector.load %arg9[%c2_149, %c0_150, %c0_151] : memref<4x64x256xf32, #tpu.memory_space<vmem>>, vector<1x64x256xf32>
    %162 = vector.shape_cast %161 : vector<1x64x256xf32> to vector<64x256xf32>
    %163 = vector.extract_strided_slice %142 {offsets = [32, 0], sizes = [16, 256], strides = [1, 1]} : vector<64x256xbf16> to vector<16x256xbf16>
    %cst_152 = arith.constant dense<0.000000e+00> : vector<64x256xf32>
    %164 = tpu.matmul %144, %163, %cst_152 {dimension_numbers = #tpu.dot_dimension_numbers<[1], [0], [0], [1], [0, 0, 1, 1], [], []>} : vector<64x16xbf16>, vector<16x256xbf16>, vector<64x256xf32> -> vector<64x256xf32>
    %165 = arith.addf %162, %164 : vector<64x256xf32>
    %c2_153 = arith.constant 2 : index
    %c0_154 = arith.constant 0 : index
    %c0_155 = arith.constant 0 : index
    %166 = vector.load %arg9[%c2_153, %c0_154, %c0_155] : memref<4x64x256xf32, #tpu.memory_space<vmem>>, vector<1x64x256xf32>
    %167 = vector.shape_cast %166 : vector<1x64x256xf32> to vector<64x256xf32>
    %168 = vector.shape_cast %165 : vector<64x256xf32> to vector<1x64x256xf32>
    tpu.vector_store %arg9[%c2_153, %c0_154, %c0_155], %168 {strides = array<i32>} : memref<4x64x256xf32, #tpu.memory_space<vmem>>, vector<1x64x256xf32>,
    %c3_156 = arith.constant 3 : index
    %c0_157 = arith.constant 0 : index
    %c0_158 = arith.constant 0 : index
    %169 = vector.load %arg9[%c3_156, %c0_157, %c0_158] : memref<4x64x256xf32, #tpu.memory_space<vmem>>, vector<1x64x256xf32>
    %170 = vector.shape_cast %169 : vector<1x64x256xf32> to vector<64x256xf32>
    %171 = vector.extract_strided_slice %142 {offsets = [48, 0], sizes = [16, 256], strides = [1, 1]} : vector<64x256xbf16> to vector<16x256xbf16>
    %cst_159 = arith.constant dense<0.000000e+00> : vector<64x256xf32>
    %172 = tpu.matmul %144, %171, %cst_159 {dimension_numbers = #tpu.dot_dimension_numbers<[1], [0], [0], [1], [0, 0, 1, 1], [], []>} : vector<64x16xbf16>, vector<16x256xbf16>, vector<64x256xf32> -> vector<64x256xf32>
    %173 = arith.addf %170, %172 : vector<64x256xf32>
    %c3_160 = arith.constant 3 : index
    %c0_161 = arith.constant 0 : index
    %c0_162 = arith.constant 0 : index
    %174 = vector.load %arg9[%c3_160, %c0_161, %c0_162] : memref<4x64x256xf32, #tpu.memory_space<vmem>>, vector<1x64x256xf32>
    %175 = vector.shape_cast %174 : vector<1x64x256xf32> to vector<64x256xf32>
    %176 = vector.shape_cast %173 : vector<64x256xf32> to vector<1x64x256xf32>
    tpu.vector_store %arg9[%c3_160, %c0_161, %c0_162], %176 {strides = array<i32>} : memref<4x64x256xf32, #tpu.memory_space<vmem>>, vector<1x64x256xf32>,
    %c4 = arith.constant 4 : index
    %c0_163 = arith.constant 0 : index
    %c0_164 = arith.constant 0 : index
    %177 = vector.load %arg6[%c4, %c0_163, %c0_164] : memref<9x256x256xbf16, #tpu.memory_space<vmem>>, vector<1x256x256xbf16>
    %178 = vector.shape_cast %177 : vector<1x256x256xbf16> to vector<256x256xbf16>
    %cst_165 = arith.constant dense<0.000000e+00> : vector<64x256xf32>
    %179 = tpu.matmul %22, %178, %cst_165 {dimension_numbers = #tpu.dot_dimension_numbers<[1], [0], [0], [1], [0, 0, 1, 1], [], []>} : vector<64x256xbf16>, vector<256x256xbf16>, vector<64x256xf32> -> vector<64x256xf32>
    %180 = arith.truncf %179 : vector<64x256xf32> to vector<64x256xbf16>
    %c4_166 = arith.constant 4 : index
    %c0_167 = arith.constant 0 : index
    %c0_168 = arith.constant 0 : index
    %181 = vector.load %arg5[%c4_166, %c0_167, %c0_168] : memref<9x64x16xbf16, #tpu.memory_space<vmem>>, vector<1x64x16xbf16>
    %182 = vector.shape_cast %181 : vector<1x64x16xbf16> to vector<64x16xbf16>
    %c0_169 = arith.constant 0 : index
    %c0_170 = arith.constant 0 : index
    %c0_171 = arith.constant 0 : index
    %183 = vector.load %arg9[%c0_169, %c0_170, %c0_171] : memref<4x64x256xf32, #tpu.memory_space<vmem>>, vector<1x64x256xf32>
    %184 = vector.shape_cast %183 : vector<1x64x256xf32> to vector<64x256xf32>
    %185 = vector.extract_strided_slice %180 {offsets = [0, 0], sizes = [16, 256], strides = [1, 1]} : vector<64x256xbf16> to vector<16x256xbf16>
    %cst_172 = arith.constant dense<0.000000e+00> : vector<64x256xf32>
    %186 = tpu.matmul %182, %185, %cst_172 {dimension_numbers = #tpu.dot_dimension_numbers<[1], [0], [0], [1], [0, 0, 1, 1], [], []>} : vector<64x16xbf16>, vector<16x256xbf16>, vector<64x256xf32> -> vector<64x256xf32>
    %187 = arith.addf %184, %186 : vector<64x256xf32>
    %c0_173 = arith.constant 0 : index
    %c0_174 = arith.constant 0 : index
    %c0_175 = arith.constant 0 : index
    %188 = vector.load %arg9[%c0_173, %c0_174, %c0_175] : memref<4x64x256xf32, #tpu.memory_space<vmem>>, vector<1x64x256xf32>
    %189 = vector.shape_cast %188 : vector<1x64x256xf32> to vector<64x256xf32>
    %190 = vector.shape_cast %187 : vector<64x256xf32> to vector<1x64x256xf32>
    tpu.vector_store %arg9[%c0_173, %c0_174, %c0_175], %190 {strides = array<i32>} : memref<4x64x256xf32, #tpu.memory_space<vmem>>, vector<1x64x256xf32>,
    %c1_176 = arith.constant 1 : index
    %c0_177 = arith.constant 0 : index
    %c0_178 = arith.constant 0 : index
    %191 = vector.load %arg9[%c1_176, %c0_177, %c0_178] : memref<4x64x256xf32, #tpu.memory_space<vmem>>, vector<1x64x256xf32>
    %192 = vector.shape_cast %191 : vector<1x64x256xf32> to vector<64x256xf32>
    %193 = vector.extract_strided_slice %180 {offsets = [16, 0], sizes = [16, 256], strides = [1, 1]} : vector<64x256xbf16> to vector<16x256xbf16>
    %cst_179 = arith.constant dense<0.000000e+00> : vector<64x256xf32>
    %194 = tpu.matmul %182, %193, %cst_179 {dimension_numbers = #tpu.dot_dimension_numbers<[1], [0], [0], [1], [0, 0, 1, 1], [], []>} : vector<64x16xbf16>, vector<16x256xbf16>, vector<64x256xf32> -> vector<64x256xf32>
    %195 = arith.addf %192, %194 : vector<64x256xf32>
    %c1_180 = arith.constant 1 : index
    %c0_181 = arith.constant 0 : index
    %c0_182 = arith.constant 0 : index
    %196 = vector.load %arg9[%c1_180, %c0_181, %c0_182] : memref<4x64x256xf32, #tpu.memory_space<vmem>>, vector<1x64x256xf32>
    %197 = vector.shape_cast %196 : vector<1x64x256xf32> to vector<64x256xf32>
    %198 = vector.shape_cast %195 : vector<64x256xf32> to vector<1x64x256xf32>
    tpu.vector_store %arg9[%c1_180, %c0_181, %c0_182], %198 {strides = array<i32>} : memref<4x64x256xf32, #tpu.memory_space<vmem>>, vector<1x64x256xf32>,
    %c2_183 = arith.constant 2 : index
    %c0_184 = arith.constant 0 : index
    %c0_185 = arith.constant 0 : index
    %199 = vector.load %arg9[%c2_183, %c0_184, %c0_185] : memref<4x64x256xf32, #tpu.memory_space<vmem>>, vector<1x64x256xf32>
    %200 = vector.shape_cast %199 : vector<1x64x256xf32> to vector<64x256xf32>
    %201 = vector.extract_strided_slice %180 {offsets = [32, 0], sizes = [16, 256], strides = [1, 1]} : vector<64x256xbf16> to vector<16x256xbf16>
    %cst_186 = arith.constant dense<0.000000e+00> : vector<64x256xf32>
    %202 = tpu.matmul %182, %201, %cst_186 {dimension_numbers = #tpu.dot_dimension_numbers<[1], [0], [0], [1], [0, 0, 1, 1], [], []>} : vector<64x16xbf16>, vector<16x256xbf16>, vector<64x256xf32> -> vector<64x256xf32>
    %203 = arith.addf %200, %202 : vector<64x256xf32>
    %c2_187 = arith.constant 2 : index
    %c0_188 = arith.constant 0 : index
    %c0_189 = arith.constant 0 : index
    %204 = vector.load %arg9[%c2_187, %c0_188, %c0_189] : memref<4x64x256xf32, #tpu.memory_space<vmem>>, vector<1x64x256xf32>
    %205 = vector.shape_cast %204 : vector<1x64x256xf32> to vector<64x256xf32>
    %206 = vector.shape_cast %203 : vector<64x256xf32> to vector<1x64x256xf32>
    tpu.vector_store %arg9[%c2_187, %c0_188, %c0_189], %206 {strides = array<i32>} : memref<4x64x256xf32, #tpu.memory_space<vmem>>, vector<1x64x256xf32>,
    %c3_190 = arith.constant 3 : index
    %c0_191 = arith.constant 0 : index
    %c0_192 = arith.constant 0 : index
    %207 = vector.load %arg9[%c3_190, %c0_191, %c0_192] : memref<4x64x256xf32, #tpu.memory_space<vmem>>, vector<1x64x256xf32>
    %208 = vector.shape_cast %207 : vector<1x64x256xf32> to vector<64x256xf32>
    %209 = vector.extract_strided_slice %180 {offsets = [48, 0], sizes = [16, 256], strides = [1, 1]} : vector<64x256xbf16> to vector<16x256xbf16>
    %cst_193 = arith.constant dense<0.000000e+00> : vector<64x256xf32>
    %210 = tpu.matmul %182, %209, %cst_193 {dimension_numbers = #tpu.dot_dimension_numbers<[1], [0], [0], [1], [0, 0, 1, 1], [], []>} : vector<64x16xbf16>, vector<16x256xbf16>, vector<64x256xf32> -> vector<64x256xf32>
    %211 = arith.addf %208, %210 : vector<64x256xf32>
    %c3_194 = arith.constant 3 : index
    %c0_195 = arith.constant 0 : index
    %c0_196 = arith.constant 0 : index
    %212 = vector.load %arg9[%c3_194, %c0_195, %c0_196] : memref<4x64x256xf32, #tpu.memory_space<vmem>>, vector<1x64x256xf32>
    %213 = vector.shape_cast %212 : vector<1x64x256xf32> to vector<64x256xf32>
    %214 = vector.shape_cast %211 : vector<64x256xf32> to vector<1x64x256xf32>
    tpu.vector_store %arg9[%c3_194, %c0_195, %c0_196], %214 {strides = array<i32>} : memref<4x64x256xf32, #tpu.memory_space<vmem>>, vector<1x64x256xf32>,
    %c5 = arith.constant 5 : index
    %c0_197 = arith.constant 0 : index
    %c0_198 = arith.constant 0 : index
    %215 = vector.load %arg6[%c5, %c0_197, %c0_198] : memref<9x256x256xbf16, #tpu.memory_space<vmem>>, vector<1x256x256xbf16>
    %216 = vector.shape_cast %215 : vector<1x256x256xbf16> to vector<256x256xbf16>
    %cst_199 = arith.constant dense<0.000000e+00> : vector<64x256xf32>
    %217 = tpu.matmul %22, %216, %cst_199 {dimension_numbers = #tpu.dot_dimension_numbers<[1], [0], [0], [1], [0, 0, 1, 1], [], []>} : vector<64x256xbf16>, vector<256x256xbf16>, vector<64x256xf32> -> vector<64x256xf32>
    %218 = arith.truncf %217 : vector<64x256xf32> to vector<64x256xbf16>
    %c5_200 = arith.constant 5 : index
    %c0_201 = arith.constant 0 : index
    %c0_202 = arith.constant 0 : index
    %219 = vector.load %arg5[%c5_200, %c0_201, %c0_202] : memref<9x64x16xbf16, #tpu.memory_space<vmem>>, vector<1x64x16xbf16>
    %220 = vector.shape_cast %219 : vector<1x64x16xbf16> to vector<64x16xbf16>
    %c0_203 = arith.constant 0 : index
    %c0_204 = arith.constant 0 : index
    %c0_205 = arith.constant 0 : index
    %221 = vector.load %arg9[%c0_203, %c0_204, %c0_205] : memref<4x64x256xf32, #tpu.memory_space<vmem>>, vector<1x64x256xf32>
    %222 = vector.shape_cast %221 : vector<1x64x256xf32> to vector<64x256xf32>
    %223 = vector.extract_strided_slice %218 {offsets = [0, 0], sizes = [16, 256], strides = [1, 1]} : vector<64x256xbf16> to vector<16x256xbf16>
    %cst_206 = arith.constant dense<0.000000e+00> : vector<64x256xf32>
    %224 = tpu.matmul %220, %223, %cst_206 {dimension_numbers = #tpu.dot_dimension_numbers<[1], [0], [0], [1], [0, 0, 1, 1], [], []>} : vector<64x16xbf16>, vector<16x256xbf16>, vector<64x256xf32> -> vector<64x256xf32>
    %225 = arith.addf %222, %224 : vector<64x256xf32>
    %c0_207 = arith.constant 0 : index
    %c0_208 = arith.constant 0 : index
    %c0_209 = arith.constant 0 : index
    %226 = vector.load %arg9[%c0_207, %c0_208, %c0_209] : memref<4x64x256xf32, #tpu.memory_space<vmem>>, vector<1x64x256xf32>
    %227 = vector.shape_cast %226 : vector<1x64x256xf32> to vector<64x256xf32>
    %228 = vector.shape_cast %225 : vector<64x256xf32> to vector<1x64x256xf32>
    tpu.vector_store %arg9[%c0_207, %c0_208, %c0_209], %228 {strides = array<i32>} : memref<4x64x256xf32, #tpu.memory_space<vmem>>, vector<1x64x256xf32>,
    %c1_210 = arith.constant 1 : index
    %c0_211 = arith.constant 0 : index
    %c0_212 = arith.constant 0 : index
    %229 = vector.load %arg9[%c1_210, %c0_211, %c0_212] : memref<4x64x256xf32, #tpu.memory_space<vmem>>, vector<1x64x256xf32>
    %230 = vector.shape_cast %229 : vector<1x64x256xf32> to vector<64x256xf32>
    %231 = vector.extract_strided_slice %218 {offsets = [16, 0], sizes = [16, 256], strides = [1, 1]} : vector<64x256xbf16> to vector<16x256xbf16>
    %cst_213 = arith.constant dense<0.000000e+00> : vector<64x256xf32>
    %232 = tpu.matmul %220, %231, %cst_213 {dimension_numbers = #tpu.dot_dimension_numbers<[1], [0], [0], [1], [0, 0, 1, 1], [], []>} : vector<64x16xbf16>, vector<16x256xbf16>, vector<64x256xf32> -> vector<64x256xf32>
    %233 = arith.addf %230, %232 : vector<64x256xf32>
    %c1_214 = arith.constant 1 : index
    %c0_215 = arith.constant 0 : index
    %c0_216 = arith.constant 0 : index
    %234 = vector.load %arg9[%c1_214, %c0_215, %c0_216] : memref<4x64x256xf32, #tpu.memory_space<vmem>>, vector<1x64x256xf32>
    %235 = vector.shape_cast %234 : vector<1x64x256xf32> to vector<64x256xf32>
    %236 = vector.shape_cast %233 : vector<64x256xf32> to vector<1x64x256xf32>
    tpu.vector_store %arg9[%c1_214, %c0_215, %c0_216], %236 {strides = array<i32>} : memref<4x64x256xf32, #tpu.memory_space<vmem>>, vector<1x64x256xf32>,
    %c2_217 = arith.constant 2 : index
    %c0_218 = arith.constant 0 : index
    %c0_219 = arith.constant 0 : index
    %237 = vector.load %arg9[%c2_217, %c0_218, %c0_219] : memref<4x64x256xf32, #tpu.memory_space<vmem>>, vector<1x64x256xf32>
    %238 = vector.shape_cast %237 : vector<1x64x256xf32> to vector<64x256xf32>
    %239 = vector.extract_strided_slice %218 {offsets = [32, 0], sizes = [16, 256], strides = [1, 1]} : vector<64x256xbf16> to vector<16x256xbf16>
    %cst_220 = arith.constant dense<0.000000e+00> : vector<64x256xf32>
    %240 = tpu.matmul %220, %239, %cst_220 {dimension_numbers = #tpu.dot_dimension_numbers<[1], [0], [0], [1], [0, 0, 1, 1], [], []>} : vector<64x16xbf16>, vector<16x256xbf16>, vector<64x256xf32> -> vector<64x256xf32>
    %241 = arith.addf %238, %240 : vector<64x256xf32>
    %c2_221 = arith.constant 2 : index
    %c0_222 = arith.constant 0 : index
    %c0_223 = arith.constant 0 : index
    %242 = vector.load %arg9[%c2_221, %c0_222, %c0_223] : memref<4x64x256xf32, #tpu.memory_space<vmem>>, vector<1x64x256xf32>
    %243 = vector.shape_cast %242 : vector<1x64x256xf32> to vector<64x256xf32>
    %244 = vector.shape_cast %241 : vector<64x256xf32> to vector<1x64x256xf32>
    tpu.vector_store %arg9[%c2_221, %c0_222, %c0_223], %244 {strides = array<i32>} : memref<4x64x256xf32, #tpu.memory_space<vmem>>, vector<1x64x256xf32>,
    %c3_224 = arith.constant 3 : index
    %c0_225 = arith.constant 0 : index
    %c0_226 = arith.constant 0 : index
    %245 = vector.load %arg9[%c3_224, %c0_225, %c0_226] : memref<4x64x256xf32, #tpu.memory_space<vmem>>, vector<1x64x256xf32>
    %246 = vector.shape_cast %245 : vector<1x64x256xf32> to vector<64x256xf32>
    %247 = vector.extract_strided_slice %218 {offsets = [48, 0], sizes = [16, 256], strides = [1, 1]} : vector<64x256xbf16> to vector<16x256xbf16>
    %cst_227 = arith.constant dense<0.000000e+00> : vector<64x256xf32>
    %248 = tpu.matmul %220, %247, %cst_227 {dimension_numbers = #tpu.dot_dimension_numbers<[1], [0], [0], [1], [0, 0, 1, 1], [], []>} : vector<64x16xbf16>, vector<16x256xbf16>, vector<64x256xf32> -> vector<64x256xf32>
    %249 = arith.addf %246, %248 : vector<64x256xf32>
    %c3_228 = arith.constant 3 : index
    %c0_229 = arith.constant 0 : index
    %c0_230 = arith.constant 0 : index
    %250 = vector.load %arg9[%c3_228, %c0_229, %c0_230] : memref<4x64x256xf32, #tpu.memory_space<vmem>>, vector<1x64x256xf32>
    %251 = vector.shape_cast %250 : vector<1x64x256xf32> to vector<64x256xf32>
    %252 = vector.shape_cast %249 : vector<64x256xf32> to vector<1x64x256xf32>
    tpu.vector_store %arg9[%c3_228, %c0_229, %c0_230], %252 {strides = array<i32>} : memref<4x64x256xf32, #tpu.memory_space<vmem>>, vector<1x64x256xf32>,
    %c6 = arith.constant 6 : index
    %c0_231 = arith.constant 0 : index
    %c0_232 = arith.constant 0 : index
    %253 = vector.load %arg6[%c6, %c0_231, %c0_232] : memref<9x256x256xbf16, #tpu.memory_space<vmem>>, vector<1x256x256xbf16>
    %254 = vector.shape_cast %253 : vector<1x256x256xbf16> to vector<256x256xbf16>
    %cst_233 = arith.constant dense<0.000000e+00> : vector<64x256xf32>
    %255 = tpu.matmul %22, %254, %cst_233 {dimension_numbers = #tpu.dot_dimension_numbers<[1], [0], [0], [1], [0, 0, 1, 1], [], []>} : vector<64x256xbf16>, vector<256x256xbf16>, vector<64x256xf32> -> vector<64x256xf32>
    %256 = arith.truncf %255 : vector<64x256xf32> to vector<64x256xbf16>
    %c6_234 = arith.constant 6 : index
    %c0_235 = arith.constant 0 : index
    %c0_236 = arith.constant 0 : index
    %257 = vector.load %arg5[%c6_234, %c0_235, %c0_236] : memref<9x64x16xbf16, #tpu.memory_space<vmem>>, vector<1x64x16xbf16>
    %258 = vector.shape_cast %257 : vector<1x64x16xbf16> to vector<64x16xbf16>
    %c0_237 = arith.constant 0 : index
    %c0_238 = arith.constant 0 : index
    %c0_239 = arith.constant 0 : index
    %259 = vector.load %arg9[%c0_237, %c0_238, %c0_239] : memref<4x64x256xf32, #tpu.memory_space<vmem>>, vector<1x64x256xf32>
    %260 = vector.shape_cast %259 : vector<1x64x256xf32> to vector<64x256xf32>
    %261 = vector.extract_strided_slice %256 {offsets = [0, 0], sizes = [16, 256], strides = [1, 1]} : vector<64x256xbf16> to vector<16x256xbf16>
    %cst_240 = arith.constant dense<0.000000e+00> : vector<64x256xf32>
    %262 = tpu.matmul %258, %261, %cst_240 {dimension_numbers = #tpu.dot_dimension_numbers<[1], [0], [0], [1], [0, 0, 1, 1], [], []>} : vector<64x16xbf16>, vector<16x256xbf16>, vector<64x256xf32> -> vector<64x256xf32>
    %263 = arith.addf %260, %262 : vector<64x256xf32>
    %c0_241 = arith.constant 0 : index
    %c0_242 = arith.constant 0 : index
    %c0_243 = arith.constant 0 : index
    %264 = vector.load %arg9[%c0_241, %c0_242, %c0_243] : memref<4x64x256xf32, #tpu.memory_space<vmem>>, vector<1x64x256xf32>
    %265 = vector.shape_cast %264 : vector<1x64x256xf32> to vector<64x256xf32>
    %266 = vector.shape_cast %263 : vector<64x256xf32> to vector<1x64x256xf32>
    tpu.vector_store %arg9[%c0_241, %c0_242, %c0_243], %266 {strides = array<i32>} : memref<4x64x256xf32, #tpu.memory_space<vmem>>, vector<1x64x256xf32>,
    %c1_244 = arith.constant 1 : index
    %c0_245 = arith.constant 0 : index
    %c0_246 = arith.constant 0 : index
    %267 = vector.load %arg9[%c1_244, %c0_245, %c0_246] : memref<4x64x256xf32, #tpu.memory_space<vmem>>, vector<1x64x256xf32>
    %268 = vector.shape_cast %267 : vector<1x64x256xf32> to vector<64x256xf32>
    %269 = vector.extract_strided_slice %256 {offsets = [16, 0], sizes = [16, 256], strides = [1, 1]} : vector<64x256xbf16> to vector<16x256xbf16>
    %cst_247 = arith.constant dense<0.000000e+00> : vector<64x256xf32>
    %270 = tpu.matmul %258, %269, %cst_247 {dimension_numbers = #tpu.dot_dimension_numbers<[1], [0], [0], [1], [0, 0, 1, 1], [], []>} : vector<64x16xbf16>, vector<16x256xbf16>, vector<64x256xf32> -> vector<64x256xf32>
    %271 = arith.addf %268, %270 : vector<64x256xf32>
    %c1_248 = arith.constant 1 : index
    %c0_249 = arith.constant 0 : index
    %c0_250 = arith.constant 0 : index
    %272 = vector.load %arg9[%c1_248, %c0_249, %c0_250] : memref<4x64x256xf32, #tpu.memory_space<vmem>>, vector<1x64x256xf32>
    %273 = vector.shape_cast %272 : vector<1x64x256xf32> to vector<64x256xf32>
    %274 = vector.shape_cast %271 : vector<64x256xf32> to vector<1x64x256xf32>
    tpu.vector_store %arg9[%c1_248, %c0_249, %c0_250], %274 {strides = array<i32>} : memref<4x64x256xf32, #tpu.memory_space<vmem>>, vector<1x64x256xf32>,
    %c2_251 = arith.constant 2 : index
    %c0_252 = arith.constant 0 : index
    %c0_253 = arith.constant 0 : index
    %275 = vector.load %arg9[%c2_251, %c0_252, %c0_253] : memref<4x64x256xf32, #tpu.memory_space<vmem>>, vector<1x64x256xf32>
    %276 = vector.shape_cast %275 : vector<1x64x256xf32> to vector<64x256xf32>
    %277 = vector.extract_strided_slice %256 {offsets = [32, 0], sizes = [16, 256], strides = [1, 1]} : vector<64x256xbf16> to vector<16x256xbf16>
    %cst_254 = arith.constant dense<0.000000e+00> : vector<64x256xf32>
    %278 = tpu.matmul %258, %277, %cst_254 {dimension_numbers = #tpu.dot_dimension_numbers<[1], [0], [0], [1], [0, 0, 1, 1], [], []>} : vector<64x16xbf16>, vector<16x256xbf16>, vector<64x256xf32> -> vector<64x256xf32>
    %279 = arith.addf %276, %278 : vector<64x256xf32>
    %c2_255 = arith.constant 2 : index
    %c0_256 = arith.constant 0 : index
    %c0_257 = arith.constant 0 : index
    %280 = vector.load %arg9[%c2_255, %c0_256, %c0_257] : memref<4x64x256xf32, #tpu.memory_space<vmem>>, vector<1x64x256xf32>
    %281 = vector.shape_cast %280 : vector<1x64x256xf32> to vector<64x256xf32>
    %282 = vector.shape_cast %279 : vector<64x256xf32> to vector<1x64x256xf32>
    tpu.vector_store %arg9[%c2_255, %c0_256, %c0_257], %282 {strides = array<i32>} : memref<4x64x256xf32, #tpu.memory_space<vmem>>, vector<1x64x256xf32>,
    %c3_258 = arith.constant 3 : index
    %c0_259 = arith.constant 0 : index
    %c0_260 = arith.constant 0 : index
    %283 = vector.load %arg9[%c3_258, %c0_259, %c0_260] : memref<4x64x256xf32, #tpu.memory_space<vmem>>, vector<1x64x256xf32>
    %284 = vector.shape_cast %283 : vector<1x64x256xf32> to vector<64x256xf32>
    %285 = vector.extract_strided_slice %256 {offsets = [48, 0], sizes = [16, 256], strides = [1, 1]} : vector<64x256xbf16> to vector<16x256xbf16>
    %cst_261 = arith.constant dense<0.000000e+00> : vector<64x256xf32>
    %286 = tpu.matmul %258, %285, %cst_261 {dimension_numbers = #tpu.dot_dimension_numbers<[1], [0], [0], [1], [0, 0, 1, 1], [], []>} : vector<64x16xbf16>, vector<16x256xbf16>, vector<64x256xf32> -> vector<64x256xf32>
    %287 = arith.addf %284, %286 : vector<64x256xf32>
    %c3_262 = arith.constant 3 : index
    %c0_263 = arith.constant 0 : index
    %c0_264 = arith.constant 0 : index
    %288 = vector.load %arg9[%c3_262, %c0_263, %c0_264] : memref<4x64x256xf32, #tpu.memory_space<vmem>>, vector<1x64x256xf32>
    %289 = vector.shape_cast %288 : vector<1x64x256xf32> to vector<64x256xf32>
    %290 = vector.shape_cast %287 : vector<64x256xf32> to vector<1x64x256xf32>
    tpu.vector_store %arg9[%c3_262, %c0_263, %c0_264], %290 {strides = array<i32>} : memref<4x64x256xf32, #tpu.memory_space<vmem>>, vector<1x64x256xf32>,
    %c7 = arith.constant 7 : index
    %c0_265 = arith.constant 0 : index
    %c0_266 = arith.constant 0 : index
    %291 = vector.load %arg6[%c7, %c0_265, %c0_266] : memref<9x256x256xbf16, #tpu.memory_space<vmem>>, vector<1x256x256xbf16>
    %292 = vector.shape_cast %291 : vector<1x256x256xbf16> to vector<256x256xbf16>
    %cst_267 = arith.constant dense<0.000000e+00> : vector<64x256xf32>
    %293 = tpu.matmul %22, %292, %cst_267 {dimension_numbers = #tpu.dot_dimension_numbers<[1], [0], [0], [1], [0, 0, 1, 1], [], []>} : vector<64x256xbf16>, vector<256x256xbf16>, vector<64x256xf32> -> vector<64x256xf32>
    %294 = arith.truncf %293 : vector<64x256xf32> to vector<64x256xbf16>
    %c7_268 = arith.constant 7 : index
    %c0_269 = arith.constant 0 : index
    %c0_270 = arith.constant 0 : index
    %295 = vector.load %arg5[%c7_268, %c0_269, %c0_270] : memref<9x64x16xbf16, #tpu.memory_space<vmem>>, vector<1x64x16xbf16>
    %296 = vector.shape_cast %295 : vector<1x64x16xbf16> to vector<64x16xbf16>
    %c0_271 = arith.constant 0 : index
    %c0_272 = arith.constant 0 : index
    %c0_273 = arith.constant 0 : index
    %297 = vector.load %arg9[%c0_271, %c0_272, %c0_273] : memref<4x64x256xf32, #tpu.memory_space<vmem>>, vector<1x64x256xf32>
    %298 = vector.shape_cast %297 : vector<1x64x256xf32> to vector<64x256xf32>
    %299 = vector.extract_strided_slice %294 {offsets = [0, 0], sizes = [16, 256], strides = [1, 1]} : vector<64x256xbf16> to vector<16x256xbf16>
    %cst_274 = arith.constant dense<0.000000e+00> : vector<64x256xf32>
    %300 = tpu.matmul %296, %299, %cst_274 {dimension_numbers = #tpu.dot_dimension_numbers<[1], [0], [0], [1], [0, 0, 1, 1], [], []>} : vector<64x16xbf16>, vector<16x256xbf16>, vector<64x256xf32> -> vector<64x256xf32>
    %301 = arith.addf %298, %300 : vector<64x256xf32>
    %c0_275 = arith.constant 0 : index
    %c0_276 = arith.constant 0 : index
    %c0_277 = arith.constant 0 : index
    %302 = vector.load %arg9[%c0_275, %c0_276, %c0_277] : memref<4x64x256xf32, #tpu.memory_space<vmem>>, vector<1x64x256xf32>
    %303 = vector.shape_cast %302 : vector<1x64x256xf32> to vector<64x256xf32>
    %304 = vector.shape_cast %301 : vector<64x256xf32> to vector<1x64x256xf32>
    tpu.vector_store %arg9[%c0_275, %c0_276, %c0_277], %304 {strides = array<i32>} : memref<4x64x256xf32, #tpu.memory_space<vmem>>, vector<1x64x256xf32>,
    %c1_278 = arith.constant 1 : index
    %c0_279 = arith.constant 0 : index
    %c0_280 = arith.constant 0 : index
    %305 = vector.load %arg9[%c1_278, %c0_279, %c0_280] : memref<4x64x256xf32, #tpu.memory_space<vmem>>, vector<1x64x256xf32>
    %306 = vector.shape_cast %305 : vector<1x64x256xf32> to vector<64x256xf32>
    %307 = vector.extract_strided_slice %294 {offsets = [16, 0], sizes = [16, 256], strides = [1, 1]} : vector<64x256xbf16> to vector<16x256xbf16>
    %cst_281 = arith.constant dense<0.000000e+00> : vector<64x256xf32>
    %308 = tpu.matmul %296, %307, %cst_281 {dimension_numbers = #tpu.dot_dimension_numbers<[1], [0], [0], [1], [0, 0, 1, 1], [], []>} : vector<64x16xbf16>, vector<16x256xbf16>, vector<64x256xf32> -> vector<64x256xf32>
    %309 = arith.addf %306, %308 : vector<64x256xf32>
    %c1_282 = arith.constant 1 : index
    %c0_283 = arith.constant 0 : index
    %c0_284 = arith.constant 0 : index
    %310 = vector.load %arg9[%c1_282, %c0_283, %c0_284] : memref<4x64x256xf32, #tpu.memory_space<vmem>>, vector<1x64x256xf32>
    %311 = vector.shape_cast %310 : vector<1x64x256xf32> to vector<64x256xf32>
    %312 = vector.shape_cast %309 : vector<64x256xf32> to vector<1x64x256xf32>
    tpu.vector_store %arg9[%c1_282, %c0_283, %c0_284], %312 {strides = array<i32>} : memref<4x64x256xf32, #tpu.memory_space<vmem>>, vector<1x64x256xf32>,
    %c2_285 = arith.constant 2 : index
    %c0_286 = arith.constant 0 : index
    %c0_287 = arith.constant 0 : index
    %313 = vector.load %arg9[%c2_285, %c0_286, %c0_287] : memref<4x64x256xf32, #tpu.memory_space<vmem>>, vector<1x64x256xf32>
    %314 = vector.shape_cast %313 : vector<1x64x256xf32> to vector<64x256xf32>
    %315 = vector.extract_strided_slice %294 {offsets = [32, 0], sizes = [16, 256], strides = [1, 1]} : vector<64x256xbf16> to vector<16x256xbf16>
    %cst_288 = arith.constant dense<0.000000e+00> : vector<64x256xf32>
    %316 = tpu.matmul %296, %315, %cst_288 {dimension_numbers = #tpu.dot_dimension_numbers<[1], [0], [0], [1], [0, 0, 1, 1], [], []>} : vector<64x16xbf16>, vector<16x256xbf16>, vector<64x256xf32> -> vector<64x256xf32>
    %317 = arith.addf %314, %316 : vector<64x256xf32>
    %c2_289 = arith.constant 2 : index
    %c0_290 = arith.constant 0 : index
    %c0_291 = arith.constant 0 : index
    %318 = vector.load %arg9[%c2_289, %c0_290, %c0_291] : memref<4x64x256xf32, #tpu.memory_space<vmem>>, vector<1x64x256xf32>
    %319 = vector.shape_cast %318 : vector<1x64x256xf32> to vector<64x256xf32>
    %320 = vector.shape_cast %317 : vector<64x256xf32> to vector<1x64x256xf32>
    tpu.vector_store %arg9[%c2_289, %c0_290, %c0_291], %320 {strides = array<i32>} : memref<4x64x256xf32, #tpu.memory_space<vmem>>, vector<1x64x256xf32>,
    %c3_292 = arith.constant 3 : index
    %c0_293 = arith.constant 0 : index
    %c0_294 = arith.constant 0 : index
    %321 = vector.load %arg9[%c3_292, %c0_293, %c0_294] : memref<4x64x256xf32, #tpu.memory_space<vmem>>, vector<1x64x256xf32>
    %322 = vector.shape_cast %321 : vector<1x64x256xf32> to vector<64x256xf32>
    %323 = vector.extract_strided_slice %294 {offsets = [48, 0], sizes = [16, 256], strides = [1, 1]} : vector<64x256xbf16> to vector<16x256xbf16>
    %cst_295 = arith.constant dense<0.000000e+00> : vector<64x256xf32>
    %324 = tpu.matmul %296, %323, %cst_295 {dimension_numbers = #tpu.dot_dimension_numbers<[1], [0], [0], [1], [0, 0, 1, 1], [], []>} : vector<64x16xbf16>, vector<16x256xbf16>, vector<64x256xf32> -> vector<64x256xf32>
    %325 = arith.addf %322, %324 : vector<64x256xf32>
    %c3_296 = arith.constant 3 : index
    %c0_297 = arith.constant 0 : index
    %c0_298 = arith.constant 0 : index
    %326 = vector.load %arg9[%c3_296, %c0_297, %c0_298] : memref<4x64x256xf32, #tpu.memory_space<vmem>>, vector<1x64x256xf32>
    %327 = vector.shape_cast %326 : vector<1x64x256xf32> to vector<64x256xf32>
    %328 = vector.shape_cast %325 : vector<64x256xf32> to vector<1x64x256xf32>
    tpu.vector_store %arg9[%c3_296, %c0_297, %c0_298], %328 {strides = array<i32>} : memref<4x64x256xf32, #tpu.memory_space<vmem>>, vector<1x64x256xf32>,
    %c8 = arith.constant 8 : index
    %c0_299 = arith.constant 0 : index
    %c0_300 = arith.constant 0 : index
    %329 = vector.load %arg6[%c8, %c0_299, %c0_300] : memref<9x256x256xbf16, #tpu.memory_space<vmem>>, vector<1x256x256xbf16>
    %330 = vector.shape_cast %329 : vector<1x256x256xbf16> to vector<256x256xbf16>
    %cst_301 = arith.constant dense<0.000000e+00> : vector<64x256xf32>
    %331 = tpu.matmul %22, %330, %cst_301 {dimension_numbers = #tpu.dot_dimension_numbers<[1], [0], [0], [1], [0, 0, 1, 1], [], []>} : vector<64x256xbf16>, vector<256x256xbf16>, vector<64x256xf32> -> vector<64x256xf32>
    %332 = arith.truncf %331 : vector<64x256xf32> to vector<64x256xbf16>
    %c8_302 = arith.constant 8 : index
    %c0_303 = arith.constant 0 : index
    %c0_304 = arith.constant 0 : index
    %333 = vector.load %arg5[%c8_302, %c0_303, %c0_304] : memref<9x64x16xbf16, #tpu.memory_space<vmem>>, vector<1x64x16xbf16>
    %334 = vector.shape_cast %333 : vector<1x64x16xbf16> to vector<64x16xbf16>
    %c0_305 = arith.constant 0 : index
    %c0_306 = arith.constant 0 : index
    %c0_307 = arith.constant 0 : index
    %335 = vector.load %arg9[%c0_305, %c0_306, %c0_307] : memref<4x64x256xf32, #tpu.memory_space<vmem>>, vector<1x64x256xf32>
    %336 = vector.shape_cast %335 : vector<1x64x256xf32> to vector<64x256xf32>
    %337 = vector.extract_strided_slice %332 {offsets = [0, 0], sizes = [16, 256], strides = [1, 1]} : vector<64x256xbf16> to vector<16x256xbf16>
    %cst_308 = arith.constant dense<0.000000e+00> : vector<64x256xf32>
    %338 = tpu.matmul %334, %337, %cst_308 {dimension_numbers = #tpu.dot_dimension_numbers<[1], [0], [0], [1], [0, 0, 1, 1], [], []>} : vector<64x16xbf16>, vector<16x256xbf16>, vector<64x256xf32> -> vector<64x256xf32>
    %339 = arith.addf %336, %338 : vector<64x256xf32>
    %c0_309 = arith.constant 0 : index
    %c0_310 = arith.constant 0 : index
    %c0_311 = arith.constant 0 : index
    %340 = vector.load %arg9[%c0_309, %c0_310, %c0_311] : memref<4x64x256xf32, #tpu.memory_space<vmem>>, vector<1x64x256xf32>
    %341 = vector.shape_cast %340 : vector<1x64x256xf32> to vector<64x256xf32>
    %342 = vector.shape_cast %339 : vector<64x256xf32> to vector<1x64x256xf32>
    tpu.vector_store %arg9[%c0_309, %c0_310, %c0_311], %342 {strides = array<i32>} : memref<4x64x256xf32, #tpu.memory_space<vmem>>, vector<1x64x256xf32>,
    %c1_312 = arith.constant 1 : index
    %c0_313 = arith.constant 0 : index
    %c0_314 = arith.constant 0 : index
    %343 = vector.load %arg9[%c1_312, %c0_313, %c0_314] : memref<4x64x256xf32, #tpu.memory_space<vmem>>, vector<1x64x256xf32>
    %344 = vector.shape_cast %343 : vector<1x64x256xf32> to vector<64x256xf32>
    %345 = vector.extract_strided_slice %332 {offsets = [16, 0], sizes = [16, 256], strides = [1, 1]} : vector<64x256xbf16> to vector<16x256xbf16>
    %cst_315 = arith.constant dense<0.000000e+00> : vector<64x256xf32>
    %346 = tpu.matmul %334, %345, %cst_315 {dimension_numbers = #tpu.dot_dimension_numbers<[1], [0], [0], [1], [0, 0, 1, 1], [], []>} : vector<64x16xbf16>, vector<16x256xbf16>, vector<64x256xf32> -> vector<64x256xf32>
    %347 = arith.addf %344, %346 : vector<64x256xf32>
    %c1_316 = arith.constant 1 : index
    %c0_317 = arith.constant 0 : index
    %c0_318 = arith.constant 0 : index
    %348 = vector.load %arg9[%c1_316, %c0_317, %c0_318] : memref<4x64x256xf32, #tpu.memory_space<vmem>>, vector<1x64x256xf32>
    %349 = vector.shape_cast %348 : vector<1x64x256xf32> to vector<64x256xf32>
    %350 = vector.shape_cast %347 : vector<64x256xf32> to vector<1x64x256xf32>
    tpu.vector_store %arg9[%c1_316, %c0_317, %c0_318], %350 {strides = array<i32>} : memref<4x64x256xf32, #tpu.memory_space<vmem>>, vector<1x64x256xf32>,
    %c2_319 = arith.constant 2 : index
    %c0_320 = arith.constant 0 : index
    %c0_321 = arith.constant 0 : index
    %351 = vector.load %arg9[%c2_319, %c0_320, %c0_321] : memref<4x64x256xf32, #tpu.memory_space<vmem>>, vector<1x64x256xf32>
    %352 = vector.shape_cast %351 : vector<1x64x256xf32> to vector<64x256xf32>
    %353 = vector.extract_strided_slice %332 {offsets = [32, 0], sizes = [16, 256], strides = [1, 1]} : vector<64x256xbf16> to vector<16x256xbf16>
    %cst_322 = arith.constant dense<0.000000e+00> : vector<64x256xf32>
    %354 = tpu.matmul %334, %353, %cst_322 {dimension_numbers = #tpu.dot_dimension_numbers<[1], [0], [0], [1], [0, 0, 1, 1], [], []>} : vector<64x16xbf16>, vector<16x256xbf16>, vector<64x256xf32> -> vector<64x256xf32>
    %355 = arith.addf %352, %354 : vector<64x256xf32>
    %c2_323 = arith.constant 2 : index
    %c0_324 = arith.constant 0 : index
    %c0_325 = arith.constant 0 : index
    %356 = vector.load %arg9[%c2_323, %c0_324, %c0_325] : memref<4x64x256xf32, #tpu.memory_space<vmem>>, vector<1x64x256xf32>
    %357 = vector.shape_cast %356 : vector<1x64x256xf32> to vector<64x256xf32>
    %358 = vector.shape_cast %355 : vector<64x256xf32> to vector<1x64x256xf32>
    tpu.vector_store %arg9[%c2_323, %c0_324, %c0_325], %358 {strides = array<i32>} : memref<4x64x256xf32, #tpu.memory_space<vmem>>, vector<1x64x256xf32>,
    %c3_326 = arith.constant 3 : index
    %c0_327 = arith.constant 0 : index
    %c0_328 = arith.constant 0 : index
    %359 = vector.load %arg9[%c3_326, %c0_327, %c0_328] : memref<4x64x256xf32, #tpu.memory_space<vmem>>, vector<1x64x256xf32>
    %360 = vector.shape_cast %359 : vector<1x64x256xf32> to vector<64x256xf32>
    %361 = vector.extract_strided_slice %332 {offsets = [48, 0], sizes = [16, 256], strides = [1, 1]} : vector<64x256xbf16> to vector<16x256xbf16>
    %cst_329 = arith.constant dense<0.000000e+00> : vector<64x256xf32>
    %362 = tpu.matmul %334, %361, %cst_329 {dimension_numbers = #tpu.dot_dimension_numbers<[1], [0], [0], [1], [0, 0, 1, 1], [], []>} : vector<64x16xbf16>, vector<16x256xbf16>, vector<64x256xf32> -> vector<64x256xf32>
    %363 = arith.addf %360, %362 : vector<64x256xf32>
    %c3_330 = arith.constant 3 : index
    %c0_331 = arith.constant 0 : index
    %c0_332 = arith.constant 0 : index
    %364 = vector.load %arg9[%c3_330, %c0_331, %c0_332] : memref<4x64x256xf32, #tpu.memory_space<vmem>>, vector<1x64x256xf32>
    %365 = vector.shape_cast %364 : vector<1x64x256xf32> to vector<64x256xf32>
    %366 = vector.shape_cast %363 : vector<64x256xf32> to vector<1x64x256xf32>
    tpu.vector_store %arg9[%c3_330, %c0_331, %c0_332], %366 {strides = array<i32>} : memref<4x64x256xf32, #tpu.memory_space<vmem>>, vector<1x64x256xf32>,
    %c0_333 = arith.constant 0 : index
    %c0_334 = arith.constant 0 : index
    %367 = vector.load %arg7[%c0_333, %c0_334] : memref<1x256xf32, #tpu.memory_space<vmem>>, vector<1x256xf32>
    %c0_335 = arith.constant 0 : index
    %c0_336 = arith.constant 0 : index
    %c0_337 = arith.constant 0 : index
    %368 = vector.load %arg9[%c0_335, %c0_336, %c0_337] : memref<4x64x256xf32, #tpu.memory_space<vmem>>, vector<1x64x256xf32>
    %369 = vector.shape_cast %368 : vector<1x64x256xf32> to vector<64x256xf32>
    %370 = vector.broadcast %367 : vector<1x256xf32> to vector<64x256xf32>
    %371 = arith.addf %369, %370 : vector<64x256xf32>
    %cst_338 = arith.constant 0.000000e+00 : f32
    %372 = vector.broadcast %cst_338 : f32 to vector<64x256xf32>
    %373 = arith.maximumf %371, %372 : vector<64x256xf32>
    %374 = arith.truncf %373 : vector<64x256xf32> to vector<64x256xbf16>
    %c0_339 = arith.constant 0 : index
    %c0_340 = arith.constant 0 : index
    %c0_341 = arith.constant 0 : index
    %375 = vector.load %arg8[%c0_339, %c0_340, %c0_341] : memref<4x64x256xbf16, #tpu.memory_space<vmem>>, vector<1x64x256xbf16>
    %376 = vector.shape_cast %375 : vector<1x64x256xbf16> to vector<64x256xbf16>
    %377 = vector.shape_cast %374 : vector<64x256xbf16> to vector<1x64x256xbf16>
    tpu.vector_store %arg8[%c0_339, %c0_340, %c0_341], %377 {strides = array<i32>} : memref<4x64x256xbf16, #tpu.memory_space<vmem>>, vector<1x64x256xbf16>,
    %c1_342 = arith.constant 1 : index
    %c0_343 = arith.constant 0 : index
    %c0_344 = arith.constant 0 : index
    %378 = vector.load %arg9[%c1_342, %c0_343, %c0_344] : memref<4x64x256xf32, #tpu.memory_space<vmem>>, vector<1x64x256xf32>
    %379 = vector.shape_cast %378 : vector<1x64x256xf32> to vector<64x256xf32>
    %380 = vector.broadcast %367 : vector<1x256xf32> to vector<64x256xf32>
    %381 = arith.addf %379, %380 : vector<64x256xf32>
    %cst_345 = arith.constant 0.000000e+00 : f32
    %382 = vector.broadcast %cst_345 : f32 to vector<64x256xf32>
    %383 = arith.maximumf %381, %382 : vector<64x256xf32>
    %384 = arith.truncf %383 : vector<64x256xf32> to vector<64x256xbf16>
    %c1_346 = arith.constant 1 : index
    %c0_347 = arith.constant 0 : index
    %c0_348 = arith.constant 0 : index
    %385 = vector.load %arg8[%c1_346, %c0_347, %c0_348] : memref<4x64x256xbf16, #tpu.memory_space<vmem>>, vector<1x64x256xbf16>
    %386 = vector.shape_cast %385 : vector<1x64x256xbf16> to vector<64x256xbf16>
    %387 = vector.shape_cast %384 : vector<64x256xbf16> to vector<1x64x256xbf16>
    tpu.vector_store %arg8[%c1_346, %c0_347, %c0_348], %387 {strides = array<i32>} : memref<4x64x256xbf16, #tpu.memory_space<vmem>>, vector<1x64x256xbf16>,
    %c2_349 = arith.constant 2 : index
    %c0_350 = arith.constant 0 : index
    %c0_351 = arith.constant 0 : index
    %388 = vector.load %arg9[%c2_349, %c0_350, %c0_351] : memref<4x64x256xf32, #tpu.memory_space<vmem>>, vector<1x64x256xf32>
    %389 = vector.shape_cast %388 : vector<1x64x256xf32> to vector<64x256xf32>
    %390 = vector.broadcast %367 : vector<1x256xf32> to vector<64x256xf32>
    %391 = arith.addf %389, %390 : vector<64x256xf32>
    %cst_352 = arith.constant 0.000000e+00 : f32
    %392 = vector.broadcast %cst_352 : f32 to vector<64x256xf32>
    %393 = arith.maximumf %391, %392 : vector<64x256xf32>
    %394 = arith.truncf %393 : vector<64x256xf32> to vector<64x256xbf16>
    %c2_353 = arith.constant 2 : index
    %c0_354 = arith.constant 0 : index
    %c0_355 = arith.constant 0 : index
    %395 = vector.load %arg8[%c2_353, %c0_354, %c0_355] : memref<4x64x256xbf16, #tpu.memory_space<vmem>>, vector<1x64x256xbf16>
    %396 = vector.shape_cast %395 : vector<1x64x256xbf16> to vector<64x256xbf16>
    %397 = vector.shape_cast %394 : vector<64x256xbf16> to vector<1x64x256xbf16>
    tpu.vector_store %arg8[%c2_353, %c0_354, %c0_355], %397 {strides = array<i32>} : memref<4x64x256xbf16, #tpu.memory_space<vmem>>, vector<1x64x256xbf16>,
    %c3_356 = arith.constant 3 : index
    %c0_357 = arith.constant 0 : index
    %c0_358 = arith.constant 0 : index
    %398 = vector.load %arg9[%c3_356, %c0_357, %c0_358] : memref<4x64x256xf32, #tpu.memory_space<vmem>>, vector<1x64x256xf32>
    %399 = vector.shape_cast %398 : vector<1x64x256xf32> to vector<64x256xf32>
    %400 = vector.broadcast %367 : vector<1x256xf32> to vector<64x256xf32>
    %401 = arith.addf %399, %400 : vector<64x256xf32>
    %cst_359 = arith.constant 0.000000e+00 : f32
    %402 = vector.broadcast %cst_359 : f32 to vector<64x256xf32>
    %403 = arith.maximumf %401, %402 : vector<64x256xf32>
    %404 = arith.truncf %403 : vector<64x256xf32> to vector<64x256xbf16>
    %c3_360 = arith.constant 3 : index
    %c0_361 = arith.constant 0 : index
    %c0_362 = arith.constant 0 : index
    %405 = vector.load %arg8[%c3_360, %c0_361, %c0_362] : memref<4x64x256xbf16, #tpu.memory_space<vmem>>, vector<1x64x256xbf16>
    %406 = vector.shape_cast %405 : vector<1x64x256xbf16> to vector<64x256xbf16>
    %407 = vector.shape_cast %404 : vector<64x256xbf16> to vector<1x64x256xbf16>
    tpu.vector_store %arg8[%c3_360, %c0_361, %c0_362], %407 {strides = array<i32>} : memref<4x64x256xbf16, #tpu.memory_space<vmem>>, vector<1x64x256xbf16>,
    return
  }
  func.func @transform_0(%arg0: i32) -> (i32, i32, i32) {
    %c0_i32 = arith.constant 0 : i32
    %c0_i32_0 = arith.constant 0 : i32
    %c0_i32_1 = arith.constant 0 : i32
    return %arg0, %c0_i32, %c0_i32_0 : i32, i32, i32
  }
  func.func @transform_1(%arg0: i32) -> (i32, i32) {
    %c0_i32 = arith.constant 0 : i32
    %c0_i32_0 = arith.constant 0 : i32
    %c0_i32_1 = arith.constant 0 : i32
    return %c0_i32, %c0_i32_0 : i32, i32
  }
  func.func @transform_2(%arg0: i32) -> (i32, i32) {
    %c0_i32 = arith.constant 0 : i32
    %c0_i32_0 = arith.constant 0 : i32
    %c0_i32_1 = arith.constant 0 : i32
    return %c0_i32, %c0_i32_0 : i32, i32
  }
  func.func @transform_3(%arg0: i32) -> (i32, i32) {
    %c0_i32 = arith.constant 0 : i32
    %c0_i32_0 = arith.constant 0 : i32
    %c0_i32_1 = arith.constant 0 : i32
    return %c0_i32, %c0_i32_0 : i32, i32
  }
  func.func @transform_4(%arg0: i32) -> (i32, i32, i32) {
    %c0_i32 = arith.constant 0 : i32
    %c0_i32_0 = arith.constant 0 : i32
    %c0_i32_1 = arith.constant 0 : i32
    %c0_i32_2 = arith.constant 0 : i32
    return %c0_i32, %c0_i32_0, %c0_i32_1 : i32, i32, i32
  }
  func.func @transform_5(%arg0: i32) -> (i32, i32, i32) {
    %c0_i32 = arith.constant 0 : i32
    %c0_i32_0 = arith.constant 0 : i32
    %c0_i32_1 = arith.constant 0 : i32
    %c0_i32_2 = arith.constant 0 : i32
    return %c0_i32, %c0_i32_0, %c0_i32_1 : i32, i32, i32
  }
  func.func @transform_6(%arg0: i32) -> (i32, i32) {
    %c0_i32 = arith.constant 0 : i32
    %c0_i32_0 = arith.constant 0 : i32
    %c0_i32_1 = arith.constant 0 : i32
    return %c0_i32, %c0_i32_0 : i32, i32
  }
  func.func @transform_7(%arg0: i32) -> (i32, i32, i32) {
    %c0_i32 = arith.constant 0 : i32
    %c0_i32_0 = arith.constant 0 : i32
    %c0_i32_1 = arith.constant 0 : i32
    return %arg0, %c0_i32, %c0_i32_0 : i32, i32, i32
  }
}

</mosaic_0001>

<llo_original>
// kernel: scale_block_forward.1
$region0: #{scale_block_forward.1}
  #allocation0 [shape = 'u32[]', space=smem, size = 0x4, offset = 0x4, fixed_abs, tag = 'smem constant byte address 0x4 - core index']
  #allocation1 [shape = 'u32[144,128]{1,0:T(1,128)}', space=vmem, size = 0x12000, scoped, tag = 'internal scratch']
  #allocation2 [shape = 'f32[4,64,256]{2,1,0:T(8,128)}', space=vmem, size = 0x40000, scoped, tag = 'scratch operand']
  %s0 = inlined_call_operand.vmem [shape: bf16[8,64,512], index: 0, kind: input, shape index: {}]
  %s1 = inlined_call_operand.vmem [shape: bf16[16,64], index: 1, kind: input, shape index: {}]
  %s2 = inlined_call_operand.vmem [shape: bf16[512,256], index: 2, kind: input, shape index: {}]
  %s3 = inlined_call_operand.vmem [shape: f32[1,256], index: 3, kind: input, shape index: {}]
  %s4 = inlined_call_operand.vmem [shape: bf16[9,64,16], index: 4, kind: input, shape index: {}]
  %s5 = inlined_call_operand.vmem [shape: bf16[9,256,256], index: 5, kind: input, shape index: {}]
  %s6 = inlined_call_operand.vmem [shape: f32[1,256], index: 6, kind: input, shape index: {}]
  %s7 = inlined_call_operand.vmem [shape: bf16[8,64,256], index: 7, kind: output, shape index: {}]
  %s8 = sld [smem:[#allocation0]]
  $region61: #{scale_block_forward.1} parent=0
    _
  %s10 = ssub.s32 1, %s8
  %s11 = scalar_select 0, %s10, %s8
  loop: start=0, step=1, limit=4
  $region2: #{scale_block_forward.1} parent=0 // loop_pre_header
    _
  $region3: #{scale_block_forward.1} parent=0 // loop_header
    %s13 = sphi 0, %s17
    %p14 = scmp.ge.s32.totalorder %s13, 4
    %s23 = sphi 0, %s25
    %s26 = sphi 0, %s23
    %s27 = sphi 0, %s26
    %s43 = sphi 0, %s27
    %s47 = sphi 0, %s47
    %s49 = sphi 0, %s47
    %s50 = sphi 0, %s49
    %s64 = sphi 0, %s50
    %s68 = sphi 0, %s68
    %s70 = sphi 0, %s68
    %s71 = sphi 0, %s70
    %s85 = sphi 0, %s71
    %s89 = sphi 0, %s89
    %s91 = sphi 0, %s89
    %s92 = sphi 0, %s91
    %s106 = sphi 0, %s92
    %s110 = sphi 0, %s110
    %s112 = sphi 0, %s110
    %s113 = sphi 0, %s112
    %s127 = sphi 0, %s113
    %s131 = sphi 0, %s131
    %s133 = sphi 0, %s131
    %s134 = sphi 0, %s133
    %s148 = sphi 0, %s134
    %s152 = sphi 0, %s152
    %s154 = sphi 0, %s152
    %s155 = sphi 0, %s154
    %s169 = sphi 0, %s155
    %s175 = sphi 0, %s177
    %s178 = sphi 0, %s175
    %s179 = sphi 0, %s178
    %s195 = sphi 0, %s179
  $region4: #{scale_block_forward.1} parent=0 // loop_header_branch
    %16 = sbr.rel (%p14) target = $region8
  $region5: #{scale_block_forward.1} parent=0 // loop_body
    %s18 = ssub.s32 %s13, 1
    %s19 = ssub.s32 %s13, 2
    %s20 = sadd.s32 %s13, 1
    %s21 = ssub.s32 %s13, %s20
    %p22 = scmp.eq.s32.totalorder %s21, 0
    %s24 = sadd.s32 %s23, 1
    %s25 = scalar_select %p22, %s23, %s24
    %p28 = pneg %p22
    %p29 = scmp.eq.s32.totalorder %s13, 1
    %p30 = por %p28, %p29
    %p31 = scmp.ne.s32.totalorder %s23, %s26
    %p32 = scmp.eq.s32.totalorder %s13, 0
    %p33 = por %p31, %p32
    %p34 = scmp.ne.s32.totalorder %s23, %s26
    %p35 = scmp.eq.s32.totalorder %s18, 1
    %p36 = por %p34, %p35
    %p37 = scmp.ne.s32.totalorder %s26, %s27
    %p38 = scmp.eq.s32.totalorder %s18, 0
    %p39 = por %p37, %p38
    %p40 = scmp.ne.s32.totalorder %s26, %s27
    %p41 = scmp.eq.s32.totalorder %s19, 1
    %p42 = por %p40, %p41
    %p44 = scmp.ne.s32.totalorder %s27, %s43
    %p45 = scmp.eq.s32.totalorder %s19, 0
    %p46 = por %p44, %p45
    %s48 = sadd.s32 %s47, 1
    %p51 = scmp.eq.s32.totalorder %s13, 1
    %p52 = scmp.ne.s32.totalorder %s47, %s49
    %p53 = scmp.eq.s32.totalorder %s13, 0
    %p54 = por %p52, %p53
    %p55 = scmp.ne.s32.totalorder %s47, %s49
    %p56 = scmp.eq.s32.totalorder %s18, 1
    %p57 = por %p55, %p56
    %p58 = scmp.ne.s32.totalorder %s49, %s50
    %p59 = scmp.eq.s32.totalorder %s18, 0
    %p60 = por %p58, %p59
    %p61 = scmp.ne.s32.totalorder %s49, %s50
    %p62 = scmp.eq.s32.totalorder %s19, 1
    %p63 = por %p61, %p62
    %p65 = scmp.ne.s32.totalorder %s50, %s64
    %p66 = scmp.eq.s32.totalorder %s19, 0
    %p67 = por %p65, %p66
    %s69 = sadd.s32 %s68, 1
    %p72 = scmp.eq.s32.totalorder %s13, 1
    %p73 = scmp.ne.s32.totalorder %s68, %s70
    %p74 = scmp.eq.s32.totalorder %s13, 0
    %p75 = por %p73, %p74
    %p76 = scmp.ne.s32.totalorder %s68, %s70
    %p77 = scmp.eq.s32.totalorder %s18, 1
    %p78 = por %p76, %p77
    %p79 = scmp.ne.s32.totalorder %s70, %s71
    %p80 = scmp.eq.s32.totalorder %s18, 0
    %p81 = por %p79, %p80
    %p82 = scmp.ne.s32.totalorder %s70, %s71
    %p83 = scmp.eq.s32.totalorder %s19, 1
    %p84 = por %p82, %p83
    %p86 = scmp.ne.s32.totalorder %s71, %s85
    %p87 = scmp.eq.s32.totalorder %s19, 0
    %p88 = por %p86, %p87
    %s90 = sadd.s32 %s89, 1
    %p93 = scmp.eq.s32.totalorder %s13, 1
    %p94 = scmp.ne.s32.totalorder %s89, %s91
    %p95 = scmp.eq.s32.totalorder %s13, 0
    %p96 = por %p94, %p95
    %p97 = scmp.ne.s32.totalorder %s89, %s91
    %p98 = scmp.eq.s32.totalorder %s18, 1
    %p99 = por %p97, %p98
    %p100 = scmp.ne.s32.totalorder %s91, %s92
    %p101 = scmp.eq.s32.totalorder %s18, 0
    %p102 = por %p100, %p101
    %p103 = scmp.ne.s32.totalorder %s91, %s92
    %p104 = scmp.eq.s32.totalorder %s19, 1
    %p105 = por %p103, %p104
    %p107 = scmp.ne.s32.totalorder %s92, %s106
    %p108 = scmp.eq.s32.totalorder %s19, 0
    %p109 = por %p107, %p108
    %s111 = sadd.s32 %s110, 1
    %p114 = scmp.eq.s32.totalorder %s13, 1
    %p115 = scmp.ne.s32.totalorder %s110, %s112
    %p116 = scmp.eq.s32.totalorder %s13, 0
    %p117 = por %p115, %p116
    %p118 = scmp.ne.s32.totalorder %s110, %s112
    %p119 = scmp.eq.s32.totalorder %s18, 1
    %p120 = por %p118, %p119
    %p121 = scmp.ne.s32.totalorder %s112, %s113
    %p122 = scmp.eq.s32.totalorder %s18, 0
    %p123 = por %p121, %p122
    %p124 = scmp.ne.s32.totalorder %s112, %s113
    %p125 = scmp.eq.s32.totalorder %s19, 1
    %p126 = por %p124, %p125
    %p128 = scmp.ne.s32.totalorder %s113, %s127
    %p129 = scmp.eq.s32.totalorder %s19, 0
    %p130 = por %p128, %p129
    %s132 = sadd.s32 %s131, 1
    %p135 = scmp.eq.s32.totalorder %s13, 1
    %p136 = scmp.ne.s32.totalorder %s131, %s133
    %p137 = scmp.eq.s32.totalorder %s13, 0
    %p138 = por %p136, %p137
    %p139 = scmp.ne.s32.totalorder %s131, %s133
    %p140 = scmp.eq.s32.totalorder %s18, 1
    %p141 = por %p139, %p140
    %p142 = scmp.ne.s32.totalorder %s133, %s134
    %p143 = scmp.eq.s32.totalorder %s18, 0
    %p144 = por %p142, %p143
    %p145 = scmp.ne.s32.totalorder %s133, %s134
    %p146 = scmp.eq.s32.totalorder %s19, 1
    %p147 = por %p145, %p146
    %p149 = scmp.ne.s32.totalorder %s134, %s148
    %p150 = scmp.eq.s32.totalorder %s19, 0
    %p151 = por %p149, %p150
    %s153 = sadd.s32 %s152, 1
    %p156 = scmp.eq.s32.totalorder %s13, 1
    %p157 = scmp.ne.s32.totalorder %s152, %s154
    %p158 = scmp.eq.s32.totalorder %s13, 0
    %p159 = por %p157, %p158
    %p160 = scmp.ne.s32.totalorder %s152, %s154
    %p161 = scmp.eq.s32.totalorder %s18, 1
    %p162 = por %p160, %p161
    %p163 = scmp.ne.s32.totalorder %s154, %s155
    %p164 = scmp.eq.s32.totalorder %s18, 0
    %p165 = por %p163, %p164
    %p166 = scmp.ne.s32.totalorder %s154, %s155
    %p167 = scmp.eq.s32.totalorder %s19, 1
    %p168 = por %p166, %p167
    %p170 = scmp.ne.s32.totalorder %s155, %s169
    %p171 = scmp.eq.s32.totalorder %s19, 0
    %p172 = por %p170, %p171
    %s173 = ssub.s32 %s13, %s20
    %p174 = scmp.eq.s32.totalorder %s173, 0
    %s176 = sadd.s32 %s175, 1
    %s177 = scalar_select %p174, %s175, %s176
    %p180 = pneg %p174
    %p181 = scmp.eq.s32.totalorder %s13, 1
    %p182 = por %p180, %p181
    %p183 = scmp.ne.s32.totalorder %s175, %s178
    %p184 = scmp.eq.s32.totalorder %s13, 0
    %p185 = por %p183, %p184
    %p186 = scmp.ne.s32.totalorder %s175, %s178
    %p187 = scmp.eq.s32.totalorder %s18, 1
    %p188 = por %p186, %p187
    %p189 = scmp.ne.s32.totalorder %s178, %s179
    %p190 = scmp.eq.s32.totalorder %s18, 0
    %p191 = por %p189, %p190
    %p192 = scmp.ne.s32.totalorder %s178, %s179
    %p193 = scmp.eq.s32.totalorder %s19, 1
    %p194 = por %p192, %p193
    %p196 = scmp.ne.s32.totalorder %s179, %s195
    %p197 = scmp.eq.s32.totalorder %s19, 0
    %p198 = por %p196, %p197
    %p199 = scmp.le.s32.totalorder 1, %s13
    %p200 = scmp.lt.s32.totalorder %s13, 3
    %p201 = pnand %p199, %p200
    %p202 = pneg %p201
    // Predicated region
    $region9: #{scale_block_forward.1} parent=5 // pred_check
      _
    $region10: #{scale_block_forward.1} parent=5 // pred_check_branch
      %204 = sbr.rel (%p201) target = $region12
    $region11: #{scale_block_forward.1} parent=5 // pred_region
      %s205 = ssub.s32 %s13, 1
      // Predicated region
      $region13: #{scale_block_forward.1} parent=11 // pred_check
        %p206 = pneg %p60
      $region14: #{scale_block_forward.1} parent=11 // pred_check_branch
        %208 = sbr.rel (%p206) target = $region16
      $region15: #{scale_block_forward.1} parent=11 // pred_region
        _
      $region16: #{scale_block_forward.1} parent=11 // pred_fallthru
        _
      // Predicated region
      $region17: #{scale_block_forward.1} parent=11 // pred_check
        %p209 = pneg %p81
      $region18: #{scale_block_forward.1} parent=11 // pred_check_branch
        %211 = sbr.rel (%p209) target = $region20
      $region19: #{scale_block_forward.1} parent=11 // pred_region
        _
      $region20: #{scale_block_forward.1} parent=11 // pred_fallthru
        _
      // Predicated region
      $region21: #{scale_block_forward.1} parent=11 // pred_check
        %p212 = pneg %p102
      $region22: #{scale_block_forward.1} parent=11 // pred_check_branch
        %214 = sbr.rel (%p212) target = $region24
      $region23: #{scale_block_forward.1} parent=11 // pred_region
        _
      $region24: #{scale_block_forward.1} parent=11 // pred_fallthru
        _
      // Predicated region
      $region25: #{scale_block_forward.1} parent=11 // pred_check
        %p215 = pneg %p123
      $region26: #{scale_block_forward.1} parent=11 // pred_check_branch
        %217 = sbr.rel (%p215) target = $region28
      $region27: #{scale_block_forward.1} parent=11 // pred_region
        _
      $region28: #{scale_block_forward.1} parent=11 // pred_fallthru
        _
      // Predicated region
      $region29: #{scale_block_forward.1} parent=11 // pred_check
        %p218 = pneg %p144
      $region30: #{scale_block_forward.1} parent=11 // pred_check_branch
        %220 = sbr.rel (%p218) target = $region32
      $region31: #{scale_block_forward.1} parent=11 // pred_region
        _
      $region32: #{scale_block_forward.1} parent=11 // pred_fallthru
        _
      // Predicated region
      $region33: #{scale_block_forward.1} parent=11 // pred_check
        %p221 = pneg %p165
      $region34: #{scale_block_forward.1} parent=11 // pred_check_branch
        %223 = sbr.rel (%p221) target = $region36
      $region35: #{scale_block_forward.1} parent=11 // pred_region
        _
      $region36: #{scale_block_forward.1} parent=11 // pred_fallthru
        _
    $region12: #{scale_block_forward.1} parent=5 // pred_fallthru
      _
    %p224 = scmp.lt.s32.totalorder %s13, 2
    // Predicated region
    $region37: #{scale_block_forward.1} parent=5 // pred_check
      %p225 = pneg %p224
    $region38: #{scale_block_forward.1} parent=5 // pred_check_branch
      %227 = sbr.rel (%p225) target = $region40
    $region39: #{scale_block_forward.1} parent=5 // pred_region
      // Predicated region
      $region41: #{scale_block_forward.1} parent=39 // pred_check
        %p228 = pneg %p33
      $region42: #{scale_block_forward.1} parent=39 // pred_check_branch
        %230 = sbr.rel (%p228) target = $region44
      $region43: #{scale_block_forward.1} parent=39 // pred_region
        %s231 = smul.u32 4, %s13
        %p232 = scmp.lt.s32.totalorder %s231, 7
        %s233 = scalar_select %p232, %s231, 7
        %s234 = smul.addr %s233, 32
        %s235 = smul.addr %s234, 4
        %s236 = scalar_lea.vmem %s0, %s235
        %s237 = smul.u32 4, %s13
      $region44: #{scale_block_forward.1} parent=39 // pred_fallthru
        _
    $region40: #{scale_block_forward.1} parent=5 // pred_fallthru
      _
    %p238 = scmp.le.s32.totalorder 1, %s13
    %p239 = scmp.lt.s32.totalorder %s13, 3
    %p240 = pnand %p238, %p239
    %p241 = pneg %p240
    // Predicated region
    $region45: #{scale_block_forward.1} parent=5 // pred_check
      _
    $region46: #{scale_block_forward.1} parent=5 // pred_check_branch
      %243 = sbr.rel (%p240) target = $region48
    $region47: #{scale_block_forward.1} parent=5 // pred_region
      %s244 = ssub.s32 %s13, 1
      %s245 = smul.u32 4, %s18
      %p246 = scmp.lt.s32.totalorder %s245, 7
      %s247 = scalar_select %p246, %s245, 7
      %s248 = smul.addr %s247, 32
      %s249 = smul.addr %s248, 4
      %s250 = scalar_lea.vmem %s0, %s249
      %p251 = pneg %p39
      %p252 = pneg %p36
      %p253 = pneg %p60
      %p254 = pneg %p57
      %p255 = pneg %p81
      %p256 = pneg %p78
      %p257 = pneg %p102
      %p258 = pneg %p99
      %p259 = pneg %p123
      %p260 = pneg %p120
      %p261 = pneg %p144
      %p262 = pneg %p141
      %p263 = pneg %p165
      %p264 = pneg %p162
      %p265 = pneg %p191
      %p266 = pneg %p188
      %s267 = smul.u32 4, %s18
      %p268 = scmp.lt.s32.totalorder %s267, 7
      %s269 = scalar_select %p268, %s267, 7
      %s270 = smul.addr %s269, 16
      %s271 = smul.addr %s270, 4
      %s272 = scalar_lea.vmem %s7, %s271
      %s273 = smul.u32 4, %s18
      %p274 = scmp.lt.s32.totalorder %s273, 7
      %s275 = scalar_select %p274, %s273, 7
      %s276 = smul.addr %s275, 32
      %s277 = smul.addr %s276, 4
      %s278 = scalar_lea.vmem %s0, %s277
      %s279 = smul.u32 4, %s18
      %s280 = smul.u32 4, %s18
      %p281 = scmp.lt.s32.totalorder %s280, 7
      %s282 = scalar_select %p281, %s280, 7
      %s283 = smul.addr %s282, 16
      %s284 = smul.addr %s283, 4
      %s285 = scalar_lea.vmem %s7, %s284
      %s286 = smul.u32 4, %s18
      %v288 = vld [vmem:[%s1] sm:$0xf]
      %v289 = vld [vmem:[%s1 + $0x4] sm:$0xf]
      %v290 = vld [vmem:[%s278] sm:$0xff]
      %v291 = vld [vmem:[%s278 + $0x8] sm:$0xff]
      %v292 = vld [vmem:[%s278 + $0x10] sm:$0xff]
      %v293 = vld [vmem:[%s278 + $0x18] sm:$0xff]
      %v294 = vld [vmem:[%s278 + $0x20] sm:$0xff]
      %v295 = vld [vmem:[%s278 + $0x28] sm:$0xff]
      %v296 = vld [vmem:[%s278 + $0x30] sm:$0xff]
      %v297 = vld [vmem:[%s278 + $0x38] sm:$0xff]
      %v298 = vld [vmem:[%s278 + $0x40] sm:$0xff]
      %v299 = vld [vmem:[%s278 + $0x48] sm:$0xff]
      %v300 = vld [vmem:[%s278 + $0x50] sm:$0xff]
      %v301 = vld [vmem:[%s278 + $0x58] sm:$0xff]
      %v302 = vld [vmem:[%s278 + $0x60] sm:$0xff]
      %v303 = vld [vmem:[%s278 + $0x68] sm:$0xff]
      %v304 = vld [vmem:[%s278 + $0x70] sm:$0xff]
      %v305 = vld [vmem:[%s278 + $0x78] sm:$0xff]
      %v308 = vunpack.c.l.b16 %v288
      %v309 = vunpack.c.l.b16 %v289
      %v310 = vpack.c.b16 %v309, %v308
      %v327 = vunpack.c.l.b16 %v290
      %v328 = vunpack.c.h.b16 %v290
      %v329 = vunpack.c.l.b16 %v291
      %v330 = vunpack.c.h.b16 %v291
      %v331 = vunpack.c.l.b16 %v292
      %v332 = vunpack.c.h.b16 %v292
      %v333 = vunpack.c.l.b16 %v293
      %v334 = vunpack.c.h.b16 %v293
      %v335 = vunpack.c.l.b16 %v294
      %v336 = vunpack.c.h.b16 %v294
      %v337 = vunpack.c.l.b16 %v295
      %v338 = vunpack.c.h.b16 %v295
      %v339 = vunpack.c.l.b16 %v296
      %v340 = vunpack.c.h.b16 %v296
      %v341 = vunpack.c.l.b16 %v297
      %v342 = vunpack.c.h.b16 %v297
      %v343 = vunpack.c.l.b16 %v298
      %v344 = vunpack.c.h.b16 %v298
      %v345 = vunpack.c.l.b16 %v299
      %v346 = vunpack.c.h.b16 %v299
      %v347 = vunpack.c.l.b16 %v300
      %v348 = vunpack.c.h.b16 %v300
      %v349 = vunpack.c.l.b16 %v301
      %v350 = vunpack.c.h.b16 %v301
      %v351 = vunpack.c.l.b16 %v302
      %v352 = vunpack.c.h.b16 %v302
      %v353 = vunpack.c.l.b16 %v303
      %v354 = vunpack.c.h.b16 %v303
      %v355 = vunpack.c.l.b16 %v304
      %v356 = vunpack.c.h.b16 %v304
      %v357 = vunpack.c.l.b16 %v305
      %v358 = vunpack.c.h.b16 %v305
      %v359 = vpack.c.b16 %v331, %v327
      %v360 = vpack.c.b16 %v332, %v328
      %v361 = vpack.c.b16 %v333, %v329
      %v362 = vpack.c.b16 %v334, %v330
      %v363 = vpack.c.b16 %v339, %v335
      %v364 = vpack.c.b16 %v340, %v336
      %v365 = vpack.c.b16 %v341, %v337
      %v366 = vpack.c.b16 %v342, %v338
      %v367 = vpack.c.b16 %v347, %v343
      %v368 = vpack.c.b16 %v348, %v344
      %v369 = vpack.c.b16 %v349, %v345
      %v370 = vpack.c.b16 %v350, %v346
      %v371 = vpack.c.b16 %v355, %v351
      %v372 = vpack.c.b16 %v356, %v352
      %v373 = vpack.c.b16 %v357, %v353
      %v374 = vpack.c.b16 %v358, %v354
      %vm391 = vcmask 523264
      %v393 = vsel %vm391, %v310, 0
      %395 = vmatprep.subr.bf16.mxu0 %v360
      %396 = vmatpush1.bf16.msra.mxu0 %v359
      %397 = vmatprep.subr.bf16.mxu0 %v364
      %398 = vmatpush1.bf16.msra.mxu0 %v363
      %399 = vmatprep.subr.bf16.mxu0 %v368
      %400 = vmatpush1.bf16.msra.mxu0 %v367
      %401 = vmatprep.subr.bf16.mxu0 %v372
      %402 = vmatpush1.bf16.msra.mxu0 %v371
      %403 = vmatprep.subr.bf16.mxu0 0
      %404 = vmatpush1.bf16.msra.mxu0 0
      %405 = vmatprep.subr.bf16.mxu0 0
      %406 = vmatpush1.bf16.msra.mxu0 0
      %407 = vmatprep.subr.bf16.mxu0 0
      %408 = vmatpush1.bf16.msra.mxu0 0
      %409 = vmatprep.subr.bf16.mxu0 0
      %410 = vmatpush1.bf16.msra.mxu0 0
      %411 = vmatprep.subr.bf16.mxu0 0
      %412 = vmatpush1.bf16.msra.mxu0 0
      %413 = vmatprep.subr.bf16.mxu0 0
      %414 = vmatpush1.bf16.msra.mxu0 0
      %415 = vmatprep.subr.bf16.mxu0 0
      %416 = vmatpush1.bf16.msra.mxu0 0
      %417 = vmatprep.subr.bf16.mxu0 0
      %418 = vmatpush1.bf16.msra.mxu0 0
      %419 = vmatprep.subr.bf16.mxu0 0
      %420 = vmatpush1.bf16.msra.mxu0 0
      %421 = vmatprep.subr.bf16.mxu0 0
      %422 = vmatpush1.bf16.msra.mxu0 0
      %423 = vmatprep.subr.bf16.mxu0 0
      %424 = vmatpush1.bf16.msra.mxu0 0
      %425 = vmatprep.subr.bf16.mxu0 0
      %426 = vmatpush1.bf16.msra.mxu0 0
      %427 = vmatprep.mubr.bf16.mxu0 0
      %428 = vmatmul.mubr.bf16.gmra.mrb[0].mxu0 %v393
      %v429 = vpop.f32.mrb[0].mxu0
      %v430 = vadd.f32 0.0, %v429
      %v431 = vpop.f32.mrb[0].mxu0
      %v432 = vadd.f32 0.0, %v431
      %v433 = vpop.f32.mrb[0].mxu0
      %v434 = vadd.f32 0.0, %v433
      %v435 = vpop.f32.mrb[0].mxu0
      %v436 = vadd.f32 0.0, %v435
      %437 = vdwg.mxu0
      %438 = vmatprep.subr.bf16.mxu0 %v362
      %439 = vmatpush1.bf16.msra.mxu0 %v361
      %440 = vmatprep.subr.bf16.mxu0 %v366
      %441 = vmatpush1.bf16.msra.mxu0 %v365
      %442 = vmatprep.subr.bf16.mxu0 %v370
      %443 = vmatpush1.bf16.msra.mxu0 %v369
      %444 = vmatprep.subr.bf16.mxu0 %v374
      %445 = vmatpush1.bf16.msra.mxu0 %v373
      %446 = vmatprep.subr.bf16.mxu0 0
      %447 = vmatpush1.bf16.msra.mxu0 0
      %448 = vmatprep.subr.bf16.mxu0 0
      %449 = vmatpush1.bf16.msra.mxu0 0
      %450 = vmatprep.subr.bf16.mxu0 0
      %451 = vmatpush1.bf16.msra.mxu0 0
      %452 = vmatprep.subr.bf16.mxu0 0
      %453 = vmatpush1.bf16.msra.mxu0 0
      %454 = vmatprep.subr.bf16.mxu0 0
      %455 = vmatpush1.bf16.msra.mxu0 0
      %456 = vmatprep.subr.bf16.mxu0 0
      %457 = vmatpush1.bf16.msra.mxu0 0
      %458 = vmatprep.subr.bf16.mxu0 0
      %459 = vmatpush1.bf16.msra.mxu0 0
      %460 = vmatprep.subr.bf16.mxu0 0
      %461 = vmatpush1.bf16.msra.mxu0 0
      %462 = vmatprep.subr.bf16.mxu0 0
      %463 = vmatpush1.bf16.msra.mxu0 0
      %464 = vmatprep.subr.bf16.mxu0 0
      %465 = vmatpush1.bf16.msra.mxu0 0
      %466 = vmatprep.subr.bf16.mxu0 0
      %467 = vmatpush1.bf16.msra.mxu0 0
      %468 = vmatprep.subr.bf16.mxu0 0
      %469 = vmatpush1.bf16.msra.mxu0 0
      %470 = vmatprep.mubr.bf16.mxu0 0
      %471 = vmatmul.mubr.bf16.gmra.mrb[0].mxu0 %v393
      %v472 = vpop.f32.mrb[0].mxu0
      %v473 = vadd.f32 0.0, %v472
      %v474 = vpop.f32.mrb[0].mxu0
      %v475 = vadd.f32 0.0, %v474
      %v476 = vpop.f32.mrb[0].mxu0
      %v477 = vadd.f32 0.0, %v476
      %v478 = vpop.f32.mrb[0].mxu0
      %v479 = vadd.f32 0.0, %v478
      %480 = vdwg.mxu0
      %s481 = scalar_lea.vmem %s278, 128
      %v482 = vld [vmem:[%s481] sm:$0xff]
      %v483 = vld [vmem:[%s481 + $0x8] sm:$0xff]
      %v484 = vld [vmem:[%s481 + $0x10] sm:$0xff]
      %v485 = vld [vmem:[%s481 + $0x18] sm:$0xff]
      %v486 = vld [vmem:[%s481 + $0x20] sm:$0xff]
      %v487 = vld [vmem:[%s481 + $0x28] sm:$0xff]
      %v488 = vld [vmem:[%s481 + $0x30] sm:$0xff]
      %v489 = vld [vmem:[%s481 + $0x38] sm:$0xff]
      %v490 = vld [vmem:[%s481 + $0x40] sm:$0xff]
      %v491 = vld [vmem:[%s481 + $0x48] sm:$0xff]
      %v492 = vld [vmem:[%s481 + $0x50] sm:$0xff]
      %v493 = vld [vmem:[%s481 + $0x58] sm:$0xff]
      %v494 = vld [vmem:[%s481 + $0x60] sm:$0xff]
      %v495 = vld [vmem:[%s481 + $0x68] sm:$0xff]
      %v496 = vld [vmem:[%s481 + $0x70] sm:$0xff]
      %v497 = vld [vmem:[%s481 + $0x78] sm:$0xff]
      %v514 = vunpack.c.l.b16 %v482
      %v515 = vunpack.c.h.b16 %v482
      %v516 = vunpack.c.l.b16 %v483
      %v517 = vunpack.c.h.b16 %v483
      %v518 = vunpack.c.l.b16 %v484
      %v519 = vunpack.c.h.b16 %v484
      %v520 = vunpack.c.l.b16 %v485
      %v521 = vunpack.c.h.b16 %v485
      %v522 = vunpack.c.l.b16 %v486
      %v523 = vunpack.c.h.b16 %v486
      %v524 = vunpack.c.l.b16 %v487
      %v525 = vunpack.c.h.b16 %v487
      %v526 = vunpack.c.l.b16 %v488
      %v527 = vunpack.c.h.b16 %v488
      %v528 = vunpack.c.l.b16 %v489
      %v529 = vunpack.c.h.b16 %v489
      %v530 = vunpack.c.l.b16 %v490
      %v531 = vunpack.c.h.b16 %v490
      %v532 = vunpack.c.l.b16 %v491
      %v533 = vunpack.c.h.b16 %v491
      %v534 = vunpack.c.l.b16 %v492
      %v535 = vunpack.c.h.b16 %v492
      %v536 = vunpack.c.l.b16 %v493
      %v537 = vunpack.c.h.b16 %v493
      %v538 = vunpack.c.l.b16 %v494
      %v539 = vunpack.c.h.b16 %v494
      %v540 = vunpack.c.l.b16 %v495
      %v541 = vunpack.c.h.b16 %v495
      %v542 = vunpack.c.l.b16 %v496
      %v543 = vunpack.c.h.b16 %v496
      %v544 = vunpack.c.l.b16 %v497
      %v545 = vunpack.c.h.b16 %v497
      %v546 = vpack.c.b16 %v518, %v514
      %v547 = vpack.c.b16 %v519, %v515
      %v548 = vpack.c.b16 %v520, %v516
      %v549 = vpack.c.b16 %v521, %v517
      %v550 = vpack.c.b16 %v526, %v522
      %v551 = vpack.c.b16 %v527, %v523
      %v552 = vpack.c.b16 %v528, %v524
      %v553 = vpack.c.b16 %v529, %v525
      %v554 = vpack.c.b16 %v534, %v530
      %v555 = vpack.c.b16 %v535, %v531
      %v556 = vpack.c.b16 %v536, %v532
      %v557 = vpack.c.b16 %v537, %v533
      %v558 = vpack.c.b16 %v542, %v538
      %v559 = vpack.c.b16 %v543, %v539
      %v560 = vpack.c.b16 %v544, %v540
      %v561 = vpack.c.b16 %v545, %v541
      %578 = vmatprep.subr.bf16.mxu0 %v547
      %579 = vmatpush1.bf16.msra.mxu0 %v546
      %580 = vmatprep.subr.bf16.mxu0 %v551
      %581 = vmatpush1.bf16.msra.mxu0 %v550
      %582 = vmatprep.subr.bf16.mxu0 %v555
      %583 = vmatpush1.bf16.msra.mxu0 %v554
      %584 = vmatprep.subr.bf16.mxu0 %v559
      %585 = vmatpush1.bf16.msra.mxu0 %v558
      %586 = vmatprep.subr.bf16.mxu0 0
      %587 = vmatpush1.bf16.msra.mxu0 0
      %588 = vmatprep.subr.bf16.mxu0 0
      %589 = vmatpush1.bf16.msra.mxu0 0
      %590 = vmatprep.subr.bf16.mxu0 0
      %591 = vmatpush1.bf16.msra.mxu0 0
      %592 = vmatprep.subr.bf16.mxu0 0
      %593 = vmatpush1.bf16.msra.mxu0 0
      %594 = vmatprep.subr.bf16.mxu0 0
      %595 = vmatpush1.bf16.msra.mxu0 0
      %596 = vmatprep.subr.bf16.mxu0 0
      %597 = vmatpush1.bf16.msra.mxu0 0
      %598 = vmatprep.subr.bf16.mxu0 0
      %599 = vmatpush1.bf16.msra.mxu0 0
      %600 = vmatprep.subr.bf16.mxu0 0
      %601 = vmatpush1.bf16.msra.mxu0 0
      %602 = vmatprep.subr.bf16.mxu0 0
      %603 = vmatpush1.bf16.msra.mxu0 0
      %604 = vmatprep.subr.bf16.mxu0 0
      %605 = vmatpush1.bf16.msra.mxu0 0
      %606 = vmatprep.subr.bf16.mxu0 0
      %607 = vmatpush1.bf16.msra.mxu0 0
      %608 = vmatprep.subr.bf16.mxu0 0
      %609 = vmatpush1.bf16.msra.mxu0 0
      %610 = vmatprep.mubr.bf16.mxu0 0
      %611 = vmatmul.mubr.bf16.gmra.mrb[0].mxu0 %v393
      %v612 = vpop.f32.mrb[0].mxu0
      %v613 = vadd.f32 0.0, %v612
      %v614 = vpop.f32.mrb[0].mxu0
      %v615 = vadd.f32 0.0, %v614
      %v616 = vpop.f32.mrb[0].mxu0
      %v617 = vadd.f32 0.0, %v616
      %v618 = vpop.f32.mrb[0].mxu0
      %v619 = vadd.f32 0.0, %v618
      %620 = vdwg.mxu0
      %621 = vmatprep.subr.bf16.mxu0 %v549
      %622 = vmatpush1.bf16.msra.mxu0 %v548
      %623 = vmatprep.subr.bf16.mxu0 %v553
      %624 = vmatpush1.bf16.msra.mxu0 %v552
      %625 = vmatprep.subr.bf16.mxu0 %v557
      %626 = vmatpush1.bf16.msra.mxu0 %v556
      %627 = vmatprep.subr.bf16.mxu0 %v561
      %628 = vmatpush1.bf16.msra.mxu0 %v560
      %629 = vmatprep.subr.bf16.mxu0 0
      %630 = vmatpush1.bf16.msra.mxu0 0
      %631 = vmatprep.subr.bf16.mxu0 0
      %632 = vmatpush1.bf16.msra.mxu0 0
      %633 = vmatprep.subr.bf16.mxu0 0
      %634 = vmatpush1.bf16.msra.mxu0 0
      %635 = vmatprep.subr.bf16.mxu0 0
      %636 = vmatpush1.bf16.msra.mxu0 0
      %637 = vmatprep.subr.bf16.mxu0 0
      %638 = vmatpush1.bf16.msra.mxu0 0
      %639 = vmatprep.subr.bf16.mxu0 0
      %640 = vmatpush1.bf16.msra.mxu0 0
      %641 = vmatprep.subr.bf16.mxu0 0
      %642 = vmatpush1.bf16.msra.mxu0 0
      %643 = vmatprep.subr.bf16.mxu0 0
      %644 = vmatpush1.bf16.msra.mxu0 0
      %645 = vmatprep.subr.bf16.mxu0 0
      %646 = vmatpush1.bf16.msra.mxu0 0
      %647 = vmatprep.subr.bf16.mxu0 0
      %648 = vmatpush1.bf16.msra.mxu0 0
      %649 = vmatprep.subr.bf16.mxu0 0
      %650 = vmatpush1.bf16.msra.mxu0 0
      %651 = vmatprep.subr.bf16.mxu0 0
      %652 = vmatpush1.bf16.msra.mxu0 0
      %653 = vmatprep.mubr.bf16.mxu0 0
      %654 = vmatmul.mubr.bf16.gmra.mrb[0].mxu0 %v393
      %v655 = vpop.f32.mrb[0].mxu0
      %v656 = vadd.f32 0.0, %v655
      %v657 = vpop.f32.mrb[0].mxu0
      %v658 = vadd.f32 0.0, %v657
      %v659 = vpop.f32.mrb[0].mxu0
      %v660 = vadd.f32 0.0, %v659
      %v661 = vpop.f32.mrb[0].mxu0
      %v662 = vadd.f32 0.0, %v661
      %663 = vdwg.mxu0
      %s664 = scalar_lea.vmem %s278, 256
      %v665 = vld [vmem:[%s664] sm:$0xff]
      %v666 = vld [vmem:[%s664 + $0x8] sm:$0xff]
      %v667 = vld [vmem:[%s664 + $0x10] sm:$0xff]
      %v668 = vld [vmem:[%s664 + $0x18] sm:$0xff]
      %v669 = vld [vmem:[%s664 + $0x20] sm:$0xff]
      %v670 = vld [vmem:[%s664 + $0x28] sm:$0xff]
      %v671 = vld [vmem:[%s664 + $0x30] sm:$0xff]
      %v672 = vld [vmem:[%s664 + $0x38] sm:$0xff]
      %v673 = vld [vmem:[%s664 + $0x40] sm:$0xff]
      %v674 = vld [vmem:[%s664 + $0x48] sm:$0xff]
      %v675 = vld [vmem:[%s664 + $0x50] sm:$0xff]
      %v676 = vld [vmem:[%s664 + $0x58] sm:$0xff]
      %v677 = vld [vmem:[%s664 + $0x60] sm:$0xff]
      %v678 = vld [vmem:[%s664 + $0x68] sm:$0xff]
      %v679 = vld [vmem:[%s664 + $0x70] sm:$0xff]
      %v680 = vld [vmem:[%s664 + $0x78] sm:$0xff]
      %v697 = vunpack.c.l.b16 %v665
      %v698 = vunpack.c.h.b16 %v665
      %v699 = vunpack.c.l.b16 %v666
      %v700 = vunpack.c.h.b16 %v666
      %v701 = vunpack.c.l.b16 %v667
      %v702 = vunpack.c.h.b16 %v667
      %v703 = vunpack.c.l.b16 %v668
      %v704 = vunpack.c.h.b16 %v668
      %v705 = vunpack.c.l.b16 %v669
      %v706 = vunpack.c.h.b16 %v669
      %v707 = vunpack.c.l.b16 %v670
      %v708 = vunpack.c.h.b16 %v670
      %v709 = vunpack.c.l.b16 %v671
      %v710 = vunpack.c.h.b16 %v671
      %v711 = vunpack.c.l.b16 %v672
      %v712 = vunpack.c.h.b16 %v672
      %v713 = vunpack.c.l.b16 %v673
      %v714 = vunpack.c.h.b16 %v673
      %v715 = vunpack.c.l.b16 %v674
      %v716 = vunpack.c.h.b16 %v674
      %v717 = vunpack.c.l.b16 %v675
      %v718 = vunpack.c.h.b16 %v675
      %v719 = vunpack.c.l.b16 %v676
      %v720 = vunpack.c.h.b16 %v676
      %v721 = vunpack.c.l.b16 %v677
      %v722 = vunpack.c.h.b16 %v677
      %v723 = vunpack.c.l.b16 %v678
      %v724 = vunpack.c.h.b16 %v678
      %v725 = vunpack.c.l.b16 %v679
      %v726 = vunpack.c.h.b16 %v679
      %v727 = vunpack.c.l.b16 %v680
      %v728 = vunpack.c.h.b16 %v680
      %v729 = vpack.c.b16 %v701, %v697
      %v730 = vpack.c.b16 %v702, %v698
      %v731 = vpack.c.b16 %v703, %v699
      %v732 = vpack.c.b16 %v704, %v700
      %v733 = vpack.c.b16 %v709, %v705
      %v734 = vpack.c.b16 %v710, %v706
      %v735 = vpack.c.b16 %v711, %v707
      %v736 = vpack.c.b16 %v712, %v708
      %v737 = vpack.c.b16 %v717, %v713
      %v738 = vpack.c.b16 %v718, %v714
      %v739 = vpack.c.b16 %v719, %v715
      %v740 = vpack.c.b16 %v720, %v716
      %v741 = vpack.c.b16 %v725, %v721
      %v742 = vpack.c.b16 %v726, %v722
      %v743 = vpack.c.b16 %v727, %v723
      %v744 = vpack.c.b16 %v728, %v724
      %761 = vmatprep.subr.bf16.mxu0 %v730
      %762 = vmatpush1.bf16.msra.mxu0 %v729
      %763 = vmatprep.subr.bf16.mxu0 %v734
      %764 = vmatpush1.bf16.msra.mxu0 %v733
      %765 = vmatprep.subr.bf16.mxu0 %v738
      %766 = vmatpush1.bf16.msra.mxu0 %v737
      %767 = vmatprep.subr.bf16.mxu0 %v742
      %768 = vmatpush1.bf16.msra.mxu0 %v741
      %769 = vmatprep.subr.bf16.mxu0 0
      %770 = vmatpush1.bf16.msra.mxu0 0
      %771 = vmatprep.subr.bf16.mxu0 0
      %772 = vmatpush1.bf16.msra.mxu0 0
      %773 = vmatprep.subr.bf16.mxu0 0
      %774 = vmatpush1.bf16.msra.mxu0 0
      %775 = vmatprep.subr.bf16.mxu0 0
      %776 = vmatpush1.bf16.msra.mxu0 0
      %777 = vmatprep.subr.bf16.mxu0 0
      %778 = vmatpush1.bf16.msra.mxu0 0
      %779 = vmatprep.subr.bf16.mxu0 0
      %780 = vmatpush1.bf16.msra.mxu0 0
      %781 = vmatprep.subr.bf16.mxu0 0
      %782 = vmatpush1.bf16.msra.mxu0 0
      %783 = vmatprep.subr.bf16.mxu0 0
      %784 = vmatpush1.bf16.msra.mxu0 0
      %785 = vmatprep.subr.bf16.mxu0 0
      %786 = vmatpush1.bf16.msra.mxu0 0
      %787 = vmatprep.subr.bf16.mxu0 0
      %788 = vmatpush1.bf16.msra.mxu0 0
      %789 = vmatprep.subr.bf16.mxu0 0
      %790 = vmatpush1.bf16.msra.mxu0 0
      %791 = vmatprep.subr.bf16.mxu0 0
      %792 = vmatpush1.bf16.msra.mxu0 0
      %793 = vmatprep.mubr.bf16.mxu0 0
      %794 = vmatmul.mubr.bf16.gmra.mrb[0].mxu0 %v393
      %v795 = vpop.f32.mrb[0].mxu0
      %v796 = vadd.f32 0.0, %v795
      %v797 = vpop.f32.mrb[0].mxu0
      %v798 = vadd.f32 0.0, %v797
      %v799 = vpop.f32.mrb[0].mxu0
      %v800 = vadd.f32 0.0, %v799
      %v801 = vpop.f32.mrb[0].mxu0
      %v802 = vadd.f32 0.0, %v801
      %803 = vdwg.mxu0
      %804 = vmatprep.subr.bf16.mxu0 %v732
      %805 = vmatpush1.bf16.msra.mxu0 %v731
      %806 = vmatprep.subr.bf16.mxu0 %v736
      %807 = vmatpush1.bf16.msra.mxu0 %v735
      %808 = vmatprep.subr.bf16.mxu0 %v740
      %809 = vmatpush1.bf16.msra.mxu0 %v739
      %810 = vmatprep.subr.bf16.mxu0 %v744
      %811 = vmatpush1.bf16.msra.mxu0 %v743
      %812 = vmatprep.subr.bf16.mxu0 0
      %813 = vmatpush1.bf16.msra.mxu0 0
      %814 = vmatprep.subr.bf16.mxu0 0
      %815 = vmatpush1.bf16.msra.mxu0 0
      %816 = vmatprep.subr.bf16.mxu0 0
      %817 = vmatpush1.bf16.msra.mxu0 0
      %818 = vmatprep.subr.bf16.mxu0 0
      %819 = vmatpush1.bf16.msra.mxu0 0
      %820 = vmatprep.subr.bf16.mxu0 0
      %821 = vmatpush1.bf16.msra.mxu0 0
      %822 = vmatprep.subr.bf16.mxu0 0
      %823 = vmatpush1.bf16.msra.mxu0 0
      %824 = vmatprep.subr.bf16.mxu0 0
      %825 = vmatpush1.bf16.msra.mxu0 0
      %826 = vmatprep.subr.bf16.mxu0 0
      %827 = vmatpush1.bf16.msra.mxu0 0
      %828 = vmatprep.subr.bf16.mxu0 0
      %829 = vmatpush1.bf16.msra.mxu0 0
      %830 = vmatprep.subr.bf16.mxu0 0
      %831 = vmatpush1.bf16.msra.mxu0 0
      %832 = vmatprep.subr.bf16.mxu0 0
      %833 = vmatpush1.bf16.msra.mxu0 0
      %834 = vmatprep.subr.bf16.mxu0 0
      %835 = vmatpush1.bf16.msra.mxu0 0
      %836 = vmatprep.mubr.bf16.mxu0 0
      %837 = vmatmul.mubr.bf16.gmra.mrb[0].mxu0 %v393
      %v838 = vpop.f32.mrb[0].mxu0
      %v839 = vadd.f32 0.0, %v838
      %v840 = vpop.f32.mrb[0].mxu0
      %v841 = vadd.f32 0.0, %v840
      %v842 = vpop.f32.mrb[0].mxu0
      %v843 = vadd.f32 0.0, %v842
      %v844 = vpop.f32.mrb[0].mxu0
      %v845 = vadd.f32 0.0, %v844
      %846 = vdwg.mxu0
      %s847 = scalar_lea.vmem %s278, 384
      %v848 = vld [vmem:[%s847] sm:$0xff]
      %v849 = vld [vmem:[%s847 + $0x8] sm:$0xff]
      %v850 = vld [vmem:[%s847 + $0x10] sm:$0xff]
      %v851 = vld [vmem:[%s847 + $0x18] sm:$0xff]
      %v852 = vld [vmem:[%s847 + $0x20] sm:$0xff]
      %v853 = vld [vmem:[%s847 + $0x28] sm:$0xff]
      %v854 = vld [vmem:[%s847 + $0x30] sm:$0xff]
      %v855 = vld [vmem:[%s847 + $0x38] sm:$0xff]
      %v856 = vld [vmem:[%s847 + $0x40] sm:$0xff]
      %v857 = vld [vmem:[%s847 + $0x48] sm:$0xff]
      %v858 = vld [vmem:[%s847 + $0x50] sm:$0xff]
      %v859 = vld [vmem:[%s847 + $0x58] sm:$0xff]
      %v860 = vld [vmem:[%s847 + $0x60] sm:$0xff]
      %v861 = vld [vmem:[%s847 + $0x68] sm:$0xff]
      %v862 = vld [vmem:[%s847 + $0x70] sm:$0xff]
      %v863 = vld [vmem:[%s847 + $0x78] sm:$0xff]
      %v880 = vunpack.c.l.b16 %v848
      %v881 = vunpack.c.h.b16 %v848
      %v882 = vunpack.c.l.b16 %v849
      %v883 = vunpack.c.h.b16 %v849
      %v884 = vunpack.c.l.b16 %v850
      %v885 = vunpack.c.h.b16 %v850
      %v886 = vunpack.c.l.b16 %v851
      %v887 = vunpack.c.h.b16 %v851
      %v888 = vunpack.c.l.b16 %v852
      %v889 = vunpack.c.h.b16 %v852
      %v890 = vunpack.c.l.b16 %v853
      %v891 = vunpack.c.h.b16 %v853
      %v892 = vunpack.c.l.b16 %v854
      %v893 = vunpack.c.h.b16 %v854
      %v894 = vunpack.c.l.b16 %v855
      %v895 = vunpack.c.h.b16 %v855
      %v896 = vunpack.c.l.b16 %v856
      %v897 = vunpack.c.h.b16 %v856
      %v898 = vunpack.c.l.b16 %v857
      %v899 = vunpack.c.h.b16 %v857
      %v900 = vunpack.c.l.b16 %v858
      %v901 = vunpack.c.h.b16 %v858
      %v902 = vunpack.c.l.b16 %v859
      %v903 = vunpack.c.h.b16 %v859
      %v904 = vunpack.c.l.b16 %v860
      %v905 = vunpack.c.h.b16 %v860
      %v906 = vunpack.c.l.b16 %v861
      %v907 = vunpack.c.h.b16 %v861
      %v908 = vunpack.c.l.b16 %v862
      %v909 = vunpack.c.h.b16 %v862
      %v910 = vunpack.c.l.b16 %v863
      %v911 = vunpack.c.h.b16 %v863
      %v912 = vpack.c.b16 %v884, %v880
      %v913 = vpack.c.b16 %v885, %v881
      %v914 = vpack.c.b16 %v886, %v882
      %v915 = vpack.c.b16 %v887, %v883
      %v916 = vpack.c.b16 %v892, %v888
      %v917 = vpack.c.b16 %v893, %v889
      %v918 = vpack.c.b16 %v894, %v890
      %v919 = vpack.c.b16 %v895, %v891
      %v920 = vpack.c.b16 %v900, %v896
      %v921 = vpack.c.b16 %v901, %v897
      %v922 = vpack.c.b16 %v902, %v898
      %v923 = vpack.c.b16 %v903, %v899
      %v924 = vpack.c.b16 %v908, %v904
      %v925 = vpack.c.b16 %v909, %v905
      %v926 = vpack.c.b16 %v910, %v906
      %v927 = vpack.c.b16 %v911, %v907
      %944 = vmatprep.subr.bf16.mxu0 %v913
      %945 = vmatpush1.bf16.msra.mxu0 %v912
      %946 = vmatprep.subr.bf16.mxu0 %v917
      %947 = vmatpush1.bf16.msra.mxu0 %v916
      %948 = vmatprep.subr.bf16.mxu0 %v921
      %949 = vmatpush1.bf16.msra.mxu0 %v920
      %950 = vmatprep.subr.bf16.mxu0 %v925
      %951 = vmatpush1.bf16.msra.mxu0 %v924
      %952 = vmatprep.subr.bf16.mxu0 0
      %953 = vmatpush1.bf16.msra.mxu0 0
      %954 = vmatprep.subr.bf16.mxu0 0
      %955 = vmatpush1.bf16.msra.mxu0 0
      %956 = vmatprep.subr.bf16.mxu0 0
      %957 = vmatpush1.bf16.msra.mxu0 0
      %958 = vmatprep.subr.bf16.mxu0 0
      %959 = vmatpush1.bf16.msra.mxu0 0
      %960 = vmatprep.subr.bf16.mxu0 0
      %961 = vmatpush1.bf16.msra.mxu0 0
      %962 = vmatprep.subr.bf16.mxu0 0
      %963 = vmatpush1.bf16.msra.mxu0 0
      %964 = vmatprep.subr.bf16.mxu0 0
      %965 = vmatpush1.bf16.msra.mxu0 0
      %966 = vmatprep.subr.bf16.mxu0 0
      %967 = vmatpush1.bf16.msra.mxu0 0
      %968 = vmatprep.subr.bf16.mxu0 0
      %969 = vmatpush1.bf16.msra.mxu0 0
      %970 = vmatprep.subr.bf16.mxu0 0
      %971 = vmatpush1.bf16.msra.mxu0 0
      %972 = vmatprep.subr.bf16.mxu0 0
      %973 = vmatpush1.bf16.msra.mxu0 0
      %974 = vmatprep.subr.bf16.mxu0 0
      %975 = vmatpush1.bf16.msra.mxu0 0
      %976 = vmatprep.mubr.bf16.mxu0 0
      %977 = vmatmul.mubr.bf16.gmra.mrb[0].mxu0 %v393
      %v978 = vpop.f32.mrb[0].mxu0
      %v979 = vadd.f32 0.0, %v978
      %v980 = vpop.f32.mrb[0].mxu0
      %v981 = vadd.f32 0.0, %v980
      %v982 = vpop.f32.mrb[0].mxu0
      %v983 = vadd.f32 0.0, %v982
      %v984 = vpop.f32.mrb[0].mxu0
      %v985 = vadd.f32 0.0, %v984
      %986 = vdwg.mxu0
      %987 = vmatprep.subr.bf16.mxu0 %v915
      %988 = vmatpush1.bf16.msra.mxu0 %v914
      %989 = vmatprep.subr.bf16.mxu0 %v919
      %990 = vmatpush1.bf16.msra.mxu0 %v918
      %991 = vmatprep.subr.bf16.mxu0 %v923
      %992 = vmatpush1.bf16.msra.mxu0 %v922
      %993 = vmatprep.subr.bf16.mxu0 %v927
      %994 = vmatpush1.bf16.msra.mxu0 %v926
      %995 = vmatprep.subr.bf16.mxu0 0
      %996 = vmatpush1.bf16.msra.mxu0 0
      %997 = vmatprep.subr.bf16.mxu0 0
      %998 = vmatpush1.bf16.msra.mxu0 0
      %999 = vmatprep.subr.bf16.mxu0 0
      %1000 = vmatpush1.bf16.msra.mxu0 0
      %1001 = vmatprep.subr.bf16.mxu0 0
      %1002 = vmatpush1.bf16.msra.mxu0 0
      %1003 = vmatprep.subr.bf16.mxu0 0
      %1004 = vmatpush1.bf16.msra.mxu0 0
      %1005 = vmatprep.subr.bf16.mxu0 0
      %1006 = vmatpush1.bf16.msra.mxu0 0
      %1007 = vmatprep.subr.bf16.mxu0 0
      %1008 = vmatpush1.bf16.msra.mxu0 0
      %1009 = vmatprep.subr.bf16.mxu0 0
      %1010 = vmatpush1.bf16.msra.mxu0 0
      %1011 = vmatprep.subr.bf16.mxu0 0
      %1012 = vmatpush1.bf16.msra.mxu0 0
      %1013 = vmatprep.subr.bf16.mxu0 0
      %1014 = vmatpush1.bf16.msra.mxu0 0
      %1015 = vmatprep.subr.bf16.mxu0 0
      %1016 = vmatpush1.bf16.msra.mxu0 0
      %1017 = vmatprep.subr.bf16.mxu0 0
      %1018 = vmatpush1.bf16.msra.mxu0 0
      %1019 = vmatprep.mubr.bf16.mxu0 0
      %1020 = vmatmul.mubr.bf16.gmra.mrb[0].mxu0 %v393
      %v1021 = vpop.f32.mrb[0].mxu0
      %v1022 = vadd.f32 0.0, %v1021
      %v1023 = vpop.f32.mrb[0].mxu0
      %v1024 = vadd.f32 0.0, %v1023
      %v1025 = vpop.f32.mrb[0].mxu0
      %v1026 = vadd.f32 0.0, %v1025
      %v1027 = vpop.f32.mrb[0].mxu0
      %v1028 = vadd.f32 0.0, %v1027
      %1029 = vdwg.mxu0
      %v1030 = vpack.c.bf16 %v434, %v430
      %v1031 = vpack.c.bf16 %v436, %v432
      %v1032 = vpack.c.bf16 %v477, %v473
      %v1033 = vpack.c.bf16 %v479, %v475
      %v1034 = vpack.c.bf16 %v617, %v613
      %v1035 = vpack.c.bf16 %v619, %v615
      %v1036 = vpack.c.bf16 %v660, %v656
      %v1037 = vpack.c.bf16 %v662, %v658
      %v1038 = vpack.c.bf16 %v800, %v796
      %v1039 = vpack.c.bf16 %v802, %v798
      %v1040 = vpack.c.bf16 %v843, %v839
      %v1041 = vpack.c.bf16 %v845, %v841
      %v1042 = vpack.c.bf16 %v983, %v979
      %v1043 = vpack.c.bf16 %v985, %v981
      %v1044 = vpack.c.bf16 %v1026, %v1022
      %v1045 = vpack.c.bf16 %v1028, %v1024
      %v1046 = vld [vmem:[%s2] sm:$0xff]
      %v1047 = vld [vmem:[%s2 + $0x8] sm:$0xff]
      %v1048 = vld [vmem:[%s2 + $0x10] sm:$0xff]
      %v1049 = vld [vmem:[%s2 + $0x18] sm:$0xff]
      %v1050 = vld [vmem:[%s2 + $0x20] sm:$0xff]
      %v1051 = vld [vmem:[%s2 + $0x28] sm:$0xff]
      %v1052 = vld [vmem:[%s2 + $0x30] sm:$0xff]
      %v1053 = vld [vmem:[%s2 + $0x38] sm:$0xff]
      %v1054 = vld [vmem:[%s2 + $0x40] sm:$0xff]
      %v1055 = vld [vmem:[%s2 + $0x48] sm:$0xff]
      %v1056 = vld [vmem:[%s2 + $0x50] sm:$0xff]
      %v1057 = vld [vmem:[%s2 + $0x58] sm:$0xff]
      %v1058 = vld [vmem:[%s2 + $0x60] sm:$0xff]
      %v1059 = vld [vmem:[%s2 + $0x68] sm:$0xff]
      %v1060 = vld [vmem:[%s2 + $0x70] sm:$0xff]
      %v1061 = vld [vmem:[%s2 + $0x78] sm:$0xff]
      %v1062 = vld [vmem:[%s2 + $0x80] sm:$0xff]
      %v1063 = vld [vmem:[%s2 + $0x88] sm:$0xff]
      %v1064 = vld [vmem:[%s2 + $0x90] sm:$0xff]
      %v1065 = vld [vmem:[%s2 + $0x98] sm:$0xff]
      %v1066 = vld [vmem:[%s2 + $0xa0] sm:$0xff]
      %v1067 = vld [vmem:[%s2 + $0xa8] sm:$0xff]
      %v1068 = vld [vmem:[%s2 + $0xb0] sm:$0xff]
      %v1069 = vld [vmem:[%s2 + $0xb8] sm:$0xff]
      %v1070 = vld [vmem:[%s2 + $0xc0] sm:$0xff]
      %v1071 = vld [vmem:[%s2 + $0xc8] sm:$0xff]
      %v1072 = vld [vmem:[%s2 + $0xd0] sm:$0xff]
      %v1073 = vld [vmem:[%s2 + $0xd8] sm:$0xff]
      %v1074 = vld [vmem:[%s2 + $0xe0] sm:$0xff]
      %v1075 = vld [vmem:[%s2 + $0xe8] sm:$0xff]
      %v1076 = vld [vmem:[%s2 + $0xf0] sm:$0xff]
      %v1077 = vld [vmem:[%s2 + $0xf8] sm:$0xff]
      %v1078 = vld [vmem:[%s2 + $0x100] sm:$0xff]
      %v1079 = vld [vmem:[%s2 + $0x108] sm:$0xff]
      %v1080 = vld [vmem:[%s2 + $0x110] sm:$0xff]
      %v1081 = vld [vmem:[%s2 + $0x118] sm:$0xff]
      %v1082 = vld [vmem:[%s2 + $0x120] sm:$0xff]
      %v1083 = vld [vmem:[%s2 + $0x128] sm:$0xff]
      %v1084 = vld [vmem:[%s2 + $0x130] sm:$0xff]
      %v1085 = vld [vmem:[%s2 + $0x138] sm:$0xff]
      %v1086 = vld [vmem:[%s2 + $0x140] sm:$0xff]
      %v1087 = vld [vmem:[%s2 + $0x148] sm:$0xff]
      %v1088 = vld [vmem:[%s2 + $0x150] sm:$0xff]
      %v1089 = vld [vmem:[%s2 + $0x158] sm:$0xff]
      %v1090 = vld [vmem:[%s2 + $0x160] sm:$0xff]
      %v1091 = vld [vmem:[%s2 + $0x168] sm:$0xff]
      %v1092 = vld [vmem:[%s2 + $0x170] sm:$0xff]
      %v1093 = vld [vmem:[%s2 + $0x178] sm:$0xff]
      %v1094 = vld [vmem:[%s2 + $0x180] sm:$0xff]
      %v1095 = vld [vmem:[%s2 + $0x188] sm:$0xff]
      %v1096 = vld [vmem:[%s2 + $0x190] sm:$0xff]
      %v1097 = vld [vmem:[%s2 + $0x198] sm:$0xff]
      %v1098 = vld [vmem:[%s2 + $0x1a0] sm:$0xff]
      %v1099 = vld [vmem:[%s2 + $0x1a8] sm:$0xff]
      %v1100 = vld [vmem:[%s2 + $0x1b0] sm:$0xff]
      %v1101 = vld [vmem:[%s2 + $0x1b8] sm:$0xff]
      %v1102 = vld [vmem:[%s2 + $0x1c0] sm:$0xff]
      %v1103 = vld [vmem:[%s2 + $0x1c8] sm:$0xff]
      %v1104 = vld [vmem:[%s2 + $0x1d0] sm:$0xff]
      %v1105 = vld [vmem:[%s2 + $0x1d8] sm:$0xff]
      %v1106 = vld [vmem:[%s2 + $0x1e0] sm:$0xff]
      %v1107 = vld [vmem:[%s2 + $0x1e8] sm:$0xff]
      %v1108 = vld [vmem:[%s2 + $0x1f0] sm:$0xff]
      %v1109 = vld [vmem:[%s2 + $0x1f8] sm:$0xff]
      %v1110 = vld [vmem:[%s3] sm:$0x3]
      %v1112 = vlaneseq
      %v1113 = vshrl.u32 %v1112, 7
      %v1114 = vsub.s32 0, %v1113
      %v1115 = vrot.slane %v1110, %v1114
      %v1116 = vlaneseq
      %v1117 = vshrl.u32 %v1116, 7
      %v1118 = vsub.s32 1, %v1117
      %v1119 = vrot.slane %v1110, %v1118
      %v1186 = vunpack.c.l.b16 %v1046
      %v1187 = vunpack.c.h.b16 %v1046
      %v1188 = vunpack.c.l.b16 %v1047
      %v1189 = vunpack.c.h.b16 %v1047
      %v1190 = vunpack.c.l.b16 %v1048
      %v1191 = vunpack.c.h.b16 %v1048
      %v1192 = vunpack.c.l.b16 %v1049
      %v1193 = vunpack.c.h.b16 %v1049
      %v1194 = vunpack.c.l.b16 %v1050
      %v1195 = vunpack.c.h.b16 %v1050
      %v1196 = vunpack.c.l.b16 %v1051
      %v1197 = vunpack.c.h.b16 %v1051
      %v1198 = vunpack.c.l.b16 %v1052
      %v1199 = vunpack.c.h.b16 %v1052
      %v1200 = vunpack.c.l.b16 %v1053
      %v1201 = vunpack.c.h.b16 %v1053
      %v1202 = vunpack.c.l.b16 %v1054
      %v1203 = vunpack.c.h.b16 %v1054
      %v1204 = vunpack.c.l.b16 %v1055
      %v1205 = vunpack.c.h.b16 %v1055
      %v1206 = vunpack.c.l.b16 %v1056
      %v1207 = vunpack.c.h.b16 %v1056
      %v1208 = vunpack.c.l.b16 %v1057
      %v1209 = vunpack.c.h.b16 %v1057
      %v1210 = vunpack.c.l.b16 %v1058
      %v1211 = vunpack.c.h.b16 %v1058
      %v1212 = vunpack.c.l.b16 %v1059
      %v1213 = vunpack.c.h.b16 %v1059
      %v1214 = vunpack.c.l.b16 %v1060
      %v1215 = vunpack.c.h.b16 %v1060
      %v1216 = vunpack.c.l.b16 %v1061
      %v1217 = vunpack.c.h.b16 %v1061
      %v1218 = vunpack.c.l.b16 %v1062
      %v1219 = vunpack.c.h.b16 %v1062
      %v1220 = vunpack.c.l.b16 %v1063
      %v1221 = vunpack.c.h.b16 %v1063
      %v1222 = vunpack.c.l.b16 %v1064
      %v1223 = vunpack.c.h.b16 %v1064
      %v1224 = vunpack.c.l.b16 %v1065
      %v1225 = vunpack.c.h.b16 %v1065
      %v1226 = vunpack.c.l.b16 %v1066
      %v1227 = vunpack.c.h.b16 %v1066
      %v1228 = vunpack.c.l.b16 %v1067
      %v1229 = vunpack.c.h.b16 %v1067
      %v1230 = vunpack.c.l.b16 %v1068
      %v1231 = vunpack.c.h.b16 %v1068
      %v1232 = vunpack.c.l.b16 %v1069
      %v1233 = vunpack.c.h.b16 %v1069
      %v1234 = vunpack.c.l.b16 %v1070
      %v1235 = vunpack.c.h.b16 %v1070
      %v1236 = vunpack.c.l.b16 %v1071
      %v1237 = vunpack.c.h.b16 %v1071
      %v1238 = vunpack.c.l.b16 %v1072
      %v1239 = vunpack.c.h.b16 %v1072
      %v1240 = vunpack.c.l.b16 %v1073
      %v1241 = vunpack.c.h.b16 %v1073
      %v1242 = vunpack.c.l.b16 %v1074
      %v1243 = vunpack.c.h.b16 %v1074
      %v1244 = vunpack.c.l.b16 %v1075
      %v1245 = vunpack.c.h.b16 %v1075
      %v1246 = vunpack.c.l.b16 %v1076
      %v1247 = vunpack.c.h.b16 %v1076
      %v1248 = vunpack.c.l.b16 %v1077
      %v1249 = vunpack.c.h.b16 %v1077
      %v1250 = vunpack.c.l.b16 %v1078
      %v1251 = vunpack.c.h.b16 %v1078
      %v1252 = vunpack.c.l.b16 %v1079
      %v1253 = vunpack.c.h.b16 %v1079
      %v1254 = vunpack.c.l.b16 %v1080
      %v1255 = vunpack.c.h.b16 %v1080
      %v1256 = vunpack.c.l.b16 %v1081
      %v1257 = vunpack.c.h.b16 %v1081
      %v1258 = vunpack.c.l.b16 %v1082
      %v1259 = vunpack.c.h.b16 %v1082
      %v1260 = vunpack.c.l.b16 %v1083
      %v1261 = vunpack.c.h.b16 %v1083
      %v1262 = vunpack.c.l.b16 %v1084
      %v1263 = vunpack.c.h.b16 %v1084
      %v1264 = vunpack.c.l.b16 %v1085
      %v1265 = vunpack.c.h.b16 %v1085
      %v1266 = vunpack.c.l.b16 %v1086
      %v1267 = vunpack.c.h.b16 %v1086
      %v1268 = vunpack.c.l.b16 %v1087
      %v1269 = vunpack.c.h.b16 %v1087
      %v1270 = vunpack.c.l.b16 %v1088
      %v1271 = vunpack.c.h.b16 %v1088
      %v1272 = vunpack.c.l.b16 %v1089
      %v1273 = vunpack.c.h.b16 %v1089
      %v1274 = vunpack.c.l.b16 %v1090
      %v1275 = vunpack.c.h.b16 %v1090
      %v1276 = vunpack.c.l.b16 %v1091
      %v1277 = vunpack.c.h.b16 %v1091
      %v1278 = vunpack.c.l.b16 %v1092
      %v1279 = vunpack.c.h.b16 %v1092
      %v1280 = vunpack.c.l.b16 %v1093
      %v1281 = vunpack.c.h.b16 %v1093
      %v1282 = vunpack.c.l.b16 %v1094
      %v1283 = vunpack.c.h.b16 %v1094
      %v1284 = vunpack.c.l.b16 %v1095
      %v1285 = vunpack.c.h.b16 %v1095
      %v1286 = vunpack.c.l.b16 %v1096
      %v1287 = vunpack.c.h.b16 %v1096
      %v1288 = vunpack.c.l.b16 %v1097
      %v1289 = vunpack.c.h.b16 %v1097
      %v1290 = vunpack.c.l.b16 %v1098
      %v1291 = vunpack.c.h.b16 %v1098
      %v1292 = vunpack.c.l.b16 %v1099
      %v1293 = vunpack.c.h.b16 %v1099
      %v1294 = vunpack.c.l.b16 %v1100
      %v1295 = vunpack.c.h.b16 %v1100
      %v1296 = vunpack.c.l.b16 %v1101
      %v1297 = vunpack.c.h.b16 %v1101
      %v1298 = vunpack.c.l.b16 %v1102
      %v1299 = vunpack.c.h.b16 %v1102
      %v1300 = vunpack.c.l.b16 %v1103
      %v1301 = vunpack.c.h.b16 %v1103
      %v1302 = vunpack.c.l.b16 %v1104
      %v1303 = vunpack.c.h.b16 %v1104
      %v1304 = vunpack.c.l.b16 %v1105
      %v1305 = vunpack.c.h.b16 %v1105
      %v1306 = vunpack.c.l.b16 %v1106
      %v1307 = vunpack.c.h.b16 %v1106
      %v1308 = vunpack.c.l.b16 %v1107
      %v1309 = vunpack.c.h.b16 %v1107
      %v1310 = vunpack.c.l.b16 %v1108
      %v1311 = vunpack.c.h.b16 %v1108
      %v1312 = vunpack.c.l.b16 %v1109
      %v1313 = vunpack.c.h.b16 %v1109
      %v1314 = vpack.c.b16 %v1188, %v1186
      %v1315 = vpack.c.b16 %v1189, %v1187
      %v1316 = vpack.c.b16 %v1192, %v1190
      %v1317 = vpack.c.b16 %v1193, %v1191
      %v1318 = vpack.c.b16 %v1196, %v1194
      %v1319 = vpack.c.b16 %v1197, %v1195
      %v1320 = vpack.c.b16 %v1200, %v1198
      %v1321 = vpack.c.b16 %v1201, %v1199
      %v1322 = vpack.c.b16 %v1204, %v1202
      %v1323 = vpack.c.b16 %v1205, %v1203
      %v1324 = vpack.c.b16 %v1208, %v1206
      %v1325 = vpack.c.b16 %v1209, %v1207
      %v1326 = vpack.c.b16 %v1212, %v1210
      %v1327 = vpack.c.b16 %v1213, %v1211
      %v1328 = vpack.c.b16 %v1216, %v1214
      %v1329 = vpack.c.b16 %v1217, %v1215
      %v1330 = vpack.c.b16 %v1220, %v1218
      %v1331 = vpack.c.b16 %v1221, %v1219
      %v1332 = vpack.c.b16 %v1224, %v1222
      %v1333 = vpack.c.b16 %v1225, %v1223
      %v1334 = vpack.c.b16 %v1228, %v1226
      %v1335 = vpack.c.b16 %v1229, %v1227
      %v1336 = vpack.c.b16 %v1232, %v1230
      %v1337 = vpack.c.b16 %v1233, %v1231
      %v1338 = vpack.c.b16 %v1236, %v1234
      %v1339 = vpack.c.b16 %v1237, %v1235
      %v1340 = vpack.c.b16 %v1240, %v1238
      %v1341 = vpack.c.b16 %v1241, %v1239
      %v1342 = vpack.c.b16 %v1244, %v1242
      %v1343 = vpack.c.b16 %v1245, %v1243
      %v1344 = vpack.c.b16 %v1248, %v1246
      %v1345 = vpack.c.b16 %v1249, %v1247
      %v1346 = vpack.c.b16 %v1252, %v1250
      %v1347 = vpack.c.b16 %v1253, %v1251
      %v1348 = vpack.c.b16 %v1256, %v1254
      %v1349 = vpack.c.b16 %v1257, %v1255
      %v1350 = vpack.c.b16 %v1260, %v1258
      %v1351 = vpack.c.b16 %v1261, %v1259
      %v1352 = vpack.c.b16 %v1264, %v1262
      %v1353 = vpack.c.b16 %v1265, %v1263
      %v1354 = vpack.c.b16 %v1268, %v1266
      %v1355 = vpack.c.b16 %v1269, %v1267
      %v1356 = vpack.c.b16 %v1272, %v1270
      %v1357 = vpack.c.b16 %v1273, %v1271
      %v1358 = vpack.c.b16 %v1276, %v1274
      %v1359 = vpack.c.b16 %v1277, %v1275
      %v1360 = vpack.c.b16 %v1280, %v1278
      %v1361 = vpack.c.b16 %v1281, %v1279
      %v1362 = vpack.c.b16 %v1284, %v1282
      %v1363 = vpack.c.b16 %v1285, %v1283
      %v1364 = vpack.c.b16 %v1288, %v1286
      %v1365 = vpack.c.b16 %v1289, %v1287
      %v1366 = vpack.c.b16 %v1292, %v1290
      %v1367 = vpack.c.b16 %v1293, %v1291
      %v1368 = vpack.c.b16 %v1296, %v1294
      %v1369 = vpack.c.b16 %v1297, %v1295
      %v1370 = vpack.c.b16 %v1300, %v1298
      %v1371 = vpack.c.b16 %v1301, %v1299
      %v1372 = vpack.c.b16 %v1304, %v1302
      %v1373 = vpack.c.b16 %v1305, %v1303
      %v1374 = vpack.c.b16 %v1308, %v1306
      %v1375 = vpack.c.b16 %v1309, %v1307
      %v1376 = vpack.c.b16 %v1312, %v1310
      %v1377 = vpack.c.b16 %v1313, %v1311
      %1442 = vmatprep.subr.bf16.mxu0 %v1315
      %1443 = vmatpush1.bf16.msra.mxu0 %v1314
      %1444 = vmatprep.subr.bf16.mxu0 %v1317
      %1445 = vmatpush1.bf16.msra.mxu0 %v1316
      %1446 = vmatprep.subr.bf16.mxu0 %v1319
      %1447 = vmatpush1.bf16.msra.mxu0 %v1318
      %1448 = vmatprep.subr.bf16.mxu0 %v1321
      %1449 = vmatpush1.bf16.msra.mxu0 %v1320
      %1450 = vmatprep.subr.bf16.mxu0 %v1323
      %1451 = vmatpush1.bf16.msra.mxu0 %v1322
      %1452 = vmatprep.subr.bf16.mxu0 %v1325
      %1453 = vmatpush1.bf16.msra.mxu0 %v1324
      %1454 = vmatprep.subr.bf16.mxu0 %v1327
      %1455 = vmatpush1.bf16.msra.mxu0 %v1326
      %1456 = vmatprep.subr.bf16.mxu0 %v1329
      %1457 = vmatpush1.bf16.msra.mxu0 %v1328
      %1458 = vmatprep.subr.bf16.mxu0 %v1331
      %1459 = vmatpush1.bf16.msra.mxu0 %v1330
      %1460 = vmatprep.subr.bf16.mxu0 %v1333
      %1461 = vmatpush1.bf16.msra.mxu0 %v1332
      %1462 = vmatprep.subr.bf16.mxu0 %v1335
      %1463 = vmatpush1.bf16.msra.mxu0 %v1334
      %1464 = vmatprep.subr.bf16.mxu0 %v1337
      %1465 = vmatpush1.bf16.msra.mxu0 %v1336
      %1466 = vmatprep.subr.bf16.mxu0 %v1339
      %1467 = vmatpush1.bf16.msra.mxu0 %v1338
      %1468 = vmatprep.subr.bf16.mxu0 %v1341
      %1469 = vmatpush1.bf16.msra.mxu0 %v1340
      %1470 = vmatprep.subr.bf16.mxu0 %v1343
      %1471 = vmatpush1.bf16.msra.mxu0 %v1342
      %1472 = vmatprep.subr.bf16.mxu0 %v1345
      %1473 = vmatpush1.bf16.msra.mxu0 %v1344
      %1474 = vmatprep.mubr.bf16.mxu0 %v1031
      %1475 = vmatmul.mubr.bf16.gmra.mrb[0].mxu0 %v1030
      %v1476 = vpop.f32.mrb[0].mxu0
      %v1477 = vadd.f32 %v1115, %v1476
      %v1478 = vpop.f32.mrb[0].mxu0
      %v1479 = vadd.f32 %v1119, %v1478
      %v1480 = vpop.f32.mrb[0].mxu0
      %v1481 = vadd.f32 %v1115, %v1480
      %v1482 = vpop.f32.mrb[0].mxu0
      %v1483 = vadd.f32 %v1119, %v1482
      %1484 = vmatprep.mubr.bf16.mxu0 %v1035
      %1485 = vmatmul.mubr.bf16.gmra.mrb[0].mxu0 %v1034
      %v1486 = vpop.f32.mrb[0].mxu0
      %v1487 = vadd.f32 %v1115, %v1486
      %v1488 = vpop.f32.mrb[0].mxu0
      %v1489 = vadd.f32 %v1119, %v1488
      %v1490 = vpop.f32.mrb[0].mxu0
      %v1491 = vadd.f32 %v1115, %v1490
      %v1492 = vpop.f32.mrb[0].mxu0
      %v1493 = vadd.f32 %v1119, %v1492
      %1494 = vmatprep.mubr.bf16.mxu0 %v1039
      %1495 = vmatmul.mubr.bf16.gmra.mrb[0].mxu0 %v1038
      %v1496 = vpop.f32.mrb[0].mxu0
      %v1497 = vadd.f32 %v1115, %v1496
      %v1498 = vpop.f32.mrb[0].mxu0
      %v1499 = vadd.f32 %v1119, %v1498
      %v1500 = vpop.f32.mrb[0].mxu0
      %v1501 = vadd.f32 %v1115, %v1500
      %v1502 = vpop.f32.mrb[0].mxu0
      %v1503 = vadd.f32 %v1119, %v1502
      %1504 = vmatprep.mubr.bf16.mxu0 %v1043
      %1505 = vmatmul.mubr.bf16.gmra.mrb[0].mxu0 %v1042
      %v1506 = vpop.f32.mrb[0].mxu0
      %v1507 = vadd.f32 %v1115, %v1506
      %v1508 = vpop.f32.mrb[0].mxu0
      %v1509 = vadd.f32 %v1119, %v1508
      %v1510 = vpop.f32.mrb[0].mxu0
      %v1511 = vadd.f32 %v1115, %v1510
      %v1512 = vpop.f32.mrb[0].mxu0
      %v1513 = vadd.f32 %v1119, %v1512
      %1514 = vdwg.mxu0
      %1515 = vmatprep.subr.bf16.mxu0 %v1347
      %1516 = vmatpush1.bf16.msra.mxu0 %v1346
      %1517 = vmatprep.subr.bf16.mxu0 %v1349
      %1518 = vmatpush1.bf16.msra.mxu0 %v1348
      %1519 = vmatprep.subr.bf16.mxu0 %v1351
      %1520 = vmatpush1.bf16.msra.mxu0 %v1350
      %1521 = vmatprep.subr.bf16.mxu0 %v1353
      %1522 = vmatpush1.bf16.msra.mxu0 %v1352
      %1523 = vmatprep.subr.bf16.mxu0 %v1355
      %1524 = vmatpush1.bf16.msra.mxu0 %v1354
      %1525 = vmatprep.subr.bf16.mxu0 %v1357
      %1526 = vmatpush1.bf16.msra.mxu0 %v1356
      %1527 = vmatprep.subr.bf16.mxu0 %v1359
      %1528 = vmatpush1.bf16.msra.mxu0 %v1358
      %1529 = vmatprep.subr.bf16.mxu0 %v1361
      %1530 = vmatpush1.bf16.msra.mxu0 %v1360
      %1531 = vmatprep.subr.bf16.mxu0 %v1363
      %1532 = vmatpush1.bf16.msra.mxu0 %v1362
      %1533 = vmatprep.subr.bf16.mxu0 %v1365
      %1534 = vmatpush1.bf16.msra.mxu0 %v1364
      %1535 = vmatprep.subr.bf16.mxu0 %v1367
      %1536 = vmatpush1.bf16.msra.mxu0 %v1366
      %1537 = vmatprep.subr.bf16.mxu0 %v1369
      %1538 = vmatpush1.bf16.msra.mxu0 %v1368
      %1539 = vmatprep.subr.bf16.mxu0 %v1371
      %1540 = vmatpush1.bf16.msra.mxu0 %v1370
      %1541 = vmatprep.subr.bf16.mxu0 %v1373
      %1542 = vmatpush1.bf16.msra.mxu0 %v1372
      %1543 = vmatprep.subr.bf16.mxu0 %v1375
      %1544 = vmatpush1.bf16.msra.mxu0 %v1374
      %1545 = vmatprep.subr.bf16.mxu0 %v1377
      %1546 = vmatpush1.bf16.msra.mxu0 %v1376
      %1547 = vmatprep.mubr.bf16.mxu0 %v1033
      %1548 = vmatmul.mubr.bf16.gmra.mrb[0].mxu0 %v1032
      %v1549 = vpop.f32.mrb[0].mxu0
      %v1550 = vadd.f32 %v1477, %v1549
      %v1551 = vpop.f32.mrb[0].mxu0
      %v1552 = vadd.f32 %v1479, %v1551
      %v1553 = vpop.f32.mrb[0].mxu0
      %v1554 = vadd.f32 %v1481, %v1553
      %v1555 = vpop.f32.mrb[0].mxu0
      %v1556 = vadd.f32 %v1483, %v1555
      %1557 = vmatprep.mubr.bf16.mxu0 %v1037
      %1558 = vmatmul.mubr.bf16.gmra.mrb[0].mxu0 %v1036
      %v1559 = vpop.f32.mrb[0].mxu0
      %v1560 = vadd.f32 %v1487, %v1559
      %v1561 = vpop.f32.mrb[0].mxu0
      %v1562 = vadd.f32 %v1489, %v1561
      %v1563 = vpop.f32.mrb[0].mxu0
      %v1564 = vadd.f32 %v1491, %v1563
      %v1565 = vpop.f32.mrb[0].mxu0
      %v1566 = vadd.f32 %v1493, %v1565
      %1567 = vmatprep.mubr.bf16.mxu0 %v1041
      %1568 = vmatmul.mubr.bf16.gmra.mrb[0].mxu0 %v1040
      %v1569 = vpop.f32.mrb[0].mxu0
      %v1570 = vadd.f32 %v1497, %v1569
      %v1571 = vpop.f32.mrb[0].mxu0
      %v1572 = vadd.f32 %v1499, %v1571
      %v1573 = vpop.f32.mrb[0].mxu0
      %v1574 = vadd.f32 %v1501, %v1573
      %v1575 = vpop.f32.mrb[0].mxu0
      %v1576 = vadd.f32 %v1503, %v1575
      %1577 = vmatprep.mubr.bf16.mxu0 %v1045
      %1578 = vmatmul.mubr.bf16.gmra.mrb[0].mxu0 %v1044
      %v1579 = vpop.f32.mrb[0].mxu0
      %v1580 = vadd.f32 %v1507, %v1579
      %v1581 = vpop.f32.mrb[0].mxu0
      %v1582 = vadd.f32 %v1509, %v1581
      %v1583 = vpop.f32.mrb[0].mxu0
      %v1584 = vadd.f32 %v1511, %v1583
      %v1585 = vpop.f32.mrb[0].mxu0
      %v1586 = vadd.f32 %v1513, %v1585
      %1587 = vdwg.mxu0
      %v1588 = vmax.f32 %v1550, 0.0
      %v1589 = vmax.f32 %v1552, 0.0
      %v1590 = vmax.f32 %v1554, 0.0
      %v1591 = vmax.f32 %v1556, 0.0
      %v1592 = vmax.f32 %v1560, 0.0
      %v1593 = vmax.f32 %v1562, 0.0
      %v1594 = vmax.f32 %v1564, 0.0
      %v1595 = vmax.f32 %v1566, 0.0
      %v1596 = vmax.f32 %v1570, 0.0
      %v1597 = vmax.f32 %v1572, 0.0
      %v1598 = vmax.f32 %v1574, 0.0
      %v1599 = vmax.f32 %v1576, 0.0
      %v1600 = vmax.f32 %v1580, 0.0
      %v1601 = vmax.f32 %v1582, 0.0
      %v1602 = vmax.f32 %v1584, 0.0
      %v1603 = vmax.f32 %v1586, 0.0
      %v1604 = vpack.c.bf16 %v1590, %v1588
      %v1605 = vpack.c.bf16 %v1591, %v1589
      %v1606 = vpack.c.bf16 %v1594, %v1592
      %v1607 = vpack.c.bf16 %v1595, %v1593
      %v1608 = vpack.c.bf16 %v1598, %v1596
      %v1609 = vpack.c.bf16 %v1599, %v1597
      %v1610 = vpack.c.bf16 %v1602, %v1600
      %v1611 = vpack.c.bf16 %v1603, %v1601
      %1612 = vst [vmem:[#allocation2] sm:$0xff] 0.0
      %1613 = vst [vmem:[#allocation2 + $0x8] sm:$0xff] 0.0
      %1614 = vst [vmem:[#allocation2 + $0x10] sm:$0xff] 0.0
      %1615 = vst [vmem:[#allocation2 + $0x18] sm:$0xff] 0.0
      %1616 = vst [vmem:[#allocation2 + $0x20] sm:$0xff] 0.0
      %1617 = vst [vmem:[#allocation2 + $0x28] sm:$0xff] 0.0
      %1618 = vst [vmem:[#allocation2 + $0x30] sm:$0xff] 0.0
      %1619 = vst [vmem:[#allocation2 + $0x38] sm:$0xff] 0.0
      %1620 = vst [vmem:[#allocation2 + $0x40] sm:$0xff] 0.0
      %1621 = vst [vmem:[#allocation2 + $0x48] sm:$0xff] 0.0
      %1622 = vst [vmem:[#allocation2 + $0x50] sm:$0xff] 0.0
      %1623 = vst [vmem:[#allocation2 + $0x58] sm:$0xff] 0.0
      %1624 = vst [vmem:[#allocation2 + $0x60] sm:$0xff] 0.0
      %1625 = vst [vmem:[#allocation2 + $0x68] sm:$0xff] 0.0
      %1626 = vst [vmem:[#allocation2 + $0x70] sm:$0xff] 0.0
      %1627 = vst [vmem:[#allocation2 + $0x78] sm:$0xff] 0.0
      %1628 = vst [vmem:[#allocation2 + $0x80] sm:$0xff] 0.0
      %1629 = vst [vmem:[#allocation2 + $0x88] sm:$0xff] 0.0
      %1630 = vst [vmem:[#allocation2 + $0x90] sm:$0xff] 0.0
      %1631 = vst [vmem:[#allocation2 + $0x98] sm:$0xff] 0.0
      %1632 = vst [vmem:[#allocation2 + $0xa0] sm:$0xff] 0.0
      %1633 = vst [vmem:[#allocation2 + $0xa8] sm:$0xff] 0.0
      %1634 = vst [vmem:[#allocation2 + $0xb0] sm:$0xff] 0.0
      %1635 = vst [vmem:[#allocation2 + $0xb8] sm:$0xff] 0.0
      %1636 = vst [vmem:[#allocation2 + $0xc0] sm:$0xff] 0.0
      %1637 = vst [vmem:[#allocation2 + $0xc8] sm:$0xff] 0.0
      %1638 = vst [vmem:[#allocation2 + $0xd0] sm:$0xff] 0.0
      %1639 = vst [vmem:[#allocation2 + $0xd8] sm:$0xff] 0.0
      %1640 = vst [vmem:[#allocation2 + $0xe0] sm:$0xff] 0.0
      %1641 = vst [vmem:[#allocation2 + $0xe8] sm:$0xff] 0.0
      %1642 = vst [vmem:[#allocation2 + $0xf0] sm:$0xff] 0.0
      %1643 = vst [vmem:[#allocation2 + $0xf8] sm:$0xff] 0.0
      %1644 = vst [vmem:[#allocation2 + $0x100] sm:$0xff] 0.0
      %1645 = vst [vmem:[#allocation2 + $0x108] sm:$0xff] 0.0
      %1646 = vst [vmem:[#allocation2 + $0x110] sm:$0xff] 0.0
      %1647 = vst [vmem:[#allocation2 + $0x118] sm:$0xff] 0.0
      %1648 = vst [vmem:[#allocation2 + $0x120] sm:$0xff] 0.0
      %1649 = vst [vmem:[#allocation2 + $0x128] sm:$0xff] 0.0
      %1650 = vst [vmem:[#allocation2 + $0x130] sm:$0xff] 0.0
      %1651 = vst [vmem:[#allocation2 + $0x138] sm:$0xff] 0.0
      %1652 = vst [vmem:[#allocation2 + $0x140] sm:$0xff] 0.0
      %1653 = vst [vmem:[#allocation2 + $0x148] sm:$0xff] 0.0
      %1654 = vst [vmem:[#allocation2 + $0x150] sm:$0xff] 0.0
      %1655 = vst [vmem:[#allocation2 + $0x158] sm:$0xff] 0.0
      %1656 = vst [vmem:[#allocation2 + $0x160] sm:$0xff] 0.0
      %1657 = vst [vmem:[#allocation2 + $0x168] sm:$0xff] 0.0
      %1658 = vst [vmem:[#allocation2 + $0x170] sm:$0xff] 0.0
      %1659 = vst [vmem:[#allocation2 + $0x178] sm:$0xff] 0.0
      %1660 = vst [vmem:[#allocation2 + $0x180] sm:$0xff] 0.0
      %1661 = vst [vmem:[#allocation2 + $0x188] sm:$0xff] 0.0
      %1662 = vst [vmem:[#allocation2 + $0x190] sm:$0xff] 0.0
      %1663 = vst [vmem:[#allocation2 + $0x198] sm:$0xff] 0.0
      %1664 = vst [vmem:[#allocation2 + $0x1a0] sm:$0xff] 0.0
      %1665 = vst [vmem:[#allocation2 + $0x1a8] sm:$0xff] 0.0
      %1666 = vst [vmem:[#allocation2 + $0x1b0] sm:$0xff] 0.0
      %1667 = vst [vmem:[#allocation2 + $0x1b8] sm:$0xff] 0.0
      %1668 = vst [vmem:[#allocation2 + $0x1c0] sm:$0xff] 0.0
      %1669 = vst [vmem:[#allocation2 + $0x1c8] sm:$0xff] 0.0
      %1670 = vst [vmem:[#allocation2 + $0x1d0] sm:$0xff] 0.0
      %1671 = vst [vmem:[#allocation2 + $0x1d8] sm:$0xff] 0.0
      %1672 = vst [vmem:[#allocation2 + $0x1e0] sm:$0xff] 0.0
      %1673 = vst [vmem:[#allocation2 + $0x1e8] sm:$0xff] 0.0
      %1674 = vst [vmem:[#allocation2 + $0x1f0] sm:$0xff] 0.0
      %1675 = vst [vmem:[#allocation2 + $0x1f8] sm:$0xff] 0.0
      %v1676 = vld [vmem:[%s5] sm:$0xff]
      %v1677 = vld [vmem:[%s5 + $0x8] sm:$0xff]
      %v1678 = vld [vmem:[%s5 + $0x10] sm:$0xff]
      %v1679 = vld [vmem:[%s5 + $0x18] sm:$0xff]
      %v1680 = vld [vmem:[%s5 + $0x20] sm:$0xff]
      %v1681 = vld [vmem:[%s5 + $0x28] sm:$0xff]
      %v1682 = vld [vmem:[%s5 + $0x30] sm:$0xff]
      %v1683 = vld [vmem:[%s5 + $0x38] sm:$0xff]
      %v1684 = vld [vmem:[%s5 + $0x40] sm:$0xff]
      %v1685 = vld [vmem:[%s5 + $0x48] sm:$0xff]
      %v1686 = vld [vmem:[%s5 + $0x50] sm:$0xff]
      %v1687 = vld [vmem:[%s5 + $0x58] sm:$0xff]
      %v1688 = vld [vmem:[%s5 + $0x60] sm:$0xff]
      %v1689 = vld [vmem:[%s5 + $0x68] sm:$0xff]
      %v1690 = vld [vmem:[%s5 + $0x70] sm:$0xff]
      %v1691 = vld [vmem:[%s5 + $0x78] sm:$0xff]
      %v1692 = vld [vmem:[%s5 + $0x80] sm:$0xff]
      %v1693 = vld [vmem:[%s5 + $0x88] sm:$0xff]
      %v1694 = vld [vmem:[%s5 + $0x90] sm:$0xff]
      %v1695 = vld [vmem:[%s5 + $0x98] sm:$0xff]
      %v1696 = vld [vmem:[%s5 + $0xa0] sm:$0xff]
      %v1697 = vld [vmem:[%s5 + $0xa8] sm:$0xff]
      %v1698 = vld [vmem:[%s5 + $0xb0] sm:$0xff]
      %v1699 = vld [vmem:[%s5 + $0xb8] sm:$0xff]
      %v1700 = vld [vmem:[%s5 + $0xc0] sm:$0xff]
      %v1701 = vld [vmem:[%s5 + $0xc8] sm:$0xff]
      %v1702 = vld [vmem:[%s5 + $0xd0] sm:$0xff]
      %v1703 = vld [vmem:[%s5 + $0xd8] sm:$0xff]
      %v1704 = vld [vmem:[%s5 + $0xe0] sm:$0xff]
      %v1705 = vld [vmem:[%s5 + $0xe8] sm:$0xff]
      %v1706 = vld [vmem:[%s5 + $0xf0] sm:$0xff]
      %v1707 = vld [vmem:[%s5 + $0xf8] sm:$0xff]
      %v1740 = vunpack.c.l.b16 %v1676
      %v1741 = vunpack.c.h.b16 %v1676
      %v1742 = vunpack.c.l.b16 %v1677
      %v1743 = vunpack.c.h.b16 %v1677
      %v1744 = vunpack.c.l.b16 %v1678
      %v1745 = vunpack.c.h.b16 %v1678
      %v1746 = vunpack.c.l.b16 %v1679
      %v1747 = vunpack.c.h.b16 %v1679
      %v1748 = vunpack.c.l.b16 %v1680
      %v1749 = vunpack.c.h.b16 %v1680
      %v1750 = vunpack.c.l.b16 %v1681
      %v1751 = vunpack.c.h.b16 %v1681
      %v1752 = vunpack.c.l.b16 %v1682
      %v1753 = vunpack.c.h.b16 %v1682
      %v1754 = vunpack.c.l.b16 %v1683
      %v1755 = vunpack.c.h.b16 %v1683
      %v1756 = vunpack.c.l.b16 %v1684
      %v1757 = vunpack.c.h.b16 %v1684
      %v1758 = vunpack.c.l.b16 %v1685
      %v1759 = vunpack.c.h.b16 %v1685
      %v1760 = vunpack.c.l.b16 %v1686
      %v1761 = vunpack.c.h.b16 %v1686
      %v1762 = vunpack.c.l.b16 %v1687
      %v1763 = vunpack.c.h.b16 %v1687
      %v1764 = vunpack.c.l.b16 %v1688
      %v1765 = vunpack.c.h.b16 %v1688
      %v1766 = vunpack.c.l.b16 %v1689
      %v1767 = vunpack.c.h.b16 %v1689
      %v1768 = vunpack.c.l.b16 %v1690
      %v1769 = vunpack.c.h.b16 %v1690
      %v1770 = vunpack.c.l.b16 %v1691
      %v1771 = vunpack.c.h.b16 %v1691
      %v1772 = vunpack.c.l.b16 %v1692
      %v1773 = vunpack.c.h.b16 %v1692
      %v1774 = vunpack.c.l.b16 %v1693
      %v1775 = vunpack.c.h.b16 %v1693
      %v1776 = vunpack.c.l.b16 %v1694
      %v1777 = vunpack.c.h.b16 %v1694
      %v1778 = vunpack.c.l.b16 %v1695
      %v1779 = vunpack.c.h.b16 %v1695
      %v1780 = vunpack.c.l.b16 %v1696
      %v1781 = vunpack.c.h.b16 %v1696
      %v1782 = vunpack.c.l.b16 %v1697
      %v1783 = vunpack.c.h.b16 %v1697
      %v1784 = vunpack.c.l.b16 %v1698
      %v1785 = vunpack.c.h.b16 %v1698
      %v1786 = vunpack.c.l.b16 %v1699
      %v1787 = vunpack.c.h.b16 %v1699
      %v1788 = vunpack.c.l.b16 %v1700
      %v1789 = vunpack.c.h.b16 %v1700
      %v1790 = vunpack.c.l.b16 %v1701
      %v1791 = vunpack.c.h.b16 %v1701
      %v1792 = vunpack.c.l.b16 %v1702
      %v1793 = vunpack.c.h.b16 %v1702
      %v1794 = vunpack.c.l.b16 %v1703
      %v1795 = vunpack.c.h.b16 %v1703
      %v1796 = vunpack.c.l.b16 %v1704
      %v1797 = vunpack.c.h.b16 %v1704
      %v1798 = vunpack.c.l.b16 %v1705
      %v1799 = vunpack.c.h.b16 %v1705
      %v1800 = vunpack.c.l.b16 %v1706
      %v1801 = vunpack.c.h.b16 %v1706
      %v1802 = vunpack.c.l.b16 %v1707
      %v1803 = vunpack.c.h.b16 %v1707
      %v1804 = vpack.c.b16 %v1742, %v1740
      %v1805 = vpack.c.b16 %v1743, %v1741
      %v1806 = vpack.c.b16 %v1746, %v1744
      %v1807 = vpack.c.b16 %v1747, %v1745
      %v1808 = vpack.c.b16 %v1750, %v1748
      %v1809 = vpack.c.b16 %v1751, %v1749
      %v1810 = vpack.c.b16 %v1754, %v1752
      %v1811 = vpack.c.b16 %v1755, %v1753
      %v1812 = vpack.c.b16 %v1758, %v1756
      %v1813 = vpack.c.b16 %v1759, %v1757
      %v1814 = vpack.c.b16 %v1762, %v1760
      %v1815 = vpack.c.b16 %v1763, %v1761
      %v1816 = vpack.c.b16 %v1766, %v1764
      %v1817 = vpack.c.b16 %v1767, %v1765
      %v1818 = vpack.c.b16 %v1770, %v1768
      %v1819 = vpack.c.b16 %v1771, %v1769
      %v1820 = vpack.c.b16 %v1774, %v1772
      %v1821 = vpack.c.b16 %v1775, %v1773
      %v1822 = vpack.c.b16 %v1778, %v1776
      %v1823 = vpack.c.b16 %v1779, %v1777
      %v1824 = vpack.c.b16 %v1782, %v1780
      %v1825 = vpack.c.b16 %v1783, %v1781
      %v1826 = vpack.c.b16 %v1786, %v1784
      %v1827 = vpack.c.b16 %v1787, %v1785
      %v1828 = vpack.c.b16 %v1790, %v1788
      %v1829 = vpack.c.b16 %v1791, %v1789
      %v1830 = vpack.c.b16 %v1794, %v1792
      %v1831 = vpack.c.b16 %v1795, %v1793
      %v1832 = vpack.c.b16 %v1798, %v1796
      %v1833 = vpack.c.b16 %v1799, %v1797
      %v1834 = vpack.c.b16 %v1802, %v1800
      %v1835 = vpack.c.b16 %v1803, %v1801
      %1868 = vmatprep.subr.bf16.mxu0 %v1805
      %1869 = vmatpush1.bf16.msra.mxu0 %v1804
      %1870 = vmatprep.subr.bf16.mxu0 %v1807
      %1871 = vmatpush1.bf16.msra.mxu0 %v1806
      %1872 = vmatprep.subr.bf16.mxu0 %v1809
      %1873 = vmatpush1.bf16.msra.mxu0 %v1808
      %1874 = vmatprep.subr.bf16.mxu0 %v1811
      %1875 = vmatpush1.bf16.msra.mxu0 %v1810
      %1876 = vmatprep.subr.bf16.mxu0 %v1813
      %1877 = vmatpush1.bf16.msra.mxu0 %v1812
      %1878 = vmatprep.subr.bf16.mxu0 %v1815
      %1879 = vmatpush1.bf16.msra.mxu0 %v1814
      %1880 = vmatprep.subr.bf16.mxu0 %v1817
      %1881 = vmatpush1.bf16.msra.mxu0 %v1816
      %1882 = vmatprep.subr.bf16.mxu0 %v1819
      %1883 = vmatpush1.bf16.msra.mxu0 %v1818
      %1884 = vmatprep.subr.bf16.mxu0 %v1821
      %1885 = vmatpush1.bf16.msra.mxu0 %v1820
      %1886 = vmatprep.subr.bf16.mxu0 %v1823
      %1887 = vmatpush1.bf16.msra.mxu0 %v1822
      %1888 = vmatprep.subr.bf16.mxu0 %v1825
      %1889 = vmatpush1.bf16.msra.mxu0 %v1824
      %1890 = vmatprep.subr.bf16.mxu0 %v1827
      %1891 = vmatpush1.bf16.msra.mxu0 %v1826
      %1892 = vmatprep.subr.bf16.mxu0 %v1829
      %1893 = vmatpush1.bf16.msra.mxu0 %v1828
      %1894 = vmatprep.subr.bf16.mxu0 %v1831
      %1895 = vmatpush1.bf16.msra.mxu0 %v1830
      %1896 = vmatprep.subr.bf16.mxu0 %v1833
      %1897 = vmatpush1.bf16.msra.mxu0 %v1832
      %1898 = vmatprep.subr.bf16.mxu0 %v1835
      %1899 = vmatpush1.bf16.msra.mxu0 %v1834
      %1900 = vmatprep.mubr.bf16.mxu0 %v1605
      %1901 = vmatmul.mubr.bf16.gmra.mrb[0].mxu0 %v1604
      %v1902 = vpop.f32.mrb[0].mxu0
      %v1903 = vadd.f32 0.0, %v1902
      %v1904 = vpop.f32.mrb[0].mxu0
      %v1905 = vadd.f32 0.0, %v1904
      %v1906 = vpop.f32.mrb[0].mxu0
      %v1907 = vadd.f32 0.0, %v1906
      %v1908 = vpop.f32.mrb[0].mxu0
      %v1909 = vadd.f32 0.0, %v1908
      %1910 = vmatprep.mubr.bf16.mxu0 %v1607
      %1911 = vmatmul.mubr.bf16.gmra.mrb[0].mxu0 %v1606
      %v1912 = vpop.f32.mrb[0].mxu0
      %v1913 = vadd.f32 0.0, %v1912
      %v1914 = vpop.f32.mrb[0].mxu0
      %v1915 = vadd.f32 0.0, %v1914
      %v1916 = vpop.f32.mrb[0].mxu0
      %v1917 = vadd.f32 0.0, %v1916
      %v1918 = vpop.f32.mrb[0].mxu0
      %v1919 = vadd.f32 0.0, %v1918
      %1920 = vmatprep.mubr.bf16.mxu0 %v1609
      %1921 = vmatmul.mubr.bf16.gmra.mrb[0].mxu0 %v1608
      %v1922 = vpop.f32.mrb[0].mxu0
      %v1923 = vadd.f32 0.0, %v1922
      %v1924 = vpop.f32.mrb[0].mxu0
      %v1925 = vadd.f32 0.0, %v1924
      %v1926 = vpop.f32.mrb[0].mxu0
      %v1927 = vadd.f32 0.0, %v1926
      %v1928 = vpop.f32.mrb[0].mxu0
      %v1929 = vadd.f32 0.0, %v1928
      %1930 = vmatprep.mubr.bf16.mxu0 %v1611
      %1931 = vmatmul.mubr.bf16.gmra.mrb[0].mxu0 %v1610
      %v1932 = vpop.f32.mrb[0].mxu0
      %v1933 = vadd.f32 0.0, %v1932
      %v1934 = vpop.f32.mrb[0].mxu0
      %v1935 = vadd.f32 0.0, %v1934
      %v1936 = vpop.f32.mrb[0].mxu0
      %v1937 = vadd.f32 0.0, %v1936
      %v1938 = vpop.f32.mrb[0].mxu0
      %v1939 = vadd.f32 0.0, %v1938
      %1940 = vdwg.mxu0
      %v1941 = vpack.c.bf16 %v1907, %v1903
      %v1942 = vpack.c.bf16 %v1909, %v1905
      %v1943 = vpack.c.bf16 %v1917, %v1913
      %v1944 = vpack.c.bf16 %v1919, %v1915
      %v1945 = vpack.c.bf16 %v1927, %v1923
      %v1946 = vpack.c.bf16 %v1929, %v1925
      %v1947 = vpack.c.bf16 %v1937, %v1933
      %v1948 = vpack.c.bf16 %v1939, %v1935
      %v1949 = vld [vmem:[%s4] sm:$0xf]
      %v1950 = vld [vmem:[%s4 + $0x4] sm:$0xf]
      %v1951 = vld [vmem:[%s4 + $0x8] sm:$0xf]
      %v1952 = vld [vmem:[%s4 + $0xc] sm:$0xf]
      %v1953 = vld [vmem:[%s4 + $0x10] sm:$0xf]
      %v1954 = vld [vmem:[%s4 + $0x14] sm:$0xf]
      %v1955 = vld [vmem:[%s4 + $0x18] sm:$0xf]
      %v1956 = vld [vmem:[%s4 + $0x1c] sm:$0xf]
      %v1957 = vld [vmem:[#allocation2] sm:$0xff]
      %v1958 = vld [vmem:[#allocation2 + $0x8] sm:$0xff]
      %v1959 = vld [vmem:[#allocation2 + $0x10] sm:$0xff]
      %v1960 = vld [vmem:[#allocation2 + $0x18] sm:$0xff]
      %v1961 = vld [vmem:[#allocation2 + $0x20] sm:$0xff]
      %v1962 = vld [vmem:[#allocation2 + $0x28] sm:$0xff]
      %v1963 = vld [vmem:[#allocation2 + $0x30] sm:$0xff]
      %v1964 = vld [vmem:[#allocation2 + $0x38] sm:$0xff]
      %v1965 = vld [vmem:[#allocation2 + $0x40] sm:$0xff]
      %v1966 = vld [vmem:[#allocation2 + $0x48] sm:$0xff]
      %v1967 = vld [vmem:[#allocation2 + $0x50] sm:$0xff]
      %v1968 = vld [vmem:[#allocation2 + $0x58] sm:$0xff]
      %v1969 = vld [vmem:[#allocation2 + $0x60] sm:$0xff]
      %v1970 = vld [vmem:[#allocation2 + $0x68] sm:$0xff]
      %v1971 = vld [vmem:[#allocation2 + $0x70] sm:$0xff]
      %v1972 = vld [vmem:[#allocation2 + $0x78] sm:$0xff]
      %v1981 = vunpack.c.l.b16 %v1949
      %v1982 = vunpack.c.l.b16 %v1950
      %v1983 = vunpack.c.l.b16 %v1951
      %v1984 = vunpack.c.l.b16 %v1952
      %v1985 = vunpack.c.l.b16 %v1953
      %v1986 = vunpack.c.l.b16 %v1954
      %v1987 = vunpack.c.l.b16 %v1955
      %v1988 = vunpack.c.l.b16 %v1956
      %v1989 = vpack.c.b16 %v1982, %v1981
      %v1990 = vpack.c.b16 %v1984, %v1983
      %v1991 = vpack.c.b16 %v1986, %v1985
      %v1992 = vpack.c.b16 %v1988, %v1987
      %vm1993 = vcmask 130048
      %v1995 = vsel %vm1993, %v1989, 0
      %v1998 = vsel %vm1993, %v1990, 0
      %v2001 = vsel %vm1993, %v1991, 0
      %v2004 = vsel %vm1993, %v1992, 0
      %2006 = vmatprep.subr.bf16.mxu0 %v1942
      %2007 = vmatpush1.bf16.msra.mxu0 %v1941
      %2008 = vmatprep.subr.bf16.mxu0 0
      %2009 = vmatpush1.bf16.msra.mxu0 0
      %2010 = vmatprep.subr.bf16.mxu0 0
      %2011 = vmatpush1.bf16.msra.mxu0 0
      %2012 = vmatprep.subr.bf16.mxu0 0
      %2013 = vmatpush1.bf16.msra.mxu0 0
      %2014 = vmatprep.subr.bf16.mxu0 0
      %2015 = vmatpush1.bf16.msra.mxu0 0
      %2016 = vmatprep.subr.bf16.mxu0 0
      %2017 = vmatpush1.bf16.msra.mxu0 0
      %2018 = vmatprep.subr.bf16.mxu0 0
      %2019 = vmatpush1.bf16.msra.mxu0 0
      %2020 = vmatprep.subr.bf16.mxu0 0
      %2021 = vmatpush1.bf16.msra.mxu0 0
      %2022 = vmatprep.subr.bf16.mxu0 0
      %2023 = vmatpush1.bf16.msra.mxu0 0
      %2024 = vmatprep.subr.bf16.mxu0 0
      %2025 = vmatpush1.bf16.msra.mxu0 0
      %2026 = vmatprep.subr.bf16.mxu0 0
      %2027 = vmatpush1.bf16.msra.mxu0 0
      %2028 = vmatprep.subr.bf16.mxu0 0
      %2029 = vmatpush1.bf16.msra.mxu0 0
      %2030 = vmatprep.subr.bf16.mxu0 0
      %2031 = vmatpush1.bf16.msra.mxu0 0
      %2032 = vmatprep.subr.bf16.mxu0 0
      %2033 = vmatpush1.bf16.msra.mxu0 0
      %2034 = vmatprep.subr.bf16.mxu0 0
      %2035 = vmatpush1.bf16.msra.mxu0 0
      %2036 = vmatprep.subr.bf16.mxu0 0
      %2037 = vmatpush1.bf16.msra.mxu0 0
      %2038 = vmatprep.mubr.bf16.mxu0 0
      %2039 = vmatmul.mubr.bf16.gmra.mrb[0].mxu0 %v1995
      %v2040 = vpop.f32.mrb[0].mxu0
      %v2041 = vadd.f32 0.0, %v2040
      %v2042 = vpop.f32.mrb[0].mxu0
      %v2043 = vadd.f32 0.0, %v2042
      %v2044 = vpop.f32.mrb[0].mxu0
      %v2045 = vadd.f32 0.0, %v2044
      %v2046 = vpop.f32.mrb[0].mxu0
      %v2047 = vadd.f32 0.0, %v2046
      %2048 = vmatprep.mubr.bf16.mxu0 0
      %2049 = vmatmul.mubr.bf16.gmra.mrb[0].mxu0 %v1998
      %v2050 = vpop.f32.mrb[0].mxu0
      %v2051 = vadd.f32 0.0, %v2050
      %v2052 = vpop.f32.mrb[0].mxu0
      %v2053 = vadd.f32 0.0, %v2052
      %v2054 = vpop.f32.mrb[0].mxu0
      %v2055 = vadd.f32 0.0, %v2054
      %v2056 = vpop.f32.mrb[0].mxu0
      %v2057 = vadd.f32 0.0, %v2056
      %2058 = vmatprep.mubr.bf16.mxu0 0
      %2059 = vmatmul.mubr.bf16.gmra.mrb[0].mxu0 %v2001
      %v2060 = vpop.f32.mrb[0].mxu0
      %v2061 = vadd.f32 0.0, %v2060
      %v2062 = vpop.f32.mrb[0].mxu0
      %v2063 = vadd.f32 0.0, %v2062
      %v2064 = vpop.f32.mrb[0].mxu0
      %v2065 = vadd.f32 0.0, %v2064
      %v2066 = vpop.f32.mrb[0].mxu0
      %v2067 = vadd.f32 0.0, %v2066
      %2068 = vmatprep.mubr.bf16.mxu0 0
      %2069 = vmatmul.mubr.bf16.gmra.mrb[0].mxu0 %v2004
      %v2070 = vpop.f32.mrb[0].mxu0
      %v2071 = vadd.f32 0.0, %v2070
      %v2072 = vpop.f32.mrb[0].mxu0
      %v2073 = vadd.f32 0.0, %v2072
      %v2074 = vpop.f32.mrb[0].mxu0
      %v2075 = vadd.f32 0.0, %v2074
      %v2076 = vpop.f32.mrb[0].mxu0
      %v2077 = vadd.f32 0.0, %v2076
      %2078 = vdwg.mxu0
      %v2079 = vadd.f32 %v1957, %v2041
      %v2080 = vadd.f32 %v1958, %v2043
      %v2081 = vadd.f32 %v1959, %v2045
      %v2082 = vadd.f32 %v1960, %v2047
      %v2083 = vadd.f32 %v1961, %v2051
      %v2084 = vadd.f32 %v1962, %v2053
      %v2085 = vadd.f32 %v1963, %v2055
      %v2086 = vadd.f32 %v1964, %v2057
      %v2087 = vadd.f32 %v1965, %v2061
      %v2088 = vadd.f32 %v1966, %v2063
      %v2089 = vadd.f32 %v1967, %v2065
      %v2090 = vadd.f32 %v1968, %v2067
      %v2091 = vadd.f32 %v1969, %v2071
      %v2092 = vadd.f32 %v1970, %v2073
      %v2093 = vadd.f32 %v1971, %v2075
      %v2094 = vadd.f32 %v1972, %v2077
      %2095 = vst [vmem:[#allocation2] sm:$0xff] %v2079
      %2096 = vst [vmem:[#allocation2 + $0x8] sm:$0xff] %v2080
      %2097 = vst [vmem:[#allocation2 + $0x10] sm:$0xff] %v2081
      %2098 = vst [vmem:[#allocation2 + $0x18] sm:$0xff] %v2082
      %2099 = vst [vmem:[#allocation2 + $0x20] sm:$0xff] %v2083
      %2100 = vst [vmem:[#allocation2 + $0x28] sm:$0xff] %v2084
      %2101 = vst [vmem:[#allocation2 + $0x30] sm:$0xff] %v2085
      %2102 = vst [vmem:[#allocation2 + $0x38] sm:$0xff] %v2086
      %2103 = vst [vmem:[#allocation2 + $0x40] sm:$0xff] %v2087
      %2104 = vst [vmem:[#allocation2 + $0x48] sm:$0xff] %v2088
      %2105 = vst [vmem:[#allocation2 + $0x50] sm:$0xff] %v2089
      %2106 = vst [vmem:[#allocation2 + $0x58] sm:$0xff] %v2090
      %2107 = vst [vmem:[#allocation2 + $0x60] sm:$0xff] %v2091
      %2108 = vst [vmem:[#allocation2 + $0x68] sm:$0xff] %v2092
      %2109 = vst [vmem:[#allocation2 + $0x70] sm:$0xff] %v2093
      %2110 = vst [vmem:[#allocation2 + $0x78] sm:$0xff] %v2094
      %s2111 = scalar_lea.vmem [#allocation2], 128
      %v2112 = vld [vmem:[%s2111] sm:$0xff]
      %v2113 = vld [vmem:[%s2111 + $0x8] sm:$0xff]
      %v2114 = vld [vmem:[%s2111 + $0x10] sm:$0xff]
      %v2115 = vld [vmem:[%s2111 + $0x18] sm:$0xff]
      %v2116 = vld [vmem:[%s2111 + $0x20] sm:$0xff]
      %v2117 = vld [vmem:[%s2111 + $0x28] sm:$0xff]
      %v2118 = vld [vmem:[%s2111 + $0x30] sm:$0xff]
      %v2119 = vld [vmem:[%s2111 + $0x38] sm:$0xff]
      %v2120 = vld [vmem:[%s2111 + $0x40] sm:$0xff]
      %v2121 = vld [vmem:[%s2111 + $0x48] sm:$0xff]
      %v2122 = vld [vmem:[%s2111 + $0x50] sm:$0xff]
      %v2123 = vld [vmem:[%s2111 + $0x58] sm:$0xff]
      %v2124 = vld [vmem:[%s2111 + $0x60] sm:$0xff]
      %v2125 = vld [vmem:[%s2111 + $0x68] sm:$0xff]
      %v2126 = vld [vmem:[%s2111 + $0x70] sm:$0xff]
      %v2127 = vld [vmem:[%s2111 + $0x78] sm:$0xff]
      %2128 = vmatprep.subr.bf16.mxu0 %v1944
      %2129 = vmatpush1.bf16.msra.mxu0 %v1943
      %2130 = vmatprep.subr.bf16.mxu0 0
      %2131 = vmatpush1.bf16.msra.mxu0 0
      %2132 = vmatprep.subr.bf16.mxu0 0
      %2133 = vmatpush1.bf16.msra.mxu0 0
      %2134 = vmatprep.subr.bf16.mxu0 0
      %2135 = vmatpush1.bf16.msra.mxu0 0
      %2136 = vmatprep.subr.bf16.mxu0 0
      %2137 = vmatpush1.bf16.msra.mxu0 0
      %2138 = vmatprep.subr.bf16.mxu0 0
      %2139 = vmatpush1.bf16.msra.mxu0 0
      %2140 = vmatprep.subr.bf16.mxu0 0
      %2141 = vmatpush1.bf16.msra.mxu0 0
      %2142 = vmatprep.subr.bf16.mxu0 0
      %2143 = vmatpush1.bf16.msra.mxu0 0
      %2144 = vmatprep.subr.bf16.mxu0 0
      %2145 = vmatpush1.bf16.msra.mxu0 0
      %2146 = vmatprep.subr.bf16.mxu0 0
      %2147 = vmatpush1.bf16.msra.mxu0 0
      %2148 = vmatprep.subr.bf16.mxu0 0
      %2149 = vmatpush1.bf16.msra.mxu0 0
      %2150 = vmatprep.subr.bf16.mxu0 0
      %2151 = vmatpush1.bf16.msra.mxu0 0
      %2152 = vmatprep.subr.bf16.mxu0 0
      %2153 = vmatpush1.bf16.msra.mxu0 0
      %2154 = vmatprep.subr.bf16.mxu0 0
      %2155 = vmatpush1.bf16.msra.mxu0 0
      %2156 = vmatprep.subr.bf16.mxu0 0
      %2157 = vmatpush1.bf16.msra.mxu0 0
      %2158 = vmatprep.subr.bf16.mxu0 0
      %2159 = vmatpush1.bf16.msra.mxu0 0
      %2160 = vmatprep.mubr.bf16.mxu0 0
      %2161 = vmatmul.mubr.bf16.gmra.mrb[0].mxu0 %v1995
      %v2162 = vpop.f32.mrb[0].mxu0
      %v2163 = vadd.f32 0.0, %v2162
      %v2164 = vpop.f32.mrb[0].mxu0
      %v2165 = vadd.f32 0.0, %v2164
      %v2166 = vpop.f32.mrb[0].mxu0
      %v2167 = vadd.f32 0.0, %v2166
      %v2168 = vpop.f32.mrb[0].mxu0
      %v2169 = vadd.f32 0.0, %v2168
      %2170 = vmatprep.mubr.bf16.mxu0 0
      %2171 = vmatmul.mubr.bf16.gmra.mrb[0].mxu0 %v1998
      %v2172 = vpop.f32.mrb[0].mxu0
      %v2173 = vadd.f32 0.0, %v2172
      %v2174 = vpop.f32.mrb[0].mxu0
      %v2175 = vadd.f32 0.0, %v2174
      %v2176 = vpop.f32.mrb[0].mxu0
      %v2177 = vadd.f32 0.0, %v2176
      %v2178 = vpop.f32.mrb[0].mxu0
      %v2179 = vadd.f32 0.0, %v2178
      %2180 = vmatprep.mubr.bf16.mxu0 0
      %2181 = vmatmul.mubr.bf16.gmra.mrb[0].mxu0 %v2001
      %v2182 = vpop.f32.mrb[0].mxu0
      %v2183 = vadd.f32 0.0, %v2182
      %v2184 = vpop.f32.mrb[0].mxu0
      %v2185 = vadd.f32 0.0, %v2184
      %v2186 = vpop.f32.mrb[0].mxu0
      %v2187 = vadd.f32 0.0, %v2186
      %v2188 = vpop.f32.mrb[0].mxu0
      %v2189 = vadd.f32 0.0, %v2188
      %2190 = vmatprep.mubr.bf16.mxu0 0
      %2191 = vmatmul.mubr.bf16.gmra.mrb[0].mxu0 %v2004
      %v2192 = vpop.f32.mrb[0].mxu0
      %v2193 = vadd.f32 0.0, %v2192
      %v2194 = vpop.f32.mrb[0].mxu0
      %v2195 = vadd.f32 0.0, %v2194
      %v2196 = vpop.f32.mrb[0].mxu0
      %v2197 = vadd.f32 0.0, %v2196
      %v2198 = vpop.f32.mrb[0].mxu0
      %v2199 = vadd.f32 0.0, %v2198
      %2200 = vdwg.mxu0
      %v2201 = vadd.f32 %v2112, %v2163
      %v2202 = vadd.f32 %v2113, %v2165
      %v2203 = vadd.f32 %v2114, %v2167
      %v2204 = vadd.f32 %v2115, %v2169
      %v2205 = vadd.f32 %v2116, %v2173
      %v2206 = vadd.f32 %v2117, %v2175
      %v2207 = vadd.f32 %v2118, %v2177
      %v2208 = vadd.f32 %v2119, %v2179
      %v2209 = vadd.f32 %v2120, %v2183
      %v2210 = vadd.f32 %v2121, %v2185
      %v2211 = vadd.f32 %v2122, %v2187
      %v2212 = vadd.f32 %v2123, %v2189
      %v2213 = vadd.f32 %v2124, %v2193
      %v2214 = vadd.f32 %v2125, %v2195
      %v2215 = vadd.f32 %v2126, %v2197
      %v2216 = vadd.f32 %v2127, %v2199
      %2217 = vst [vmem:[%s2111] sm:$0xff] %v2201
      %2218 = vst [vmem:[%s2111 + $0x8] sm:$0xff] %v2202
      %2219 = vst [vmem:[%s2111 + $0x10] sm:$0xff] %v2203
      %2220 = vst [vmem:[%s2111 + $0x18] sm:$0xff] %v2204
      %2221 = vst [vmem:[%s2111 + $0x20] sm:$0xff] %v2205
      %2222 = vst [vmem:[%s2111 + $0x28] sm:$0xff] %v2206
      %2223 = vst [vmem:[%s2111 + $0x30] sm:$0xff] %v2207
      %2224 = vst [vmem:[%s2111 + $0x38] sm:$0xff] %v2208
      %2225 = vst [vmem:[%s2111 + $0x40] sm:$0xff] %v2209
      %2226 = vst [vmem:[%s2111 + $0x48] sm:$0xff] %v2210
      %2227 = vst [vmem:[%s2111 + $0x50] sm:$0xff] %v2211
      %2228 = vst [vmem:[%s2111 + $0x58] sm:$0xff] %v2212
      %2229 = vst [vmem:[%s2111 + $0x60] sm:$0xff] %v2213
      %2230 = vst [vmem:[%s2111 + $0x68] sm:$0xff] %v2214
      %2231 = vst [vmem:[%s2111 + $0x70] sm:$0xff] %v2215
      %2232 = vst [vmem:[%s2111 + $0x78] sm:$0xff] %v2216
      %s2233 = scalar_lea.vmem [#allocation2], 256
      %v2234 = vld [vmem:[%s2233] sm:$0xff]
      %v2235 = vld [vmem:[%s2233 + $0x8] sm:$0xff]
      %v2236 = vld [vmem:[%s2233 + $0x10] sm:$0xff]
      %v2237 = vld [vmem:[%s2233 + $0x18] sm:$0xff]
      %v2238 = vld [vmem:[%s2233 + $0x20] sm:$0xff]
      %v2239 = vld [vmem:[%s2233 + $0x28] sm:$0xff]
      %v2240 = vld [vmem:[%s2233 + $0x30] sm:$0xff]
      %v2241 = vld [vmem:[%s2233 + $0x38] sm:$0xff]
      %v2242 = vld [vmem:[%s2233 + $0x40] sm:$0xff]
      %v2243 = vld [vmem:[%s2233 + $0x48] sm:$0xff]
      %v2244 = vld [vmem:[%s2233 + $0x50] sm:$0xff]
      %v2245 = vld [vmem:[%s2233 + $0x58] sm:$0xff]
      %v2246 = vld [vmem:[%s2233 + $0x60] sm:$0xff]
      %v2247 = vld [vmem:[%s2233 + $0x68] sm:$0xff]
      %v2248 = vld [vmem:[%s2233 + $0x70] sm:$0xff]
      %v2249 = vld [vmem:[%s2233 + $0x78] sm:$0xff]
      %2250 = vmatprep.subr.bf16.mxu0 %v1946
      %2251 = vmatpush1.bf16.msra.mxu0 %v1945
      %2252 = vmatprep.subr.bf16.mxu0 0
      %2253 = vmatpush1.bf16.msra.mxu0 0
      %2254 = vmatprep.subr.bf16.mxu0 0
      %2255 = vmatpush1.bf16.msra.mxu0 0
      %2256 = vmatprep.subr.bf16.mxu0 0
      %2257 = vmatpush1.bf16.msra.mxu0 0
      %2258 = vmatprep.subr.bf16.mxu0 0
      %2259 = vmatpush1.bf16.msra.mxu0 0
      %2260 = vmatprep.subr.bf16.mxu0 0
      %2261 = vmatpush1.bf16.msra.mxu0 0
      %2262 = vmatprep.subr.bf16.mxu0 0
      %2263 = vmatpush1.bf16.msra.mxu0 0
      %2264 = vmatprep.subr.bf16.mxu0 0
      %2265 = vmatpush1.bf16.msra.mxu0 0
      %2266 = vmatprep.subr.bf16.mxu0 0
      %2267 = vmatpush1.bf16.msra.mxu0 0
      %2268 = vmatprep.subr.bf16.mxu0 0
      %2269 = vmatpush1.bf16.msra.mxu0 0
      %2270 = vmatprep.subr.bf16.mxu0 0
      %2271 = vmatpush1.bf16.msra.mxu0 0
      %2272 = vmatprep.subr.bf16.mxu0 0
      %2273 = vmatpush1.bf16.msra.mxu0 0
      %2274 = vmatprep.subr.bf16.mxu0 0
      %2275 = vmatpush1.bf16.msra.mxu0 0
      %2276 = vmatprep.subr.bf16.mxu0 0
      %2277 = vmatpush1.bf16.msra.mxu0 0
      %2278 = vmatprep.subr.bf16.mxu0 0
      %2279 = vmatpush1.bf16.msra.mxu0 0
      %2280 = vmatprep.subr.bf16.mxu0 0
      %2281 = vmatpush1.bf16.msra.mxu0 0
      %2282 = vmatprep.mubr.bf16.mxu0 0
      %2283 = vmatmul.mubr.bf16.gmra.mrb[0].mxu0 %v1995
      %v2284 = vpop.f32.mrb[0].mxu0
      %v2285 = vadd.f32 0.0, %v2284
      %v2286 = vpop.f32.mrb[0].mxu0
      %v2287 = vadd.f32 0.0, %v2286
      %v2288 = vpop.f32.mrb[0].mxu0
      %v2289 = vadd.f32 0.0, %v2288
      %v2290 = vpop.f32.mrb[0].mxu0
      %v2291 = vadd.f32 0.0, %v2290
      %2292 = vmatprep.mubr.bf16.mxu0 0
      %2293 = vmatmul.mubr.bf16.gmra.mrb[0].mxu0 %v1998
      %v2294 = vpop.f32.mrb[0].mxu0
      %v2295 = vadd.f32 0.0, %v2294
      %v2296 = vpop.f32.mrb[0].mxu0
      %v2297 = vadd.f32 0.0, %v2296
      %v2298 = vpop.f32.mrb[0].mxu0
      %v2299 = vadd.f32 0.0, %v2298
      %v2300 = vpop.f32.mrb[0].mxu0
      %v2301 = vadd.f32 0.0, %v2300
      %2302 = vmatprep.mubr.bf16.mxu0 0
      %2303 = vmatmul.mubr.bf16.gmra.mrb[0].mxu0 %v2001
      %v2304 = vpop.f32.mrb[0].mxu0
      %v2305 = vadd.f32 0.0, %v2304
      %v2306 = vpop.f32.mrb[0].mxu0
      %v2307 = vadd.f32 0.0, %v2306
      %v2308 = vpop.f32.mrb[0].mxu0
      %v2309 = vadd.f32 0.0, %v2308
      %v2310 = vpop.f32.mrb[0].mxu0
      %v2311 = vadd.f32 0.0, %v2310
      %2312 = vmatprep.mubr.bf16.mxu0 0
      %2313 = vmatmul.mubr.bf16.gmra.mrb[0].mxu0 %v2004
      %v2314 = vpop.f32.mrb[0].mxu0
      %v2315 = vadd.f32 0.0, %v2314
      %v2316 = vpop.f32.mrb[0].mxu0
      %v2317 = vadd.f32 0.0, %v2316
      %v2318 = vpop.f32.mrb[0].mxu0
      %v2319 = vadd.f32 0.0, %v2318
      %v2320 = vpop.f32.mrb[0].mxu0
      %v2321 = vadd.f32 0.0, %v2320
      %2322 = vdwg.mxu0
      %v2323 = vadd.f32 %v2234, %v2285
      %v2324 = vadd.f32 %v2235, %v2287
      %v2325 = vadd.f32 %v2236, %v2289
      %v2326 = vadd.f32 %v2237, %v2291
      %v2327 = vadd.f32 %v2238, %v2295
      %v2328 = vadd.f32 %v2239, %v2297
      %v2329 = vadd.f32 %v2240, %v2299
      %v2330 = vadd.f32 %v2241, %v2301
      %v2331 = vadd.f32 %v2242, %v2305
      %v2332 = vadd.f32 %v2243, %v2307
      %v2333 = vadd.f32 %v2244, %v2309
      %v2334 = vadd.f32 %v2245, %v2311
      %v2335 = vadd.f32 %v2246, %v2315
      %v2336 = vadd.f32 %v2247, %v2317
      %v2337 = vadd.f32 %v2248, %v2319
      %v2338 = vadd.f32 %v2249, %v2321
      %2339 = vst [vmem:[%s2233] sm:$0xff] %v2323
      %2340 = vst [vmem:[%s2233 + $0x8] sm:$0xff] %v2324
      %2341 = vst [vmem:[%s2233 + $0x10] sm:$0xff] %v2325
      %2342 = vst [vmem:[%s2233 + $0x18] sm:$0xff] %v2326
      %2343 = vst [vmem:[%s2233 + $0x20] sm:$0xff] %v2327
      %2344 = vst [vmem:[%s2233 + $0x28] sm:$0xff] %v2328
      %2345 = vst [vmem:[%s2233 + $0x30] sm:$0xff] %v2329
      %2346 = vst [vmem:[%s2233 + $0x38] sm:$0xff] %v2330
      %2347 = vst [vmem:[%s2233 + $0x40] sm:$0xff] %v2331
      %2348 = vst [vmem:[%s2233 + $0x48] sm:$0xff] %v2332
      %2349 = vst [vmem:[%s2233 + $0x50] sm:$0xff] %v2333
      %2350 = vst [vmem:[%s2233 + $0x58] sm:$0xff] %v2334
      %2351 = vst [vmem:[%s2233 + $0x60] sm:$0xff] %v2335
      %2352 = vst [vmem:[%s2233 + $0x68] sm:$0xff] %v2336
      %2353 = vst [vmem:[%s2233 + $0x70] sm:$0xff] %v2337
      %2354 = vst [vmem:[%s2233 + $0x78] sm:$0xff] %v2338
      %s2355 = scalar_lea.vmem [#allocation2], 384
      %v2356 = vld [vmem:[%s2355] sm:$0xff]
      %v2357 = vld [vmem:[%s2355 + $0x8] sm:$0xff]
      %v2358 = vld [vmem:[%s2355 + $0x10] sm:$0xff]
      %v2359 = vld [vmem:[%s2355 + $0x18] sm:$0xff]
      %v2360 = vld [vmem:[%s2355 + $0x20] sm:$0xff]
      %v2361 = vld [vmem:[%s2355 + $0x28] sm:$0xff]
      %v2362 = vld [vmem:[%s2355 + $0x30] sm:$0xff]
      %v2363 = vld [vmem:[%s2355 + $0x38] sm:$0xff]
      %v2364 = vld [vmem:[%s2355 + $0x40] sm:$0xff]
      %v2365 = vld [vmem:[%s2355 + $0x48] sm:$0xff]
      %v2366 = vld [vmem:[%s2355 + $0x50] sm:$0xff]
      %v2367 = vld [vmem:[%s2355 + $0x58] sm:$0xff]
      %v2368 = vld [vmem:[%s2355 + $0x60] sm:$0xff]
      %v2369 = vld [vmem:[%s2355 + $0x68] sm:$0xff]
      %v2370 = vld [vmem:[%s2355 + $0x70] sm:$0xff]
      %v2371 = vld [vmem:[%s2355 + $0x78] sm:$0xff]
      %2372 = vmatprep.subr.bf16.mxu0 %v1948
      %2373 = vmatpush1.bf16.msra.mxu0 %v1947
      %2374 = vmatprep.subr.bf16.mxu0 0
      %2375 = vmatpush1.bf16.msra.mxu0 0
      %2376 = vmatprep.subr.bf16.mxu0 0
      %2377 = vmatpush1.bf16.msra.mxu0 0
      %2378 = vmatprep.subr.bf16.mxu0 0
      %2379 = vmatpush1.bf16.msra.mxu0 0
      %2380 = vmatprep.subr.bf16.mxu0 0
      %2381 = vmatpush1.bf16.msra.mxu0 0
      %2382 = vmatprep.subr.bf16.mxu0 0
      %2383 = vmatpush1.bf16.msra.mxu0 0
      %2384 = vmatprep.subr.bf16.mxu0 0
      %2385 = vmatpush1.bf16.msra.mxu0 0
      %2386 = vmatprep.subr.bf16.mxu0 0
      %2387 = vmatpush1.bf16.msra.mxu0 0
      %2388 = vmatprep.subr.bf16.mxu0 0
      %2389 = vmatpush1.bf16.msra.mxu0 0
      %2390 = vmatprep.subr.bf16.mxu0 0
      %2391 = vmatpush1.bf16.msra.mxu0 0
      %2392 = vmatprep.subr.bf16.mxu0 0
      %2393 = vmatpush1.bf16.msra.mxu0 0
      %2394 = vmatprep.subr.bf16.mxu0 0
      %2395 = vmatpush1.bf16.msra.mxu0 0
      %2396 = vmatprep.subr.bf16.mxu0 0
      %2397 = vmatpush1.bf16.msra.mxu0 0
      %2398 = vmatprep.subr.bf16.mxu0 0
      %2399 = vmatpush1.bf16.msra.mxu0 0
      %2400 = vmatprep.subr.bf16.mxu0 0
      %2401 = vmatpush1.bf16.msra.mxu0 0
      %2402 = vmatprep.subr.bf16.mxu0 0
      %2403 = vmatpush1.bf16.msra.mxu0 0
      %2404 = vmatprep.mubr.bf16.mxu0 0
      %2405 = vmatmul.mubr.bf16.gmra.mrb[0].mxu0 %v1995
      %v2406 = vpop.f32.mrb[0].mxu0
      %v2407 = vadd.f32 0.0, %v2406
      %v2408 = vpop.f32.mrb[0].mxu0
      %v2409 = vadd.f32 0.0, %v2408
      %v2410 = vpop.f32.mrb[0].mxu0
      %v2411 = vadd.f32 0.0, %v2410
      %v2412 = vpop.f32.mrb[0].mxu0
      %v2413 = vadd.f32 0.0, %v2412
      %2414 = vmatprep.mubr.bf16.mxu0 0
      %2415 = vmatmul.mubr.bf16.gmra.mrb[0].mxu0 %v1998
      %v2416 = vpop.f32.mrb[0].mxu0
      %v2417 = vadd.f32 0.0, %v2416
      %v2418 = vpop.f32.mrb[0].mxu0
      %v2419 = vadd.f32 0.0, %v2418
      %v2420 = vpop.f32.mrb[0].mxu0
      %v2421 = vadd.f32 0.0, %v2420
      %v2422 = vpop.f32.mrb[0].mxu0
      %v2423 = vadd.f32 0.0, %v2422
      %2424 = vmatprep.mubr.bf16.mxu0 0
      %2425 = vmatmul.mubr.bf16.gmra.mrb[0].mxu0 %v2001
      %v2426 = vpop.f32.mrb[0].mxu0
      %v2427 = vadd.f32 0.0, %v2426
      %v2428 = vpop.f32.mrb[0].mxu0
      %v2429 = vadd.f32 0.0, %v2428
      %v2430 = vpop.f32.mrb[0].mxu0
      %v2431 = vadd.f32 0.0, %v2430
      %v2432 = vpop.f32.mrb[0].mxu0
      %v2433 = vadd.f32 0.0, %v2432
      %2434 = vmatprep.mubr.bf16.mxu0 0
      %2435 = vmatmul.mubr.bf16.gmra.mrb[0].mxu0 %v2004
      %v2436 = vpop.f32.mrb[0].mxu0
      %v2437 = vadd.f32 0.0, %v2436
      %v2438 = vpop.f32.mrb[0].mxu0
      %v2439 = vadd.f32 0.0, %v2438
      %v2440 = vpop.f32.mrb[0].mxu0
      %v2441 = vadd.f32 0.0, %v2440
      %v2442 = vpop.f32.mrb[0].mxu0
      %v2443 = vadd.f32 0.0, %v2442
      %2444 = vdwg.mxu0
      %v2445 = vadd.f32 %v2356, %v2407
      %v2446 = vadd.f32 %v2357, %v2409
      %v2447 = vadd.f32 %v2358, %v2411
      %v2448 = vadd.f32 %v2359, %v2413
      %v2449 = vadd.f32 %v2360, %v2417
      %v2450 = vadd.f32 %v2361, %v2419
      %v2451 = vadd.f32 %v2362, %v2421
      %v2452 = vadd.f32 %v2363, %v2423
      %v2453 = vadd.f32 %v2364, %v2427
      %v2454 = vadd.f32 %v2365, %v2429
      %v2455 = vadd.f32 %v2366, %v2431
      %v2456 = vadd.f32 %v2367, %v2433
      %v2457 = vadd.f32 %v2368, %v2437
      %v2458 = vadd.f32 %v2369, %v2439
      %v2459 = vadd.f32 %v2370, %v2441
      %v2460 = vadd.f32 %v2371, %v2443
      %2461 = vst [vmem:[%s2355] sm:$0xff] %v2445
      %2462 = vst [vmem:[%s2355 + $0x8] sm:$0xff] %v2446
      %2463 = vst [vmem:[%s2355 + $0x10] sm:$0xff] %v2447
      %2464 = vst [vmem:[%s2355 + $0x18] sm:$0xff] %v2448
      %2465 = vst [vmem:[%s2355 + $0x20] sm:$0xff] %v2449
      %2466 = vst [vmem:[%s2355 + $0x28] sm:$0xff] %v2450
      %2467 = vst [vmem:[%s2355 + $0x30] sm:$0xff] %v2451
      %2468 = vst [vmem:[%s2355 + $0x38] sm:$0xff] %v2452
      %2469 = vst [vmem:[%s2355 + $0x40] sm:$0xff] %v2453
      %2470 = vst [vmem:[%s2355 + $0x48] sm:$0xff] %v2454
      %2471 = vst [vmem:[%s2355 + $0x50] sm:$0xff] %v2455
      %2472 = vst [vmem:[%s2355 + $0x58] sm:$0xff] %v2456
      %2473 = vst [vmem:[%s2355 + $0x60] sm:$0xff] %v2457
      %2474 = vst [vmem:[%s2355 + $0x68] sm:$0xff] %v2458
      %2475 = vst [vmem:[%s2355 + $0x70] sm:$0xff] %v2459
      %2476 = vst [vmem:[%s2355 + $0x78] sm:$0xff] %v2460
      %s2477 = scalar_lea.vmem %s5, 256
      %v2478 = vld [vmem:[%s2477] sm:$0xff]
      %v2479 = vld [vmem:[%s2477 + $0x8] sm:$0xff]
      %v2480 = vld [vmem:[%s2477 + $0x10] sm:$0xff]
      %v2481 = vld [vmem:[%s2477 + $0x18] sm:$0xff]
      %v2482 = vld [vmem:[%s2477 + $0x20] sm:$0xff]
      %v2483 = vld [vmem:[%s2477 + $0x28] sm:$0xff]
      %v2484 = vld [vmem:[%s2477 + $0x30] sm:$0xff]
      %v2485 = vld [vmem:[%s2477 + $0x38] sm:$0xff]
      %v2486 = vld [vmem:[%s2477 + $0x40] sm:$0xff]
      %v2487 = vld [vmem:[%s2477 + $0x48] sm:$0xff]
      %v2488 = vld [vmem:[%s2477 + $0x50] sm:$0xff]
      %v2489 = vld [vmem:[%s2477 + $0x58] sm:$0xff]
      %v2490 = vld [vmem:[%s2477 + $0x60] sm:$0xff]
      %v2491 = vld [vmem:[%s2477 + $0x68] sm:$0xff]
      %v2492 = vld [vmem:[%s2477 + $0x70] sm:$0xff]
      %v2493 = vld [vmem:[%s2477 + $0x78] sm:$0xff]
      %v2494 = vld [vmem:[%s2477 + $0x80] sm:$0xff]
      %v2495 = vld [vmem:[%s2477 + $0x88] sm:$0xff]
      %v2496 = vld [vmem:[%s2477 + $0x90] sm:$0xff]
      %v2497 = vld [vmem:[%s2477 + $0x98] sm:$0xff]
      %v2498 = vld [vmem:[%s2477 + $0xa0] sm:$0xff]
      %v2499 = vld [vmem:[%s2477 + $0xa8] sm:$0xff]
      %v2500 = vld [vmem:[%s2477 + $0xb0] sm:$0xff]
      %v2501 = vld [vmem:[%s2477 + $0xb8] sm:$0xff]
      %v2502 = vld [vmem:[%s2477 + $0xc0] sm:$0xff]
      %v2503 = vld [vmem:[%s2477 + $0xc8] sm:$0xff]
      %v2504 = vld [vmem:[%s2477 + $0xd0] sm:$0xff]
      %v2505 = vld [vmem:[%s2477 + $0xd8] sm:$0xff]
      %v2506 = vld [vmem:[%s2477 + $0xe0] sm:$0xff]
      %v2507 = vld [vmem:[%s2477 + $0xe8] sm:$0xff]
      %v2508 = vld [vmem:[%s2477 + $0xf0] sm:$0xff]
      %v2509 = vld [vmem:[%s2477 + $0xf8] sm:$0xff]
      %v2542 = vunpack.c.l.b16 %v2478
      %v2543 = vunpack.c.h.b16 %v2478
      %v2544 = vunpack.c.l.b16 %v2479
      %v2545 = vunpack.c.h.b16 %v2479
      %v2546 = vunpack.c.l.b16 %v2480
      %v2547 = vunpack.c.h.b16 %v2480
      %v2548 = vunpack.c.l.b16 %v2481
      %v2549 = vunpack.c.h.b16 %v2481
      %v2550 = vunpack.c.l.b16 %v2482
      %v2551 = vunpack.c.h.b16 %v2482
      %v2552 = vunpack.c.l.b16 %v2483
      %v2553 = vunpack.c.h.b16 %v2483
      %v2554 = vunpack.c.l.b16 %v2484
      %v2555 = vunpack.c.h.b16 %v2484
      %v2556 = vunpack.c.l.b16 %v2485
      %v2557 = vunpack.c.h.b16 %v2485
      %v2558 = vunpack.c.l.b16 %v2486
      %v2559 = vunpack.c.h.b16 %v2486
      %v2560 = vunpack.c.l.b16 %v2487
      %v2561 = vunpack.c.h.b16 %v2487
      %v2562 = vunpack.c.l.b16 %v2488
      %v2563 = vunpack.c.h.b16 %v2488
      %v2564 = vunpack.c.l.b16 %v2489
      %v2565 = vunpack.c.h.b16 %v2489
      %v2566 = vunpack.c.l.b16 %v2490
      %v2567 = vunpack.c.h.b16 %v2490
      %v2568 = vunpack.c.l.b16 %v2491
      %v2569 = vunpack.c.h.b16 %v2491
      %v2570 = vunpack.c.l.b16 %v2492
      %v2571 = vunpack.c.h.b16 %v2492
      %v2572 = vunpack.c.l.b16 %v2493
      %v2573 = vunpack.c.h.b16 %v2493
      %v2574 = vunpack.c.l.b16 %v2494
      %v2575 = vunpack.c.h.b16 %v2494
      %v2576 = vunpack.c.l.b16 %v2495
      %v2577 = vunpack.c.h.b16 %v2495
      %v2578 = vunpack.c.l.b16 %v2496
      %v2579 = vunpack.c.h.b16 %v2496
      %v2580 = vunpack.c.l.b16 %v2497
      %v2581 = vunpack.c.h.b16 %v2497
      %v2582 = vunpack.c.l.b16 %v2498
      %v2583 = vunpack.c.h.b16 %v2498
      %v2584 = vunpack.c.l.b16 %v2499
      %v2585 = vunpack.c.h.b16 %v2499
      %v2586 = vunpack.c.l.b16 %v2500
      %v2587 = vunpack.c.h.b16 %v2500
      %v2588 = vunpack.c.l.b16 %v2501
      %v2589 = vunpack.c.h.b16 %v2501
      %v2590 = vunpack.c.l.b16 %v2502
      %v2591 = vunpack.c.h.b16 %v2502
      %v2592 = vunpack.c.l.b16 %v2503
      %v2593 = vunpack.c.h.b16 %v2503
      %v2594 = vunpack.c.l.b16 %v2504
      %v2595 = vunpack.c.h.b16 %v2504
      %v2596 = vunpack.c.l.b16 %v2505
      %v2597 = vunpack.c.h.b16 %v2505
      %v2598 = vunpack.c.l.b16 %v2506
      %v2599 = vunpack.c.h.b16 %v2506
      %v2600 = vunpack.c.l.b16 %v2507
      %v2601 = vunpack.c.h.b16 %v2507
      %v2602 = vunpack.c.l.b16 %v2508
      %v2603 = vunpack.c.h.b16 %v2508
      %v2604 = vunpack.c.l.b16 %v2509
      %v2605 = vunpack.c.h.b16 %v2509
      %v2606 = vpack.c.b16 %v2544, %v2542
      %v2607 = vpack.c.b16 %v2545, %v2543
      %v2608 = vpack.c.b16 %v2548, %v2546
      %v2609 = vpack.c.b16 %v2549, %v2547
      %v2610 = vpack.c.b16 %v2552, %v2550
      %v2611 = vpack.c.b16 %v2553, %v2551
      %v2612 = vpack.c.b16 %v2556, %v2554
      %v2613 = vpack.c.b16 %v2557, %v2555
      %v2614 = vpack.c.b16 %v2560, %v2558
      %v2615 = vpack.c.b16 %v2561, %v2559
      %v2616 = vpack.c.b16 %v2564, %v2562
      %v2617 = vpack.c.b16 %v2565, %v2563
      %v2618 = vpack.c.b16 %v2568, %v2566
      %v2619 = vpack.c.b16 %v2569, %v2567
      %v2620 = vpack.c.b16 %v2572, %v2570
      %v2621 = vpack.c.b16 %v2573, %v2571
      %v2622 = vpack.c.b16 %v2576, %v2574
      %v2623 = vpack.c.b16 %v2577, %v2575
      %v2624 = vpack.c.b16 %v2580, %v2578
      %v2625 = vpack.c.b16 %v2581, %v2579
      %v2626 = vpack.c.b16 %v2584, %v2582
      %v2627 = vpack.c.b16 %v2585, %v2583
      %v2628 = vpack.c.b16 %v2588, %v2586
      %v2629 = vpack.c.b16 %v2589, %v2587
      %v2630 = vpack.c.b16 %v2592, %v2590
      %v2631 = vpack.c.b16 %v2593, %v2591
      %v2632 = vpack.c.b16 %v2596, %v2594
      %v2633 = vpack.c.b16 %v2597, %v2595
      %v2634 = vpack.c.b16 %v2600, %v2598
      %v2635 = vpack.c.b16 %v2601, %v2599
      %v2636 = vpack.c.b16 %v2604, %v2602
      %v2637 = vpack.c.b16 %v2605, %v2603
      %2670 = vmatprep.subr.bf16.mxu0 %v2607
      %2671 = vmatpush1.bf16.msra.mxu0 %v2606
      %2672 = vmatprep.subr.bf16.mxu0 %v2609
      %2673 = vmatpush1.bf16.msra.mxu0 %v2608
      %2674 = vmatprep.subr.bf16.mxu0 %v2611
      %2675 = vmatpush1.bf16.msra.mxu0 %v2610
      %2676 = vmatprep.subr.bf16.mxu0 %v2613
      %2677 = vmatpush1.bf16.msra.mxu0 %v2612
      %2678 = vmatprep.subr.bf16.mxu0 %v2615
      %2679 = vmatpush1.bf16.msra.mxu0 %v2614
      %2680 = vmatprep.subr.bf16.mxu0 %v2617
      %2681 = vmatpush1.bf16.msra.mxu0 %v2616
      %2682 = vmatprep.subr.bf16.mxu0 %v2619
      %2683 = vmatpush1.bf16.msra.mxu0 %v2618
      %2684 = vmatprep.subr.bf16.mxu0 %v2621
      %2685 = vmatpush1.bf16.msra.mxu0 %v2620
      %2686 = vmatprep.subr.bf16.mxu0 %v2623
      %2687 = vmatpush1.bf16.msra.mxu0 %v2622
      %2688 = vmatprep.subr.bf16.mxu0 %v2625
      %2689 = vmatpush1.bf16.msra.mxu0 %v2624
      %2690 = vmatprep.subr.bf16.mxu0 %v2627
      %2691 = vmatpush1.bf16.msra.mxu0 %v2626
      %2692 = vmatprep.subr.bf16.mxu0 %v2629
      %2693 = vmatpush1.bf16.msra.mxu0 %v2628
      %2694 = vmatprep.subr.bf16.mxu0 %v2631
      %2695 = vmatpush1.bf16.msra.mxu0 %v2630
      %2696 = vmatprep.subr.bf16.mxu0 %v2633
      %2697 = vmatpush1.bf16.msra.mxu0 %v2632
      %2698 = vmatprep.subr.bf16.mxu0 %v2635
      %2699 = vmatpush1.bf16.msra.mxu0 %v2634
      %2700 = vmatprep.subr.bf16.mxu0 %v2637
      %2701 = vmatpush1.bf16.msra.mxu0 %v2636
      %2702 = vmatprep.mubr.bf16.mxu0 %v1605
      %2703 = vmatmul.mubr.bf16.gmra.mrb[0].mxu0 %v1604
      %v2704 = vpop.f32.mrb[0].mxu0
      %v2705 = vadd.f32 0.0, %v2704
      %v2706 = vpop.f32.mrb[0].mxu0
      %v2707 = vadd.f32 0.0, %v2706
      %v2708 = vpop.f32.mrb[0].mxu0
      %v2709 = vadd.f32 0.0, %v2708
      %v2710 = vpop.f32.mrb[0].mxu0
      %v2711 = vadd.f32 0.0, %v2710
      %2712 = vmatprep.mubr.bf16.mxu0 %v1607
      %2713 = vmatmul.mubr.bf16.gmra.mrb[0].mxu0 %v1606
      %v2714 = vpop.f32.mrb[0].mxu0
      %v2715 = vadd.f32 0.0, %v2714
      %v2716 = vpop.f32.mrb[0].mxu0
      %v2717 = vadd.f32 0.0, %v2716
      %v2718 = vpop.f32.mrb[0].mxu0
      %v2719 = vadd.f32 0.0, %v2718
      %v2720 = vpop.f32.mrb[0].mxu0
      %v2721 = vadd.f32 0.0, %v2720
      %2722 = vmatprep.mubr.bf16.mxu0 %v1609
      %2723 = vmatmul.mubr.bf16.gmra.mrb[0].mxu0 %v1608
      %v2724 = vpop.f32.mrb[0].mxu0
      %v2725 = vadd.f32 0.0, %v2724
      %v2726 = vpop.f32.mrb[0].mxu0
      %v2727 = vadd.f32 0.0, %v2726
      %v2728 = vpop.f32.mrb[0].mxu0
      %v2729 = vadd.f32 0.0, %v2728
      %v2730 = vpop.f32.mrb[0].mxu0
      %v2731 = vadd.f32 0.0, %v2730
      %2732 = vmatprep.mubr.bf16.mxu0 %v1611
      %2733 = vmatmul.mubr.bf16.gmra.mrb[0].mxu0 %v1610
      %v2734 = vpop.f32.mrb[0].mxu0
      %v2735 = vadd.f32 0.0, %v2734
      %v2736 = vpop.f32.mrb[0].mxu0
      %v2737 = vadd.f32 0.0, %v2736
      %v2738 = vpop.f32.mrb[0].mxu0
      %v2739 = vadd.f32 0.0, %v2738
      %v2740 = vpop.f32.mrb[0].mxu0
      %v2741 = vadd.f32 0.0, %v2740
      %2742 = vdwg.mxu0
      %v2743 = vpack.c.bf16 %v2709, %v2705
      %v2744 = vpack.c.bf16 %v2711, %v2707
      %v2745 = vpack.c.bf16 %v2719, %v2715
      %v2746 = vpack.c.bf16 %v2721, %v2717
      %v2747 = vpack.c.bf16 %v2729, %v2725
      %v2748 = vpack.c.bf16 %v2731, %v2727
      %v2749 = vpack.c.bf16 %v2739, %v2735
      %v2750 = vpack.c.bf16 %v2741, %v2737
      %s2751 = scalar_lea.vmem %s4, 32
      %v2752 = vld [vmem:[%s2751] sm:$0xf]
      %v2753 = vld [vmem:[%s2751 + $0x4] sm:$0xf]
      %v2754 = vld [vmem:[%s2751 + $0x8] sm:$0xf]
      %v2755 = vld [vmem:[%s2751 + $0xc] sm:$0xf]
      %v2756 = vld [vmem:[%s2751 + $0x10] sm:$0xf]
      %v2757 = vld [vmem:[%s2751 + $0x14] sm:$0xf]
      %v2758 = vld [vmem:[%s2751 + $0x18] sm:$0xf]
      %v2759 = vld [vmem:[%s2751 + $0x1c] sm:$0xf]
      %v2760 = vld [vmem:[#allocation2] sm:$0xff]
      %v2761 = vld [vmem:[#allocation2 + $0x8] sm:$0xff]
      %v2762 = vld [vmem:[#allocation2 + $0x10] sm:$0xff]
      %v2763 = vld [vmem:[#allocation2 + $0x18] sm:$0xff]
      %v2764 = vld [vmem:[#allocation2 + $0x20] sm:$0xff]
      %v2765 = vld [vmem:[#allocation2 + $0x28] sm:$0xff]
      %v2766 = vld [vmem:[#allocation2 + $0x30] sm:$0xff]
      %v2767 = vld [vmem:[#allocation2 + $0x38] sm:$0xff]
      %v2768 = vld [vmem:[#allocation2 + $0x40] sm:$0xff]
      %v2769 = vld [vmem:[#allocation2 + $0x48] sm:$0xff]
      %v2770 = vld [vmem:[#allocation2 + $0x50] sm:$0xff]
      %v2771 = vld [vmem:[#allocation2 + $0x58] sm:$0xff]
      %v2772 = vld [vmem:[#allocation2 + $0x60] sm:$0xff]
      %v2773 = vld [vmem:[#allocation2 + $0x68] sm:$0xff]
      %v2774 = vld [vmem:[#allocation2 + $0x70] sm:$0xff]
      %v2775 = vld [vmem:[#allocation2 + $0x78] sm:$0xff]
      %v2784 = vunpack.c.l.b16 %v2752
      %v2785 = vunpack.c.l.b16 %v2753
      %v2786 = vunpack.c.l.b16 %v2754
      %v2787 = vunpack.c.l.b16 %v2755
      %v2788 = vunpack.c.l.b16 %v2756
      %v2789 = vunpack.c.l.b16 %v2757
      %v2790 = vunpack.c.l.b16 %v2758
      %v2791 = vunpack.c.l.b16 %v2759
      %v2792 = vpack.c.b16 %v2785, %v2784
      %v2793 = vpack.c.b16 %v2787, %v2786
      %v2794 = vpack.c.b16 %v2789, %v2788
      %v2795 = vpack.c.b16 %v2791, %v2790
      %v2797 = vsel %vm1993, %v2792, 0
      %v2800 = vsel %vm1993, %v2793, 0
      %v2803 = vsel %vm1993, %v2794, 0
      %v2806 = vsel %vm1993, %v2795, 0
      %2808 = vmatprep.subr.bf16.mxu0 %v2744
      %2809 = vmatpush1.bf16.msra.mxu0 %v2743
      %2810 = vmatprep.subr.bf16.mxu0 0
      %2811 = vmatpush1.bf16.msra.mxu0 0
      %2812 = vmatprep.subr.bf16.mxu0 0
      %2813 = vmatpush1.bf16.msra.mxu0 0
      %2814 = vmatprep.subr.bf16.mxu0 0
      %2815 = vmatpush1.bf16.msra.mxu0 0
      %2816 = vmatprep.subr.bf16.mxu0 0
      %2817 = vmatpush1.bf16.msra.mxu0 0
      %2818 = vmatprep.subr.bf16.mxu0 0
      %2819 = vmatpush1.bf16.msra.mxu0 0
      %2820 = vmatprep.subr.bf16.mxu0 0
      %2821 = vmatpush1.bf16.msra.mxu0 0
      %2822 = vmatprep.subr.bf16.mxu0 0
      %2823 = vmatpush1.bf16.msra.mxu0 0
      %2824 = vmatprep.subr.bf16.mxu0 0
      %2825 = vmatpush1.bf16.msra.mxu0 0
      %2826 = vmatprep.subr.bf16.mxu0 0
      %2827 = vmatpush1.bf16.msra.mxu0 0
      %2828 = vmatprep.subr.bf16.mxu0 0
      %2829 = vmatpush1.bf16.msra.mxu0 0
      %2830 = vmatprep.subr.bf16.mxu0 0
      %2831 = vmatpush1.bf16.msra.mxu0 0
      %2832 = vmatprep.subr.bf16.mxu0 0
      %2833 = vmatpush1.bf16.msra.mxu0 0
      %2834 = vmatprep.subr.bf16.mxu0 0
      %2835 = vmatpush1.bf16.msra.mxu0 0
      %2836 = vmatprep.subr.bf16.mxu0 0
      %2837 = vmatpush1.bf16.msra.mxu0 0
      %2838 = vmatprep.subr.bf16.mxu0 0
      %2839 = vmatpush1.bf16.msra.mxu0 0
      %2840 = vmatprep.mubr.bf16.mxu0 0
      %2841 = vmatmul.mubr.bf16.gmra.mrb[0].mxu0 %v2797
      %v2842 = vpop.f32.mrb[0].mxu0
      %v2843 = vadd.f32 0.0, %v2842
      %v2844 = vpop.f32.mrb[0].mxu0
      %v2845 = vadd.f32 0.0, %v2844
      %v2846 = vpop.f32.mrb[0].mxu0
      %v2847 = vadd.f32 0.0, %v2846
      %v2848 = vpop.f32.mrb[0].mxu0
      %v2849 = vadd.f32 0.0, %v2848
      %2850 = vmatprep.mubr.bf16.mxu0 0
      %2851 = vmatmul.mubr.bf16.gmra.mrb[0].mxu0 %v2800
      %v2852 = vpop.f32.mrb[0].mxu0
      %v2853 = vadd.f32 0.0, %v2852
      %v2854 = vpop.f32.mrb[0].mxu0
      %v2855 = vadd.f32 0.0, %v2854
      %v2856 = vpop.f32.mrb[0].mxu0
      %v2857 = vadd.f32 0.0, %v2856
      %v2858 = vpop.f32.mrb[0].mxu0
      %v2859 = vadd.f32 0.0, %v2858
      %2860 = vmatprep.mubr.bf16.mxu0 0
      %2861 = vmatmul.mubr.bf16.gmra.mrb[0].mxu0 %v2803
      %v2862 = vpop.f32.mrb[0].mxu0
      %v2863 = vadd.f32 0.0, %v2862
      %v2864 = vpop.f32.mrb[0].mxu0
      %v2865 = vadd.f32 0.0, %v2864
      %v2866 = vpop.f32.mrb[0].mxu0
      %v2867 = vadd.f32 0.0, %v2866
      %v2868 = vpop.f32.mrb[0].mxu0
      %v2869 = vadd.f32 0.0, %v2868
      %2870 = vmatprep.mubr.bf16.mxu0 0
      %2871 = vmatmul.mubr.bf16.gmra.mrb[0].mxu0 %v2806
      %v2872 = vpop.f32.mrb[0].mxu0
      %v2873 = vadd.f32 0.0, %v2872
      %v2874 = vpop.f32.mrb[0].mxu0
      %v2875 = vadd.f32 0.0, %v2874
      %v2876 = vpop.f32.mrb[0].mxu0
      %v2877 = vadd.f32 0.0, %v2876
      %v2878 = vpop.f32.mrb[0].mxu0
      %v2879 = vadd.f32 0.0, %v2878
      %2880 = vdwg.mxu0
      %v2881 = vadd.f32 %v2760, %v2843
      %v2882 = vadd.f32 %v2761, %v2845
      %v2883 = vadd.f32 %v2762, %v2847
      %v2884 = vadd.f32 %v2763, %v2849
      %v2885 = vadd.f32 %v2764, %v2853
      %v2886 = vadd.f32 %v2765, %v2855
      %v2887 = vadd.f32 %v2766, %v2857
      %v2888 = vadd.f32 %v2767, %v2859
      %v2889 = vadd.f32 %v2768, %v2863
      %v2890 = vadd.f32 %v2769, %v2865
      %v2891 = vadd.f32 %v2770, %v2867
      %v2892 = vadd.f32 %v2771, %v2869
      %v2893 = vadd.f32 %v2772, %v2873
      %v2894 = vadd.f32 %v2773, %v2875
      %v2895 = vadd.f32 %v2774, %v2877
      %v2896 = vadd.f32 %v2775, %v2879
      %2897 = vst [vmem:[#allocation2] sm:$0xff] %v2881
      %2898 = vst [vmem:[#allocation2 + $0x8] sm:$0xff] %v2882
      %2899 = vst [vmem:[#allocation2 + $0x10] sm:$0xff] %v2883
      %2900 = vst [vmem:[#allocation2 + $0x18] sm:$0xff] %v2884
      %2901 = vst [vmem:[#allocation2 + $0x20] sm:$0xff] %v2885
      %2902 = vst [vmem:[#allocation2 + $0x28] sm:$0xff] %v2886
      %2903 = vst [vmem:[#allocation2 + $0x30] sm:$0xff] %v2887
      %2904 = vst [vmem:[#allocation2 + $0x38] sm:$0xff] %v2888
      %2905 = vst [vmem:[#allocation2 + $0x40] sm:$0xff] %v2889
      %2906 = vst [vmem:[#allocation2 + $0x48] sm:$0xff] %v2890
      %2907 = vst [vmem:[#allocation2 + $0x50] sm:$0xff] %v2891
      %2908 = vst [vmem:[#allocation2 + $0x58] sm:$0xff] %v2892
      %2909 = vst [vmem:[#allocation2 + $0x60] sm:$0xff] %v2893
      %2910 = vst [vmem:[#allocation2 + $0x68] sm:$0xff] %v2894
      %2911 = vst [vmem:[#allocation2 + $0x70] sm:$0xff] %v2895
      %2912 = vst [vmem:[#allocation2 + $0x78] sm:$0xff] %v2896
      %v2913 = vld [vmem:[%s2111] sm:$0xff]
      %v2914 = vld [vmem:[%s2111 + $0x8] sm:$0xff]
      %v2915 = vld [vmem:[%s2111 + $0x10] sm:$0xff]
      %v2916 = vld [vmem:[%s2111 + $0x18] sm:$0xff]
      %v2917 = vld [vmem:[%s2111 + $0x20] sm:$0xff]
      %v2918 = vld [vmem:[%s2111 + $0x28] sm:$0xff]
      %v2919 = vld [vmem:[%s2111 + $0x30] sm:$0xff]
      %v2920 = vld [vmem:[%s2111 + $0x38] sm:$0xff]
      %v2921 = vld [vmem:[%s2111 + $0x40] sm:$0xff]
      %v2922 = vld [vmem:[%s2111 + $0x48] sm:$0xff]
      %v2923 = vld [vmem:[%s2111 + $0x50] sm:$0xff]
      %v2924 = vld [vmem:[%s2111 + $0x58] sm:$0xff]
      %v2925 = vld [vmem:[%s2111 + $0x60] sm:$0xff]
      %v2926 = vld [vmem:[%s2111 + $0x68] sm:$0xff]
      %v2927 = vld [vmem:[%s2111 + $0x70] sm:$0xff]
      %v2928 = vld [vmem:[%s2111 + $0x78] sm:$0xff]
      %2929 = vmatprep.subr.bf16.mxu0 %v2746
      %2930 = vmatpush1.bf16.msra.mxu0 %v2745
      %2931 = vmatprep.subr.bf16.mxu0 0
      %2932 = vmatpush1.bf16.msra.mxu0 0
      %2933 = vmatprep.subr.bf16.mxu0 0
      %2934 = vmatpush1.bf16.msra.mxu0 0
      %2935 = vmatprep.subr.bf16.mxu0 0
      %2936 = vmatpush1.bf16.msra.mxu0 0
      %2937 = vmatprep.subr.bf16.mxu0 0
      %2938 = vmatpush1.bf16.msra.mxu0 0
      %2939 = vmatprep.subr.bf16.mxu0 0
      %2940 = vmatpush1.bf16.msra.mxu0 0
      %2941 = vmatprep.subr.bf16.mxu0 0
      %2942 = vmatpush1.bf16.msra.mxu0 0
      %2943 = vmatprep.subr.bf16.mxu0 0
      %2944 = vmatpush1.bf16.msra.mxu0 0
      %2945 = vmatprep.subr.bf16.mxu0 0
      %2946 = vmatpush1.bf16.msra.mxu0 0
      %2947 = vmatprep.subr.bf16.mxu0 0
      %2948 = vmatpush1.bf16.msra.mxu0 0
      %2949 = vmatprep.subr.bf16.mxu0 0
      %2950 = vmatpush1.bf16.msra.mxu0 0
      %2951 = vmatprep.subr.bf16.mxu0 0
      %2952 = vmatpush1.bf16.msra.mxu0 0
      %2953 = vmatprep.subr.bf16.mxu0 0
      %2954 = vmatpush1.bf16.msra.mxu0 0
      %2955 = vmatprep.subr.bf16.mxu0 0
      %2956 = vmatpush1.bf16.msra.mxu0 0
      %2957 = vmatprep.subr.bf16.mxu0 0
      %2958 = vmatpush1.bf16.msra.mxu0 0
      %2959 = vmatprep.subr.bf16.mxu0 0
      %2960 = vmatpush1.bf16.msra.mxu0 0
      %2961 = vmatprep.mubr.bf16.mxu0 0
      %2962 = vmatmul.mubr.bf16.gmra.mrb[0].mxu0 %v2797
      %v2963 = vpop.f32.mrb[0].mxu0
      %v2964 = vadd.f32 0.0, %v2963
      %v2965 = vpop.f32.mrb[0].mxu0
      %v2966 = vadd.f32 0.0, %v2965
      %v2967 = vpop.f32.mrb[0].mxu0
      %v2968 = vadd.f32 0.0, %v2967
      %v2969 = vpop.f32.mrb[0].mxu0
      %v2970 = vadd.f32 0.0, %v2969
      %2971 = vmatprep.mubr.bf16.mxu0 0
      %2972 = vmatmul.mubr.bf16.gmra.mrb[0].mxu0 %v2800
      %v2973 = vpop.f32.mrb[0].mxu0
      %v2974 = vadd.f32 0.0, %v2973
      %v2975 = vpop.f32.mrb[0].mxu0
      %v2976 = vadd.f32 0.0, %v2975
      %v2977 = vpop.f32.mrb[0].mxu0
      %v2978 = vadd.f32 0.0, %v2977
      %v2979 = vpop.f32.mrb[0].mxu0
      %v2980 = vadd.f32 0.0, %v2979
      %2981 = vmatprep.mubr.bf16.mxu0 0
      %2982 = vmatmul.mubr.bf16.gmra.mrb[0].mxu0 %v2803
      %v2983 = vpop.f32.mrb[0].mxu0
      %v2984 = vadd.f32 0.0, %v2983
      %v2985 = vpop.f32.mrb[0].mxu0
      %v2986 = vadd.f32 0.0, %v2985
      %v2987 = vpop.f32.mrb[0].mxu0
      %v2988 = vadd.f32 0.0, %v2987
      %v2989 = vpop.f32.mrb[0].mxu0
      %v2990 = vadd.f32 0.0, %v2989
      %2991 = vmatprep.mubr.bf16.mxu0 0
      %2992 = vmatmul.mubr.bf16.gmra.mrb[0].mxu0 %v2806
      %v2993 = vpop.f32.mrb[0].mxu0
      %v2994 = vadd.f32 0.0, %v2993
      %v2995 = vpop.f32.mrb[0].mxu0
      %v2996 = vadd.f32 0.0, %v2995
      %v2997 = vpop.f32.mrb[0].mxu0
      %v2998 = vadd.f32 0.0, %v2997
      %v2999 = vpop.f32.mrb[0].mxu0
      %v3000 = vadd.f32 0.0, %v2999
      %3001 = vdwg.mxu0
      %v3002 = vadd.f32 %v2913, %v2964
      %v3003 = vadd.f32 %v2914, %v2966
      %v3004 = vadd.f32 %v2915, %v2968
      %v3005 = vadd.f32 %v2916, %v2970
      %v3006 = vadd.f32 %v2917, %v2974
      %v3007 = vadd.f32 %v2918, %v2976
      %v3008 = vadd.f32 %v2919, %v2978
      %v3009 = vadd.f32 %v2920, %v2980
      %v3010 = vadd.f32 %v2921, %v2984
      %v3011 = vadd.f32 %v2922, %v2986
      %v3012 = vadd.f32 %v2923, %v2988
      %v3013 = vadd.f32 %v2924, %v2990
      %v3014 = vadd.f32 %v2925, %v2994
      %v3015 = vadd.f32 %v2926, %v2996
      %v3016 = vadd.f32 %v2927, %v2998
      %v3017 = vadd.f32 %v2928, %v3000
      %3018 = vst [vmem:[%s2111] sm:$0xff] %v3002
      %3019 = vst [vmem:[%s2111 + $0x8] sm:$0xff] %v3003
      %3020 = vst [vmem:[%s2111 + $0x10] sm:$0xff] %v3004
      %3021 = vst [vmem:[%s2111 + $0x18] sm:$0xff] %v3005
      %3022 = vst [vmem:[%s2111 + $0x20] sm:$0xff] %v3006
      %3023 = vst [vmem:[%s2111 + $0x28] sm:$0xff] %v3007
      %3024 = vst [vmem:[%s2111 + $0x30] sm:$0xff] %v3008
      %3025 = vst [vmem:[%s2111 + $0x38] sm:$0xff] %v3009
      %3026 = vst [vmem:[%s2111 + $0x40] sm:$0xff] %v3010
      %3027 = vst [vmem:[%s2111 + $0x48] sm:$0xff] %v3011
      %3028 = vst [vmem:[%s2111 + $0x50] sm:$0xff] %v3012
      %3029 = vst [vmem:[%s2111 + $0x58] sm:$0xff] %v3013
      %3030 = vst [vmem:[%s2111 + $0x60] sm:$0xff] %v3014
      %3031 = vst [vmem:[%s2111 + $0x68] sm:$0xff] %v3015
      %3032 = vst [vmem:[%s2111 + $0x70] sm:$0xff] %v3016
      %3033 = vst [vmem:[%s2111 + $0x78] sm:$0xff] %v3017
      %v3034 = vld [vmem:[%s2233] sm:$0xff]
      %v3035 = vld [vmem:[%s2233 + $0x8] sm:$0xff]
      %v3036 = vld [vmem:[%s2233 + $0x10] sm:$0xff]
      %v3037 = vld [vmem:[%s2233 + $0x18] sm:$0xff]
      %v3038 = vld [vmem:[%s2233 + $0x20] sm:$0xff]
      %v3039 = vld [vmem:[%s2233 + $0x28] sm:$0xff]
      %v3040 = vld [vmem:[%s2233 + $0x30] sm:$0xff]
      %v3041 = vld [vmem:[%s2233 + $0x38] sm:$0xff]
      %v3042 = vld [vmem:[%s2233 + $0x40] sm:$0xff]
      %v3043 = vld [vmem:[%s2233 + $0x48] sm:$0xff]
      %v3044 = vld [vmem:[%s2233 + $0x50] sm:$0xff]
      %v3045 = vld [vmem:[%s2233 + $0x58] sm:$0xff]
      %v3046 = vld [vmem:[%s2233 + $0x60] sm:$0xff]
      %v3047 = vld [vmem:[%s2233 + $0x68] sm:$0xff]
      %v3048 = vld [vmem:[%s2233 + $0x70] sm:$0xff]
      %v3049 = vld [vmem:[%s2233 + $0x78] sm:$0xff]
      %3050 = vmatprep.subr.bf16.mxu0 %v2748
      %3051 = vmatpush1.bf16.msra.mxu0 %v2747
      %3052 = vmatprep.subr.bf16.mxu0 0
      %3053 = vmatpush1.bf16.msra.mxu0 0
      %3054 = vmatprep.subr.bf16.mxu0 0
      %3055 = vmatpush1.bf16.msra.mxu0 0
      %3056 = vmatprep.subr.bf16.mxu0 0
      %3057 = vmatpush1.bf16.msra.mxu0 0
      %3058 = vmatprep.subr.bf16.mxu0 0
      %3059 = vmatpush1.bf16.msra.mxu0 0
      %3060 = vmatprep.subr.bf16.mxu0 0
      %3061 = vmatpush1.bf16.msra.mxu0 0
      %3062 = vmatprep.subr.bf16.mxu0 0
      %3063 = vmatpush1.bf16.msra.mxu0 0
      %3064 = vmatprep.subr.bf16.mxu0 0
      %3065 = vmatpush1.bf16.msra.mxu0 0
      %3066 = vmatprep.subr.bf16.mxu0 0
      %3067 = vmatpush1.bf16.msra.mxu0 0
      %3068 = vmatprep.subr.bf16.mxu0 0
      %3069 = vmatpush1.bf16.msra.mxu0 0
      %3070 = vmatprep.subr.bf16.mxu0 0
      %3071 = vmatpush1.bf16.msra.mxu0 0
      %3072 = vmatprep.subr.bf16.mxu0 0
      %3073 = vmatpush1.bf16.msra.mxu0 0
      %3074 = vmatprep.subr.bf16.mxu0 0
      %3075 = vmatpush1.bf16.msra.mxu0 0
      %3076 = vmatprep.subr.bf16.mxu0 0
      %3077 = vmatpush1.bf16.msra.mxu0 0
      %3078 = vmatprep.subr.bf16.mxu0 0
      %3079 = vmatpush1.bf16.msra.mxu0 0
      %3080 = vmatprep.subr.bf16.mxu0 0
      %3081 = vmatpush1.bf16.msra.mxu0 0
      %3082 = vmatprep.mubr.bf16.mxu0 0
      %3083 = vmatmul.mubr.bf16.gmra.mrb[0].mxu0 %v2797
      %v3084 = vpop.f32.mrb[0].mxu0
      %v3085 = vadd.f32 0.0, %v3084
      %v3086 = vpop.f32.mrb[0].mxu0
      %v3087 = vadd.f32 0.0, %v3086
      %v3088 = vpop.f32.mrb[0].mxu0
      %v3089 = vadd.f32 0.0, %v3088
      %v3090 = vpop.f32.mrb[0].mxu0
      %v3091 = vadd.f32 0.0, %v3090
      %3092 = vmatprep.mubr.bf16.mxu0 0
      %3093 = vmatmul.mubr.bf16.gmra.mrb[0].mxu0 %v2800
      %v3094 = vpop.f32.mrb[0].mxu0
      %v3095 = vadd.f32 0.0, %v3094
      %v3096 = vpop.f32.mrb[0].mxu0
      %v3097 = vadd.f32 0.0, %v3096
      %v3098 = vpop.f32.mrb[0].mxu0
      %v3099 = vadd.f32 0.0, %v3098
      %v3100 = vpop.f32.mrb[0].mxu0
      %v3101 = vadd.f32 0.0, %v3100
      %3102 = vmatprep.mubr.bf16.mxu0 0
      %3103 = vmatmul.mubr.bf16.gmra.mrb[0].mxu0 %v2803
      %v3104 = vpop.f32.mrb[0].mxu0
      %v3105 = vadd.f32 0.0, %v3104
      %v3106 = vpop.f32.mrb[0].mxu0
      %v3107 = vadd.f32 0.0, %v3106
      %v3108 = vpop.f32.mrb[0].mxu0
      %v3109 = vadd.f32 0.0, %v3108
      %v3110 = vpop.f32.mrb[0].mxu0
      %v3111 = vadd.f32 0.0, %v3110
      %3112 = vmatprep.mubr.bf16.mxu0 0
      %3113 = vmatmul.mubr.bf16.gmra.mrb[0].mxu0 %v2806
      %v3114 = vpop.f32.mrb[0].mxu0
      %v3115 = vadd.f32 0.0, %v3114
      %v3116 = vpop.f32.mrb[0].mxu0
      %v3117 = vadd.f32 0.0, %v3116
      %v3118 = vpop.f32.mrb[0].mxu0
      %v3119 = vadd.f32 0.0, %v3118
      %v3120 = vpop.f32.mrb[0].mxu0
      %v3121 = vadd.f32 0.0, %v3120
      %3122 = vdwg.mxu0
      %v3123 = vadd.f32 %v3034, %v3085
      %v3124 = vadd.f32 %v3035, %v3087
      %v3125 = vadd.f32 %v3036, %v3089
      %v3126 = vadd.f32 %v3037, %v3091
      %v3127 = vadd.f32 %v3038, %v3095
      %v3128 = vadd.f32 %v3039, %v3097
      %v3129 = vadd.f32 %v3040, %v3099
      %v3130 = vadd.f32 %v3041, %v3101
      %v3131 = vadd.f32 %v3042, %v3105
      %v3132 = vadd.f32 %v3043, %v3107
      %v3133 = vadd.f32 %v3044, %v3109
      %v3134 = vadd.f32 %v3045, %v3111
      %v3135 = vadd.f32 %v3046, %v3115
      %v3136 = vadd.f32 %v3047, %v3117
      %v3137 = vadd.f32 %v3048, %v3119
      %v3138 = vadd.f32 %v3049, %v3121
      %3139 = vst [vmem:[%s2233] sm:$0xff] %v3123
      %3140 = vst [vmem:[%s2233 + $0x8] sm:$0xff] %v3124
      %3141 = vst [vmem:[%s2233 + $0x10] sm:$0xff] %v3125
      %3142 = vst [vmem:[%s2233 + $0x18] sm:$0xff] %v3126
      %3143 = vst [vmem:[%s2233 + $0x20] sm:$0xff] %v3127
      %3144 = vst [vmem:[%s2233 + $0x28] sm:$0xff] %v3128
      %3145 = vst [vmem:[%s2233 + $0x30] sm:$0xff] %v3129
      %3146 = vst [vmem:[%s2233 + $0x38] sm:$0xff] %v3130
      %3147 = vst [vmem:[%s2233 + $0x40] sm:$0xff] %v3131
      %3148 = vst [vmem:[%s2233 + $0x48] sm:$0xff] %v3132
      %3149 = vst [vmem:[%s2233 + $0x50] sm:$0xff] %v3133
      %3150 = vst [vmem:[%s2233 + $0x58] sm:$0xff] %v3134
      %3151 = vst [vmem:[%s2233 + $0x60] sm:$0xff] %v3135
      %3152 = vst [vmem:[%s2233 + $0x68] sm:$0xff] %v3136
      %3153 = vst [vmem:[%s2233 + $0x70] sm:$0xff] %v3137
      %3154 = vst [vmem:[%s2233 + $0x78] sm:$0xff] %v3138
      %v3155 = vld [vmem:[%s2355] sm:$0xff]
      %v3156 = vld [vmem:[%s2355 + $0x8] sm:$0xff]
      %v3157 = vld [vmem:[%s2355 + $0x10] sm:$0xff]
      %v3158 = vld [vmem:[%s2355 + $0x18] sm:$0xff]
      %v3159 = vld [vmem:[%s2355 + $0x20] sm:$0xff]
      %v3160 = vld [vmem:[%s2355 + $0x28] sm:$0xff]
      %v3161 = vld [vmem:[%s2355 + $0x30] sm:$0xff]
      %v3162 = vld [vmem:[%s2355 + $0x38] sm:$0xff]
      %v3163 = vld [vmem:[%s2355 + $0x40] sm:$0xff]
      %v3164 = vld [vmem:[%s2355 + $0x48] sm:$0xff]
      %v3165 = vld [vmem:[%s2355 + $0x50] sm:$0xff]
      %v3166 = vld [vmem:[%s2355 + $0x58] sm:$0xff]
      %v3167 = vld [vmem:[%s2355 + $0x60] sm:$0xff]
      %v3168 = vld [vmem:[%s2355 + $0x68] sm:$0xff]
      %v3169 = vld [vmem:[%s2355 + $0x70] sm:$0xff]
      %v3170 = vld [vmem:[%s2355 + $0x78] sm:$0xff]
      %3171 = vmatprep.subr.bf16.mxu0 %v2750
      %3172 = vmatpush1.bf16.msra.mxu0 %v2749
      %3173 = vmatprep.subr.bf16.mxu0 0
      %3174 = vmatpush1.bf16.msra.mxu0 0
      %3175 = vmatprep.subr.bf16.mxu0 0
      %3176 = vmatpush1.bf16.msra.mxu0 0
      %3177 = vmatprep.subr.bf16.mxu0 0
      %3178 = vmatpush1.bf16.msra.mxu0 0
      %3179 = vmatprep.subr.bf16.mxu0 0
      %3180 = vmatpush1.bf16.msra.mxu0 0
      %3181 = vmatprep.subr.bf16.mxu0 0
      %3182 = vmatpush1.bf16.msra.mxu0 0
      %3183 = vmatprep.subr.bf16.mxu0 0
      %3184 = vmatpush1.bf16.msra.mxu0 0
      %3185 = vmatprep.subr.bf16.mxu0 0
      %3186 = vmatpush1.bf16.msra.mxu0 0
      %3187 = vmatprep.subr.bf16.mxu0 0
      %3188 = vmatpush1.bf16.msra.mxu0 0
      %3189 = vmatprep.subr.bf16.mxu0 0
      %3190 = vmatpush1.bf16.msra.mxu0 0
      %3191 = vmatprep.subr.bf16.mxu0 0
      %3192 = vmatpush1.bf16.msra.mxu0 0
      %3193 = vmatprep.subr.bf16.mxu0 0
      %3194 = vmatpush1.bf16.msra.mxu0 0
      %3195 = vmatprep.subr.bf16.mxu0 0
      %3196 = vmatpush1.bf16.msra.mxu0 0
      %3197 = vmatprep.subr.bf16.mxu0 0
      %3198 = vmatpush1.bf16.msra.mxu0 0
      %3199 = vmatprep.subr.bf16.mxu0 0
      %3200 = vmatpush1.bf16.msra.mxu0 0
      %3201 = vmatprep.subr.bf16.mxu0 0
      %3202 = vmatpush1.bf16.msra.mxu0 0
      %3203 = vmatprep.mubr.bf16.mxu0 0
      %3204 = vmatmul.mubr.bf16.gmra.mrb[0].mxu0 %v2797
      %v3205 = vpop.f32.mrb[0].mxu0
      %v3206 = vadd.f32 0.0, %v3205
      %v3207 = vpop.f32.mrb[0].mxu0
      %v3208 = vadd.f32 0.0, %v3207
      %v3209 = vpop.f32.mrb[0].mxu0
      %v3210 = vadd.f32 0.0, %v3209
      %v3211 = vpop.f32.mrb[0].mxu0
      %v3212 = vadd.f32 0.0, %v3211
      %3213 = vmatprep.mubr.bf16.mxu0 0
      %3214 = vmatmul.mubr.bf16.gmra.mrb[0].mxu0 %v2800
      %v3215 = vpop.f32.mrb[0].mxu0
      %v3216 = vadd.f32 0.0, %v3215
      %v3217 = vpop.f32.mrb[0].mxu0
      %v3218 = vadd.f32 0.0, %v3217
      %v3219 = vpop.f32.mrb[0].mxu0
      %v3220 = vadd.f32 0.0, %v3219
      %v3221 = vpop.f32.mrb[0].mxu0
      %v3222 = vadd.f32 0.0, %v3221
      %3223 = vmatprep.mubr.bf16.mxu0 0
      %3224 = vmatmul.mubr.bf16.gmra.mrb[0].mxu0 %v2803
      %v3225 = vpop.f32.mrb[0].mxu0
      %v3226 = vadd.f32 0.0, %v3225
      %v3227 = vpop.f32.mrb[0].mxu0
      %v3228 = vadd.f32 0.0, %v3227
      %v3229 = vpop.f32.mrb[0].mxu0
      %v3230 = vadd.f32 0.0, %v3229
      %v3231 = vpop.f32.mrb[0].mxu0
      %v3232 = vadd.f32 0.0, %v3231
      %3233 = vmatprep.mubr.bf16.mxu0 0
      %3234 = vmatmul.mubr.bf16.gmra.mrb[0].mxu0 %v2806
      %v3235 = vpop.f32.mrb[0].mxu0
      %v3236 = vadd.f32 0.0, %v3235
      %v3237 = vpop.f32.mrb[0].mxu0
      %v3238 = vadd.f32 0.0, %v3237
      %v3239 = vpop.f32.mrb[0].mxu0
      %v3240 = vadd.f32 0.0, %v3239
      %v3241 = vpop.f32.mrb[0].mxu0
      %v3242 = vadd.f32 0.0, %v3241
      %3243 = vdwg.mxu0
      %v3244 = vadd.f32 %v3155, %v3206
      %v3245 = vadd.f32 %v3156, %v3208
      %v3246 = vadd.f32 %v3157, %v3210
      %v3247 = vadd.f32 %v3158, %v3212
      %v3248 = vadd.f32 %v3159, %v3216
      %v3249 = vadd.f32 %v3160, %v3218
      %v3250 = vadd.f32 %v3161, %v3220
      %v3251 = vadd.f32 %v3162, %v3222
      %v3252 = vadd.f32 %v3163, %v3226
      %v3253 = vadd.f32 %v3164, %v3228
      %v3254 = vadd.f32 %v3165, %v3230
      %v3255 = vadd.f32 %v3166, %v3232
      %v3256 = vadd.f32 %v3167, %v3236
      %v3257 = vadd.f32 %v3168, %v3238
      %v3258 = vadd.f32 %v3169, %v3240
      %v3259 = vadd.f32 %v3170, %v3242
      %3260 = vst [vmem:[%s2355] sm:$0xff] %v3244
      %3261 = vst [vmem:[%s2355 + $0x8] sm:$0xff] %v3245
      %3262 = vst [vmem:[%s2355 + $0x10] sm:$0xff] %v3246
      %3263 = vst [vmem:[%s2355 + $0x18] sm:$0xff] %v3247
      %3264 = vst [vmem:[%s2355 + $0x20] sm:$0xff] %v3248
      %3265 = vst [vmem:[%s2355 + $0x28] sm:$0xff] %v3249
      %3266 = vst [vmem:[%s2355 + $0x30] sm:$0xff] %v3250
      %3267 = vst [vmem:[%s2355 + $0x38] sm:$0xff] %v3251
      %3268 = vst [vmem:[%s2355 + $0x40] sm:$0xff] %v3252
      %3269 = vst [vmem:[%s2355 + $0x48] sm:$0xff] %v3253
      %3270 = vst [vmem:[%s2355 + $0x50] sm:$0xff] %v3254
      %3271 = vst [vmem:[%s2355 + $0x58] sm:$0xff] %v3255
      %3272 = vst [vmem:[%s2355 + $0x60] sm:$0xff] %v3256
      %3273 = vst [vmem:[%s2355 + $0x68] sm:$0xff] %v3257
      %3274 = vst [vmem:[%s2355 + $0x70] sm:$0xff] %v3258
      %3275 = vst [vmem:[%s2355 + $0x78] sm:$0xff] %v3259
      %s3276 = scalar_lea.vmem %s5, 512
      %v3277 = vld [vmem:[%s3276] sm:$0xff]
      %v3278 = vld [vmem:[%s3276 + $0x8] sm:$0xff]
      %v3279 = vld [vmem:[%s3276 + $0x10] sm:$0xff]
      %v3280 = vld [vmem:[%s3276 + $0x18] sm:$0xff]
      %v3281 = vld [vmem:[%s3276 + $0x20] sm:$0xff]
      %v3282 = vld [vmem:[%s3276 + $0x28] sm:$0xff]
      %v3283 = vld [vmem:[%s3276 + $0x30] sm:$0xff]
      %v3284 = vld [vmem:[%s3276 + $0x38] sm:$0xff]
      %v3285 = vld [vmem:[%s3276 + $0x40] sm:$0xff]
      %v3286 = vld [vmem:[%s3276 + $0x48] sm:$0xff]
      %v3287 = vld [vmem:[%s3276 + $0x50] sm:$0xff]
      %v3288 = vld [vmem:[%s3276 + $0x58] sm:$0xff]
      %v3289 = vld [vmem:[%s3276 + $0x60] sm:$0xff]
      %v3290 = vld [vmem:[%s3276 + $0x68] sm:$0xff]
      %v3291 = vld [vmem:[%s3276 + $0x70] sm:$0xff]
      %v3292 = vld [vmem:[%s3276 + $0x78] sm:$0xff]
      %v3293 = vld [vmem:[%s3276 + $0x80] sm:$0xff]
      %v3294 = vld [vmem:[%s3276 + $0x88] sm:$0xff]
      %v3295 = vld [vmem:[%s3276 + $0x90] sm:$0xff]
      %v3296 = vld [vmem:[%s3276 + $0x98] sm:$0xff]
      %v3297 = vld [vmem:[%s3276 + $0xa0] sm:$0xff]
      %v3298 = vld [vmem:[%s3276 + $0xa8] sm:$0xff]
      %v3299 = vld [vmem:[%s3276 + $0xb0] sm:$0xff]
      %v3300 = vld [vmem:[%s3276 + $0xb8] sm:$0xff]
      %v3301 = vld [vmem:[%s3276 + $0xc0] sm:$0xff]
      %v3302 = vld [vmem:[%s3276 + $0xc8] sm:$0xff]
      %v3303 = vld [vmem:[%s3276 + $0xd0] sm:$0xff]
      %v3304 = vld [vmem:[%s3276 + $0xd8] sm:$0xff]
      %v3305 = vld [vmem:[%s3276 + $0xe0] sm:$0xff]
      %v3306 = vld [vmem:[%s3276 + $0xe8] sm:$0xff]
      %v3307 = vld [vmem:[%s3276 + $0xf0] sm:$0xff]
      %v3308 = vld [vmem:[%s3276 + $0xf8] sm:$0xff]
      %v3341 = vunpack.c.l.b16 %v3277
      %v3342 = vunpack.c.h.b16 %v3277
      %v3343 = vunpack.c.l.b16 %v3278
      %v3344 = vunpack.c.h.b16 %v3278
      %v3345 = vunpack.c.l.b16 %v3279
      %v3346 = vunpack.c.h.b16 %v3279
      %v3347 = vunpack.c.l.b16 %v3280
      %v3348 = vunpack.c.h.b16 %v3280
      %v3349 = vunpack.c.l.b16 %v3281
      %v3350 = vunpack.c.h.b16 %v3281
      %v3351 = vunpack.c.l.b16 %v3282
      %v3352 = vunpack.c.h.b16 %v3282
      %v3353 = vunpack.c.l.b16 %v3283
      %v3354 = vunpack.c.h.b16 %v3283
      %v3355 = vunpack.c.l.b16 %v3284
      %v3356 = vunpack.c.h.b16 %v3284
      %v3357 = vunpack.c.l.b16 %v3285
      %v3358 = vunpack.c.h.b16 %v3285
      %v3359 = vunpack.c.l.b16 %v3286
      %v3360 = vunpack.c.h.b16 %v3286
      %v3361 = vunpack.c.l.b16 %v3287
      %v3362 = vunpack.c.h.b16 %v3287
      %v3363 = vunpack.c.l.b16 %v3288
      %v3364 = vunpack.c.h.b16 %v3288
      %v3365 = vunpack.c.l.b16 %v3289
      %v3366 = vunpack.c.h.b16 %v3289
      %v3367 = vunpack.c.l.b16 %v3290
      %v3368 = vunpack.c.h.b16 %v3290
      %v3369 = vunpack.c.l.b16 %v3291
      %v3370 = vunpack.c.h.b16 %v3291
      %v3371 = vunpack.c.l.b16 %v3292
      %v3372 = vunpack.c.h.b16 %v3292
      %v3373 = vunpack.c.l.b16 %v3293
      %v3374 = vunpack.c.h.b16 %v3293
      %v3375 = vunpack.c.l.b16 %v3294
      %v3376 = vunpack.c.h.b16 %v3294
      %v3377 = vunpack.c.l.b16 %v3295
      %v3378 = vunpack.c.h.b16 %v3295
      %v3379 = vunpack.c.l.b16 %v3296
      %v3380 = vunpack.c.h.b16 %v3296
      %v3381 = vunpack.c.l.b16 %v3297
      %v3382 = vunpack.c.h.b16 %v3297
      %v3383 = vunpack.c.l.b16 %v3298
      %v3384 = vunpack.c.h.b16 %v3298
      %v3385 = vunpack.c.l.b16 %v3299
      %v3386 = vunpack.c.h.b16 %v3299
      %v3387 = vunpack.c.l.b16 %v3300
      %v3388 = vunpack.c.h.b16 %v3300
      %v3389 = vunpack.c.l.b16 %v3301
      %v3390 = vunpack.c.h.b16 %v3301
      %v3391 = vunpack.c.l.b16 %v3302
      %v3392 = vunpack.c.h.b16 %v3302
      %v3393 = vunpack.c.l.b16 %v3303
      %v3394 = vunpack.c.h.b16 %v3303
      %v3395 = vunpack.c.l.b16 %v3304
      %v3396 = vunpack.c.h.b16 %v3304
      %v3397 = vunpack.c.l.b16 %v3305
      %v3398 = vunpack.c.h.b16 %v3305
      %v3399 = vunpack.c.l.b16 %v3306
      %v3400 = vunpack.c.h.b16 %v3306
      %v3401 = vunpack.c.l.b16 %v3307
      %v3402 = vunpack.c.h.b16 %v3307
      %v3403 = vunpack.c.l.b16 %v3308
      %v3404 = vunpack.c.h.b16 %v3308
      %v3405 = vpack.c.b16 %v3343, %v3341
      %v3406 = vpack.c.b16 %v3344, %v3342
      %v3407 = vpack.c.b16 %v3347, %v3345
      %v3408 = vpack.c.b16 %v3348, %v3346
      %v3409 = vpack.c.b16 %v3351, %v3349
      %v3410 = vpack.c.b16 %v3352, %v3350
      %v3411 = vpack.c.b16 %v3355, %v3353
      %v3412 = vpack.c.b16 %v3356, %v3354
      %v3413 = vpack.c.b16 %v3359, %v3357
      %v3414 = vpack.c.b16 %v3360, %v3358
      %v3415 = vpack.c.b16 %v3363, %v3361
      %v3416 = vpack.c.b16 %v3364, %v3362
      %v3417 = vpack.c.b16 %v3367, %v3365
      %v3418 = vpack.c.b16 %v3368, %v3366
      %v3419 = vpack.c.b16 %v3371, %v3369
      %v3420 = vpack.c.b16 %v3372, %v3370
      %v3421 = vpack.c.b16 %v3375, %v3373
      %v3422 = vpack.c.b16 %v3376, %v3374
      %v3423 = vpack.c.b16 %v3379, %v3377
      %v3424 = vpack.c.b16 %v3380, %v3378
      %v3425 = vpack.c.b16 %v3383, %v3381
      %v3426 = vpack.c.b16 %v3384, %v3382
      %v3427 = vpack.c.b16 %v3387, %v3385
      %v3428 = vpack.c.b16 %v3388, %v3386
      %v3429 = vpack.c.b16 %v3391, %v3389
      %v3430 = vpack.c.b16 %v3392, %v3390
      %v3431 = vpack.c.b16 %v3395, %v3393
      %v3432 = vpack.c.b16 %v3396, %v3394
      %v3433 = vpack.c.b16 %v3399, %v3397
      %v3434 = vpack.c.b16 %v3400, %v3398
      %v3435 = vpack.c.b16 %v3403, %v3401
      %v3436 = vpack.c.b16 %v3404, %v3402
      %3469 = vmatprep.subr.bf16.mxu0 %v3406
      %3470 = vmatpush1.bf16.msra.mxu0 %v3405
      %3471 = vmatprep.subr.bf16.mxu0 %v3408
      %3472 = vmatpush1.bf16.msra.mxu0 %v3407
      %3473 = vmatprep.subr.bf16.mxu0 %v3410
      %3474 = vmatpush1.bf16.msra.mxu0 %v3409
      %3475 = vmatprep.subr.bf16.mxu0 %v3412
      %3476 = vmatpush1.bf16.msra.mxu0 %v3411
      %3477 = vmatprep.subr.bf16.mxu0 %v3414
      %3478 = vmatpush1.bf16.msra.mxu0 %v3413
      %3479 = vmatprep.subr.bf16.mxu0 %v3416
      %3480 = vmatpush1.bf16.msra.mxu0 %v3415
      %3481 = vmatprep.subr.bf16.mxu0 %v3418
      %3482 = vmatpush1.bf16.msra.mxu0 %v3417
      %3483 = vmatprep.subr.bf16.mxu0 %v3420
      %3484 = vmatpush1.bf16.msra.mxu0 %v3419
      %3485 = vmatprep.subr.bf16.mxu0 %v3422
      %3486 = vmatpush1.bf16.msra.mxu0 %v3421
      %3487 = vmatprep.subr.bf16.mxu0 %v3424
      %3488 = vmatpush1.bf16.msra.mxu0 %v3423
      %3489 = vmatprep.subr.bf16.mxu0 %v3426
      %3490 = vmatpush1.bf16.msra.mxu0 %v3425
      %3491 = vmatprep.subr.bf16.mxu0 %v3428
      %3492 = vmatpush1.bf16.msra.mxu0 %v3427
      %3493 = vmatprep.subr.bf16.mxu0 %v3430
      %3494 = vmatpush1.bf16.msra.mxu0 %v3429
      %3495 = vmatprep.subr.bf16.mxu0 %v3432
      %3496 = vmatpush1.bf16.msra.mxu0 %v3431
      %3497 = vmatprep.subr.bf16.mxu0 %v3434
      %3498 = vmatpush1.bf16.msra.mxu0 %v3433
      %3499 = vmatprep.subr.bf16.mxu0 %v3436
      %3500 = vmatpush1.bf16.msra.mxu0 %v3435
      %3501 = vmatprep.mubr.bf16.mxu0 %v1605
      %3502 = vmatmul.mubr.bf16.gmra.mrb[0].mxu0 %v1604
      %v3503 = vpop.f32.mrb[0].mxu0
      %v3504 = vadd.f32 0.0, %v3503
      %v3505 = vpop.f32.mrb[0].mxu0
      %v3506 = vadd.f32 0.0, %v3505
      %v3507 = vpop.f32.mrb[0].mxu0
      %v3508 = vadd.f32 0.0, %v3507
      %v3509 = vpop.f32.mrb[0].mxu0
      %v3510 = vadd.f32 0.0, %v3509
      %3511 = vmatprep.mubr.bf16.mxu0 %v1607
      %3512 = vmatmul.mubr.bf16.gmra.mrb[0].mxu0 %v1606
      %v3513 = vpop.f32.mrb[0].mxu0
      %v3514 = vadd.f32 0.0, %v3513
      %v3515 = vpop.f32.mrb[0].mxu0
      %v3516 = vadd.f32 0.0, %v3515
      %v3517 = vpop.f32.mrb[0].mxu0
      %v3518 = vadd.f32 0.0, %v3517
      %v3519 = vpop.f32.mrb[0].mxu0
      %v3520 = vadd.f32 0.0, %v3519
      %3521 = vmatprep.mubr.bf16.mxu0 %v1609
      %3522 = vmatmul.mubr.bf16.gmra.mrb[0].mxu0 %v1608
      %v3523 = vpop.f32.mrb[0].mxu0
      %v3524 = vadd.f32 0.0, %v3523
      %v3525 = vpop.f32.mrb[0].mxu0
      %v3526 = vadd.f32 0.0, %v3525
      %v3527 = vpop.f32.mrb[0].mxu0
      %v3528 = vadd.f32 0.0, %v3527
      %v3529 = vpop.f32.mrb[0].mxu0
      %v3530 = vadd.f32 0.0, %v3529
      %3531 = vmatprep.mubr.bf16.mxu0 %v1611
      %3532 = vmatmul.mubr.bf16.gmra.mrb[0].mxu0 %v1610
      %v3533 = vpop.f32.mrb[0].mxu0
      %v3534 = vadd.f32 0.0, %v3533
      %v3535 = vpop.f32.mrb[0].mxu0
      %v3536 = vadd.f32 0.0, %v3535
      %v3537 = vpop.f32.mrb[0].mxu0
      %v3538 = vadd.f32 0.0, %v3537
      %v3539 = vpop.f32.mrb[0].mxu0
      %v3540 = vadd.f32 0.0, %v3539
      %3541 = vdwg.mxu0
      %v3542 = vpack.c.bf16 %v3508, %v3504
      %v3543 = vpack.c.bf16 %v3510, %v3506
      %v3544 = vpack.c.bf16 %v3518, %v3514
      %v3545 = vpack.c.bf16 %v3520, %v3516
      %v3546 = vpack.c.bf16 %v3528, %v3524
      %v3547 = vpack.c.bf16 %v3530, %v3526
      %v3548 = vpack.c.bf16 %v3538, %v3534
      %v3549 = vpack.c.bf16 %v3540, %v3536
      %s3550 = scalar_lea.vmem %s4, 64
      %v3551 = vld [vmem:[%s3550] sm:$0xf]
      %v3552 = vld [vmem:[%s3550 + $0x4] sm:$0xf]
      %v3553 = vld [vmem:[%s3550 + $0x8] sm:$0xf]
      %v3554 = vld [vmem:[%s3550 + $0xc] sm:$0xf]
      %v3555 = vld [vmem:[%s3550 + $0x10] sm:$0xf]
      %v3556 = vld [vmem:[%s3550 + $0x14] sm:$0xf]
      %v3557 = vld [vmem:[%s3550 + $0x18] sm:$0xf]
      %v3558 = vld [vmem:[%s3550 + $0x1c] sm:$0xf]
      %v3559 = vld [vmem:[#allocation2] sm:$0xff]
      %v3560 = vld [vmem:[#allocation2 + $0x8] sm:$0xff]
      %v3561 = vld [vmem:[#allocation2 + $0x10] sm:$0xff]
      %v3562 = vld [vmem:[#allocation2 + $0x18] sm:$0xff]
      %v3563 = vld [vmem:[#allocation2 + $0x20] sm:$0xff]
      %v3564 = vld [vmem:[#allocation2 + $0x28] sm:$0xff]
      %v3565 = vld [vmem:[#allocation2 + $0x30] sm:$0xff]
      %v3566 = vld [vmem:[#allocation2 + $0x38] sm:$0xff]
      %v3567 = vld [vmem:[#allocation2 + $0x40] sm:$0xff]
      %v3568 = vld [vmem:[#allocation2 + $0x48] sm:$0xff]
      %v3569 = vld [vmem:[#allocation2 + $0x50] sm:$0xff]
      %v3570 = vld [vmem:[#allocation2 + $0x58] sm:$0xff]
      %v3571 = vld [vmem:[#allocation2 + $0x60] sm:$0xff]
      %v3572 = vld [vmem:[#allocation2 + $0x68] sm:$0xff]
      %v3573 = vld [vmem:[#allocation2 + $0x70] sm:$0xff]
      %v3574 = vld [vmem:[#allocation2 + $0x78] sm:$0xff]
      %v3583 = vunpack.c.l.b16 %v3551
      %v3584 = vunpack.c.l.b16 %v3552
      %v3585 = vunpack.c.l.b16 %v3553
      %v3586 = vunpack.c.l.b16 %v3554
      %v3587 = vunpack.c.l.b16 %v3555
      %v3588 = vunpack.c.l.b16 %v3556
      %v3589 = vunpack.c.l.b16 %v3557
      %v3590 = vunpack.c.l.b16 %v3558
      %v3591 = vpack.c.b16 %v3584, %v3583
      %v3592 = vpack.c.b16 %v3586, %v3585
      %v3593 = vpack.c.b16 %v3588, %v3587
      %v3594 = vpack.c.b16 %v3590, %v3589
      %v3596 = vsel %vm1993, %v3591, 0
      %v3599 = vsel %vm1993, %v3592, 0
      %v3602 = vsel %vm1993, %v3593, 0
      %v3605 = vsel %vm1993, %v3594, 0
      %3607 = vmatprep.subr.bf16.mxu0 %v3543
      %3608 = vmatpush1.bf16.msra.mxu0 %v3542
      %3609 = vmatprep.subr.bf16.mxu0 0
      %3610 = vmatpush1.bf16.msra.mxu0 0
      %3611 = vmatprep.subr.bf16.mxu0 0
      %3612 = vmatpush1.bf16.msra.mxu0 0
      %3613 = vmatprep.subr.bf16.mxu0 0
      %3614 = vmatpush1.bf16.msra.mxu0 0
      %3615 = vmatprep.subr.bf16.mxu0 0
      %3616 = vmatpush1.bf16.msra.mxu0 0
      %3617 = vmatprep.subr.bf16.mxu0 0
      %3618 = vmatpush1.bf16.msra.mxu0 0
      %3619 = vmatprep.subr.bf16.mxu0 0
      %3620 = vmatpush1.bf16.msra.mxu0 0
      %3621 = vmatprep.subr.bf16.mxu0 0
      %3622 = vmatpush1.bf16.msra.mxu0 0
      %3623 = vmatprep.subr.bf16.mxu0 0
      %3624 = vmatpush1.bf16.msra.mxu0 0
      %3625 = vmatprep.subr.bf16.mxu0 0
      %3626 = vmatpush1.bf16.msra.mxu0 0
      %3627 = vmatprep.subr.bf16.mxu0 0
      %3628 = vmatpush1.bf16.msra.mxu0 0
      %3629 = vmatprep.subr.bf16.mxu0 0
      %3630 = vmatpush1.bf16.msra.mxu0 0
      %3631 = vmatprep.subr.bf16.mxu0 0
      %3632 = vmatpush1.bf16.msra.mxu0 0
      %3633 = vmatprep.subr.bf16.mxu0 0
      %3634 = vmatpush1.bf16.msra.mxu0 0
      %3635 = vmatprep.subr.bf16.mxu0 0
      %3636 = vmatpush1.bf16.msra.mxu0 0
      %3637 = vmatprep.subr.bf16.mxu0 0
      %3638 = vmatpush1.bf16.msra.mxu0 0
      %3639 = vmatprep.mubr.bf16.mxu0 0
      %3640 = vmatmul.mubr.bf16.gmra.mrb[0].mxu0 %v3596
      %v3641 = vpop.f32.mrb[0].mxu0
      %v3642 = vadd.f32 0.0, %v3641
      %v3643 = vpop.f32.mrb[0].mxu0
      %v3644 = vadd.f32 0.0, %v3643
      %v3645 = vpop.f32.mrb[0].mxu0
      %v3646 = vadd.f32 0.0, %v3645
      %v3647 = vpop.f32.mrb[0].mxu0
      %v3648 = vadd.f32 0.0, %v3647
      %3649 = vmatprep.mubr.bf16.mxu0 0
      %3650 = vmatmul.mubr.bf16.gmra.mrb[0].mxu0 %v3599
      %v3651 = vpop.f32.mrb[0].mxu0
      %v3652 = vadd.f32 0.0, %v3651
      %v3653 = vpop.f32.mrb[0].mxu0
      %v3654 = vadd.f32 0.0, %v3653
      %v3655 = vpop.f32.mrb[0].mxu0
      %v3656 = vadd.f32 0.0, %v3655
      %v3657 = vpop.f32.mrb[0].mxu0
      %v3658 = vadd.f32 0.0, %v3657
      %3659 = vmatprep.mubr.bf16.mxu0 0
      %3660 = vmatmul.mubr.bf16.gmra.mrb[0].mxu0 %v3602
      %v3661 = vpop.f32.mrb[0].mxu0
      %v3662 = vadd.f32 0.0, %v3661
      %v3663 = vpop.f32.mrb[0].mxu0
      %v3664 = vadd.f32 0.0, %v3663
      %v3665 = vpop.f32.mrb[0].mxu0
      %v3666 = vadd.f32 0.0, %v3665
      %v3667 = vpop.f32.mrb[0].mxu0
      %v3668 = vadd.f32 0.0, %v3667
      %3669 = vmatprep.mubr.bf16.mxu0 0
      %3670 = vmatmul.mubr.bf16.gmra.mrb[0].mxu0 %v3605
      %v3671 = vpop.f32.mrb[0].mxu0
      %v3672 = vadd.f32 0.0, %v3671
      %v3673 = vpop.f32.mrb[0].mxu0
      %v3674 = vadd.f32 0.0, %v3673
      %v3675 = vpop.f32.mrb[0].mxu0
      %v3676 = vadd.f32 0.0, %v3675
      %v3677 = vpop.f32.mrb[0].mxu0
      %v3678 = vadd.f32 0.0, %v3677
      %3679 = vdwg.mxu0
      %v3680 = vadd.f32 %v3559, %v3642
      %v3681 = vadd.f32 %v3560, %v3644
      %v3682 = vadd.f32 %v3561, %v3646
      %v3683 = vadd.f32 %v3562, %v3648
      %v3684 = vadd.f32 %v3563, %v3652
      %v3685 = vadd.f32 %v3564, %v3654
      %v3686 = vadd.f32 %v3565, %v3656
      %v3687 = vadd.f32 %v3566, %v3658
      %v3688 = vadd.f32 %v3567, %v3662
      %v3689 = vadd.f32 %v3568, %v3664
      %v3690 = vadd.f32 %v3569, %v3666
      %v3691 = vadd.f32 %v3570, %v3668
      %v3692 = vadd.f32 %v3571, %v3672
      %v3693 = vadd.f32 %v3572, %v3674
      %v3694 = vadd.f32 %v3573, %v3676
      %v3695 = vadd.f32 %v3574, %v3678
      %3696 = vst [vmem:[#allocation2] sm:$0xff] %v3680
      %3697 = vst [vmem:[#allocation2 + $0x8] sm:$0xff] %v3681
      %3698 = vst [vmem:[#allocation2 + $0x10] sm:$0xff] %v3682
      %3699 = vst [vmem:[#allocation2 + $0x18] sm:$0xff] %v3683
      %3700 = vst [vmem:[#allocation2 + $0x20] sm:$0xff] %v3684
      %3701 = vst [vmem:[#allocation2 + $0x28] sm:$0xff] %v3685
      %3702 = vst [vmem:[#allocation2 + $0x30] sm:$0xff] %v3686
      %3703 = vst [vmem:[#allocation2 + $0x38] sm:$0xff] %v3687
      %3704 = vst [vmem:[#allocation2 + $0x40] sm:$0xff] %v3688
      %3705 = vst [vmem:[#allocation2 + $0x48] sm:$0xff] %v3689
      %3706 = vst [vmem:[#allocation2 + $0x50] sm:$0xff] %v3690
      %3707 = vst [vmem:[#allocation2 + $0x58] sm:$0xff] %v3691
      %3708 = vst [vmem:[#allocation2 + $0x60] sm:$0xff] %v3692
      %3709 = vst [vmem:[#allocation2 + $0x68] sm:$0xff] %v3693
      %3710 = vst [vmem:[#allocation2 + $0x70] sm:$0xff] %v3694
      %3711 = vst [vmem:[#allocation2 + $0x78] sm:$0xff] %v3695
      %v3712 = vld [vmem:[%s2111] sm:$0xff]
      %v3713 = vld [vmem:[%s2111 + $0x8] sm:$0xff]
      %v3714 = vld [vmem:[%s2111 + $0x10] sm:$0xff]
      %v3715 = vld [vmem:[%s2111 + $0x18] sm:$0xff]
      %v3716 = vld [vmem:[%s2111 + $0x20] sm:$0xff]
      %v3717 = vld [vmem:[%s2111 + $0x28] sm:$0xff]
      %v3718 = vld [vmem:[%s2111 + $0x30] sm:$0xff]
      %v3719 = vld [vmem:[%s2111 + $0x38] sm:$0xff]
      %v3720 = vld [vmem:[%s2111 + $0x40] sm:$0xff]
      %v3721 = vld [vmem:[%s2111 + $0x48] sm:$0xff]
      %v3722 = vld [vmem:[%s2111 + $0x50] sm:$0xff]
      %v3723 = vld [vmem:[%s2111 + $0x58] sm:$0xff]
      %v3724 = vld [vmem:[%s2111 + $0x60] sm:$0xff]
      %v3725 = vld [vmem:[%s2111 + $0x68] sm:$0xff]
      %v3726 = vld [vmem:[%s2111 + $0x70] sm:$0xff]
      %v3727 = vld [vmem:[%s2111 + $0x78] sm:$0xff]
      %3728 = vmatprep.subr.bf16.mxu0 %v3545
      %3729 = vmatpush1.bf16.msra.mxu0 %v3544
      %3730 = vmatprep.subr.bf16.mxu0 0
      %3731 = vmatpush1.bf16.msra.mxu0 0
      %3732 = vmatprep.subr.bf16.mxu0 0
      %3733 = vmatpush1.bf16.msra.mxu0 0
      %3734 = vmatprep.subr.bf16.mxu0 0
      %3735 = vmatpush1.bf16.msra.mxu0 0
      %3736 = vmatprep.subr.bf16.mxu0 0
      %3737 = vmatpush1.bf16.msra.mxu0 0
      %3738 = vmatprep.subr.bf16.mxu0 0
      %3739 = vmatpush1.bf16.msra.mxu0 0
      %3740 = vmatprep.subr.bf16.mxu0 0
      %3741 = vmatpush1.bf16.msra.mxu0 0
      %3742 = vmatprep.subr.bf16.mxu0 0
      %3743 = vmatpush1.bf16.msra.mxu0 0
      %3744 = vmatprep.subr.bf16.mxu0 0
      %3745 = vmatpush1.bf16.msra.mxu0 0
      %3746 = vmatprep.subr.bf16.mxu0 0
      %3747 = vmatpush1.bf16.msra.mxu0 0
      %3748 = vmatprep.subr.bf16.mxu0 0
      %3749 = vmatpush1.bf16.msra.mxu0 0
      %3750 = vmatprep.subr.bf16.mxu0 0
      %3751 = vmatpush1.bf16.msra.mxu0 0
      %3752 = vmatprep.subr.bf16.mxu0 0
      %3753 = vmatpush1.bf16.msra.mxu0 0
      %3754 = vmatprep.subr.bf16.mxu0 0
      %3755 = vmatpush1.bf16.msra.mxu0 0
      %3756 = vmatprep.subr.bf16.mxu0 0
      %3757 = vmatpush1.bf16.msra.mxu0 0
      %3758 = vmatprep.subr.bf16.mxu0 0
      %3759 = vmatpush1.bf16.msra.mxu0 0
      %3760 = vmatprep.mubr.bf16.mxu0 0
      %3761 = vmatmul.mubr.bf16.gmra.mrb[0].mxu0 %v3596
      %v3762 = vpop.f32.mrb[0].mxu0
      %v3763 = vadd.f32 0.0, %v3762
      %v3764 = vpop.f32.mrb[0].mxu0
      %v3765 = vadd.f32 0.0, %v3764
      %v3766 = vpop.f32.mrb[0].mxu0
      %v3767 = vadd.f32 0.0, %v3766
      %v3768 = vpop.f32.mrb[0].mxu0
      %v3769 = vadd.f32 0.0, %v3768
      %3770 = vmatprep.mubr.bf16.mxu0 0
      %3771 = vmatmul.mubr.bf16.gmra.mrb[0].mxu0 %v3599
      %v3772 = vpop.f32.mrb[0].mxu0
      %v3773 = vadd.f32 0.0, %v3772
      %v3774 = vpop.f32.mrb[0].mxu0
      %v3775 = vadd.f32 0.0, %v3774
      %v3776 = vpop.f32.mrb[0].mxu0
      %v3777 = vadd.f32 0.0, %v3776
      %v3778 = vpop.f32.mrb[0].mxu0
      %v3779 = vadd.f32 0.0, %v3778
      %3780 = vmatprep.mubr.bf16.mxu0 0
      %3781 = vmatmul.mubr.bf16.gmra.mrb[0].mxu0 %v3602
      %v3782 = vpop.f32.mrb[0].mxu0
      %v3783 = vadd.f32 0.0, %v3782
      %v3784 = vpop.f32.mrb[0].mxu0
      %v3785 = vadd.f32 0.0, %v3784
      %v3786 = vpop.f32.mrb[0].mxu0
      %v3787 = vadd.f32 0.0, %v3786
      %v3788 = vpop.f32.mrb[0].mxu0
      %v3789 = vadd.f32 0.0, %v3788
      %3790 = vmatprep.mubr.bf16.mxu0 0
      %3791 = vmatmul.mubr.bf16.gmra.mrb[0].mxu0 %v3605
      %v3792 = vpop.f32.mrb[0].mxu0
      %v3793 = vadd.f32 0.0, %v3792
      %v3794 = vpop.f32.mrb[0].mxu0
      %v3795 = vadd.f32 0.0, %v3794
      %v3796 = vpop.f32.mrb[0].mxu0
      %v3797 = vadd.f32 0.0, %v3796
      %v3798 = vpop.f32.mrb[0].mxu0
      %v3799 = vadd.f32 0.0, %v3798
      %3800 = vdwg.mxu0
      %v3801 = vadd.f32 %v3712, %v3763
      %v3802 = vadd.f32 %v3713, %v3765
      %v3803 = vadd.f32 %v3714, %v3767
      %v3804 = vadd.f32 %v3715, %v3769
      %v3805 = vadd.f32 %v3716, %v3773
      %v3806 = vadd.f32 %v3717, %v3775
      %v3807 = vadd.f32 %v3718, %v3777
      %v3808 = vadd.f32 %v3719, %v3779
      %v3809 = vadd.f32 %v3720, %v3783
      %v3810 = vadd.f32 %v3721, %v3785
      %v3811 = vadd.f32 %v3722, %v3787
      %v3812 = vadd.f32 %v3723, %v3789
      %v3813 = vadd.f32 %v3724, %v3793
      %v3814 = vadd.f32 %v3725, %v3795
      %v3815 = vadd.f32 %v3726, %v3797
      %v3816 = vadd.f32 %v3727, %v3799
      %3817 = vst [vmem:[%s2111] sm:$0xff] %v3801
      %3818 = vst [vmem:[%s2111 + $0x8] sm:$0xff] %v3802
      %3819 = vst [vmem:[%s2111 + $0x10] sm:$0xff] %v3803
      %3820 = vst [vmem:[%s2111 + $0x18] sm:$0xff] %v3804
      %3821 = vst [vmem:[%s2111 + $0x20] sm:$0xff] %v3805
      %3822 = vst [vmem:[%s2111 + $0x28] sm:$0xff] %v3806
      %3823 = vst [vmem:[%s2111 + $0x30] sm:$0xff] %v3807
      %3824 = vst [vmem:[%s2111 + $0x38] sm:$0xff] %v3808
      %3825 = vst [vmem:[%s2111 + $0x40] sm:$0xff] %v3809
      %3826 = vst [vmem:[%s2111 + $0x48] sm:$0xff] %v3810
      %3827 = vst [vmem:[%s2111 + $0x50] sm:$0xff] %v3811
      %3828 = vst [vmem:[%s2111 + $0x58] sm:$0xff] %v3812
      %3829 = vst [vmem:[%s2111 + $0x60] sm:$0xff] %v3813
      %3830 = vst [vmem:[%s2111 + $0x68] sm:$0xff] %v3814
      %3831 = vst [vmem:[%s2111 + $0x70] sm:$0xff] %v3815
      %3832 = vst [vmem:[%s2111 + $0x78] sm:$0xff] %v3816
      %v3833 = vld [vmem:[%s2233] sm:$0xff]
      %v3834 = vld [vmem:[%s2233 + $0x8] sm:$0xff]
      %v3835 = vld [vmem:[%s2233 + $0x10] sm:$0xff]
      %v3836 = vld [vmem:[%s2233 + $0x18] sm:$0xff]
      %v3837 = vld [vmem:[%s2233 + $0x20] sm:$0xff]
      %v3838 = vld [vmem:[%s2233 + $0x28] sm:$0xff]
      %v3839 = vld [vmem:[%s2233 + $0x30] sm:$0xff]
      %v3840 = vld [vmem:[%s2233 + $0x38] sm:$0xff]
      %v3841 = vld [vmem:[%s2233 + $0x40] sm:$0xff]
      %v3842 = vld [vmem:[%s2233 + $0x48] sm:$0xff]
      %v3843 = vld [vmem:[%s2233 + $0x50] sm:$0xff]
      %v3844 = vld [vmem:[%s2233 + $0x58] sm:$0xff]
      %v3845 = vld [vmem:[%s2233 + $0x60] sm:$0xff]
      %v3846 = vld [vmem:[%s2233 + $0x68] sm:$0xff]
      %v3847 = vld [vmem:[%s2233 + $0x70] sm:$0xff]
      %v3848 = vld [vmem:[%s2233 + $0x78] sm:$0xff]
      %3849 = vmatprep.subr.bf16.mxu0 %v3547
      %3850 = vmatpush1.bf16.msra.mxu0 %v3546
      %3851 = vmatprep.subr.bf16.mxu0 0
      %3852 = vmatpush1.bf16.msra.mxu0 0
      %3853 = vmatprep.subr.bf16.mxu0 0
      %3854 = vmatpush1.bf16.msra.mxu0 0
      %3855 = vmatprep.subr.bf16.mxu0 0
      %3856 = vmatpush1.bf16.msra.mxu0 0
      %3857 = vmatprep.subr.bf16.mxu0 0
      %3858 = vmatpush1.bf16.msra.mxu0 0
      %3859 = vmatprep.subr.bf16.mxu0 0
      %3860 = vmatpush1.bf16.msra.mxu0 0
      %3861 = vmatprep.subr.bf16.mxu0 0
      %3862 = vmatpush1.bf16.msra.mxu0 0
      %3863 = vmatprep.subr.bf16.mxu0 0
      %3864 = vmatpush1.bf16.msra.mxu0 0
      %3865 = vmatprep.subr.bf16.mxu0 0
      %3866 = vmatpush1.bf16.msra.mxu0 0
      %3867 = vmatprep.subr.bf16.mxu0 0
      %3868 = vmatpush1.bf16.msra.mxu0 0
      %3869 = vmatprep.subr.bf16.mxu0 0
      %3870 = vmatpush1.bf16.msra.mxu0 0
      %3871 = vmatprep.subr.bf16.mxu0 0
      %3872 = vmatpush1.bf16.msra.mxu0 0
      %3873 = vmatprep.subr.bf16.mxu0 0
      %3874 = vmatpush1.bf16.msra.mxu0 0
      %3875 = vmatprep.subr.bf16.mxu0 0
      %3876 = vmatpush1.bf16.msra.mxu0 0
      %3877 = vmatprep.subr.bf16.mxu0 0
      %3878 = vmatpush1.bf16.msra.mxu0 0
      %3879 = vmatprep.subr.bf16.mxu0 0
      %3880 = vmatpush1.bf16.msra.mxu0 0
      %3881 = vmatprep.mubr.bf16.mxu0 0
      %3882 = vmatmul.mubr.bf16.gmra.mrb[0].mxu0 %v3596
      %v3883 = vpop.f32.mrb[0].mxu0
      %v3884 = vadd.f32 0.0, %v3883
      %v3885 = vpop.f32.mrb[0].mxu0
      %v3886 = vadd.f32 0.0, %v3885
      %v3887 = vpop.f32.mrb[0].mxu0
      %v3888 = vadd.f32 0.0, %v3887
      %v3889 = vpop.f32.mrb[0].mxu0
      %v3890 = vadd.f32 0.0, %v3889
      %3891 = vmatprep.mubr.bf16.mxu0 0
      %3892 = vmatmul.mubr.bf16.gmra.mrb[0].mxu0 %v3599
      %v3893 = vpop.f32.mrb[0].mxu0
      %v3894 = vadd.f32 0.0, %v3893
      %v3895 = vpop.f32.mrb[0].mxu0
      %v3896 = vadd.f32 0.0, %v3895
      %v3897 = vpop.f32.mrb[0].mxu0
      %v3898 = vadd.f32 0.0, %v3897
      %v3899 = vpop.f32.mrb[0].mxu0
      %v3900 = vadd.f32 0.0, %v3899
      %3901 = vmatprep.mubr.bf16.mxu0 0
      %3902 = vmatmul.mubr.bf16.gmra.mrb[0].mxu0 %v3602
      %v3903 = vpop.f32.mrb[0].mxu0
      %v3904 = vadd.f32 0.0, %v3903
      %v3905 = vpop.f32.mrb[0].mxu0
      %v3906 = vadd.f32 0.0, %v3905
      %v3907 = vpop.f32.mrb[0].mxu0
      %v3908 = vadd.f32 0.0, %v3907
      %v3909 = vpop.f32.mrb[0].mxu0
      %v3910 = vadd.f32 0.0, %v3909
      %3911 = vmatprep.mubr.bf16.mxu0 0
      %3912 = vmatmul.mubr.bf16.gmra.mrb[0].mxu0 %v3605
      %v3913 = vpop.f32.mrb[0].mxu0
      %v3914 = vadd.f32 0.0, %v3913
      %v3915 = vpop.f32.mrb[0].mxu0
      %v3916 = vadd.f32 0.0, %v3915
      %v3917 = vpop.f32.mrb[0].mxu0
      %v3918 = vadd.f32 0.0, %v3917
      %v3919 = vpop.f32.mrb[0].mxu0
      %v3920 = vadd.f32 0.0, %v3919
      %3921 = vdwg.mxu0
      %v3922 = vadd.f32 %v3833, %v3884
      %v3923 = vadd.f32 %v3834, %v3886
      %v3924 = vadd.f32 %v3835, %v3888
      %v3925 = vadd.f32 %v3836, %v3890
      %v3926 = vadd.f32 %v3837, %v3894
      %v3927 = vadd.f32 %v3838, %v3896
      %v3928 = vadd.f32 %v3839, %v3898
      %v3929 = vadd.f32 %v3840, %v3900
      %v3930 = vadd.f32 %v3841, %v3904
      %v3931 = vadd.f32 %v3842, %v3906
      %v3932 = vadd.f32 %v3843, %v3908
      %v3933 = vadd.f32 %v3844, %v3910
      %v3934 = vadd.f32 %v3845, %v3914
      %v3935 = vadd.f32 %v3846, %v3916
      %v3936 = vadd.f32 %v3847, %v3918
      %v3937 = vadd.f32 %v3848, %v3920
      %3938 = vst [vmem:[%s2233] sm:$0xff] %v3922
      %3939 = vst [vmem:[%s2233 + $0x8] sm:$0xff] %v3923
      %3940 = vst [vmem:[%s2233 + $0x10] sm:$0xff] %v3924
      %3941 = vst [vmem:[%s2233 + $0x18] sm:$0xff] %v3925
      %3942 = vst [vmem:[%s2233 + $0x20] sm:$0xff] %v3926
      %3943 = vst [vmem:[%s2233 + $0x28] sm:$0xff] %v3927
      %3944 = vst [vmem:[%s2233 + $0x30] sm:$0xff] %v3928
      %3945 = vst [vmem:[%s2233 + $0x38] sm:$0xff] %v3929
      %3946 = vst [vmem:[%s2233 + $0x40] sm:$0xff] %v3930
      %3947 = vst [vmem:[%s2233 + $0x48] sm:$0xff] %v3931
      %3948 = vst [vmem:[%s2233 + $0x50] sm:$0xff] %v3932
      %3949 = vst [vmem:[%s2233 + $0x58] sm:$0xff] %v3933
      %3950 = vst [vmem:[%s2233 + $0x60] sm:$0xff] %v3934
      %3951 = vst [vmem:[%s2233 + $0x68] sm:$0xff] %v3935
      %3952 = vst [vmem:[%s2233 + $0x70] sm:$0xff] %v3936
      %3953 = vst [vmem:[%s2233 + $0x78] sm:$0xff] %v3937
      %v3954 = vld [vmem:[%s2355] sm:$0xff]
      %v3955 = vld [vmem:[%s2355 + $0x8] sm:$0xff]
      %v3956 = vld [vmem:[%s2355 + $0x10] sm:$0xff]
      %v3957 = vld [vmem:[%s2355 + $0x18] sm:$0xff]
      %v3958 = vld [vmem:[%s2355 + $0x20] sm:$0xff]
      %v3959 = vld [vmem:[%s2355 + $0x28] sm:$0xff]
      %v3960 = vld [vmem:[%s2355 + $0x30] sm:$0xff]
      %v3961 = vld [vmem:[%s2355 + $0x38] sm:$0xff]
      %v3962 = vld [vmem:[%s2355 + $0x40] sm:$0xff]
      %v3963 = vld [vmem:[%s2355 + $0x48] sm:$0xff]
      %v3964 = vld [vmem:[%s2355 + $0x50] sm:$0xff]
      %v3965 = vld [vmem:[%s2355 + $0x58] sm:$0xff]
      %v3966 = vld [vmem:[%s2355 + $0x60] sm:$0xff]
      %v3967 = vld [vmem:[%s2355 + $0x68] sm:$0xff]
      %v3968 = vld [vmem:[%s2355 + $0x70] sm:$0xff]
      %v3969 = vld [vmem:[%s2355 + $0x78] sm:$0xff]
      %3970 = vmatprep.subr.bf16.mxu0 %v3549
      %3971 = vmatpush1.bf16.msra.mxu0 %v3548
      %3972 = vmatprep.subr.bf16.mxu0 0
      %3973 = vmatpush1.bf16.msra.mxu0 0
      %3974 = vmatprep.subr.bf16.mxu0 0
      %3975 = vmatpush1.bf16.msra.mxu0 0
      %3976 = vmatprep.subr.bf16.mxu0 0
      %3977 = vmatpush1.bf16.msra.mxu0 0
      %3978 = vmatprep.subr.bf16.mxu0 0
      %3979 = vmatpush1.bf16.msra.mxu0 0
      %3980 = vmatprep.subr.bf16.mxu0 0
      %3981 = vmatpush1.bf16.msra.mxu0 0
      %3982 = vmatprep.subr.bf16.mxu0 0
      %3983 = vmatpush1.bf16.msra.mxu0 0
      %3984 = vmatprep.subr.bf16.mxu0 0
      %3985 = vmatpush1.bf16.msra.mxu0 0
      %3986 = vmatprep.subr.bf16.mxu0 0
      %3987 = vmatpush1.bf16.msra.mxu0 0
      %3988 = vmatprep.subr.bf16.mxu0 0
      %3989 = vmatpush1.bf16.msra.mxu0 0
      %3990 = vmatprep.subr.bf16.mxu0 0
      %3991 = vmatpush1.bf16.msra.mxu0 0
      %3992 = vmatprep.subr.bf16.mxu0 0
      %3993 = vmatpush1.bf16.msra.mxu0 0
      %3994 = vmatprep.subr.bf16.mxu0 0
      %3995 = vmatpush1.bf16.msra.mxu0 0
      %3996 = vmatprep.subr.bf16.mxu0 0
      %3997 = vmatpush1.bf16.msra.mxu0 0
      %3998 = vmatprep.subr.bf16.mxu0 0
      %3999 = vmatpush1.bf16.msra.mxu0 0
      %4000 = vmatprep.subr.bf16.mxu0 0
      %4001 = vmatpush1.bf16.msra.mxu0 0
      %4002 = vmatprep.mubr.bf16.mxu0 0
      %4003 = vmatmul.mubr.bf16.gmra.mrb[0].mxu0 %v3596
      %v4004 = vpop.f32.mrb[0].mxu0
      %v4005 = vadd.f32 0.0, %v4004
      %v4006 = vpop.f32.mrb[0].mxu0
      %v4007 = vadd.f32 0.0, %v4006
      %v4008 = vpop.f32.mrb[0].mxu0
      %v4009 = vadd.f32 0.0, %v4008
      %v4010 = vpop.f32.mrb[0].mxu0
      %v4011 = vadd.f32 0.0, %v4010
      %4012 = vmatprep.mubr.bf16.mxu0 0
      %4013 = vmatmul.mubr.bf16.gmra.mrb[0].mxu0 %v3599
      %v4014 = vpop.f32.mrb[0].mxu0
      %v4015 = vadd.f32 0.0, %v4014
      %v4016 = vpop.f32.mrb[0].mxu0
      %v4017 = vadd.f32 0.0, %v4016
      %v4018 = vpop.f32.mrb[0].mxu0
      %v4019 = vadd.f32 0.0, %v4018
      %v4020 = vpop.f32.mrb[0].mxu0
      %v4021 = vadd.f32 0.0, %v4020
      %4022 = vmatprep.mubr.bf16.mxu0 0
      %4023 = vmatmul.mubr.bf16.gmra.mrb[0].mxu0 %v3602
      %v4024 = vpop.f32.mrb[0].mxu0
      %v4025 = vadd.f32 0.0, %v4024
      %v4026 = vpop.f32.mrb[0].mxu0
      %v4027 = vadd.f32 0.0, %v4026
      %v4028 = vpop.f32.mrb[0].mxu0
      %v4029 = vadd.f32 0.0, %v4028
      %v4030 = vpop.f32.mrb[0].mxu0
      %v4031 = vadd.f32 0.0, %v4030
      %4032 = vmatprep.mubr.bf16.mxu0 0
      %4033 = vmatmul.mubr.bf16.gmra.mrb[0].mxu0 %v3605
      %v4034 = vpop.f32.mrb[0].mxu0
      %v4035 = vadd.f32 0.0, %v4034
      %v4036 = vpop.f32.mrb[0].mxu0
      %v4037 = vadd.f32 0.0, %v4036
      %v4038 = vpop.f32.mrb[0].mxu0
      %v4039 = vadd.f32 0.0, %v4038
      %v4040 = vpop.f32.mrb[0].mxu0
      %v4041 = vadd.f32 0.0, %v4040
      %4042 = vdwg.mxu0
      %v4043 = vadd.f32 %v3954, %v4005
      %v4044 = vadd.f32 %v3955, %v4007
      %v4045 = vadd.f32 %v3956, %v4009
      %v4046 = vadd.f32 %v3957, %v4011
      %v4047 = vadd.f32 %v3958, %v4015
      %v4048 = vadd.f32 %v3959, %v4017
      %v4049 = vadd.f32 %v3960, %v4019
      %v4050 = vadd.f32 %v3961, %v4021
      %v4051 = vadd.f32 %v3962, %v4025
      %v4052 = vadd.f32 %v3963, %v4027
      %v4053 = vadd.f32 %v3964, %v4029
      %v4054 = vadd.f32 %v3965, %v4031
      %v4055 = vadd.f32 %v3966, %v4035
      %v4056 = vadd.f32 %v3967, %v4037
      %v4057 = vadd.f32 %v3968, %v4039
      %v4058 = vadd.f32 %v3969, %v4041
      %4059 = vst [vmem:[%s2355] sm:$0xff] %v4043
      %4060 = vst [vmem:[%s2355 + $0x8] sm:$0xff] %v4044
      %4061 = vst [vmem:[%s2355 + $0x10] sm:$0xff] %v4045
      %4062 = vst [vmem:[%s2355 + $0x18] sm:$0xff] %v4046
      %4063 = vst [vmem:[%s2355 + $0x20] sm:$0xff] %v4047
      %4064 = vst [vmem:[%s2355 + $0x28] sm:$0xff] %v4048
      %4065 = vst [vmem:[%s2355 + $0x30] sm:$0xff] %v4049
      %4066 = vst [vmem:[%s2355 + $0x38] sm:$0xff] %v4050
      %4067 = vst [vmem:[%s2355 + $0x40] sm:$0xff] %v4051
      %4068 = vst [vmem:[%s2355 + $0x48] sm:$0xff] %v4052
      %4069 = vst [vmem:[%s2355 + $0x50] sm:$0xff] %v4053
      %4070 = vst [vmem:[%s2355 + $0x58] sm:$0xff] %v4054
      %4071 = vst [vmem:[%s2355 + $0x60] sm:$0xff] %v4055
      %4072 = vst [vmem:[%s2355 + $0x68] sm:$0xff] %v4056
      %4073 = vst [vmem:[%s2355 + $0x70] sm:$0xff] %v4057
      %4074 = vst [vmem:[%s2355 + $0x78] sm:$0xff] %v4058
      %s4075 = scalar_lea.vmem %s5, 768
      %v4076 = vld [vmem:[%s4075] sm:$0xff]
      %v4077 = vld [vmem:[%s4075 + $0x8] sm:$0xff]
      %v4078 = vld [vmem:[%s4075 + $0x10] sm:$0xff]
      %v4079 = vld [vmem:[%s4075 + $0x18] sm:$0xff]
      %v4080 = vld [vmem:[%s4075 + $0x20] sm:$0xff]
      %v4081 = vld [vmem:[%s4075 + $0x28] sm:$0xff]
      %v4082 = vld [vmem:[%s4075 + $0x30] sm:$0xff]
      %v4083 = vld [vmem:[%s4075 + $0x38] sm:$0xff]
      %v4084 = vld [vmem:[%s4075 + $0x40] sm:$0xff]
      %v4085 = vld [vmem:[%s4075 + $0x48] sm:$0xff]
      %v4086 = vld [vmem:[%s4075 + $0x50] sm:$0xff]
      %v4087 = vld [vmem:[%s4075 + $0x58] sm:$0xff]
      %v4088 = vld [vmem:[%s4075 + $0x60] sm:$0xff]
      %v4089 = vld [vmem:[%s4075 + $0x68] sm:$0xff]
      %v4090 = vld [vmem:[%s4075 + $0x70] sm:$0xff]
      %v4091 = vld [vmem:[%s4075 + $0x78] sm:$0xff]
      %v4092 = vld [vmem:[%s4075 + $0x80] sm:$0xff]
      %v4093 = vld [vmem:[%s4075 + $0x88] sm:$0xff]
      %v4094 = vld [vmem:[%s4075 + $0x90] sm:$0xff]
      %v4095 = vld [vmem:[%s4075 + $0x98] sm:$0xff]
      %v4096 = vld [vmem:[%s4075 + $0xa0] sm:$0xff]
      %v4097 = vld [vmem:[%s4075 + $0xa8] sm:$0xff]
      %v4098 = vld [vmem:[%s4075 + $0xb0] sm:$0xff]
      %v4099 = vld [vmem:[%s4075 + $0xb8] sm:$0xff]
      %v4100 = vld [vmem:[%s4075 + $0xc0] sm:$0xff]
      %v4101 = vld [vmem:[%s4075 + $0xc8] sm:$0xff]
      %v4102 = vld [vmem:[%s4075 + $0xd0] sm:$0xff]
      %v4103 = vld [vmem:[%s4075 + $0xd8] sm:$0xff]
      %v4104 = vld [vmem:[%s4075 + $0xe0] sm:$0xff]
      %v4105 = vld [vmem:[%s4075 + $0xe8] sm:$0xff]
      %v4106 = vld [vmem:[%s4075 + $0xf0] sm:$0xff]
      %v4107 = vld [vmem:[%s4075 + $0xf8] sm:$0xff]
      %v4140 = vunpack.c.l.b16 %v4076
      %v4141 = vunpack.c.h.b16 %v4076
      %v4142 = vunpack.c.l.b16 %v4077
      %v4143 = vunpack.c.h.b16 %v4077
      %v4144 = vunpack.c.l.b16 %v4078
      %v4145 = vunpack.c.h.b16 %v4078
      %v4146 = vunpack.c.l.b16 %v4079
      %v4147 = vunpack.c.h.b16 %v4079
      %v4148 = vunpack.c.l.b16 %v4080
      %v4149 = vunpack.c.h.b16 %v4080
      %v4150 = vunpack.c.l.b16 %v4081
      %v4151 = vunpack.c.h.b16 %v4081
      %v4152 = vunpack.c.l.b16 %v4082
      %v4153 = vunpack.c.h.b16 %v4082
      %v4154 = vunpack.c.l.b16 %v4083
      %v4155 = vunpack.c.h.b16 %v4083
      %v4156 = vunpack.c.l.b16 %v4084
      %v4157 = vunpack.c.h.b16 %v4084
      %v4158 = vunpack.c.l.b16 %v4085
      %v4159 = vunpack.c.h.b16 %v4085
      %v4160 = vunpack.c.l.b16 %v4086
      %v4161 = vunpack.c.h.b16 %v4086
      %v4162 = vunpack.c.l.b16 %v4087
      %v4163 = vunpack.c.h.b16 %v4087
      %v4164 = vunpack.c.l.b16 %v4088
      %v4165 = vunpack.c.h.b16 %v4088
      %v4166 = vunpack.c.l.b16 %v4089
      %v4167 = vunpack.c.h.b16 %v4089
      %v4168 = vunpack.c.l.b16 %v4090
      %v4169 = vunpack.c.h.b16 %v4090
      %v4170 = vunpack.c.l.b16 %v4091
      %v4171 = vunpack.c.h.b16 %v4091
      %v4172 = vunpack.c.l.b16 %v4092
      %v4173 = vunpack.c.h.b16 %v4092
      %v4174 = vunpack.c.l.b16 %v4093
      %v4175 = vunpack.c.h.b16 %v4093
      %v4176 = vunpack.c.l.b16 %v4094
      %v4177 = vunpack.c.h.b16 %v4094
      %v4178 = vunpack.c.l.b16 %v4095
      %v4179 = vunpack.c.h.b16 %v4095
      %v4180 = vunpack.c.l.b16 %v4096
      %v4181 = vunpack.c.h.b16 %v4096
      %v4182 = vunpack.c.l.b16 %v4097
      %v4183 = vunpack.c.h.b16 %v4097
      %v4184 = vunpack.c.l.b16 %v4098
      %v4185 = vunpack.c.h.b16 %v4098
      %v4186 = vunpack.c.l.b16 %v4099
      %v4187 = vunpack.c.h.b16 %v4099
      %v4188 = vunpack.c.l.b16 %v4100
      %v4189 = vunpack.c.h.b16 %v4100
      %v4190 = vunpack.c.l.b16 %v4101
      %v4191 = vunpack.c.h.b16 %v4101
      %v4192 = vunpack.c.l.b16 %v4102
      %v4193 = vunpack.c.h.b16 %v4102
      %v4194 = vunpack.c.l.b16 %v4103
      %v4195 = vunpack.c.h.b16 %v4103
      %v4196 = vunpack.c.l.b16 %v4104
      %v4197 = vunpack.c.h.b16 %v4104
      %v4198 = vunpack.c.l.b16 %v4105
      %v4199 = vunpack.c.h.b16 %v4105
      %v4200 = vunpack.c.l.b16 %v4106
      %v4201 = vunpack.c.h.b16 %v4106
      %v4202 = vunpack.c.l.b16 %v4107
      %v4203 = vunpack.c.h.b16 %v4107
      %v4204 = vpack.c.b16 %v4142, %v4140
      %v4205 = vpack.c.b16 %v4143, %v4141
      %v4206 = vpack.c.b16 %v4146, %v4144
      %v4207 = vpack.c.b16 %v4147, %v4145
      %v4208 = vpack.c.b16 %v4150, %v4148
      %v4209 = vpack.c.b16 %v4151, %v4149
      %v4210 = vpack.c.b16 %v4154, %v4152
      %v4211 = vpack.c.b16 %v4155, %v4153
      %v4212 = vpack.c.b16 %v4158, %v4156
      %v4213 = vpack.c.b16 %v4159, %v4157
      %v4214 = vpack.c.b16 %v4162, %v4160
      %v4215 = vpack.c.b16 %v4163, %v4161
      %v4216 = vpack.c.b16 %v4166, %v4164
      %v4217 = vpack.c.b16 %v4167, %v4165
      %v4218 = vpack.c.b16 %v4170, %v4168
      %v4219 = vpack.c.b16 %v4171, %v4169
      %v4220 = vpack.c.b16 %v4174, %v4172
      %v4221 = vpack.c.b16 %v4175, %v4173
      %v4222 = vpack.c.b16 %v4178, %v4176
      %v4223 = vpack.c.b16 %v4179, %v4177
      %v4224 = vpack.c.b16 %v4182, %v4180
      %v4225 = vpack.c.b16 %v4183, %v4181
      %v4226 = vpack.c.b16 %v4186, %v4184
      %v4227 = vpack.c.b16 %v4187, %v4185
      %v4228 = vpack.c.b16 %v4190, %v4188
      %v4229 = vpack.c.b16 %v4191, %v4189
      %v4230 = vpack.c.b16 %v4194, %v4192
      %v4231 = vpack.c.b16 %v4195, %v4193
      %v4232 = vpack.c.b16 %v4198, %v4196
      %v4233 = vpack.c.b16 %v4199, %v4197
      %v4234 = vpack.c.b16 %v4202, %v4200
      %v4235 = vpack.c.b16 %v4203, %v4201
      %4268 = vmatprep.subr.bf16.mxu0 %v4205
      %4269 = vmatpush1.bf16.msra.mxu0 %v4204
      %4270 = vmatprep.subr.bf16.mxu0 %v4207
      %4271 = vmatpush1.bf16.msra.mxu0 %v4206
      %4272 = vmatprep.subr.bf16.mxu0 %v4209
      %4273 = vmatpush1.bf16.msra.mxu0 %v4208
      %4274 = vmatprep.subr.bf16.mxu0 %v4211
      %4275 = vmatpush1.bf16.msra.mxu0 %v4210
      %4276 = vmatprep.subr.bf16.mxu0 %v4213
      %4277 = vmatpush1.bf16.msra.mxu0 %v4212
      %4278 = vmatprep.subr.bf16.mxu0 %v4215
      %4279 = vmatpush1.bf16.msra.mxu0 %v4214
      %4280 = vmatprep.subr.bf16.mxu0 %v4217
      %4281 = vmatpush1.bf16.msra.mxu0 %v4216
      %4282 = vmatprep.subr.bf16.mxu0 %v4219
      %4283 = vmatpush1.bf16.msra.mxu0 %v4218
      %4284 = vmatprep.subr.bf16.mxu0 %v4221
      %4285 = vmatpush1.bf16.msra.mxu0 %v4220
      %4286 = vmatprep.subr.bf16.mxu0 %v4223
      %4287 = vmatpush1.bf16.msra.mxu0 %v4222
      %4288 = vmatprep.subr.bf16.mxu0 %v4225
      %4289 = vmatpush1.bf16.msra.mxu0 %v4224
      %4290 = vmatprep.subr.bf16.mxu0 %v4227
      %4291 = vmatpush1.bf16.msra.mxu0 %v4226
      %4292 = vmatprep.subr.bf16.mxu0 %v4229
      %4293 = vmatpush1.bf16.msra.mxu0 %v4228
      %4294 = vmatprep.subr.bf16.mxu0 %v4231
      %4295 = vmatpush1.bf16.msra.mxu0 %v4230
      %4296 = vmatprep.subr.bf16.mxu0 %v4233
      %4297 = vmatpush1.bf16.msra.mxu0 %v4232
      %4298 = vmatprep.subr.bf16.mxu0 %v4235
      %4299 = vmatpush1.bf16.msra.mxu0 %v4234
      %4300 = vmatprep.mubr.bf16.mxu0 %v1605
      %4301 = vmatmul.mubr.bf16.gmra.mrb[0].mxu0 %v1604
      %v4302 = vpop.f32.mrb[0].mxu0
      %v4303 = vadd.f32 0.0, %v4302
      %v4304 = vpop.f32.mrb[0].mxu0
      %v4305 = vadd.f32 0.0, %v4304
      %v4306 = vpop.f32.mrb[0].mxu0
      %v4307 = vadd.f32 0.0, %v4306
      %v4308 = vpop.f32.mrb[0].mxu0
      %v4309 = vadd.f32 0.0, %v4308
      %4310 = vmatprep.mubr.bf16.mxu0 %v1607
      %4311 = vmatmul.mubr.bf16.gmra.mrb[0].mxu0 %v1606
      %v4312 = vpop.f32.mrb[0].mxu0
      %v4313 = vadd.f32 0.0, %v4312
      %v4314 = vpop.f32.mrb[0].mxu0
      %v4315 = vadd.f32 0.0, %v4314
      %v4316 = vpop.f32.mrb[0].mxu0
      %v4317 = vadd.f32 0.0, %v4316
      %v4318 = vpop.f32.mrb[0].mxu0
      %v4319 = vadd.f32 0.0, %v4318
      %4320 = vmatprep.mubr.bf16.mxu0 %v1609
      %4321 = vmatmul.mubr.bf16.gmra.mrb[0].mxu0 %v1608
      %v4322 = vpop.f32.mrb[0].mxu0
      %v4323 = vadd.f32 0.0, %v4322
      %v4324 = vpop.f32.mrb[0].mxu0
      %v4325 = vadd.f32 0.0, %v4324
      %v4326 = vpop.f32.mrb[0].mxu0
      %v4327 = vadd.f32 0.0, %v4326
      %v4328 = vpop.f32.mrb[0].mxu0
      %v4329 = vadd.f32 0.0, %v4328
      %4330 = vmatprep.mubr.bf16.mxu0 %v1611
      %4331 = vmatmul.mubr.bf16.gmra.mrb[0].mxu0 %v1610
      %v4332 = vpop.f32.mrb[0].mxu0
      %v4333 = vadd.f32 0.0, %v4332
      %v4334 = vpop.f32.mrb[0].mxu0
      %v4335 = vadd.f32 0.0, %v4334
      %v4336 = vpop.f32.mrb[0].mxu0
      %v4337 = vadd.f32 0.0, %v4336
      %v4338 = vpop.f32.mrb[0].mxu0
      %v4339 = vadd.f32 0.0, %v4338
      %4340 = vdwg.mxu0
      %v4341 = vpack.c.bf16 %v4307, %v4303
      %v4342 = vpack.c.bf16 %v4309, %v4305
      %v4343 = vpack.c.bf16 %v4317, %v4313
      %v4344 = vpack.c.bf16 %v4319, %v4315
      %v4345 = vpack.c.bf16 %v4327, %v4323
      %v4346 = vpack.c.bf16 %v4329, %v4325
      %v4347 = vpack.c.bf16 %v4337, %v4333
      %v4348 = vpack.c.bf16 %v4339, %v4335
      %s4349 = scalar_lea.vmem %s4, 96
      %v4350 = vld [vmem:[%s4349] sm:$0xf]
      %v4351 = vld [vmem:[%s4349 + $0x4] sm:$0xf]
      %v4352 = vld [vmem:[%s4349 + $0x8] sm:$0xf]
      %v4353 = vld [vmem:[%s4349 + $0xc] sm:$0xf]
      %v4354 = vld [vmem:[%s4349 + $0x10] sm:$0xf]
      %v4355 = vld [vmem:[%s4349 + $0x14] sm:$0xf]
      %v4356 = vld [vmem:[%s4349 + $0x18] sm:$0xf]
      %v4357 = vld [vmem:[%s4349 + $0x1c] sm:$0xf]
      %v4358 = vld [vmem:[#allocation2] sm:$0xff]
      %v4359 = vld [vmem:[#allocation2 + $0x8] sm:$0xff]
      %v4360 = vld [vmem:[#allocation2 + $0x10] sm:$0xff]
      %v4361 = vld [vmem:[#allocation2 + $0x18] sm:$0xff]
      %v4362 = vld [vmem:[#allocation2 + $0x20] sm:$0xff]
      %v4363 = vld [vmem:[#allocation2 + $0x28] sm:$0xff]
      %v4364 = vld [vmem:[#allocation2 + $0x30] sm:$0xff]
      %v4365 = vld [vmem:[#allocation2 + $0x38] sm:$0xff]
      %v4366 = vld [vmem:[#allocation2 + $0x40] sm:$0xff]
      %v4367 = vld [vmem:[#allocation2 + $0x48] sm:$0xff]
      %v4368 = vld [vmem:[#allocation2 + $0x50] sm:$0xff]
      %v4369 = vld [vmem:[#allocation2 + $0x58] sm:$0xff]
      %v4370 = vld [vmem:[#allocation2 + $0x60] sm:$0xff]
      %v4371 = vld [vmem:[#allocation2 + $0x68] sm:$0xff]
      %v4372 = vld [vmem:[#allocation2 + $0x70] sm:$0xff]
      %v4373 = vld [vmem:[#allocation2 + $0x78] sm:$0xff]
      %v4382 = vunpack.c.l.b16 %v4350
      %v4383 = vunpack.c.l.b16 %v4351
      %v4384 = vunpack.c.l.b16 %v4352
      %v4385 = vunpack.c.l.b16 %v4353
      %v4386 = vunpack.c.l.b16 %v4354
      %v4387 = vunpack.c.l.b16 %v4355
      %v4388 = vunpack.c.l.b16 %v4356
      %v4389 = vunpack.c.l.b16 %v4357
      %v4390 = vpack.c.b16 %v4383, %v4382
      %v4391 = vpack.c.b16 %v4385, %v4384
      %v4392 = vpack.c.b16 %v4387, %v4386
      %v4393 = vpack.c.b16 %v4389, %v4388
      %v4395 = vsel %vm1993, %v4390, 0
      %v4398 = vsel %vm1993, %v4391, 0
      %v4401 = vsel %vm1993, %v4392, 0
      %v4404 = vsel %vm1993, %v4393, 0
      %4406 = vmatprep.subr.bf16.mxu0 %v4342
      %4407 = vmatpush1.bf16.msra.mxu0 %v4341
      %4408 = vmatprep.subr.bf16.mxu0 0
      %4409 = vmatpush1.bf16.msra.mxu0 0
      %4410 = vmatprep.subr.bf16.mxu0 0
      %4411 = vmatpush1.bf16.msra.mxu0 0
      %4412 = vmatprep.subr.bf16.mxu0 0
      %4413 = vmatpush1.bf16.msra.mxu0 0
      %4414 = vmatprep.subr.bf16.mxu0 0
      %4415 = vmatpush1.bf16.msra.mxu0 0
      %4416 = vmatprep.subr.bf16.mxu0 0
      %4417 = vmatpush1.bf16.msra.mxu0 0
      %4418 = vmatprep.subr.bf16.mxu0 0
      %4419 = vmatpush1.bf16.msra.mxu0 0
      %4420 = vmatprep.subr.bf16.mxu0 0
      %4421 = vmatpush1.bf16.msra.mxu0 0
      %4422 = vmatprep.subr.bf16.mxu0 0
      %4423 = vmatpush1.bf16.msra.mxu0 0
      %4424 = vmatprep.subr.bf16.mxu0 0
      %4425 = vmatpush1.bf16.msra.mxu0 0
      %4426 = vmatprep.subr.bf16.mxu0 0
      %4427 = vmatpush1.bf16.msra.mxu0 0
      %4428 = vmatprep.subr.bf16.mxu0 0
      %4429 = vmatpush1.bf16.msra.mxu0 0
      %4430 = vmatprep.subr.bf16.mxu0 0
      %4431 = vmatpush1.bf16.msra.mxu0 0
      %4432 = vmatprep.subr.bf16.mxu0 0
      %4433 = vmatpush1.bf16.msra.mxu0 0
      %4434 = vmatprep.subr.bf16.mxu0 0
      %4435 = vmatpush1.bf16.msra.mxu0 0
      %4436 = vmatprep.subr.bf16.mxu0 0
      %4437 = vmatpush1.bf16.msra.mxu0 0
      %4438 = vmatprep.mubr.bf16.mxu0 0
      %4439 = vmatmul.mubr.bf16.gmra.mrb[0].mxu0 %v4395
      %v4440 = vpop.f32.mrb[0].mxu0
      %v4441 = vadd.f32 0.0, %v4440
      %v4442 = vpop.f32.mrb[0].mxu0
      %v4443 = vadd.f32 0.0, %v4442
      %v4444 = vpop.f32.mrb[0].mxu0
      %v4445 = vadd.f32 0.0, %v4444
      %v4446 = vpop.f32.mrb[0].mxu0
      %v4447 = vadd.f32 0.0, %v4446
      %4448 = vmatprep.mubr.bf16.mxu0 0
      %4449 = vmatmul.mubr.bf16.gmra.mrb[0].mxu0 %v4398
      %v4450 = vpop.f32.mrb[0].mxu0
      %v4451 = vadd.f32 0.0, %v4450
      %v4452 = vpop.f32.mrb[0].mxu0
      %v4453 = vadd.f32 0.0, %v4452
      %v4454 = vpop.f32.mrb[0].mxu0
      %v4455 = vadd.f32 0.0, %v4454
      %v4456 = vpop.f32.mrb[0].mxu0
      %v4457 = vadd.f32 0.0, %v4456
      %4458 = vmatprep.mubr.bf16.mxu0 0
      %4459 = vmatmul.mubr.bf16.gmra.mrb[0].mxu0 %v4401
      %v4460 = vpop.f32.mrb[0].mxu0
      %v4461 = vadd.f32 0.0, %v4460
      %v4462 = vpop.f32.mrb[0].mxu0
      %v4463 = vadd.f32 0.0, %v4462
      %v4464 = vpop.f32.mrb[0].mxu0
      %v4465 = vadd.f32 0.0, %v4464
      %v4466 = vpop.f32.mrb[0].mxu0
      %v4467 = vadd.f32 0.0, %v4466
      %4468 = vmatprep.mubr.bf16.mxu0 0
      %4469 = vmatmul.mubr.bf16.gmra.mrb[0].mxu0 %v4404
      %v4470 = vpop.f32.mrb[0].mxu0
      %v4471 = vadd.f32 0.0, %v4470
      %v4472 = vpop.f32.mrb[0].mxu0
      %v4473 = vadd.f32 0.0, %v4472
      %v4474 = vpop.f32.mrb[0].mxu0
      %v4475 = vadd.f32 0.0, %v4474
      %v4476 = vpop.f32.mrb[0].mxu0
      %v4477 = vadd.f32 0.0, %v4476
      %4478 = vdwg.mxu0
      %v4479 = vadd.f32 %v4358, %v4441
      %v4480 = vadd.f32 %v4359, %v4443
      %v4481 = vadd.f32 %v4360, %v4445
      %v4482 = vadd.f32 %v4361, %v4447
      %v4483 = vadd.f32 %v4362, %v4451
      %v4484 = vadd.f32 %v4363, %v4453
      %v4485 = vadd.f32 %v4364, %v4455
      %v4486 = vadd.f32 %v4365, %v4457
      %v4487 = vadd.f32 %v4366, %v4461
      %v4488 = vadd.f32 %v4367, %v4463
      %v4489 = vadd.f32 %v4368, %v4465
      %v4490 = vadd.f32 %v4369, %v4467
      %v4491 = vadd.f32 %v4370, %v4471
      %v4492 = vadd.f32 %v4371, %v4473
      %v4493 = vadd.f32 %v4372, %v4475
      %v4494 = vadd.f32 %v4373, %v4477
      %4495 = vst [vmem:[#allocation2] sm:$0xff] %v4479
      %4496 = vst [vmem:[#allocation2 + $0x8] sm:$0xff] %v4480
      %4497 = vst [vmem:[#allocation2 + $0x10] sm:$0xff] %v4481
      %4498 = vst [vmem:[#allocation2 + $0x18] sm:$0xff] %v4482
      %4499 = vst [vmem:[#allocation2 + $0x20] sm:$0xff] %v4483
      %4500 = vst [vmem:[#allocation2 + $0x28] sm:$0xff] %v4484
      %4501 = vst [vmem:[#allocation2 + $0x30] sm:$0xff] %v4485
      %4502 = vst [vmem:[#allocation2 + $0x38] sm:$0xff] %v4486
      %4503 = vst [vmem:[#allocation2 + $0x40] sm:$0xff] %v4487
      %4504 = vst [vmem:[#allocation2 + $0x48] sm:$0xff] %v4488
      %4505 = vst [vmem:[#allocation2 + $0x50] sm:$0xff] %v4489
      %4506 = vst [vmem:[#allocation2 + $0x58] sm:$0xff] %v4490
      %4507 = vst [vmem:[#allocation2 + $0x60] sm:$0xff] %v4491
      %4508 = vst [vmem:[#allocation2 + $0x68] sm:$0xff] %v4492
      %4509 = vst [vmem:[#allocation2 + $0x70] sm:$0xff] %v4493
      %4510 = vst [vmem:[#allocation2 + $0x78] sm:$0xff] %v4494
      %v4511 = vld [vmem:[%s2111] sm:$0xff]
      %v4512 = vld [vmem:[%s2111 + $0x8] sm:$0xff]
      %v4513 = vld [vmem:[%s2111 + $0x10] sm:$0xff]
      %v4514 = vld [vmem:[%s2111 + $0x18] sm:$0xff]
      %v4515 = vld [vmem:[%s2111 + $0x20] sm:$0xff]
      %v4516 = vld [vmem:[%s2111 + $0x28] sm:$0xff]
      %v4517 = vld [vmem:[%s2111 + $0x30] sm:$0xff]
      %v4518 = vld [vmem:[%s2111 + $0x38] sm:$0xff]
      %v4519 = vld [vmem:[%s2111 + $0x40] sm:$0xff]
      %v4520 = vld [vmem:[%s2111 + $0x48] sm:$0xff]
      %v4521 = vld [vmem:[%s2111 + $0x50] sm:$0xff]
      %v4522 = vld [vmem:[%s2111 + $0x58] sm:$0xff]
      %v4523 = vld [vmem:[%s2111 + $0x60] sm:$0xff]
      %v4524 = vld [vmem:[%s2111 + $0x68] sm:$0xff]
      %v4525 = vld [vmem:[%s2111 + $0x70] sm:$0xff]
      %v4526 = vld [vmem:[%s2111 + $0x78] sm:$0xff]
      %4527 = vmatprep.subr.bf16.mxu0 %v4344
      %4528 = vmatpush1.bf16.msra.mxu0 %v4343
      %4529 = vmatprep.subr.bf16.mxu0 0
      %4530 = vmatpush1.bf16.msra.mxu0 0
      %4531 = vmatprep.subr.bf16.mxu0 0
      %4532 = vmatpush1.bf16.msra.mxu0 0
      %4533 = vmatprep.subr.bf16.mxu0 0
      %4534 = vmatpush1.bf16.msra.mxu0 0
      %4535 = vmatprep.subr.bf16.mxu0 0
      %4536 = vmatpush1.bf16.msra.mxu0 0
      %4537 = vmatprep.subr.bf16.mxu0 0
      %4538 = vmatpush1.bf16.msra.mxu0 0
      %4539 = vmatprep.subr.bf16.mxu0 0
      %4540 = vmatpush1.bf16.msra.mxu0 0
      %4541 = vmatprep.subr.bf16.mxu0 0
      %4542 = vmatpush1.bf16.msra.mxu0 0
      %4543 = vmatprep.subr.bf16.mxu0 0
      %4544 = vmatpush1.bf16.msra.mxu0 0
      %4545 = vmatprep.subr.bf16.mxu0 0
      %4546 = vmatpush1.bf16.msra.mxu0 0
      %4547 = vmatprep.subr.bf16.mxu0 0
      %4548 = vmatpush1.bf16.msra.mxu0 0
      %4549 = vmatprep.subr.bf16.mxu0 0
      %4550 = vmatpush1.bf16.msra.mxu0 0
      %4551 = vmatprep.subr.bf16.mxu0 0
      %4552 = vmatpush1.bf16.msra.mxu0 0
      %4553 = vmatprep.subr.bf16.mxu0 0
      %4554 = vmatpush1.bf16.msra.mxu0 0
      %4555 = vmatprep.subr.bf16.mxu0 0
      %4556 = vmatpush1.bf16.msra.mxu0 0
      %4557 = vmatprep.subr.bf16.mxu0 0
      %4558 = vmatpush1.bf16.msra.mxu0 0
      %4559 = vmatprep.mubr.bf16.mxu0 0
      %4560 = vmatmul.mubr.bf16.gmra.mrb[0].mxu0 %v4395
      %v4561 = vpop.f32.mrb[0].mxu0
      %v4562 = vadd.f32 0.0, %v4561
      %v4563 = vpop.f32.mrb[0].mxu0
      %v4564 = vadd.f32 0.0, %v4563
      %v4565 = vpop.f32.mrb[0].mxu0
      %v4566 = vadd.f32 0.0, %v4565
      %v4567 = vpop.f32.mrb[0].mxu0
      %v4568 = vadd.f32 0.0, %v4567
      %4569 = vmatprep.mubr.bf16.mxu0 0
      %4570 = vmatmul.mubr.bf16.gmra.mrb[0].mxu0 %v4398
      %v4571 = vpop.f32.mrb[0].mxu0
      %v4572 = vadd.f32 0.0, %v4571
      %v4573 = vpop.f32.mrb[0].mxu0
      %v4574 = vadd.f32 0.0, %v4573
      %v4575 = vpop.f32.mrb[0].mxu0
      %v4576 = vadd.f32 0.0, %v4575
      %v4577 = vpop.f32.mrb[0].mxu0
      %v4578 = vadd.f32 0.0, %v4577
      %4579 = vmatprep.mubr.bf16.mxu0 0
      %4580 = vmatmul.mubr.bf16.gmra.mrb[0].mxu0 %v4401
      %v4581 = vpop.f32.mrb[0].mxu0
      %v4582 = vadd.f32 0.0, %v4581
      %v4583 = vpop.f32.mrb[0].mxu0
      %v4584 = vadd.f32 0.0, %v4583
      %v4585 = vpop.f32.mrb[0].mxu0
      %v4586 = vadd.f32 0.0, %v4585
      %v4587 = vpop.f32.mrb[0].mxu0
      %v4588 = vadd.f32 0.0, %v4587
      %4589 = vmatprep.mubr.bf16.mxu0 0
      %4590 = vmatmul.mubr.bf16.gmra.mrb[0].mxu0 %v4404
      %v4591 = vpop.f32.mrb[0].mxu0
      %v4592 = vadd.f32 0.0, %v4591
      %v4593 = vpop.f32.mrb[0].mxu0
      %v4594 = vadd.f32 0.0, %v4593
      %v4595 = vpop.f32.mrb[0].mxu0
      %v4596 = vadd.f32 0.0, %v4595
      %v4597 = vpop.f32.mrb[0].mxu0
      %v4598 = vadd.f32 0.0, %v4597
      %4599 = vdwg.mxu0
      %v4600 = vadd.f32 %v4511, %v4562
      %v4601 = vadd.f32 %v4512, %v4564
      %v4602 = vadd.f32 %v4513, %v4566
      %v4603 = vadd.f32 %v4514, %v4568
      %v4604 = vadd.f32 %v4515, %v4572
      %v4605 = vadd.f32 %v4516, %v4574
      %v4606 = vadd.f32 %v4517, %v4576
      %v4607 = vadd.f32 %v4518, %v4578
      %v4608 = vadd.f32 %v4519, %v4582
      %v4609 = vadd.f32 %v4520, %v4584
      %v4610 = vadd.f32 %v4521, %v4586
      %v4611 = vadd.f32 %v4522, %v4588
      %v4612 = vadd.f32 %v4523, %v4592
      %v4613 = vadd.f32 %v4524, %v4594
      %v4614 = vadd.f32 %v4525, %v4596
      %v4615 = vadd.f32 %v4526, %v4598
      %4616 = vst [vmem:[%s2111] sm:$0xff] %v4600
      %4617 = vst [vmem:[%s2111 + $0x8] sm:$0xff] %v4601
      %4618 = vst [vmem:[%s2111 + $0x10] sm:$0xff] %v4602
      %4619 = vst [vmem:[%s2111 + $0x18] sm:$0xff] %v4603
      %4620 = vst [vmem:[%s2111 + $0x20] sm:$0xff] %v4604
      %4621 = vst [vmem:[%s2111 + $0x28] sm:$0xff] %v4605
      %4622 = vst [vmem:[%s2111 + $0x30] sm:$0xff] %v4606
      %4623 = vst [vmem:[%s2111 + $0x38] sm:$0xff] %v4607
      %4624 = vst [vmem:[%s2111 + $0x40] sm:$0xff] %v4608
      %4625 = vst [vmem:[%s2111 + $0x48] sm:$0xff] %v4609
      %4626 = vst [vmem:[%s2111 + $0x50] sm:$0xff] %v4610
      %4627 = vst [vmem:[%s2111 + $0x58] sm:$0xff] %v4611
      %4628 = vst [vmem:[%s2111 + $0x60] sm:$0xff] %v4612
      %4629 = vst [vmem:[%s2111 + $0x68] sm:$0xff] %v4613
      %4630 = vst [vmem:[%s2111 + $0x70] sm:$0xff] %v4614
      %4631 = vst [vmem:[%s2111 + $0x78] sm:$0xff] %v4615
      %v4632 = vld [vmem:[%s2233] sm:$0xff]
      %v4633 = vld [vmem:[%s2233 + $0x8] sm:$0xff]
      %v4634 = vld [vmem:[%s2233 + $0x10] sm:$0xff]
      %v4635 = vld [vmem:[%s2233 + $0x18] sm:$0xff]
      %v4636 = vld [vmem:[%s2233 + $0x20] sm:$0xff]
      %v4637 = vld [vmem:[%s2233 + $0x28] sm:$0xff]
      %v4638 = vld [vmem:[%s2233 + $0x30] sm:$0xff]
      %v4639 = vld [vmem:[%s2233 + $0x38] sm:$0xff]
      %v4640 = vld [vmem:[%s2233 + $0x40] sm:$0xff]
      %v4641 = vld [vmem:[%s2233 + $0x48] sm:$0xff]
      %v4642 = vld [vmem:[%s2233 + $0x50] sm:$0xff]
      %v4643 = vld [vmem:[%s2233 + $0x58] sm:$0xff]
      %v4644 = vld [vmem:[%s2233 + $0x60] sm:$0xff]
      %v4645 = vld [vmem:[%s2233 + $0x68] sm:$0xff]
      %v4646 = vld [vmem:[%s2233 + $0x70] sm:$0xff]
      %v4647 = vld [vmem:[%s2233 + $0x78] sm:$0xff]
      %4648 = vmatprep.subr.bf16.mxu0 %v4346
      %4649 = vmatpush1.bf16.msra.mxu0 %v4345
      %4650 = vmatprep.subr.bf16.mxu0 0
      %4651 = vmatpush1.bf16.msra.mxu0 0
      %4652 = vmatprep.subr.bf16.mxu0 0
      %4653 = vmatpush1.bf16.msra.mxu0 0
      %4654 = vmatprep.subr.bf16.mxu0 0
      %4655 = vmatpush1.bf16.msra.mxu0 0
      %4656 = vmatprep.subr.bf16.mxu0 0
      %4657 = vmatpush1.bf16.msra.mxu0 0
      %4658 = vmatprep.subr.bf16.mxu0 0
      %4659 = vmatpush1.bf16.msra.mxu0 0
      %4660 = vmatprep.subr.bf16.mxu0 0
      %4661 = vmatpush1.bf16.msra.mxu0 0
      %4662 = vmatprep.subr.bf16.mxu0 0
      %4663 = vmatpush1.bf16.msra.mxu0 0
      %4664 = vmatprep.subr.bf16.mxu0 0
      %4665 = vmatpush1.bf16.msra.mxu0 0
      %4666 = vmatprep.subr.bf16.mxu0 0
      %4667 = vmatpush1.bf16.msra.mxu0 0
      %4668 = vmatprep.subr.bf16.mxu0 0
      %4669 = vmatpush1.bf16.msra.mxu0 0
      %4670 = vmatprep.subr.bf16.mxu0 0
      %4671 = vmatpush1.bf16.msra.mxu0 0
      %4672 = vmatprep.subr.bf16.mxu0 0
      %4673 = vmatpush1.bf16.msra.mxu0 0
      %4674 = vmatprep.subr.bf16.mxu0 0
      %4675 = vmatpush1.bf16.msra.mxu0 0
      %4676 = vmatprep.subr.bf16.mxu0 0
      %4677 = vmatpush1.bf16.msra.mxu0 0
      %4678 = vmatprep.subr.bf16.mxu0 0
      %4679 = vmatpush1.bf16.msra.mxu0 0
      %4680 = vmatprep.mubr.bf16.mxu0 0
      %4681 = vmatmul.mubr.bf16.gmra.mrb[0].mxu0 %v4395
      %v4682 = vpop.f32.mrb[0].mxu0
      %v4683 = vadd.f32 0.0, %v4682
      %v4684 = vpop.f32.mrb[0].mxu0
      %v4685 = vadd.f32 0.0, %v4684
      %v4686 = vpop.f32.mrb[0].mxu0
      %v4687 = vadd.f32 0.0, %v4686
      %v4688 = vpop.f32.mrb[0].mxu0
      %v4689 = vadd.f32 0.0, %v4688
      %4690 = vmatprep.mubr.bf16.mxu0 0
      %4691 = vmatmul.mubr.bf16.gmra.mrb[0].mxu0 %v4398
      %v4692 = vpop.f32.mrb[0].mxu0
      %v4693 = vadd.f32 0.0, %v4692
      %v4694 = vpop.f32.mrb[0].mxu0
      %v4695 = vadd.f32 0.0, %v4694
      %v4696 = vpop.f32.mrb[0].mxu0
      %v4697 = vadd.f32 0.0, %v4696
      %v4698 = vpop.f32.mrb[0].mxu0
      %v4699 = vadd.f32 0.0, %v4698
      %4700 = vmatprep.mubr.bf16.mxu0 0
      %4701 = vmatmul.mubr.bf16.gmra.mrb[0].mxu0 %v4401
      %v4702 = vpop.f32.mrb[0].mxu0
      %v4703 = vadd.f32 0.0, %v4702
      %v4704 = vpop.f32.mrb[0].mxu0
      %v4705 = vadd.f32 0.0, %v4704
      %v4706 = vpop.f32.mrb[0].mxu0
      %v4707 = vadd.f32 0.0, %v4706
      %v4708 = vpop.f32.mrb[0].mxu0
      %v4709 = vadd.f32 0.0, %v4708
      %4710 = vmatprep.mubr.bf16.mxu0 0
      %4711 = vmatmul.mubr.bf16.gmra.mrb[0].mxu0 %v4404
      %v4712 = vpop.f32.mrb[0].mxu0
      %v4713 = vadd.f32 0.0, %v4712
      %v4714 = vpop.f32.mrb[0].mxu0
      %v4715 = vadd.f32 0.0, %v4714
      %v4716 = vpop.f32.mrb[0].mxu0
      %v4717 = vadd.f32 0.0, %v4716
      %v4718 = vpop.f32.mrb[0].mxu0
      %v4719 = vadd.f32 0.0, %v4718
      %4720 = vdwg.mxu0
      %v4721 = vadd.f32 %v4632, %v4683
      %v4722 = vadd.f32 %v4633, %v4685
      %v4723 = vadd.f32 %v4634, %v4687
      %v4724 = vadd.f32 %v4635, %v4689
      %v4725 = vadd.f32 %v4636, %v4693
      %v4726 = vadd.f32 %v4637, %v4695
      %v4727 = vadd.f32 %v4638, %v4697
      %v4728 = vadd.f32 %v4639, %v4699
      %v4729 = vadd.f32 %v4640, %v4703
      %v4730 = vadd.f32 %v4641, %v4705
      %v4731 = vadd.f32 %v4642, %v4707
      %v4732 = vadd.f32 %v4643, %v4709
      %v4733 = vadd.f32 %v4644, %v4713
      %v4734 = vadd.f32 %v4645, %v4715
      %v4735 = vadd.f32 %v4646, %v4717
      %v4736 = vadd.f32 %v4647, %v4719
      %4737 = vst [vmem:[%s2233] sm:$0xff] %v4721
      %4738 = vst [vmem:[%s2233 + $0x8] sm:$0xff] %v4722
      %4739 = vst [vmem:[%s2233 + $0x10] sm:$0xff] %v4723
      %4740 = vst [vmem:[%s2233 + $0x18] sm:$0xff] %v4724
      %4741 = vst [vmem:[%s2233 + $0x20] sm:$0xff] %v4725
      %4742 = vst [vmem:[%s2233 + $0x28] sm:$0xff] %v4726
      %4743 = vst [vmem:[%s2233 + $0x30] sm:$0xff] %v4727
      %4744 = vst [vmem:[%s2233 + $0x38] sm:$0xff] %v4728
      %4745 = vst [vmem:[%s2233 + $0x40] sm:$0xff] %v4729
      %4746 = vst [vmem:[%s2233 + $0x48] sm:$0xff] %v4730
      %4747 = vst [vmem:[%s2233 + $0x50] sm:$0xff] %v4731
      %4748 = vst [vmem:[%s2233 + $0x58] sm:$0xff] %v4732
      %4749 = vst [vmem:[%s2233 + $0x60] sm:$0xff] %v4733
      %4750 = vst [vmem:[%s2233 + $0x68] sm:$0xff] %v4734
      %4751 = vst [vmem:[%s2233 + $0x70] sm:$0xff] %v4735
      %4752 = vst [vmem:[%s2233 + $0x78] sm:$0xff] %v4736
      %v4753 = vld [vmem:[%s2355] sm:$0xff]
      %v4754 = vld [vmem:[%s2355 + $0x8] sm:$0xff]
      %v4755 = vld [vmem:[%s2355 + $0x10] sm:$0xff]
      %v4756 = vld [vmem:[%s2355 + $0x18] sm:$0xff]
      %v4757 = vld [vmem:[%s2355 + $0x20] sm:$0xff]
      %v4758 = vld [vmem:[%s2355 + $0x28] sm:$0xff]
      %v4759 = vld [vmem:[%s2355 + $0x30] sm:$0xff]
      %v4760 = vld [vmem:[%s2355 + $0x38] sm:$0xff]
      %v4761 = vld [vmem:[%s2355 + $0x40] sm:$0xff]
      %v4762 = vld [vmem:[%s2355 + $0x48] sm:$0xff]
      %v4763 = vld [vmem:[%s2355 + $0x50] sm:$0xff]
      %v4764 = vld [vmem:[%s2355 + $0x58] sm:$0xff]
      %v4765 = vld [vmem:[%s2355 + $0x60] sm:$0xff]
      %v4766 = vld [vmem:[%s2355 + $0x68] sm:$0xff]
      %v4767 = vld [vmem:[%s2355 + $0x70] sm:$0xff]
      %v4768 = vld [vmem:[%s2355 + $0x78] sm:$0xff]
      %4769 = vmatprep.subr.bf16.mxu0 %v4348
      %4770 = vmatpush1.bf16.msra.mxu0 %v4347
      %4771 = vmatprep.subr.bf16.mxu0 0
      %4772 = vmatpush1.bf16.msra.mxu0 0
      %4773 = vmatprep.subr.bf16.mxu0 0
      %4774 = vmatpush1.bf16.msra.mxu0 0
      %4775 = vmatprep.subr.bf16.mxu0 0
      %4776 = vmatpush1.bf16.msra.mxu0 0
      %4777 = vmatprep.subr.bf16.mxu0 0
      %4778 = vmatpush1.bf16.msra.mxu0 0
      %4779 = vmatprep.subr.bf16.mxu0 0
      %4780 = vmatpush1.bf16.msra.mxu0 0
      %4781 = vmatprep.subr.bf16.mxu0 0
      %4782 = vmatpush1.bf16.msra.mxu0 0
      %4783 = vmatprep.subr.bf16.mxu0 0
      %4784 = vmatpush1.bf16.msra.mxu0 0
      %4785 = vmatprep.subr.bf16.mxu0 0
      %4786 = vmatpush1.bf16.msra.mxu0 0
      %4787 = vmatprep.subr.bf16.mxu0 0
      %4788 = vmatpush1.bf16.msra.mxu0 0
      %4789 = vmatprep.subr.bf16.mxu0 0
      %4790 = vmatpush1.bf16.msra.mxu0 0
      %4791 = vmatprep.subr.bf16.mxu0 0
      %4792 = vmatpush1.bf16.msra.mxu0 0
      %4793 = vmatprep.subr.bf16.mxu0 0
      %4794 = vmatpush1.bf16.msra.mxu0 0
      %4795 = vmatprep.subr.bf16.mxu0 0
      %4796 = vmatpush1.bf16.msra.mxu0 0
      %4797 = vmatprep.subr.bf16.mxu0 0
      %4798 = vmatpush1.bf16.msra.mxu0 0
      %4799 = vmatprep.subr.bf16.mxu0 0
      %4800 = vmatpush1.bf16.msra.mxu0 0
      %4801 = vmatprep.mubr.bf16.mxu0 0
      %4802 = vmatmul.mubr.bf16.gmra.mrb[0].mxu0 %v4395
      %v4803 = vpop.f32.mrb[0].mxu0
      %v4804 = vadd.f32 0.0, %v4803
      %v4805 = vpop.f32.mrb[0].mxu0
      %v4806 = vadd.f32 0.0, %v4805
      %v4807 = vpop.f32.mrb[0].mxu0
      %v4808 = vadd.f32 0.0, %v4807
      %v4809 = vpop.f32.mrb[0].mxu0
      %v4810 = vadd.f32 0.0, %v4809
      %4811 = vmatprep.mubr.bf16.mxu0 0
      %4812 = vmatmul.mubr.bf16.gmra.mrb[0].mxu0 %v4398
      %v4813 = vpop.f32.mrb[0].mxu0
      %v4814 = vadd.f32 0.0, %v4813
      %v4815 = vpop.f32.mrb[0].mxu0
      %v4816 = vadd.f32 0.0, %v4815
      %v4817 = vpop.f32.mrb[0].mxu0
      %v4818 = vadd.f32 0.0, %v4817
      %v4819 = vpop.f32.mrb[0].mxu0
      %v4820 = vadd.f32 0.0, %v4819
      %4821 = vmatprep.mubr.bf16.mxu0 0
      %4822 = vmatmul.mubr.bf16.gmra.mrb[0].mxu0 %v4401
      %v4823 = vpop.f32.mrb[0].mxu0
      %v4824 = vadd.f32 0.0, %v4823
      %v4825 = vpop.f32.mrb[0].mxu0
      %v4826 = vadd.f32 0.0, %v4825
      %v4827 = vpop.f32.mrb[0].mxu0
      %v4828 = vadd.f32 0.0, %v4827
      %v4829 = vpop.f32.mrb[0].mxu0
      %v4830 = vadd.f32 0.0, %v4829
      %4831 = vmatprep.mubr.bf16.mxu0 0
      %4832 = vmatmul.mubr.bf16.gmra.mrb[0].mxu0 %v4404
      %v4833 = vpop.f32.mrb[0].mxu0
      %v4834 = vadd.f32 0.0, %v4833
      %v4835 = vpop.f32.mrb[0].mxu0
      %v4836 = vadd.f32 0.0, %v4835
      %v4837 = vpop.f32.mrb[0].mxu0
      %v4838 = vadd.f32 0.0, %v4837
      %v4839 = vpop.f32.mrb[0].mxu0
      %v4840 = vadd.f32 0.0, %v4839
      %4841 = vdwg.mxu0
      %v4842 = vadd.f32 %v4753, %v4804
      %v4843 = vadd.f32 %v4754, %v4806
      %v4844 = vadd.f32 %v4755, %v4808
      %v4845 = vadd.f32 %v4756, %v4810
      %v4846 = vadd.f32 %v4757, %v4814
      %v4847 = vadd.f32 %v4758, %v4816
      %v4848 = vadd.f32 %v4759, %v4818
      %v4849 = vadd.f32 %v4760, %v4820
      %v4850 = vadd.f32 %v4761, %v4824
      %v4851 = vadd.f32 %v4762, %v4826
      %v4852 = vadd.f32 %v4763, %v4828
      %v4853 = vadd.f32 %v4764, %v4830
      %v4854 = vadd.f32 %v4765, %v4834
      %v4855 = vadd.f32 %v4766, %v4836
      %v4856 = vadd.f32 %v4767, %v4838
      %v4857 = vadd.f32 %v4768, %v4840
      %4858 = vst [vmem:[%s2355] sm:$0xff] %v4842
      %4859 = vst [vmem:[%s2355 + $0x8] sm:$0xff] %v4843
      %4860 = vst [vmem:[%s2355 + $0x10] sm:$0xff] %v4844
      %4861 = vst [vmem:[%s2355 + $0x18] sm:$0xff] %v4845
      %4862 = vst [vmem:[%s2355 + $0x20] sm:$0xff] %v4846
      %4863 = vst [vmem:[%s2355 + $0x28] sm:$0xff] %v4847
      %4864 = vst [vmem:[%s2355 + $0x30] sm:$0xff] %v4848
      %4865 = vst [vmem:[%s2355 + $0x38] sm:$0xff] %v4849
      %4866 = vst [vmem:[%s2355 + $0x40] sm:$0xff] %v4850
      %4867 = vst [vmem:[%s2355 + $0x48] sm:$0xff] %v4851
      %4868 = vst [vmem:[%s2355 + $0x50] sm:$0xff] %v4852
      %4869 = vst [vmem:[%s2355 + $0x58] sm:$0xff] %v4853
      %4870 = vst [vmem:[%s2355 + $0x60] sm:$0xff] %v4854
      %4871 = vst [vmem:[%s2355 + $0x68] sm:$0xff] %v4855
      %4872 = vst [vmem:[%s2355 + $0x70] sm:$0xff] %v4856
      %4873 = vst [vmem:[%s2355 + $0x78] sm:$0xff] %v4857
      %s4874 = scalar_lea.vmem %s5, 1024
      %v4875 = vld [vmem:[%s4874] sm:$0xff]
      %v4876 = vld [vmem:[%s4874 + $0x8] sm:$0xff]
      %v4877 = vld [vmem:[%s4874 + $0x10] sm:$0xff]
      %v4878 = vld [vmem:[%s4874 + $0x18] sm:$0xff]
      %v4879 = vld [vmem:[%s4874 + $0x20] sm:$0xff]
      %v4880 = vld [vmem:[%s4874 + $0x28] sm:$0xff]
      %v4881 = vld [vmem:[%s4874 + $0x30] sm:$0xff]
      %v4882 = vld [vmem:[%s4874 + $0x38] sm:$0xff]
      %v4883 = vld [vmem:[%s4874 + $0x40] sm:$0xff]
      %v4884 = vld [vmem:[%s4874 + $0x48] sm:$0xff]
      %v4885 = vld [vmem:[%s4874 + $0x50] sm:$0xff]
      %v4886 = vld [vmem:[%s4874 + $0x58] sm:$0xff]
      %v4887 = vld [vmem:[%s4874 + $0x60] sm:$0xff]
      %v4888 = vld [vmem:[%s4874 + $0x68] sm:$0xff]
      %v4889 = vld [vmem:[%s4874 + $0x70] sm:$0xff]
      %v4890 = vld [vmem:[%s4874 + $0x78] sm:$0xff]
      %v4891 = vld [vmem:[%s4874 + $0x80] sm:$0xff]
      %v4892 = vld [vmem:[%s4874 + $0x88] sm:$0xff]
      %v4893 = vld [vmem:[%s4874 + $0x90] sm:$0xff]
      %v4894 = vld [vmem:[%s4874 + $0x98] sm:$0xff]
      %v4895 = vld [vmem:[%s4874 + $0xa0] sm:$0xff]
      %v4896 = vld [vmem:[%s4874 + $0xa8] sm:$0xff]
      %v4897 = vld [vmem:[%s4874 + $0xb0] sm:$0xff]
      %v4898 = vld [vmem:[%s4874 + $0xb8] sm:$0xff]
      %v4899 = vld [vmem:[%s4874 + $0xc0] sm:$0xff]
      %v4900 = vld [vmem:[%s4874 + $0xc8] sm:$0xff]
      %v4901 = vld [vmem:[%s4874 + $0xd0] sm:$0xff]
      %v4902 = vld [vmem:[%s4874 + $0xd8] sm:$0xff]
      %v4903 = vld [vmem:[%s4874 + $0xe0] sm:$0xff]
      %v4904 = vld [vmem:[%s4874 + $0xe8] sm:$0xff]
      %v4905 = vld [vmem:[%s4874 + $0xf0] sm:$0xff]
      %v4906 = vld [vmem:[%s4874 + $0xf8] sm:$0xff]
      %v4939 = vunpack.c.l.b16 %v4875
      %v4940 = vunpack.c.h.b16 %v4875
      %v4941 = vunpack.c.l.b16 %v4876
      %v4942 = vunpack.c.h.b16 %v4876
      %v4943 = vunpack.c.l.b16 %v4877
      %v4944 = vunpack.c.h.b16 %v4877
      %v4945 = vunpack.c.l.b16 %v4878
      %v4946 = vunpack.c.h.b16 %v4878
      %v4947 = vunpack.c.l.b16 %v4879
      %v4948 = vunpack.c.h.b16 %v4879
      %v4949 = vunpack.c.l.b16 %v4880
      %v4950 = vunpack.c.h.b16 %v4880
      %v4951 = vunpack.c.l.b16 %v4881
      %v4952 = vunpack.c.h.b16 %v4881
      %v4953 = vunpack.c.l.b16 %v4882
      %v4954 = vunpack.c.h.b16 %v4882
      %v4955 = vunpack.c.l.b16 %v4883
      %v4956 = vunpack.c.h.b16 %v4883
      %v4957 = vunpack.c.l.b16 %v4884
      %v4958 = vunpack.c.h.b16 %v4884
      %v4959 = vunpack.c.l.b16 %v4885
      %v4960 = vunpack.c.h.b16 %v4885
      %v4961 = vunpack.c.l.b16 %v4886
      %v4962 = vunpack.c.h.b16 %v4886
      %v4963 = vunpack.c.l.b16 %v4887
      %v4964 = vunpack.c.h.b16 %v4887
      %v4965 = vunpack.c.l.b16 %v4888
      %v4966 = vunpack.c.h.b16 %v4888
      %v4967 = vunpack.c.l.b16 %v4889
      %v4968 = vunpack.c.h.b16 %v4889
      %v4969 = vunpack.c.l.b16 %v4890
      %v4970 = vunpack.c.h.b16 %v4890
      %v4971 = vunpack.c.l.b16 %v4891
      %v4972 = vunpack.c.h.b16 %v4891
      %v4973 = vunpack.c.l.b16 %v4892
      %v4974 = vunpack.c.h.b16 %v4892
      %v4975 = vunpack.c.l.b16 %v4893
      %v4976 = vunpack.c.h.b16 %v4893
      %v4977 = vunpack.c.l.b16 %v4894
      %v4978 = vunpack.c.h.b16 %v4894
      %v4979 = vunpack.c.l.b16 %v4895
      %v4980 = vunpack.c.h.b16 %v4895
      %v4981 = vunpack.c.l.b16 %v4896
      %v4982 = vunpack.c.h.b16 %v4896
      %v4983 = vunpack.c.l.b16 %v4897
      %v4984 = vunpack.c.h.b16 %v4897
      %v4985 = vunpack.c.l.b16 %v4898
      %v4986 = vunpack.c.h.b16 %v4898
      %v4987 = vunpack.c.l.b16 %v4899
      %v4988 = vunpack.c.h.b16 %v4899
      %v4989 = vunpack.c.l.b16 %v4900
      %v4990 = vunpack.c.h.b16 %v4900
      %v4991 = vunpack.c.l.b16 %v4901
      %v4992 = vunpack.c.h.b16 %v4901
      %v4993 = vunpack.c.l.b16 %v4902
      %v4994 = vunpack.c.h.b16 %v4902
      %v4995 = vunpack.c.l.b16 %v4903
      %v4996 = vunpack.c.h.b16 %v4903
      %v4997 = vunpack.c.l.b16 %v4904
      %v4998 = vunpack.c.h.b16 %v4904
      %v4999 = vunpack.c.l.b16 %v4905
      %v5000 = vunpack.c.h.b16 %v4905
      %v5001 = vunpack.c.l.b16 %v4906
      %v5002 = vunpack.c.h.b16 %v4906
      %v5003 = vpack.c.b16 %v4941, %v4939
      %v5004 = vpack.c.b16 %v4942, %v4940
      %v5005 = vpack.c.b16 %v4945, %v4943
      %v5006 = vpack.c.b16 %v4946, %v4944
      %v5007 = vpack.c.b16 %v4949, %v4947
      %v5008 = vpack.c.b16 %v4950, %v4948
      %v5009 = vpack.c.b16 %v4953, %v4951
      %v5010 = vpack.c.b16 %v4954, %v4952
      %v5011 = vpack.c.b16 %v4957, %v4955
      %v5012 = vpack.c.b16 %v4958, %v4956
      %v5013 = vpack.c.b16 %v4961, %v4959
      %v5014 = vpack.c.b16 %v4962, %v4960
      %v5015 = vpack.c.b16 %v4965, %v4963
      %v5016 = vpack.c.b16 %v4966, %v4964
      %v5017 = vpack.c.b16 %v4969, %v4967
      %v5018 = vpack.c.b16 %v4970, %v4968
      %v5019 = vpack.c.b16 %v4973, %v4971
      %v5020 = vpack.c.b16 %v4974, %v4972
      %v5021 = vpack.c.b16 %v4977, %v4975
      %v5022 = vpack.c.b16 %v4978, %v4976
      %v5023 = vpack.c.b16 %v4981, %v4979
      %v5024 = vpack.c.b16 %v4982, %v4980
      %v5025 = vpack.c.b16 %v4985, %v4983
      %v5026 = vpack.c.b16 %v4986, %v4984
      %v5027 = vpack.c.b16 %v4989, %v4987
      %v5028 = vpack.c.b16 %v4990, %v4988
      %v5029 = vpack.c.b16 %v4993, %v4991
      %v5030 = vpack.c.b16 %v4994, %v4992
      %v5031 = vpack.c.b16 %v4997, %v4995
      %v5032 = vpack.c.b16 %v4998, %v4996
      %v5033 = vpack.c.b16 %v5001, %v4999
      %v5034 = vpack.c.b16 %v5002, %v5000
      %5067 = vmatprep.subr.bf16.mxu0 %v5004
      %5068 = vmatpush1.bf16.msra.mxu0 %v5003
      %5069 = vmatprep.subr.bf16.mxu0 %v5006
      %5070 = vmatpush1.bf16.msra.mxu0 %v5005
      %5071 = vmatprep.subr.bf16.mxu0 %v5008
      %5072 = vmatpush1.bf16.msra.mxu0 %v5007
      %5073 = vmatprep.subr.bf16.mxu0 %v5010
      %5074 = vmatpush1.bf16.msra.mxu0 %v5009
      %5075 = vmatprep.subr.bf16.mxu0 %v5012
      %5076 = vmatpush1.bf16.msra.mxu0 %v5011
      %5077 = vmatprep.subr.bf16.mxu0 %v5014
      %5078 = vmatpush1.bf16.msra.mxu0 %v5013
      %5079 = vmatprep.subr.bf16.mxu0 %v5016
      %5080 = vmatpush1.bf16.msra.mxu0 %v5015
      %5081 = vmatprep.subr.bf16.mxu0 %v5018
      %5082 = vmatpush1.bf16.msra.mxu0 %v5017
      %5083 = vmatprep.subr.bf16.mxu0 %v5020
      %5084 = vmatpush1.bf16.msra.mxu0 %v5019
      %5085 = vmatprep.subr.bf16.mxu0 %v5022
      %5086 = vmatpush1.bf16.msra.mxu0 %v5021
      %5087 = vmatprep.subr.bf16.mxu0 %v5024
      %5088 = vmatpush1.bf16.msra.mxu0 %v5023
      %5089 = vmatprep.subr.bf16.mxu0 %v5026
      %5090 = vmatpush1.bf16.msra.mxu0 %v5025
      %5091 = vmatprep.subr.bf16.mxu0 %v5028
      %5092 = vmatpush1.bf16.msra.mxu0 %v5027
      %5093 = vmatprep.subr.bf16.mxu0 %v5030
      %5094 = vmatpush1.bf16.msra.mxu0 %v5029
      %5095 = vmatprep.subr.bf16.mxu0 %v5032
      %5096 = vmatpush1.bf16.msra.mxu0 %v5031
      %5097 = vmatprep.subr.bf16.mxu0 %v5034
      %5098 = vmatpush1.bf16.msra.mxu0 %v5033
      %5099 = vmatprep.mubr.bf16.mxu0 %v1605
      %5100 = vmatmul.mubr.bf16.gmra.mrb[0].mxu0 %v1604
      %v5101 = vpop.f32.mrb[0].mxu0
      %v5102 = vadd.f32 0.0, %v5101
      %v5103 = vpop.f32.mrb[0].mxu0
      %v5104 = vadd.f32 0.0, %v5103
      %v5105 = vpop.f32.mrb[0].mxu0
      %v5106 = vadd.f32 0.0, %v5105
      %v5107 = vpop.f32.mrb[0].mxu0
      %v5108 = vadd.f32 0.0, %v5107
      %5109 = vmatprep.mubr.bf16.mxu0 %v1607
      %5110 = vmatmul.mubr.bf16.gmra.mrb[0].mxu0 %v1606
      %v5111 = vpop.f32.mrb[0].mxu0
      %v5112 = vadd.f32 0.0, %v5111
      %v5113 = vpop.f32.mrb[0].mxu0
      %v5114 = vadd.f32 0.0, %v5113
      %v5115 = vpop.f32.mrb[0].mxu0
      %v5116 = vadd.f32 0.0, %v5115
      %v5117 = vpop.f32.mrb[0].mxu0
      %v5118 = vadd.f32 0.0, %v5117
      %5119 = vmatprep.mubr.bf16.mxu0 %v1609
      %5120 = vmatmul.mubr.bf16.gmra.mrb[0].mxu0 %v1608
      %v5121 = vpop.f32.mrb[0].mxu0
      %v5122 = vadd.f32 0.0, %v5121
      %v5123 = vpop.f32.mrb[0].mxu0
      %v5124 = vadd.f32 0.0, %v5123
      %v5125 = vpop.f32.mrb[0].mxu0
      %v5126 = vadd.f32 0.0, %v5125
      %v5127 = vpop.f32.mrb[0].mxu0
      %v5128 = vadd.f32 0.0, %v5127
      %5129 = vmatprep.mubr.bf16.mxu0 %v1611
      %5130 = vmatmul.mubr.bf16.gmra.mrb[0].mxu0 %v1610
      %v5131 = vpop.f32.mrb[0].mxu0
      %v5132 = vadd.f32 0.0, %v5131
      %v5133 = vpop.f32.mrb[0].mxu0
      %v5134 = vadd.f32 0.0, %v5133
      %v5135 = vpop.f32.mrb[0].mxu0
      %v5136 = vadd.f32 0.0, %v5135
      %v5137 = vpop.f32.mrb[0].mxu0
      %v5138 = vadd.f32 0.0, %v5137
      %5139 = vdwg.mxu0
      %v5140 = vpack.c.bf16 %v5106, %v5102
      %v5141 = vpack.c.bf16 %v5108, %v5104
      %v5142 = vpack.c.bf16 %v5116, %v5112
      %v5143 = vpack.c.bf16 %v5118, %v5114
      %v5144 = vpack.c.bf16 %v5126, %v5122
      %v5145 = vpack.c.bf16 %v5128, %v5124
      %v5146 = vpack.c.bf16 %v5136, %v5132
      %v5147 = vpack.c.bf16 %v5138, %v5134
      %s5148 = scalar_lea.vmem %s4, 128
      %v5149 = vld [vmem:[%s5148] sm:$0xf]
      %v5150 = vld [vmem:[%s5148 + $0x4] sm:$0xf]
      %v5151 = vld [vmem:[%s5148 + $0x8] sm:$0xf]
      %v5152 = vld [vmem:[%s5148 + $0xc] sm:$0xf]
      %v5153 = vld [vmem:[%s5148 + $0x10] sm:$0xf]
      %v5154 = vld [vmem:[%s5148 + $0x14] sm:$0xf]
      %v5155 = vld [vmem:[%s5148 + $0x18] sm:$0xf]
      %v5156 = vld [vmem:[%s5148 + $0x1c] sm:$0xf]
      %v5157 = vld [vmem:[#allocation2] sm:$0xff]
      %v5158 = vld [vmem:[#allocation2 + $0x8] sm:$0xff]
      %v5159 = vld [vmem:[#allocation2 + $0x10] sm:$0xff]
      %v5160 = vld [vmem:[#allocation2 + $0x18] sm:$0xff]
      %v5161 = vld [vmem:[#allocation2 + $0x20] sm:$0xff]
      %v5162 = vld [vmem:[#allocation2 + $0x28] sm:$0xff]
      %v5163 = vld [vmem:[#allocation2 + $0x30] sm:$0xff]
      %v5164 = vld [vmem:[#allocation2 + $0x38] sm:$0xff]
      %v5165 = vld [vmem:[#allocation2 + $0x40] sm:$0xff]
      %v5166 = vld [vmem:[#allocation2 + $0x48] sm:$0xff]
      %v5167 = vld [vmem:[#allocation2 + $0x50] sm:$0xff]
      %v5168 = vld [vmem:[#allocation2 + $0x58] sm:$0xff]
      %v5169 = vld [vmem:[#allocation2 + $0x60] sm:$0xff]
      %v5170 = vld [vmem:[#allocation2 + $0x68] sm:$0xff]
      %v5171 = vld [vmem:[#allocation2 + $0x70] sm:$0xff]
      %v5172 = vld [vmem:[#allocation2 + $0x78] sm:$0xff]
      %v5181 = vunpack.c.l.b16 %v5149
      %v5182 = vunpack.c.l.b16 %v5150
      %v5183 = vunpack.c.l.b16 %v5151
      %v5184 = vunpack.c.l.b16 %v5152
      %v5185 = vunpack.c.l.b16 %v5153
      %v5186 = vunpack.c.l.b16 %v5154
      %v5187 = vunpack.c.l.b16 %v5155
      %v5188 = vunpack.c.l.b16 %v5156
      %v5189 = vpack.c.b16 %v5182, %v5181
      %v5190 = vpack.c.b16 %v5184, %v5183
      %v5191 = vpack.c.b16 %v5186, %v5185
      %v5192 = vpack.c.b16 %v5188, %v5187
      %v5194 = vsel %vm1993, %v5189, 0
      %v5197 = vsel %vm1993, %v5190, 0
      %v5200 = vsel %vm1993, %v5191, 0
      %v5203 = vsel %vm1993, %v5192, 0
      %5205 = vmatprep.subr.bf16.mxu0 %v5141
      %5206 = vmatpush1.bf16.msra.mxu0 %v5140
      %5207 = vmatprep.subr.bf16.mxu0 0
      %5208 = vmatpush1.bf16.msra.mxu0 0
      %5209 = vmatprep.subr.bf16.mxu0 0
      %5210 = vmatpush1.bf16.msra.mxu0 0
      %5211 = vmatprep.subr.bf16.mxu0 0
      %5212 = vmatpush1.bf16.msra.mxu0 0
      %5213 = vmatprep.subr.bf16.mxu0 0
      %5214 = vmatpush1.bf16.msra.mxu0 0
      %5215 = vmatprep.subr.bf16.mxu0 0
      %5216 = vmatpush1.bf16.msra.mxu0 0
      %5217 = vmatprep.subr.bf16.mxu0 0
      %5218 = vmatpush1.bf16.msra.mxu0 0
      %5219 = vmatprep.subr.bf16.mxu0 0
      %5220 = vmatpush1.bf16.msra.mxu0 0
      %5221 = vmatprep.subr.bf16.mxu0 0
      %5222 = vmatpush1.bf16.msra.mxu0 0
      %5223 = vmatprep.subr.bf16.mxu0 0
      %5224 = vmatpush1.bf16.msra.mxu0 0
      %5225 = vmatprep.subr.bf16.mxu0 0
      %5226 = vmatpush1.bf16.msra.mxu0 0
      %5227 = vmatprep.subr.bf16.mxu0 0
      %5228 = vmatpush1.bf16.msra.mxu0 0
      %5229 = vmatprep.subr.bf16.mxu0 0
      %5230 = vmatpush1.bf16.msra.mxu0 0
      %5231 = vmatprep.subr.bf16.mxu0 0
      %5232 = vmatpush1.bf16.msra.mxu0 0
      %5233 = vmatprep.subr.bf16.mxu0 0
      %5234 = vmatpush1.bf16.msra.mxu0 0
      %5235 = vmatprep.subr.bf16.mxu0 0
      %5236 = vmatpush1.bf16.msra.mxu0 0
      %5237 = vmatprep.mubr.bf16.mxu0 0
      %5238 = vmatmul.mubr.bf16.gmra.mrb[0].mxu0 %v5194
      %v5239 = vpop.f32.mrb[0].mxu0
      %v5240 = vadd.f32 0.0, %v5239
      %v5241 = vpop.f32.mrb[0].mxu0
      %v5242 = vadd.f32 0.0, %v5241
      %v5243 = vpop.f32.mrb[0].mxu0
      %v5244 = vadd.f32 0.0, %v5243
      %v5245 = vpop.f32.mrb[0].mxu0
      %v5246 = vadd.f32 0.0, %v5245
      %5247 = vmatprep.mubr.bf16.mxu0 0
      %5248 = vmatmul.mubr.bf16.gmra.mrb[0].mxu0 %v5197
      %v5249 = vpop.f32.mrb[0].mxu0
      %v5250 = vadd.f32 0.0, %v5249
      %v5251 = vpop.f32.mrb[0].mxu0
      %v5252 = vadd.f32 0.0, %v5251
      %v5253 = vpop.f32.mrb[0].mxu0
      %v5254 = vadd.f32 0.0, %v5253
      %v5255 = vpop.f32.mrb[0].mxu0
      %v5256 = vadd.f32 0.0, %v5255
      %5257 = vmatprep.mubr.bf16.mxu0 0
      %5258 = vmatmul.mubr.bf16.gmra.mrb[0].mxu0 %v5200
      %v5259 = vpop.f32.mrb[0].mxu0
      %v5260 = vadd.f32 0.0, %v5259
      %v5261 = vpop.f32.mrb[0].mxu0
      %v5262 = vadd.f32 0.0, %v5261
      %v5263 = vpop.f32.mrb[0].mxu0
      %v5264 = vadd.f32 0.0, %v5263
      %v5265 = vpop.f32.mrb[0].mxu0
      %v5266 = vadd.f32 0.0, %v5265
      %5267 = vmatprep.mubr.bf16.mxu0 0
      %5268 = vmatmul.mubr.bf16.gmra.mrb[0].mxu0 %v5203
      %v5269 = vpop.f32.mrb[0].mxu0
      %v5270 = vadd.f32 0.0, %v5269
      %v5271 = vpop.f32.mrb[0].mxu0
      %v5272 = vadd.f32 0.0, %v5271
      %v5273 = vpop.f32.mrb[0].mxu0
      %v5274 = vadd.f32 0.0, %v5273
      %v5275 = vpop.f32.mrb[0].mxu0
      %v5276 = vadd.f32 0.0, %v5275
      %5277 = vdwg.mxu0
      %v5278 = vadd.f32 %v5157, %v5240
      %v5279 = vadd.f32 %v5158, %v5242
      %v5280 = vadd.f32 %v5159, %v5244
      %v5281 = vadd.f32 %v5160, %v5246
      %v5282 = vadd.f32 %v5161, %v5250
      %v5283 = vadd.f32 %v5162, %v5252
      %v5284 = vadd.f32 %v5163, %v5254
      %v5285 = vadd.f32 %v5164, %v5256
      %v5286 = vadd.f32 %v5165, %v5260
      %v5287 = vadd.f32 %v5166, %v5262
      %v5288 = vadd.f32 %v5167, %v5264
      %v5289 = vadd.f32 %v5168, %v5266
      %v5290 = vadd.f32 %v5169, %v5270
      %v5291 = vadd.f32 %v5170, %v5272
      %v5292 = vadd.f32 %v5171, %v5274
      %v5293 = vadd.f32 %v5172, %v5276
      %5294 = vst [vmem:[#allocation2] sm:$0xff] %v5278
      %5295 = vst [vmem:[#allocation2 + $0x8] sm:$0xff] %v5279
      %5296 = vst [vmem:[#allocation2 + $0x10] sm:$0xff] %v5280
      %5297 = vst [vmem:[#allocation2 + $0x18] sm:$0xff] %v5281
      %5298 = vst [vmem:[#allocation2 + $0x20] sm:$0xff] %v5282
      %5299 = vst [vmem:[#allocation2 + $0x28] sm:$0xff] %v5283
      %5300 = vst [vmem:[#allocation2 + $0x30] sm:$0xff] %v5284
      %5301 = vst [vmem:[#allocation2 + $0x38] sm:$0xff] %v5285
      %5302 = vst [vmem:[#allocation2 + $0x40] sm:$0xff] %v5286
      %5303 = vst [vmem:[#allocation2 + $0x48] sm:$0xff] %v5287
      %5304 = vst [vmem:[#allocation2 + $0x50] sm:$0xff] %v5288
      %5305 = vst [vmem:[#allocation2 + $0x58] sm:$0xff] %v5289
      %5306 = vst [vmem:[#allocation2 + $0x60] sm:$0xff] %v5290
      %5307 = vst [vmem:[#allocation2 + $0x68] sm:$0xff] %v5291
      %5308 = vst [vmem:[#allocation2 + $0x70] sm:$0xff] %v5292
      %5309 = vst [vmem:[#allocation2 + $0x78] sm:$0xff] %v5293
      %v5310 = vld [vmem:[%s2111] sm:$0xff]
      %v5311 = vld [vmem:[%s2111 + $0x8] sm:$0xff]
      %v5312 = vld [vmem:[%s2111 + $0x10] sm:$0xff]
      %v5313 = vld [vmem:[%s2111 + $0x18] sm:$0xff]
      %v5314 = vld [vmem:[%s2111 + $0x20] sm:$0xff]
      %v5315 = vld [vmem:[%s2111 + $0x28] sm:$0xff]
      %v5316 = vld [vmem:[%s2111 + $0x30] sm:$0xff]
      %v5317 = vld [vmem:[%s2111 + $0x38] sm:$0xff]
      %v5318 = vld [vmem:[%s2111 + $0x40] sm:$0xff]
      %v5319 = vld [vmem:[%s2111 + $0x48] sm:$0xff]
      %v5320 = vld [vmem:[%s2111 + $0x50] sm:$0xff]
      %v5321 = vld [vmem:[%s2111 + $0x58] sm:$0xff]
      %v5322 = vld [vmem:[%s2111 + $0x60] sm:$0xff]
      %v5323 = vld [vmem:[%s2111 + $0x68] sm:$0xff]
      %v5324 = vld [vmem:[%s2111 + $0x70] sm:$0xff]
      %v5325 = vld [vmem:[%s2111 + $0x78] sm:$0xff]
      %5326 = vmatprep.subr.bf16.mxu0 %v5143
      %5327 = vmatpush1.bf16.msra.mxu0 %v5142
      %5328 = vmatprep.subr.bf16.mxu0 0
      %5329 = vmatpush1.bf16.msra.mxu0 0
      %5330 = vmatprep.subr.bf16.mxu0 0
      %5331 = vmatpush1.bf16.msra.mxu0 0
      %5332 = vmatprep.subr.bf16.mxu0 0
      %5333 = vmatpush1.bf16.msra.mxu0 0
      %5334 = vmatprep.subr.bf16.mxu0 0
      %5335 = vmatpush1.bf16.msra.mxu0 0
      %5336 = vmatprep.subr.bf16.mxu0 0
      %5337 = vmatpush1.bf16.msra.mxu0 0
      %5338 = vmatprep.subr.bf16.mxu0 0
      %5339 = vmatpush1.bf16.msra.mxu0 0
      %5340 = vmatprep.subr.bf16.mxu0 0
      %5341 = vmatpush1.bf16.msra.mxu0 0
      %5342 = vmatprep.subr.bf16.mxu0 0
      %5343 = vmatpush1.bf16.msra.mxu0 0
      %5344 = vmatprep.subr.bf16.mxu0 0
      %5345 = vmatpush1.bf16.msra.mxu0 0
      %5346 = vmatprep.subr.bf16.mxu0 0
      %5347 = vmatpush1.bf16.msra.mxu0 0
      %5348 = vmatprep.subr.bf16.mxu0 0
      %5349 = vmatpush1.bf16.msra.mxu0 0
      %5350 = vmatprep.subr.bf16.mxu0 0
      %5351 = vmatpush1.bf16.msra.mxu0 0
      %5352 = vmatprep.subr.bf16.mxu0 0
      %5353 = vmatpush1.bf16.msra.mxu0 0
      %5354 = vmatprep.subr.bf16.mxu0 0
      %5355 = vmatpush1.bf16.msra.mxu0 0
      %5356 = vmatprep.subr.bf16.mxu0 0
      %5357 = vmatpush1.bf16.msra.mxu0 0
      %5358 = vmatprep.mubr.bf16.mxu0 0
      %5359 = vmatmul.mubr.bf16.gmra.mrb[0].mxu0 %v5194
      %v5360 = vpop.f32.mrb[0].mxu0
      %v5361 = vadd.f32 0.0, %v5360
      %v5362 = vpop.f32.mrb[0].mxu0
      %v5363 = vadd.f32 0.0, %v5362
      %v5364 = vpop.f32.mrb[0].mxu0
      %v5365 = vadd.f32 0.0, %v5364
      %v5366 = vpop.f32.mrb[0].mxu0
      %v5367 = vadd.f32 0.0, %v5366
      %5368 = vmatprep.mubr.bf16.mxu0 0
      %5369 = vmatmul.mubr.bf16.gmra.mrb[0].mxu0 %v5197
      %v5370 = vpop.f32.mrb[0].mxu0
      %v5371 = vadd.f32 0.0, %v5370
      %v5372 = vpop.f32.mrb[0].mxu0
      %v5373 = vadd.f32 0.0, %v5372
      %v5374 = vpop.f32.mrb[0].mxu0
      %v5375 = vadd.f32 0.0, %v5374
      %v5376 = vpop.f32.mrb[0].mxu0
      %v5377 = vadd.f32 0.0, %v5376
      %5378 = vmatprep.mubr.bf16.mxu0 0
      %5379 = vmatmul.mubr.bf16.gmra.mrb[0].mxu0 %v5200
      %v5380 = vpop.f32.mrb[0].mxu0
      %v5381 = vadd.f32 0.0, %v5380
      %v5382 = vpop.f32.mrb[0].mxu0
      %v5383 = vadd.f32 0.0, %v5382
      %v5384 = vpop.f32.mrb[0].mxu0
      %v5385 = vadd.f32 0.0, %v5384
      %v5386 = vpop.f32.mrb[0].mxu0
      %v5387 = vadd.f32 0.0, %v5386
      %5388 = vmatprep.mubr.bf16.mxu0 0
      %5389 = vmatmul.mubr.bf16.gmra.mrb[0].mxu0 %v5203
      %v5390 = vpop.f32.mrb[0].mxu0
      %v5391 = vadd.f32 0.0, %v5390
      %v5392 = vpop.f32.mrb[0].mxu0
      %v5393 = vadd.f32 0.0, %v5392
      %v5394 = vpop.f32.mrb[0].mxu0
      %v5395 = vadd.f32 0.0, %v5394
      %v5396 = vpop.f32.mrb[0].mxu0
      %v5397 = vadd.f32 0.0, %v5396
      %5398 = vdwg.mxu0
      %v5399 = vadd.f32 %v5310, %v5361
      %v5400 = vadd.f32 %v5311, %v5363
      %v5401 = vadd.f32 %v5312, %v5365
      %v5402 = vadd.f32 %v5313, %v5367
      %v5403 = vadd.f32 %v5314, %v5371
      %v5404 = vadd.f32 %v5315, %v5373
      %v5405 = vadd.f32 %v5316, %v5375
      %v5406 = vadd.f32 %v5317, %v5377
      %v5407 = vadd.f32 %v5318, %v5381
      %v5408 = vadd.f32 %v5319, %v5383
      %v5409 = vadd.f32 %v5320, %v5385
      %v5410 = vadd.f32 %v5321, %v5387
      %v5411 = vadd.f32 %v5322, %v5391
      %v5412 = vadd.f32 %v5323, %v5393
      %v5413 = vadd.f32 %v5324, %v5395
      %v5414 = vadd.f32 %v5325, %v5397
      %5415 = vst [vmem:[%s2111] sm:$0xff] %v5399
      %5416 = vst [vmem:[%s2111 + $0x8] sm:$0xff] %v5400
      %5417 = vst [vmem:[%s2111 + $0x10] sm:$0xff] %v5401
      %5418 = vst [vmem:[%s2111 + $0x18] sm:$0xff] %v5402
      %5419 = vst [vmem:[%s2111 + $0x20] sm:$0xff] %v5403
      %5420 = vst [vmem:[%s2111 + $0x28] sm:$0xff] %v5404
      %5421 = vst [vmem:[%s2111 + $0x30] sm:$0xff] %v5405
      %5422 = vst [vmem:[%s2111 + $0x38] sm:$0xff] %v5406
      %5423 = vst [vmem:[%s2111 + $0x40] sm:$0xff] %v5407
      %5424 = vst [vmem:[%s2111 + $0x48] sm:$0xff] %v5408
      %5425 = vst [vmem:[%s2111 + $0x50] sm:$0xff] %v5409
      %5426 = vst [vmem:[%s2111 + $0x58] sm:$0xff] %v5410
      %5427 = vst [vmem:[%s2111 + $0x60] sm:$0xff] %v5411
      %5428 = vst [vmem:[%s2111 + $0x68] sm:$0xff] %v5412
      %5429 = vst [vmem:[%s2111 + $0x70] sm:$0xff] %v5413
      %5430 = vst [vmem:[%s2111 + $0x78] sm:$0xff] %v5414
      %v5431 = vld [vmem:[%s2233] sm:$0xff]
      %v5432 = vld [vmem:[%s2233 + $0x8] sm:$0xff]
      %v5433 = vld [vmem:[%s2233 + $0x10] sm:$0xff]
      %v5434 = vld [vmem:[%s2233 + $0x18] sm:$0xff]
      %v5435 = vld [vmem:[%s2233 + $0x20] sm:$0xff]
      %v5436 = vld [vmem:[%s2233 + $0x28] sm:$0xff]
      %v5437 = vld [vmem:[%s2233 + $0x30] sm:$0xff]
      %v5438 = vld [vmem:[%s2233 + $0x38] sm:$0xff]
      %v5439 = vld [vmem:[%s2233 + $0x40] sm:$0xff]
      %v5440 = vld [vmem:[%s2233 + $0x48] sm:$0xff]
      %v5441 = vld [vmem:[%s2233 + $0x50] sm:$0xff]
      %v5442 = vld [vmem:[%s2233 + $0x58] sm:$0xff]
      %v5443 = vld [vmem:[%s2233 + $0x60] sm:$0xff]
      %v5444 = vld [vmem:[%s2233 + $0x68] sm:$0xff]
      %v5445 = vld [vmem:[%s2233 + $0x70] sm:$0xff]
      %v5446 = vld [vmem:[%s2233 + $0x78] sm:$0xff]
      %5447 = vmatprep.subr.bf16.mxu0 %v5145
      %5448 = vmatpush1.bf16.msra.mxu0 %v5144
      %5449 = vmatprep.subr.bf16.mxu0 0
      %5450 = vmatpush1.bf16.msra.mxu0 0
      %5451 = vmatprep.subr.bf16.mxu0 0
      %5452 = vmatpush1.bf16.msra.mxu0 0
      %5453 = vmatprep.subr.bf16.mxu0 0
      %5454 = vmatpush1.bf16.msra.mxu0 0
      %5455 = vmatprep.subr.bf16.mxu0 0
      %5456 = vmatpush1.bf16.msra.mxu0 0
      %5457 = vmatprep.subr.bf16.mxu0 0
      %5458 = vmatpush1.bf16.msra.mxu0 0
      %5459 = vmatprep.subr.bf16.mxu0 0
      %5460 = vmatpush1.bf16.msra.mxu0 0
      %5461 = vmatprep.subr.bf16.mxu0 0
      %5462 = vmatpush1.bf16.msra.mxu0 0
      %5463 = vmatprep.subr.bf16.mxu0 0
      %5464 = vmatpush1.bf16.msra.mxu0 0
      %5465 = vmatprep.subr.bf16.mxu0 0
      %5466 = vmatpush1.bf16.msra.mxu0 0
      %5467 = vmatprep.subr.bf16.mxu0 0
      %5468 = vmatpush1.bf16.msra.mxu0 0
      %5469 = vmatprep.subr.bf16.mxu0 0
      %5470 = vmatpush1.bf16.msra.mxu0 0
      %5471 = vmatprep.subr.bf16.mxu0 0
      %5472 = vmatpush1.bf16.msra.mxu0 0
      %5473 = vmatprep.subr.bf16.mxu0 0
      %5474 = vmatpush1.bf16.msra.mxu0 0
      %5475 = vmatprep.subr.bf16.mxu0 0
      %5476 = vmatpush1.bf16.msra.mxu0 0
      %5477 = vmatprep.subr.bf16.mxu0 0
      %5478 = vmatpush1.bf16.msra.mxu0 0
      %5479 = vmatprep.mubr.bf16.mxu0 0
      %5480 = vmatmul.mubr.bf16.gmra.mrb[0].mxu0 %v5194
      %v5481 = vpop.f32.mrb[0].mxu0
      %v5482 = vadd.f32 0.0, %v5481
      %v5483 = vpop.f32.mrb[0].mxu0
      %v5484 = vadd.f32 0.0, %v5483
      %v5485 = vpop.f32.mrb[0].mxu0
      %v5486 = vadd.f32 0.0, %v5485
      %v5487 = vpop.f32.mrb[0].mxu0
      %v5488 = vadd.f32 0.0, %v5487
      %5489 = vmatprep.mubr.bf16.mxu0 0
      %5490 = vmatmul.mubr.bf16.gmra.mrb[0].mxu0 %v5197
      %v5491 = vpop.f32.mrb[0].mxu0
      %v5492 = vadd.f32 0.0, %v5491
      %v5493 = vpop.f32.mrb[0].mxu0
      %v5494 = vadd.f32 0.0, %v5493
      %v5495 = vpop.f32.mrb[0].mxu0
      %v5496 = vadd.f32 0.0, %v5495
      %v5497 = vpop.f32.mrb[0].mxu0
      %v5498 = vadd.f32 0.0, %v5497
      %5499 = vmatprep.mubr.bf16.mxu0 0
      %5500 = vmatmul.mubr.bf16.gmra.mrb[0].mxu0 %v5200
      %v5501 = vpop.f32.mrb[0].mxu0
      %v5502 = vadd.f32 0.0, %v5501
      %v5503 = vpop.f32.mrb[0].mxu0
      %v5504 = vadd.f32 0.0, %v5503
      %v5505 = vpop.f32.mrb[0].mxu0
      %v5506 = vadd.f32 0.0, %v5505
      %v5507 = vpop.f32.mrb[0].mxu0
      %v5508 = vadd.f32 0.0, %v5507
      %5509 = vmatprep.mubr.bf16.mxu0 0
      %5510 = vmatmul.mubr.bf16.gmra.mrb[0].mxu0 %v5203
      %v5511 = vpop.f32.mrb[0].mxu0
      %v5512 = vadd.f32 0.0, %v5511
      %v5513 = vpop.f32.mrb[0].mxu0
      %v5514 = vadd.f32 0.0, %v5513
      %v5515 = vpop.f32.mrb[0].mxu0
      %v5516 = vadd.f32 0.0, %v5515
      %v5517 = vpop.f32.mrb[0].mxu0
      %v5518 = vadd.f32 0.0, %v5517
      %5519 = vdwg.mxu0
      %v5520 = vadd.f32 %v5431, %v5482
      %v5521 = vadd.f32 %v5432, %v5484
      %v5522 = vadd.f32 %v5433, %v5486
      %v5523 = vadd.f32 %v5434, %v5488
      %v5524 = vadd.f32 %v5435, %v5492
      %v5525 = vadd.f32 %v5436, %v5494
      %v5526 = vadd.f32 %v5437, %v5496
      %v5527 = vadd.f32 %v5438, %v5498
      %v5528 = vadd.f32 %v5439, %v5502
      %v5529 = vadd.f32 %v5440, %v5504
      %v5530 = vadd.f32 %v5441, %v5506
      %v5531 = vadd.f32 %v5442, %v5508
      %v5532 = vadd.f32 %v5443, %v5512
      %v5533 = vadd.f32 %v5444, %v5514
      %v5534 = vadd.f32 %v5445, %v5516
      %v5535 = vadd.f32 %v5446, %v5518
      %5536 = vst [vmem:[%s2233] sm:$0xff] %v5520
      %5537 = vst [vmem:[%s2233 + $0x8] sm:$0xff] %v5521
      %5538 = vst [vmem:[%s2233 + $0x10] sm:$0xff] %v5522
      %5539 = vst [vmem:[%s2233 + $0x18] sm:$0xff] %v5523
      %5540 = vst [vmem:[%s2233 + $0x20] sm:$0xff] %v5524
      %5541 = vst [vmem:[%s2233 + $0x28] sm:$0xff] %v5525
      %5542 = vst [vmem:[%s2233 + $0x30] sm:$0xff] %v5526
      %5543 = vst [vmem:[%s2233 + $0x38] sm:$0xff] %v5527
      %5544 = vst [vmem:[%s2233 + $0x40] sm:$0xff] %v5528
      %5545 = vst [vmem:[%s2233 + $0x48] sm:$0xff] %v5529
      %5546 = vst [vmem:[%s2233 + $0x50] sm:$0xff] %v5530
      %5547 = vst [vmem:[%s2233 + $0x58] sm:$0xff] %v5531
      %5548 = vst [vmem:[%s2233 + $0x60] sm:$0xff] %v5532
      %5549 = vst [vmem:[%s2233 + $0x68] sm:$0xff] %v5533
      %5550 = vst [vmem:[%s2233 + $0x70] sm:$0xff] %v5534
      %5551 = vst [vmem:[%s2233 + $0x78] sm:$0xff] %v5535
      %v5552 = vld [vmem:[%s2355] sm:$0xff]
      %v5553 = vld [vmem:[%s2355 + $0x8] sm:$0xff]
      %v5554 = vld [vmem:[%s2355 + $0x10] sm:$0xff]
      %v5555 = vld [vmem:[%s2355 + $0x18] sm:$0xff]
      %v5556 = vld [vmem:[%s2355 + $0x20] sm:$0xff]
      %v5557 = vld [vmem:[%s2355 + $0x28] sm:$0xff]
      %v5558 = vld [vmem:[%s2355 + $0x30] sm:$0xff]
      %v5559 = vld [vmem:[%s2355 + $0x38] sm:$0xff]
      %v5560 = vld [vmem:[%s2355 + $0x40] sm:$0xff]
      %v5561 = vld [vmem:[%s2355 + $0x48] sm:$0xff]
      %v5562 = vld [vmem:[%s2355 + $0x50] sm:$0xff]
      %v5563 = vld [vmem:[%s2355 + $0x58] sm:$0xff]
      %v5564 = vld [vmem:[%s2355 + $0x60] sm:$0xff]
      %v5565 = vld [vmem:[%s2355 + $0x68] sm:$0xff]
      %v5566 = vld [vmem:[%s2355 + $0x70] sm:$0xff]
      %v5567 = vld [vmem:[%s2355 + $0x78] sm:$0xff]
      %5568 = vmatprep.subr.bf16.mxu0 %v5147
      %5569 = vmatpush1.bf16.msra.mxu0 %v5146
      %5570 = vmatprep.subr.bf16.mxu0 0
      %5571 = vmatpush1.bf16.msra.mxu0 0
      %5572 = vmatprep.subr.bf16.mxu0 0
      %5573 = vmatpush1.bf16.msra.mxu0 0
      %5574 = vmatprep.subr.bf16.mxu0 0
      %5575 = vmatpush1.bf16.msra.mxu0 0
      %5576 = vmatprep.subr.bf16.mxu0 0
      %5577 = vmatpush1.bf16.msra.mxu0 0
      %5578 = vmatprep.subr.bf16.mxu0 0
      %5579 = vmatpush1.bf16.msra.mxu0 0
      %5580 = vmatprep.subr.bf16.mxu0 0
      %5581 = vmatpush1.bf16.msra.mxu0 0
      %5582 = vmatprep.subr.bf16.mxu0 0
      %5583 = vmatpush1.bf16.msra.mxu0 0
      %5584 = vmatprep.subr.bf16.mxu0 0
      %5585 = vmatpush1.bf16.msra.mxu0 0
      %5586 = vmatprep.subr.bf16.mxu0 0
      %5587 = vmatpush1.bf16.msra.mxu0 0
      %5588 = vmatprep.subr.bf16.mxu0 0
      %5589 = vmatpush1.bf16.msra.mxu0 0
      %5590 = vmatprep.subr.bf16.mxu0 0
      %5591 = vmatpush1.bf16.msra.mxu0 0
      %5592 = vmatprep.subr.bf16.mxu0 0
      %5593 = vmatpush1.bf16.msra.mxu0 0
      %5594 = vmatprep.subr.bf16.mxu0 0
      %5595 = vmatpush1.bf16.msra.mxu0 0
      %5596 = vmatprep.subr.bf16.mxu0 0
      %5597 = vmatpush1.bf16.msra.mxu0 0
      %5598 = vmatprep.subr.bf16.mxu0 0
      %5599 = vmatpush1.bf16.msra.mxu0 0
      %5600 = vmatprep.mubr.bf16.mxu0 0
      %5601 = vmatmul.mubr.bf16.gmra.mrb[0].mxu0 %v5194
      %v5602 = vpop.f32.mrb[0].mxu0
      %v5603 = vadd.f32 0.0, %v5602
      %v5604 = vpop.f32.mrb[0].mxu0
      %v5605 = vadd.f32 0.0, %v5604
      %v5606 = vpop.f32.mrb[0].mxu0
      %v5607 = vadd.f32 0.0, %v5606
      %v5608 = vpop.f32.mrb[0].mxu0
      %v5609 = vadd.f32 0.0, %v5608
      %5610 = vmatprep.mubr.bf16.mxu0 0
      %5611 = vmatmul.mubr.bf16.gmra.mrb[0].mxu0 %v5197
      %v5612 = vpop.f32.mrb[0].mxu0
      %v5613 = vadd.f32 0.0, %v5612
      %v5614 = vpop.f32.mrb[0].mxu0
      %v5615 = vadd.f32 0.0, %v5614
      %v5616 = vpop.f32.mrb[0].mxu0
      %v5617 = vadd.f32 0.0, %v5616
      %v5618 = vpop.f32.mrb[0].mxu0
      %v5619 = vadd.f32 0.0, %v5618
      %5620 = vmatprep.mubr.bf16.mxu0 0
      %5621 = vmatmul.mubr.bf16.gmra.mrb[0].mxu0 %v5200
      %v5622 = vpop.f32.mrb[0].mxu0
      %v5623 = vadd.f32 0.0, %v5622
      %v5624 = vpop.f32.mrb[0].mxu0
      %v5625 = vadd.f32 0.0, %v5624
      %v5626 = vpop.f32.mrb[0].mxu0
      %v5627 = vadd.f32 0.0, %v5626
      %v5628 = vpop.f32.mrb[0].mxu0
      %v5629 = vadd.f32 0.0, %v5628
      %5630 = vmatprep.mubr.bf16.mxu0 0
      %5631 = vmatmul.mubr.bf16.gmra.mrb[0].mxu0 %v5203
      %v5632 = vpop.f32.mrb[0].mxu0
      %v5633 = vadd.f32 0.0, %v5632
      %v5634 = vpop.f32.mrb[0].mxu0
      %v5635 = vadd.f32 0.0, %v5634
      %v5636 = vpop.f32.mrb[0].mxu0
      %v5637 = vadd.f32 0.0, %v5636
      %v5638 = vpop.f32.mrb[0].mxu0
      %v5639 = vadd.f32 0.0, %v5638
      %5640 = vdwg.mxu0
      %v5641 = vadd.f32 %v5552, %v5603
      %v5642 = vadd.f32 %v5553, %v5605
      %v5643 = vadd.f32 %v5554, %v5607
      %v5644 = vadd.f32 %v5555, %v5609
      %v5645 = vadd.f32 %v5556, %v5613
      %v5646 = vadd.f32 %v5557, %v5615
      %v5647 = vadd.f32 %v5558, %v5617
      %v5648 = vadd.f32 %v5559, %v5619
      %v5649 = vadd.f32 %v5560, %v5623
      %v5650 = vadd.f32 %v5561, %v5625
      %v5651 = vadd.f32 %v5562, %v5627
      %v5652 = vadd.f32 %v5563, %v5629
      %v5653 = vadd.f32 %v5564, %v5633
      %v5654 = vadd.f32 %v5565, %v5635
      %v5655 = vadd.f32 %v5566, %v5637
      %v5656 = vadd.f32 %v5567, %v5639
      %5657 = vst [vmem:[%s2355] sm:$0xff] %v5641
      %5658 = vst [vmem:[%s2355 + $0x8] sm:$0xff] %v5642
      %5659 = vst [vmem:[%s2355 + $0x10] sm:$0xff] %v5643
      %5660 = vst [vmem:[%s2355 + $0x18] sm:$0xff] %v5644
      %5661 = vst [vmem:[%s2355 + $0x20] sm:$0xff] %v5645
      %5662 = vst [vmem:[%s2355 + $0x28] sm:$0xff] %v5646
      %5663 = vst [vmem:[%s2355 + $0x30] sm:$0xff] %v5647
      %5664 = vst [vmem:[%s2355 + $0x38] sm:$0xff] %v5648
      %5665 = vst [vmem:[%s2355 + $0x40] sm:$0xff] %v5649
      %5666 = vst [vmem:[%s2355 + $0x48] sm:$0xff] %v5650
      %5667 = vst [vmem:[%s2355 + $0x50] sm:$0xff] %v5651
      %5668 = vst [vmem:[%s2355 + $0x58] sm:$0xff] %v5652
      %5669 = vst [vmem:[%s2355 + $0x60] sm:$0xff] %v5653
      %5670 = vst [vmem:[%s2355 + $0x68] sm:$0xff] %v5654
      %5671 = vst [vmem:[%s2355 + $0x70] sm:$0xff] %v5655
      %5672 = vst [vmem:[%s2355 + $0x78] sm:$0xff] %v5656
      %s5673 = scalar_lea.vmem %s5, 1280
      %v5674 = vld [vmem:[%s5673] sm:$0xff]
      %v5675 = vld [vmem:[%s5673 + $0x8] sm:$0xff]
      %v5676 = vld [vmem:[%s5673 + $0x10] sm:$0xff]
      %v5677 = vld [vmem:[%s5673 + $0x18] sm:$0xff]
      %v5678 = vld [vmem:[%s5673 + $0x20] sm:$0xff]
      %v5679 = vld [vmem:[%s5673 + $0x28] sm:$0xff]
      %v5680 = vld [vmem:[%s5673 + $0x30] sm:$0xff]
      %v5681 = vld [vmem:[%s5673 + $0x38] sm:$0xff]
      %v5682 = vld [vmem:[%s5673 + $0x40] sm:$0xff]
      %v5683 = vld [vmem:[%s5673 + $0x48] sm:$0xff]
      %v5684 = vld [vmem:[%s5673 + $0x50] sm:$0xff]
      %v5685 = vld [vmem:[%s5673 + $0x58] sm:$0xff]
      %v5686 = vld [vmem:[%s5673 + $0x60] sm:$0xff]
      %v5687 = vld [vmem:[%s5673 + $0x68] sm:$0xff]
      %v5688 = vld [vmem:[%s5673 + $0x70] sm:$0xff]
      %v5689 = vld [vmem:[%s5673 + $0x78] sm:$0xff]
      %v5690 = vld [vmem:[%s5673 + $0x80] sm:$0xff]
      %v5691 = vld [vmem:[%s5673 + $0x88] sm:$0xff]
      %v5692 = vld [vmem:[%s5673 + $0x90] sm:$0xff]
      %v5693 = vld [vmem:[%s5673 + $0x98] sm:$0xff]
      %v5694 = vld [vmem:[%s5673 + $0xa0] sm:$0xff]
      %v5695 = vld [vmem:[%s5673 + $0xa8] sm:$0xff]
      %v5696 = vld [vmem:[%s5673 + $0xb0] sm:$0xff]
      %v5697 = vld [vmem:[%s5673 + $0xb8] sm:$0xff]
      %v5698 = vld [vmem:[%s5673 + $0xc0] sm:$0xff]
      %v5699 = vld [vmem:[%s5673 + $0xc8] sm:$0xff]
      %v5700 = vld [vmem:[%s5673 + $0xd0] sm:$0xff]
      %v5701 = vld [vmem:[%s5673 + $0xd8] sm:$0xff]
      %v5702 = vld [vmem:[%s5673 + $0xe0] sm:$0xff]
      %v5703 = vld [vmem:[%s5673 + $0xe8] sm:$0xff]
      %v5704 = vld [vmem:[%s5673 + $0xf0] sm:$0xff]
      %v5705 = vld [vmem:[%s5673 + $0xf8] sm:$0xff]
      %v5738 = vunpack.c.l.b16 %v5674
      %v5739 = vunpack.c.h.b16 %v5674
      %v5740 = vunpack.c.l.b16 %v5675
      %v5741 = vunpack.c.h.b16 %v5675
      %v5742 = vunpack.c.l.b16 %v5676
      %v5743 = vunpack.c.h.b16 %v5676
      %v5744 = vunpack.c.l.b16 %v5677
      %v5745 = vunpack.c.h.b16 %v5677
      %v5746 = vunpack.c.l.b16 %v5678
      %v5747 = vunpack.c.h.b16 %v5678
      %v5748 = vunpack.c.l.b16 %v5679
      %v5749 = vunpack.c.h.b16 %v5679
      %v5750 = vunpack.c.l.b16 %v5680
      %v5751 = vunpack.c.h.b16 %v5680
      %v5752 = vunpack.c.l.b16 %v5681
      %v5753 = vunpack.c.h.b16 %v5681
      %v5754 = vunpack.c.l.b16 %v5682
      %v5755 = vunpack.c.h.b16 %v5682
      %v5756 = vunpack.c.l.b16 %v5683
      %v5757 = vunpack.c.h.b16 %v5683
      %v5758 = vunpack.c.l.b16 %v5684
      %v5759 = vunpack.c.h.b16 %v5684
      %v5760 = vunpack.c.l.b16 %v5685
      %v5761 = vunpack.c.h.b16 %v5685
      %v5762 = vunpack.c.l.b16 %v5686
      %v5763 = vunpack.c.h.b16 %v5686
      %v5764 = vunpack.c.l.b16 %v5687
      %v5765 = vunpack.c.h.b16 %v5687
      %v5766 = vunpack.c.l.b16 %v5688
      %v5767 = vunpack.c.h.b16 %v5688
      %v5768 = vunpack.c.l.b16 %v5689
      %v5769 = vunpack.c.h.b16 %v5689
      %v5770 = vunpack.c.l.b16 %v5690
      %v5771 = vunpack.c.h.b16 %v5690
      %v5772 = vunpack.c.l.b16 %v5691
      %v5773 = vunpack.c.h.b16 %v5691
      %v5774 = vunpack.c.l.b16 %v5692
      %v5775 = vunpack.c.h.b16 %v5692
      %v5776 = vunpack.c.l.b16 %v5693
      %v5777 = vunpack.c.h.b16 %v5693
      %v5778 = vunpack.c.l.b16 %v5694
      %v5779 = vunpack.c.h.b16 %v5694
      %v5780 = vunpack.c.l.b16 %v5695
      %v5781 = vunpack.c.h.b16 %v5695
      %v5782 = vunpack.c.l.b16 %v5696
      %v5783 = vunpack.c.h.b16 %v5696
      %v5784 = vunpack.c.l.b16 %v5697
      %v5785 = vunpack.c.h.b16 %v5697
      %v5786 = vunpack.c.l.b16 %v5698
      %v5787 = vunpack.c.h.b16 %v5698
      %v5788 = vunpack.c.l.b16 %v5699
      %v5789 = vunpack.c.h.b16 %v5699
      %v5790 = vunpack.c.l.b16 %v5700
      %v5791 = vunpack.c.h.b16 %v5700
      %v5792 = vunpack.c.l.b16 %v5701
      %v5793 = vunpack.c.h.b16 %v5701
      %v5794 = vunpack.c.l.b16 %v5702
      %v5795 = vunpack.c.h.b16 %v5702
      %v5796 = vunpack.c.l.b16 %v5703
      %v5797 = vunpack.c.h.b16 %v5703
      %v5798 = vunpack.c.l.b16 %v5704
      %v5799 = vunpack.c.h.b16 %v5704
      %v5800 = vunpack.c.l.b16 %v5705
      %v5801 = vunpack.c.h.b16 %v5705
      %v5802 = vpack.c.b16 %v5740, %v5738
      %v5803 = vpack.c.b16 %v5741, %v5739
      %v5804 = vpack.c.b16 %v5744, %v5742
      %v5805 = vpack.c.b16 %v5745, %v5743
      %v5806 = vpack.c.b16 %v5748, %v5746
      %v5807 = vpack.c.b16 %v5749, %v5747
      %v5808 = vpack.c.b16 %v5752, %v5750
      %v5809 = vpack.c.b16 %v5753, %v5751
      %v5810 = vpack.c.b16 %v5756, %v5754
      %v5811 = vpack.c.b16 %v5757, %v5755
      %v5812 = vpack.c.b16 %v5760, %v5758
      %v5813 = vpack.c.b16 %v5761, %v5759
      %v5814 = vpack.c.b16 %v5764, %v5762
      %v5815 = vpack.c.b16 %v5765, %v5763
      %v5816 = vpack.c.b16 %v5768, %v5766
      %v5817 = vpack.c.b16 %v5769, %v5767
      %v5818 = vpack.c.b16 %v5772, %v5770
      %v5819 = vpack.c.b16 %v5773, %v5771
      %v5820 = vpack.c.b16 %v5776, %v5774
      %v5821 = vpack.c.b16 %v5777, %v5775
      %v5822 = vpack.c.b16 %v5780, %v5778
      %v5823 = vpack.c.b16 %v5781, %v5779
      %v5824 = vpack.c.b16 %v5784, %v5782
      %v5825 = vpack.c.b16 %v5785, %v5783
      %v5826 = vpack.c.b16 %v5788, %v5786
      %v5827 = vpack.c.b16 %v5789, %v5787
      %v5828 = vpack.c.b16 %v5792, %v5790
      %v5829 = vpack.c.b16 %v5793, %v5791
      %v5830 = vpack.c.b16 %v5796, %v5794
      %v5831 = vpack.c.b16 %v5797, %v5795
      %v5832 = vpack.c.b16 %v5800, %v5798
      %v5833 = vpack.c.b16 %v5801, %v5799
      %5866 = vmatprep.subr.bf16.mxu0 %v5803
      %5867 = vmatpush1.bf16.msra.mxu0 %v5802
      %5868 = vmatprep.subr.bf16.mxu0 %v5805
      %5869 = vmatpush1.bf16.msra.mxu0 %v5804
      %5870 = vmatprep.subr.bf16.mxu0 %v5807
      %5871 = vmatpush1.bf16.msra.mxu0 %v5806
      %5872 = vmatprep.subr.bf16.mxu0 %v5809
      %5873 = vmatpush1.bf16.msra.mxu0 %v5808
      %5874 = vmatprep.subr.bf16.mxu0 %v5811
      %5875 = vmatpush1.bf16.msra.mxu0 %v5810
      %5876 = vmatprep.subr.bf16.mxu0 %v5813
      %5877 = vmatpush1.bf16.msra.mxu0 %v5812
      %5878 = vmatprep.subr.bf16.mxu0 %v5815
      %5879 = vmatpush1.bf16.msra.mxu0 %v5814
      %5880 = vmatprep.subr.bf16.mxu0 %v5817
      %5881 = vmatpush1.bf16.msra.mxu0 %v5816
      %5882 = vmatprep.subr.bf16.mxu0 %v5819
      %5883 = vmatpush1.bf16.msra.mxu0 %v5818
      %5884 = vmatprep.subr.bf16.mxu0 %v5821
      %5885 = vmatpush1.bf16.msra.mxu0 %v5820
      %5886 = vmatprep.subr.bf16.mxu0 %v5823
      %5887 = vmatpush1.bf16.msra.mxu0 %v5822
      %5888 = vmatprep.subr.bf16.mxu0 %v5825
      %5889 = vmatpush1.bf16.msra.mxu0 %v5824
      %5890 = vmatprep.subr.bf16.mxu0 %v5827
      %5891 = vmatpush1.bf16.msra.mxu0 %v5826
      %5892 = vmatprep.subr.bf16.mxu0 %v5829
      %5893 = vmatpush1.bf16.msra.mxu0 %v5828
      %5894 = vmatprep.subr.bf16.mxu0 %v5831
      %5895 = vmatpush1.bf16.msra.mxu0 %v5830
      %5896 = vmatprep.subr.bf16.mxu0 %v5833
      %5897 = vmatpush1.bf16.msra.mxu0 %v5832
      %5898 = vmatprep.mubr.bf16.mxu0 %v1605
      %5899 = vmatmul.mubr.bf16.gmra.mrb[0].mxu0 %v1604
      %v5900 = vpop.f32.mrb[0].mxu0
      %v5901 = vadd.f32 0.0, %v5900
      %v5902 = vpop.f32.mrb[0].mxu0
      %v5903 = vadd.f32 0.0, %v5902
      %v5904 = vpop.f32.mrb[0].mxu0
      %v5905 = vadd.f32 0.0, %v5904
      %v5906 = vpop.f32.mrb[0].mxu0
      %v5907 = vadd.f32 0.0, %v5906
      %5908 = vmatprep.mubr.bf16.mxu0 %v1607
      %5909 = vmatmul.mubr.bf16.gmra.mrb[0].mxu0 %v1606
      %v5910 = vpop.f32.mrb[0].mxu0
      %v5911 = vadd.f32 0.0, %v5910
      %v5912 = vpop.f32.mrb[0].mxu0
      %v5913 = vadd.f32 0.0, %v5912
      %v5914 = vpop.f32.mrb[0].mxu0
      %v5915 = vadd.f32 0.0, %v5914
      %v5916 = vpop.f32.mrb[0].mxu0
      %v5917 = vadd.f32 0.0, %v5916
      %5918 = vmatprep.mubr.bf16.mxu0 %v1609
      %5919 = vmatmul.mubr.bf16.gmra.mrb[0].mxu0 %v1608
      %v5920 = vpop.f32.mrb[0].mxu0
      %v5921 = vadd.f32 0.0, %v5920
      %v5922 = vpop.f32.mrb[0].mxu0
      %v5923 = vadd.f32 0.0, %v5922
      %v5924 = vpop.f32.mrb[0].mxu0
      %v5925 = vadd.f32 0.0, %v5924
      %v5926 = vpop.f32.mrb[0].mxu0
      %v5927 = vadd.f32 0.0, %v5926
      %5928 = vmatprep.mubr.bf16.mxu0 %v1611
      %5929 = vmatmul.mubr.bf16.gmra.mrb[0].mxu0 %v1610
      %v5930 = vpop.f32.mrb[0].mxu0
      %v5931 = vadd.f32 0.0, %v5930
      %v5932 = vpop.f32.mrb[0].mxu0
      %v5933 = vadd.f32 0.0, %v5932
      %v5934 = vpop.f32.mrb[0].mxu0
      %v5935 = vadd.f32 0.0, %v5934
      %v5936 = vpop.f32.mrb[0].mxu0
      %v5937 = vadd.f32 0.0, %v5936
      %5938 = vdwg.mxu0
      %v5939 = vpack.c.bf16 %v5905, %v5901
      %v5940 = vpack.c.bf16 %v5907, %v5903
      %v5941 = vpack.c.bf16 %v5915, %v5911
      %v5942 = vpack.c.bf16 %v5917, %v5913
      %v5943 = vpack.c.bf16 %v5925, %v5921
      %v5944 = vpack.c.bf16 %v5927, %v5923
      %v5945 = vpack.c.bf16 %v5935, %v5931
      %v5946 = vpack.c.bf16 %v5937, %v5933
      %s5947 = scalar_lea.vmem %s4, 160
      %v5948 = vld [vmem:[%s5947] sm:$0xf]
      %v5949 = vld [vmem:[%s5947 + $0x4] sm:$0xf]
      %v5950 = vld [vmem:[%s5947 + $0x8] sm:$0xf]
      %v5951 = vld [vmem:[%s5947 + $0xc] sm:$0xf]
      %v5952 = vld [vmem:[%s5947 + $0x10] sm:$0xf]
      %v5953 = vld [vmem:[%s5947 + $0x14] sm:$0xf]
      %v5954 = vld [vmem:[%s5947 + $0x18] sm:$0xf]
      %v5955 = vld [vmem:[%s5947 + $0x1c] sm:$0xf]
      %v5956 = vld [vmem:[#allocation2] sm:$0xff]
      %v5957 = vld [vmem:[#allocation2 + $0x8] sm:$0xff]
      %v5958 = vld [vmem:[#allocation2 + $0x10] sm:$0xff]
      %v5959 = vld [vmem:[#allocation2 + $0x18] sm:$0xff]
      %v5960 = vld [vmem:[#allocation2 + $0x20] sm:$0xff]
      %v5961 = vld [vmem:[#allocation2 + $0x28] sm:$0xff]
      %v5962 = vld [vmem:[#allocation2 + $0x30] sm:$0xff]
      %v5963 = vld [vmem:[#allocation2 + $0x38] sm:$0xff]
      %v5964 = vld [vmem:[#allocation2 + $0x40] sm:$0xff]
      %v5965 = vld [vmem:[#allocation2 + $0x48] sm:$0xff]
      %v5966 = vld [vmem:[#allocation2 + $0x50] sm:$0xff]
      %v5967 = vld [vmem:[#allocation2 + $0x58] sm:$0xff]
      %v5968 = vld [vmem:[#allocation2 + $0x60] sm:$0xff]
      %v5969 = vld [vmem:[#allocation2 + $0x68] sm:$0xff]
      %v5970 = vld [vmem:[#allocation2 + $0x70] sm:$0xff]
      %v5971 = vld [vmem:[#allocation2 + $0x78] sm:$0xff]
      %v5980 = vunpack.c.l.b16 %v5948
      %v5981 = vunpack.c.l.b16 %v5949
      %v5982 = vunpack.c.l.b16 %v5950
      %v5983 = vunpack.c.l.b16 %v5951
      %v5984 = vunpack.c.l.b16 %v5952
      %v5985 = vunpack.c.l.b16 %v5953
      %v5986 = vunpack.c.l.b16 %v5954
      %v5987 = vunpack.c.l.b16 %v5955
      %v5988 = vpack.c.b16 %v5981, %v5980
      %v5989 = vpack.c.b16 %v5983, %v5982
      %v5990 = vpack.c.b16 %v5985, %v5984
      %v5991 = vpack.c.b16 %v5987, %v5986
      %v5993 = vsel %vm1993, %v5988, 0
      %v5996 = vsel %vm1993, %v5989, 0
      %v5999 = vsel %vm1993, %v5990, 0
      %v6002 = vsel %vm1993, %v5991, 0
      %6004 = vmatprep.subr.bf16.mxu0 %v5940
      %6005 = vmatpush1.bf16.msra.mxu0 %v5939
      %6006 = vmatprep.subr.bf16.mxu0 0
      %6007 = vmatpush1.bf16.msra.mxu0 0
      %6008 = vmatprep.subr.bf16.mxu0 0
      %6009 = vmatpush1.bf16.msra.mxu0 0
      %6010 = vmatprep.subr.bf16.mxu0 0
      %6011 = vmatpush1.bf16.msra.mxu0 0
      %6012 = vmatprep.subr.bf16.mxu0 0
      %6013 = vmatpush1.bf16.msra.mxu0 0
      %6014 = vmatprep.subr.bf16.mxu0 0
      %6015 = vmatpush1.bf16.msra.mxu0 0
      %6016 = vmatprep.subr.bf16.mxu0 0
      %6017 = vmatpush1.bf16.msra.mxu0 0
      %6018 = vmatprep.subr.bf16.mxu0 0
      %6019 = vmatpush1.bf16.msra.mxu0 0
      %6020 = vmatprep.subr.bf16.mxu0 0
      %6021 = vmatpush1.bf16.msra.mxu0 0
      %6022 = vmatprep.subr.bf16.mxu0 0
      %6023 = vmatpush1.bf16.msra.mxu0 0
      %6024 = vmatprep.subr.bf16.mxu0 0
      %6025 = vmatpush1.bf16.msra.mxu0 0
      %6026 = vmatprep.subr.bf16.mxu0 0
      %6027 = vmatpush1.bf16.msra.mxu0 0
      %6028 = vmatprep.subr.bf16.mxu0 0
      %6029 = vmatpush1.bf16.msra.mxu0 0
      %6030 = vmatprep.subr.bf16.mxu0 0
      %6031 = vmatpush1.bf16.msra.mxu0 0
      %6032 = vmatprep.subr.bf16.mxu0 0
      %6033 = vmatpush1.bf16.msra.mxu0 0
      %6034 = vmatprep.subr.bf16.mxu0 0
      %6035 = vmatpush1.bf16.msra.mxu0 0
      %6036 = vmatprep.mubr.bf16.mxu0 0
      %6037 = vmatmul.mubr.bf16.gmra.mrb[0].mxu0 %v5993
      %v6038 = vpop.f32.mrb[0].mxu0
      %v6039 = vadd.f32 0.0, %v6038
      %v6040 = vpop.f32.mrb[0].mxu0
      %v6041 = vadd.f32 0.0, %v6040
      %v6042 = vpop.f32.mrb[0].mxu0
      %v6043 = vadd.f32 0.0, %v6042
      %v6044 = vpop.f32.mrb[0].mxu0
      %v6045 = vadd.f32 0.0, %v6044
      %6046 = vmatprep.mubr.bf16.mxu0 0
      %6047 = vmatmul.mubr.bf16.gmra.mrb[0].mxu0 %v5996
      %v6048 = vpop.f32.mrb[0].mxu0
      %v6049 = vadd.f32 0.0, %v6048
      %v6050 = vpop.f32.mrb[0].mxu0
      %v6051 = vadd.f32 0.0, %v6050
      %v6052 = vpop.f32.mrb[0].mxu0
      %v6053 = vadd.f32 0.0, %v6052
      %v6054 = vpop.f32.mrb[0].mxu0
      %v6055 = vadd.f32 0.0, %v6054
      %6056 = vmatprep.mubr.bf16.mxu0 0
      %6057 = vmatmul.mubr.bf16.gmra.mrb[0].mxu0 %v5999
      %v6058 = vpop.f32.mrb[0].mxu0
      %v6059 = vadd.f32 0.0, %v6058
      %v6060 = vpop.f32.mrb[0].mxu0
      %v6061 = vadd.f32 0.0, %v6060
      %v6062 = vpop.f32.mrb[0].mxu0
      %v6063 = vadd.f32 0.0, %v6062
      %v6064 = vpop.f32.mrb[0].mxu0
      %v6065 = vadd.f32 0.0, %v6064
      %6066 = vmatprep.mubr.bf16.mxu0 0
      %6067 = vmatmul.mubr.bf16.gmra.mrb[0].mxu0 %v6002
      %v6068 = vpop.f32.mrb[0].mxu0
      %v6069 = vadd.f32 0.0, %v6068
      %v6070 = vpop.f32.mrb[0].mxu0
      %v6071 = vadd.f32 0.0, %v6070
      %v6072 = vpop.f32.mrb[0].mxu0
      %v6073 = vadd.f32 0.0, %v6072
      %v6074 = vpop.f32.mrb[0].mxu0
      %v6075 = vadd.f32 0.0, %v6074
      %6076 = vdwg.mxu0
      %v6077 = vadd.f32 %v5956, %v6039
      %v6078 = vadd.f32 %v5957, %v6041
      %v6079 = vadd.f32 %v5958, %v6043
      %v6080 = vadd.f32 %v5959, %v6045
      %v6081 = vadd.f32 %v5960, %v6049
      %v6082 = vadd.f32 %v5961, %v6051
      %v6083 = vadd.f32 %v5962, %v6053
      %v6084 = vadd.f32 %v5963, %v6055
      %v6085 = vadd.f32 %v5964, %v6059
      %v6086 = vadd.f32 %v5965, %v6061
      %v6087 = vadd.f32 %v5966, %v6063
      %v6088 = vadd.f32 %v5967, %v6065
      %v6089 = vadd.f32 %v5968, %v6069
      %v6090 = vadd.f32 %v5969, %v6071
      %v6091 = vadd.f32 %v5970, %v6073
      %v6092 = vadd.f32 %v5971, %v6075
      %6093 = vst [vmem:[#allocation2] sm:$0xff] %v6077
      %6094 = vst [vmem:[#allocation2 + $0x8] sm:$0xff] %v6078
      %6095 = vst [vmem:[#allocation2 + $0x10] sm:$0xff] %v6079
      %6096 = vst [vmem:[#allocation2 + $0x18] sm:$0xff] %v6080
      %6097 = vst [vmem:[#allocation2 + $0x20] sm:$0xff] %v6081
      %6098 = vst [vmem:[#allocation2 + $0x28] sm:$0xff] %v6082
      %6099 = vst [vmem:[#allocation2 + $0x30] sm:$0xff] %v6083
      %6100 = vst [vmem:[#allocation2 + $0x38] sm:$0xff] %v6084
      %6101 = vst [vmem:[#allocation2 + $0x40] sm:$0xff] %v6085
      %6102 = vst [vmem:[#allocation2 + $0x48] sm:$0xff] %v6086
      %6103 = vst [vmem:[#allocation2 + $0x50] sm:$0xff] %v6087
      %6104 = vst [vmem:[#allocation2 + $0x58] sm:$0xff] %v6088
      %6105 = vst [vmem:[#allocation2 + $0x60] sm:$0xff] %v6089
      %6106 = vst [vmem:[#allocation2 + $0x68] sm:$0xff] %v6090
      %6107 = vst [vmem:[#allocation2 + $0x70] sm:$0xff] %v6091
      %6108 = vst [vmem:[#allocation2 + $0x78] sm:$0xff] %v6092
      %v6109 = vld [vmem:[%s2111] sm:$0xff]
      %v6110 = vld [vmem:[%s2111 + $0x8] sm:$0xff]
      %v6111 = vld [vmem:[%s2111 + $0x10] sm:$0xff]
      %v6112 = vld [vmem:[%s2111 + $0x18] sm:$0xff]
      %v6113 = vld [vmem:[%s2111 + $0x20] sm:$0xff]
      %v6114 = vld [vmem:[%s2111 + $0x28] sm:$0xff]
      %v6115 = vld [vmem:[%s2111 + $0x30] sm:$0xff]
      %v6116 = vld [vmem:[%s2111 + $0x38] sm:$0xff]
      %v6117 = vld [vmem:[%s2111 + $0x40] sm:$0xff]
      %v6118 = vld [vmem:[%s2111 + $0x48] sm:$0xff]
      %v6119 = vld [vmem:[%s2111 + $0x50] sm:$0xff]
      %v6120 = vld [vmem:[%s2111 + $0x58] sm:$0xff]
      %v6121 = vld [vmem:[%s2111 + $0x60] sm:$0xff]
      %v6122 = vld [vmem:[%s2111 + $0x68] sm:$0xff]
      %v6123 = vld [vmem:[%s2111 + $0x70] sm:$0xff]
      %v6124 = vld [vmem:[%s2111 + $0x78] sm:$0xff]
      %6125 = vmatprep.subr.bf16.mxu0 %v5942
      %6126 = vmatpush1.bf16.msra.mxu0 %v5941
      %6127 = vmatprep.subr.bf16.mxu0 0
      %6128 = vmatpush1.bf16.msra.mxu0 0
      %6129 = vmatprep.subr.bf16.mxu0 0
      %6130 = vmatpush1.bf16.msra.mxu0 0
      %6131 = vmatprep.subr.bf16.mxu0 0
      %6132 = vmatpush1.bf16.msra.mxu0 0
      %6133 = vmatprep.subr.bf16.mxu0 0
      %6134 = vmatpush1.bf16.msra.mxu0 0
      %6135 = vmatprep.subr.bf16.mxu0 0
      %6136 = vmatpush1.bf16.msra.mxu0 0
      %6137 = vmatprep.subr.bf16.mxu0 0
      %6138 = vmatpush1.bf16.msra.mxu0 0
      %6139 = vmatprep.subr.bf16.mxu0 0
      %6140 = vmatpush1.bf16.msra.mxu0 0
      %6141 = vmatprep.subr.bf16.mxu0 0
      %6142 = vmatpush1.bf16.msra.mxu0 0
      %6143 = vmatprep.subr.bf16.mxu0 0
      %6144 = vmatpush1.bf16.msra.mxu0 0
      %6145 = vmatprep.subr.bf16.mxu0 0
      %6146 = vmatpush1.bf16.msra.mxu0 0
      %6147 = vmatprep.subr.bf16.mxu0 0
      %6148 = vmatpush1.bf16.msra.mxu0 0
      %6149 = vmatprep.subr.bf16.mxu0 0
      %6150 = vmatpush1.bf16.msra.mxu0 0
      %6151 = vmatprep.subr.bf16.mxu0 0
      %6152 = vmatpush1.bf16.msra.mxu0 0
      %6153 = vmatprep.subr.bf16.mxu0 0
      %6154 = vmatpush1.bf16.msra.mxu0 0
      %6155 = vmatprep.subr.bf16.mxu0 0
      %6156 = vmatpush1.bf16.msra.mxu0 0
      %6157 = vmatprep.mubr.bf16.mxu0 0
      %6158 = vmatmul.mubr.bf16.gmra.mrb[0].mxu0 %v5993
      %v6159 = vpop.f32.mrb[0].mxu0
      %v6160 = vadd.f32 0.0, %v6159
      %v6161 = vpop.f32.mrb[0].mxu0
      %v6162 = vadd.f32 0.0, %v6161
      %v6163 = vpop.f32.mrb[0].mxu0
      %v6164 = vadd.f32 0.0, %v6163
      %v6165 = vpop.f32.mrb[0].mxu0
      %v6166 = vadd.f32 0.0, %v6165
      %6167 = vmatprep.mubr.bf16.mxu0 0
      %6168 = vmatmul.mubr.bf16.gmra.mrb[0].mxu0 %v5996
      %v6169 = vpop.f32.mrb[0].mxu0
      %v6170 = vadd.f32 0.0, %v6169
      %v6171 = vpop.f32.mrb[0].mxu0
      %v6172 = vadd.f32 0.0, %v6171
      %v6173 = vpop.f32.mrb[0].mxu0
      %v6174 = vadd.f32 0.0, %v6173
      %v6175 = vpop.f32.mrb[0].mxu0
      %v6176 = vadd.f32 0.0, %v6175
      %6177 = vmatprep.mubr.bf16.mxu0 0
      %6178 = vmatmul.mubr.bf16.gmra.mrb[0].mxu0 %v5999
      %v6179 = vpop.f32.mrb[0].mxu0
      %v6180 = vadd.f32 0.0, %v6179
      %v6181 = vpop.f32.mrb[0].mxu0
      %v6182 = vadd.f32 0.0, %v6181
      %v6183 = vpop.f32.mrb[0].mxu0
      %v6184 = vadd.f32 0.0, %v6183
      %v6185 = vpop.f32.mrb[0].mxu0
      %v6186 = vadd.f32 0.0, %v6185
      %6187 = vmatprep.mubr.bf16.mxu0 0
      %6188 = vmatmul.mubr.bf16.gmra.mrb[0].mxu0 %v6002
      %v6189 = vpop.f32.mrb[0].mxu0
      %v6190 = vadd.f32 0.0, %v6189
      %v6191 = vpop.f32.mrb[0].mxu0
      %v6192 = vadd.f32 0.0, %v6191
      %v6193 = vpop.f32.mrb[0].mxu0
      %v6194 = vadd.f32 0.0, %v6193
      %v6195 = vpop.f32.mrb[0].mxu0
      %v6196 = vadd.f32 0.0, %v6195
      %6197 = vdwg.mxu0
      %v6198 = vadd.f32 %v6109, %v6160
      %v6199 = vadd.f32 %v6110, %v6162
      %v6200 = vadd.f32 %v6111, %v6164
      %v6201 = vadd.f32 %v6112, %v6166
      %v6202 = vadd.f32 %v6113, %v6170
      %v6203 = vadd.f32 %v6114, %v6172
      %v6204 = vadd.f32 %v6115, %v6174
      %v6205 = vadd.f32 %v6116, %v6176
      %v6206 = vadd.f32 %v6117, %v6180
      %v6207 = vadd.f32 %v6118, %v6182
      %v6208 = vadd.f32 %v6119, %v6184
      %v6209 = vadd.f32 %v6120, %v6186
      %v6210 = vadd.f32 %v6121, %v6190
      %v6211 = vadd.f32 %v6122, %v6192
      %v6212 = vadd.f32 %v6123, %v6194
      %v6213 = vadd.f32 %v6124, %v6196
      %6214 = vst [vmem:[%s2111] sm:$0xff] %v6198
      %6215 = vst [vmem:[%s2111 + $0x8] sm:$0xff] %v6199
      %6216 = vst [vmem:[%s2111 + $0x10] sm:$0xff] %v6200
      %6217 = vst [vmem:[%s2111 + $0x18] sm:$0xff] %v6201
      %6218 = vst [vmem:[%s2111 + $0x20] sm:$0xff] %v6202
      %6219 = vst [vmem:[%s2111 + $0x28] sm:$0xff] %v6203
      %6220 = vst [vmem:[%s2111 + $0x30] sm:$0xff] %v6204
      %6221 = vst [vmem:[%s2111 + $0x38] sm:$0xff] %v6205
      %6222 = vst [vmem:[%s2111 + $0x40] sm:$0xff] %v6206
      %6223 = vst [vmem:[%s2111 + $0x48] sm:$0xff] %v6207
      %6224 = vst [vmem:[%s2111 + $0x50] sm:$0xff] %v6208
      %6225 = vst [vmem:[%s2111 + $0x58] sm:$0xff] %v6209
      %6226 = vst [vmem:[%s2111 + $0x60] sm:$0xff] %v6210
      %6227 = vst [vmem:[%s2111 + $0x68] sm:$0xff] %v6211
      %6228 = vst [vmem:[%s2111 + $0x70] sm:$0xff] %v6212
      %6229 = vst [vmem:[%s2111 + $0x78] sm:$0xff] %v6213
      %v6230 = vld [vmem:[%s2233] sm:$0xff]
      %v6231 = vld [vmem:[%s2233 + $0x8] sm:$0xff]
      %v6232 = vld [vmem:[%s2233 + $0x10] sm:$0xff]
      %v6233 = vld [vmem:[%s2233 + $0x18] sm:$0xff]
      %v6234 = vld [vmem:[%s2233 + $0x20] sm:$0xff]
      %v6235 = vld [vmem:[%s2233 + $0x28] sm:$0xff]
      %v6236 = vld [vmem:[%s2233 + $0x30] sm:$0xff]
      %v6237 = vld [vmem:[%s2233 + $0x38] sm:$0xff]
      %v6238 = vld [vmem:[%s2233 + $0x40] sm:$0xff]
      %v6239 = vld [vmem:[%s2233 + $0x48] sm:$0xff]
      %v6240 = vld [vmem:[%s2233 + $0x50] sm:$0xff]
      %v6241 = vld [vmem:[%s2233 + $0x58] sm:$0xff]
      %v6242 = vld [vmem:[%s2233 + $0x60] sm:$0xff]
      %v6243 = vld [vmem:[%s2233 + $0x68] sm:$0xff]
      %v6244 = vld [vmem:[%s2233 + $0x70] sm:$0xff]
      %v6245 = vld [vmem:[%s2233 + $0x78] sm:$0xff]
      %6246 = vmatprep.subr.bf16.mxu0 %v5944
      %6247 = vmatpush1.bf16.msra.mxu0 %v5943
      %6248 = vmatprep.subr.bf16.mxu0 0
      %6249 = vmatpush1.bf16.msra.mxu0 0
      %6250 = vmatprep.subr.bf16.mxu0 0
      %6251 = vmatpush1.bf16.msra.mxu0 0
      %6252 = vmatprep.subr.bf16.mxu0 0
      %6253 = vmatpush1.bf16.msra.mxu0 0
      %6254 = vmatprep.subr.bf16.mxu0 0
      %6255 = vmatpush1.bf16.msra.mxu0 0
      %6256 = vmatprep.subr.bf16.mxu0 0
      %6257 = vmatpush1.bf16.msra.mxu0 0
      %6258 = vmatprep.subr.bf16.mxu0 0
      %6259 = vmatpush1.bf16.msra.mxu0 0
      %6260 = vmatprep.subr.bf16.mxu0 0
      %6261 = vmatpush1.bf16.msra.mxu0 0
      %6262 = vmatprep.subr.bf16.mxu0 0
      %6263 = vmatpush1.bf16.msra.mxu0 0
      %6264 = vmatprep.subr.bf16.mxu0 0
      %6265 = vmatpush1.bf16.msra.mxu0 0
      %6266 = vmatprep.subr.bf16.mxu0 0
      %6267 = vmatpush1.bf16.msra.mxu0 0
      %6268 = vmatprep.subr.bf16.mxu0 0
      %6269 = vmatpush1.bf16.msra.mxu0 0
      %6270 = vmatprep.subr.bf16.mxu0 0
      %6271 = vmatpush1.bf16.msra.mxu0 0
      %6272 = vmatprep.subr.bf16.mxu0 0
      %6273 = vmatpush1.bf16.msra.mxu0 0
      %6274 = vmatprep.subr.bf16.mxu0 0
      %6275 = vmatpush1.bf16.msra.mxu0 0
      %6276 = vmatprep.subr.bf16.mxu0 0
      %6277 = vmatpush1.bf16.msra.mxu0 0
      %6278 = vmatprep.mubr.bf16.mxu0 0
      %6279 = vmatmul.mubr.bf16.gmra.mrb[0].mxu0 %v5993
      %v6280 = vpop.f32.mrb[0].mxu0
      %v6281 = vadd.f32 0.0, %v6280
      %v6282 = vpop.f32.mrb[0].mxu0
      %v6283 = vadd.f32 0.0, %v6282
      %v6284 = vpop.f32.mrb[0].mxu0
      %v6285 = vadd.f32 0.0, %v6284
      %v6286 = vpop.f32.mrb[0].mxu0
      %v6287 = vadd.f32 0.0, %v6286
      %6288 = vmatprep.mubr.bf16.mxu0 0
      %6289 = vmatmul.mubr.bf16.gmra.mrb[0].mxu0 %v5996
      %v6290 = vpop.f32.mrb[0].mxu0
      %v6291 = vadd.f32 0.0, %v6290
      %v6292 = vpop.f32.mrb[0].mxu0
      %v6293 = vadd.f32 0.0, %v6292
      %v6294 = vpop.f32.mrb[0].mxu0
      %v6295 = vadd.f32 0.0, %v6294
      %v6296 = vpop.f32.mrb[0].mxu0
      %v6297 = vadd.f32 0.0, %v6296
      %6298 = vmatprep.mubr.bf16.mxu0 0
      %6299 = vmatmul.mubr.bf16.gmra.mrb[0].mxu0 %v5999
      %v6300 = vpop.f32.mrb[0].mxu0
      %v6301 = vadd.f32 0.0, %v6300
      %v6302 = vpop.f32.mrb[0].mxu0
      %v6303 = vadd.f32 0.0, %v6302
      %v6304 = vpop.f32.mrb[0].mxu0
      %v6305 = vadd.f32 0.0, %v6304
      %v6306 = vpop.f32.mrb[0].mxu0
      %v6307 = vadd.f32 0.0, %v6306
      %6308 = vmatprep.mubr.bf16.mxu0 0
      %6309 = vmatmul.mubr.bf16.gmra.mrb[0].mxu0 %v6002
      %v6310 = vpop.f32.mrb[0].mxu0
      %v6311 = vadd.f32 0.0, %v6310
      %v6312 = vpop.f32.mrb[0].mxu0
      %v6313 = vadd.f32 0.0, %v6312
      %v6314 = vpop.f32.mrb[0].mxu0
      %v6315 = vadd.f32 0.0, %v6314
      %v6316 = vpop.f32.mrb[0].mxu0
      %v6317 = vadd.f32 0.0, %v6316
      %6318 = vdwg.mxu0
      %v6319 = vadd.f32 %v6230, %v6281
      %v6320 = vadd.f32 %v6231, %v6283
      %v6321 = vadd.f32 %v6232, %v6285
      %v6322 = vadd.f32 %v6233, %v6287
      %v6323 = vadd.f32 %v6234, %v6291
      %v6324 = vadd.f32 %v6235, %v6293
      %v6325 = vadd.f32 %v6236, %v6295
      %v6326 = vadd.f32 %v6237, %v6297
      %v6327 = vadd.f32 %v6238, %v6301
      %v6328 = vadd.f32 %v6239, %v6303
      %v6329 = vadd.f32 %v6240, %v6305
      %v6330 = vadd.f32 %v6241, %v6307
      %v6331 = vadd.f32 %v6242, %v6311
      %v6332 = vadd.f32 %v6243, %v6313
      %v6333 = vadd.f32 %v6244, %v6315
      %v6334 = vadd.f32 %v6245, %v6317
      %6335 = vst [vmem:[%s2233] sm:$0xff] %v6319
      %6336 = vst [vmem:[%s2233 + $0x8] sm:$0xff] %v6320
      %6337 = vst [vmem:[%s2233 + $0x10] sm:$0xff] %v6321
      %6338 = vst [vmem:[%s2233 + $0x18] sm:$0xff] %v6322
      %6339 = vst [vmem:[%s2233 + $0x20] sm:$0xff] %v6323
      %6340 = vst [vmem:[%s2233 + $0x28] sm:$0xff] %v6324
      %6341 = vst [vmem:[%s2233 + $0x30] sm:$0xff] %v6325
      %6342 = vst [vmem:[%s2233 + $0x38] sm:$0xff] %v6326
      %6343 = vst [vmem:[%s2233 + $0x40] sm:$0xff] %v6327
      %6344 = vst [vmem:[%s2233 + $0x48] sm:$0xff] %v6328
      %6345 = vst [vmem:[%s2233 + $0x50] sm:$0xff] %v6329
      %6346 = vst [vmem:[%s2233 + $0x58] sm:$0xff] %v6330
      %6347 = vst [vmem:[%s2233 + $0x60] sm:$0xff] %v6331
      %6348 = vst [vmem:[%s2233 + $0x68] sm:$0xff] %v6332
      %6349 = vst [vmem:[%s2233 + $0x70] sm:$0xff] %v6333
      %6350 = vst [vmem:[%s2233 + $0x78] sm:$0xff] %v6334
      %v6351 = vld [vmem:[%s2355] sm:$0xff]
      %v6352 = vld [vmem:[%s2355 + $0x8] sm:$0xff]
      %v6353 = vld [vmem:[%s2355 + $0x10] sm:$0xff]
      %v6354 = vld [vmem:[%s2355 + $0x18] sm:$0xff]
      %v6355 = vld [vmem:[%s2355 + $0x20] sm:$0xff]
      %v6356 = vld [vmem:[%s2355 + $0x28] sm:$0xff]
      %v6357 = vld [vmem:[%s2355 + $0x30] sm:$0xff]
      %v6358 = vld [vmem:[%s2355 + $0x38] sm:$0xff]
      %v6359 = vld [vmem:[%s2355 + $0x40] sm:$0xff]
      %v6360 = vld [vmem:[%s2355 + $0x48] sm:$0xff]
      %v6361 = vld [vmem:[%s2355 + $0x50] sm:$0xff]
      %v6362 = vld [vmem:[%s2355 + $0x58] sm:$0xff]
      %v6363 = vld [vmem:[%s2355 + $0x60] sm:$0xff]
      %v6364 = vld [vmem:[%s2355 + $0x68] sm:$0xff]
      %v6365 = vld [vmem:[%s2355 + $0x70] sm:$0xff]
      %v6366 = vld [vmem:[%s2355 + $0x78] sm:$0xff]
      %6367 = vmatprep.subr.bf16.mxu0 %v5946
      %6368 = vmatpush1.bf16.msra.mxu0 %v5945
      %6369 = vmatprep.subr.bf16.mxu0 0
      %6370 = vmatpush1.bf16.msra.mxu0 0
      %6371 = vmatprep.subr.bf16.mxu0 0
      %6372 = vmatpush1.bf16.msra.mxu0 0
      %6373 = vmatprep.subr.bf16.mxu0 0
      %6374 = vmatpush1.bf16.msra.mxu0 0
      %6375 = vmatprep.subr.bf16.mxu0 0
      %6376 = vmatpush1.bf16.msra.mxu0 0
      %6377 = vmatprep.subr.bf16.mxu0 0
      %6378 = vmatpush1.bf16.msra.mxu0 0
      %6379 = vmatprep.subr.bf16.mxu0 0
      %6380 = vmatpush1.bf16.msra.mxu0 0
      %6381 = vmatprep.subr.bf16.mxu0 0
      %6382 = vmatpush1.bf16.msra.mxu0 0
      %6383 = vmatprep.subr.bf16.mxu0 0
      %6384 = vmatpush1.bf16.msra.mxu0 0
      %6385 = vmatprep.subr.bf16.mxu0 0
      %6386 = vmatpush1.bf16.msra.mxu0 0
      %6387 = vmatprep.subr.bf16.mxu0 0
      %6388 = vmatpush1.bf16.msra.mxu0 0
      %6389 = vmatprep.subr.bf16.mxu0 0
      %6390 = vmatpush1.bf16.msra.mxu0 0
      %6391 = vmatprep.subr.bf16.mxu0 0
      %6392 = vmatpush1.bf16.msra.mxu0 0
      %6393 = vmatprep.subr.bf16.mxu0 0
      %6394 = vmatpush1.bf16.msra.mxu0 0
      %6395 = vmatprep.subr.bf16.mxu0 0
      %6396 = vmatpush1.bf16.msra.mxu0 0
      %6397 = vmatprep.subr.bf16.mxu0 0
      %6398 = vmatpush1.bf16.msra.mxu0 0
      %6399 = vmatprep.mubr.bf16.mxu0 0
      %6400 = vmatmul.mubr.bf16.gmra.mrb[0].mxu0 %v5993
      %v6401 = vpop.f32.mrb[0].mxu0
      %v6402 = vadd.f32 0.0, %v6401
      %v6403 = vpop.f32.mrb[0].mxu0
      %v6404 = vadd.f32 0.0, %v6403
      %v6405 = vpop.f32.mrb[0].mxu0
      %v6406 = vadd.f32 0.0, %v6405
      %v6407 = vpop.f32.mrb[0].mxu0
      %v6408 = vadd.f32 0.0, %v6407
      %6409 = vmatprep.mubr.bf16.mxu0 0
      %6410 = vmatmul.mubr.bf16.gmra.mrb[0].mxu0 %v5996
      %v6411 = vpop.f32.mrb[0].mxu0
      %v6412 = vadd.f32 0.0, %v6411
      %v6413 = vpop.f32.mrb[0].mxu0
      %v6414 = vadd.f32 0.0, %v6413
      %v6415 = vpop.f32.mrb[0].mxu0
      %v6416 = vadd.f32 0.0, %v6415
      %v6417 = vpop.f32.mrb[0].mxu0
      %v6418 = vadd.f32 0.0, %v6417
      %6419 = vmatprep.mubr.bf16.mxu0 0
      %6420 = vmatmul.mubr.bf16.gmra.mrb[0].mxu0 %v5999
      %v6421 = vpop.f32.mrb[0].mxu0
      %v6422 = vadd.f32 0.0, %v6421
      %v6423 = vpop.f32.mrb[0].mxu0
      %v6424 = vadd.f32 0.0, %v6423
      %v6425 = vpop.f32.mrb[0].mxu0
      %v6426 = vadd.f32 0.0, %v6425
      %v6427 = vpop.f32.mrb[0].mxu0
      %v6428 = vadd.f32 0.0, %v6427
      %6429 = vmatprep.mubr.bf16.mxu0 0
      %6430 = vmatmul.mubr.bf16.gmra.mrb[0].mxu0 %v6002
      %v6431 = vpop.f32.mrb[0].mxu0
      %v6432 = vadd.f32 0.0, %v6431
      %v6433 = vpop.f32.mrb[0].mxu0
      %v6434 = vadd.f32 0.0, %v6433
      %v6435 = vpop.f32.mrb[0].mxu0
      %v6436 = vadd.f32 0.0, %v6435
      %v6437 = vpop.f32.mrb[0].mxu0
      %v6438 = vadd.f32 0.0, %v6437
      %6439 = vdwg.mxu0
      %v6440 = vadd.f32 %v6351, %v6402
      %v6441 = vadd.f32 %v6352, %v6404
      %v6442 = vadd.f32 %v6353, %v6406
      %v6443 = vadd.f32 %v6354, %v6408
      %v6444 = vadd.f32 %v6355, %v6412
      %v6445 = vadd.f32 %v6356, %v6414
      %v6446 = vadd.f32 %v6357, %v6416
      %v6447 = vadd.f32 %v6358, %v6418
      %v6448 = vadd.f32 %v6359, %v6422
      %v6449 = vadd.f32 %v6360, %v6424
      %v6450 = vadd.f32 %v6361, %v6426
      %v6451 = vadd.f32 %v6362, %v6428
      %v6452 = vadd.f32 %v6363, %v6432
      %v6453 = vadd.f32 %v6364, %v6434
      %v6454 = vadd.f32 %v6365, %v6436
      %v6455 = vadd.f32 %v6366, %v6438
      %6456 = vst [vmem:[%s2355] sm:$0xff] %v6440
      %6457 = vst [vmem:[%s2355 + $0x8] sm:$0xff] %v6441
      %6458 = vst [vmem:[%s2355 + $0x10] sm:$0xff] %v6442
      %6459 = vst [vmem:[%s2355 + $0x18] sm:$0xff] %v6443
      %6460 = vst [vmem:[%s2355 + $0x20] sm:$0xff] %v6444
      %6461 = vst [vmem:[%s2355 + $0x28] sm:$0xff] %v6445
      %6462 = vst [vmem:[%s2355 + $0x30] sm:$0xff] %v6446
      %6463 = vst [vmem:[%s2355 + $0x38] sm:$0xff] %v6447
      %6464 = vst [vmem:[%s2355 + $0x40] sm:$0xff] %v6448
      %6465 = vst [vmem:[%s2355 + $0x48] sm:$0xff] %v6449
      %6466 = vst [vmem:[%s2355 + $0x50] sm:$0xff] %v6450
      %6467 = vst [vmem:[%s2355 + $0x58] sm:$0xff] %v6451
      %6468 = vst [vmem:[%s2355 + $0x60] sm:$0xff] %v6452
      %6469 = vst [vmem:[%s2355 + $0x68] sm:$0xff] %v6453
      %6470 = vst [vmem:[%s2355 + $0x70] sm:$0xff] %v6454
      %6471 = vst [vmem:[%s2355 + $0x78] sm:$0xff] %v6455
      %s6472 = scalar_lea.vmem %s5, 1536
      %v6473 = vld [vmem:[%s6472] sm:$0xff]
      %v6474 = vld [vmem:[%s6472 + $0x8] sm:$0xff]
      %v6475 = vld [vmem:[%s6472 + $0x10] sm:$0xff]
      %v6476 = vld [vmem:[%s6472 + $0x18] sm:$0xff]
      %v6477 = vld [vmem:[%s6472 + $0x20] sm:$0xff]
      %v6478 = vld [vmem:[%s6472 + $0x28] sm:$0xff]
      %v6479 = vld [vmem:[%s6472 + $0x30] sm:$0xff]
      %v6480 = vld [vmem:[%s6472 + $0x38] sm:$0xff]
      %v6481 = vld [vmem:[%s6472 + $0x40] sm:$0xff]
      %v6482 = vld [vmem:[%s6472 + $0x48] sm:$0xff]
      %v6483 = vld [vmem:[%s6472 + $0x50] sm:$0xff]
      %v6484 = vld [vmem:[%s6472 + $0x58] sm:$0xff]
      %v6485 = vld [vmem:[%s6472 + $0x60] sm:$0xff]
      %v6486 = vld [vmem:[%s6472 + $0x68] sm:$0xff]
      %v6487 = vld [vmem:[%s6472 + $0x70] sm:$0xff]
      %v6488 = vld [vmem:[%s6472 + $0x78] sm:$0xff]
      %v6489 = vld [vmem:[%s6472 + $0x80] sm:$0xff]
      %v6490 = vld [vmem:[%s6472 + $0x88] sm:$0xff]
      %v6491 = vld [vmem:[%s6472 + $0x90] sm:$0xff]
      %v6492 = vld [vmem:[%s6472 + $0x98] sm:$0xff]
      %v6493 = vld [vmem:[%s6472 + $0xa0] sm:$0xff]
      %v6494 = vld [vmem:[%s6472 + $0xa8] sm:$0xff]
      %v6495 = vld [vmem:[%s6472 + $0xb0] sm:$0xff]
      %v6496 = vld [vmem:[%s6472 + $0xb8] sm:$0xff]
      %v6497 = vld [vmem:[%s6472 + $0xc0] sm:$0xff]
      %v6498 = vld [vmem:[%s6472 + $0xc8] sm:$0xff]
      %v6499 = vld [vmem:[%s6472 + $0xd0] sm:$0xff]
      %v6500 = vld [vmem:[%s6472 + $0xd8] sm:$0xff]
      %v6501 = vld [vmem:[%s6472 + $0xe0] sm:$0xff]
      %v6502 = vld [vmem:[%s6472 + $0xe8] sm:$0xff]
      %v6503 = vld [vmem:[%s6472 + $0xf0] sm:$0xff]
      %v6504 = vld [vmem:[%s6472 + $0xf8] sm:$0xff]
      %v6537 = vunpack.c.l.b16 %v6473
      %v6538 = vunpack.c.h.b16 %v6473
      %v6539 = vunpack.c.l.b16 %v6474
      %v6540 = vunpack.c.h.b16 %v6474
      %v6541 = vunpack.c.l.b16 %v6475
      %v6542 = vunpack.c.h.b16 %v6475
      %v6543 = vunpack.c.l.b16 %v6476
      %v6544 = vunpack.c.h.b16 %v6476
      %v6545 = vunpack.c.l.b16 %v6477
      %v6546 = vunpack.c.h.b16 %v6477
      %v6547 = vunpack.c.l.b16 %v6478
      %v6548 = vunpack.c.h.b16 %v6478
      %v6549 = vunpack.c.l.b16 %v6479
      %v6550 = vunpack.c.h.b16 %v6479
      %v6551 = vunpack.c.l.b16 %v6480
      %v6552 = vunpack.c.h.b16 %v6480
      %v6553 = vunpack.c.l.b16 %v6481
      %v6554 = vunpack.c.h.b16 %v6481
      %v6555 = vunpack.c.l.b16 %v6482
      %v6556 = vunpack.c.h.b16 %v6482
      %v6557 = vunpack.c.l.b16 %v6483
      %v6558 = vunpack.c.h.b16 %v6483
      %v6559 = vunpack.c.l.b16 %v6484
      %v6560 = vunpack.c.h.b16 %v6484
      %v6561 = vunpack.c.l.b16 %v6485
      %v6562 = vunpack.c.h.b16 %v6485
      %v6563 = vunpack.c.l.b16 %v6486
      %v6564 = vunpack.c.h.b16 %v6486
      %v6565 = vunpack.c.l.b16 %v6487
      %v6566 = vunpack.c.h.b16 %v6487
      %v6567 = vunpack.c.l.b16 %v6488
      %v6568 = vunpack.c.h.b16 %v6488
      %v6569 = vunpack.c.l.b16 %v6489
      %v6570 = vunpack.c.h.b16 %v6489
      %v6571 = vunpack.c.l.b16 %v6490
      %v6572 = vunpack.c.h.b16 %v6490
      %v6573 = vunpack.c.l.b16 %v6491
      %v6574 = vunpack.c.h.b16 %v6491
      %v6575 = vunpack.c.l.b16 %v6492
      %v6576 = vunpack.c.h.b16 %v6492
      %v6577 = vunpack.c.l.b16 %v6493
      %v6578 = vunpack.c.h.b16 %v6493
      %v6579 = vunpack.c.l.b16 %v6494
      %v6580 = vunpack.c.h.b16 %v6494
      %v6581 = vunpack.c.l.b16 %v6495
      %v6582 = vunpack.c.h.b16 %v6495
      %v6583 = vunpack.c.l.b16 %v6496
      %v6584 = vunpack.c.h.b16 %v6496
      %v6585 = vunpack.c.l.b16 %v6497
      %v6586 = vunpack.c.h.b16 %v6497
      %v6587 = vunpack.c.l.b16 %v6498
      %v6588 = vunpack.c.h.b16 %v6498
      %v6589 = vunpack.c.l.b16 %v6499
      %v6590 = vunpack.c.h.b16 %v6499
      %v6591 = vunpack.c.l.b16 %v6500
      %v6592 = vunpack.c.h.b16 %v6500
      %v6593 = vunpack.c.l.b16 %v6501
      %v6594 = vunpack.c.h.b16 %v6501
      %v6595 = vunpack.c.l.b16 %v6502
      %v6596 = vunpack.c.h.b16 %v6502
      %v6597 = vunpack.c.l.b16 %v6503
      %v6598 = vunpack.c.h.b16 %v6503
      %v6599 = vunpack.c.l.b16 %v6504
      %v6600 = vunpack.c.h.b16 %v6504
      %v6601 = vpack.c.b16 %v6539, %v6537
      %v6602 = vpack.c.b16 %v6540, %v6538
      %v6603 = vpack.c.b16 %v6543, %v6541
      %v6604 = vpack.c.b16 %v6544, %v6542
      %v6605 = vpack.c.b16 %v6547, %v6545
      %v6606 = vpack.c.b16 %v6548, %v6546
      %v6607 = vpack.c.b16 %v6551, %v6549
      %v6608 = vpack.c.b16 %v6552, %v6550
      %v6609 = vpack.c.b16 %v6555, %v6553
      %v6610 = vpack.c.b16 %v6556, %v6554
      %v6611 = vpack.c.b16 %v6559, %v6557
      %v6612 = vpack.c.b16 %v6560, %v6558
      %v6613 = vpack.c.b16 %v6563, %v6561
      %v6614 = vpack.c.b16 %v6564, %v6562
      %v6615 = vpack.c.b16 %v6567, %v6565
      %v6616 = vpack.c.b16 %v6568, %v6566
      %v6617 = vpack.c.b16 %v6571, %v6569
      %v6618 = vpack.c.b16 %v6572, %v6570
      %v6619 = vpack.c.b16 %v6575, %v6573
      %v6620 = vpack.c.b16 %v6576, %v6574
      %v6621 = vpack.c.b16 %v6579, %v6577
      %v6622 = vpack.c.b16 %v6580, %v6578
      %v6623 = vpack.c.b16 %v6583, %v6581
      %v6624 = vpack.c.b16 %v6584, %v6582
      %v6625 = vpack.c.b16 %v6587, %v6585
      %v6626 = vpack.c.b16 %v6588, %v6586
      %v6627 = vpack.c.b16 %v6591, %v6589
      %v6628 = vpack.c.b16 %v6592, %v6590
      %v6629 = vpack.c.b16 %v6595, %v6593
      %v6630 = vpack.c.b16 %v6596, %v6594
      %v6631 = vpack.c.b16 %v6599, %v6597
      %v6632 = vpack.c.b16 %v6600, %v6598
      %6665 = vmatprep.subr.bf16.mxu0 %v6602
      %6666 = vmatpush1.bf16.msra.mxu0 %v6601
      %6667 = vmatprep.subr.bf16.mxu0 %v6604
      %6668 = vmatpush1.bf16.msra.mxu0 %v6603
      %6669 = vmatprep.subr.bf16.mxu0 %v6606
      %6670 = vmatpush1.bf16.msra.mxu0 %v6605
      %6671 = vmatprep.subr.bf16.mxu0 %v6608
      %6672 = vmatpush1.bf16.msra.mxu0 %v6607
      %6673 = vmatprep.subr.bf16.mxu0 %v6610
      %6674 = vmatpush1.bf16.msra.mxu0 %v6609
      %6675 = vmatprep.subr.bf16.mxu0 %v6612
      %6676 = vmatpush1.bf16.msra.mxu0 %v6611
      %6677 = vmatprep.subr.bf16.mxu0 %v6614
      %6678 = vmatpush1.bf16.msra.mxu0 %v6613
      %6679 = vmatprep.subr.bf16.mxu0 %v6616
      %6680 = vmatpush1.bf16.msra.mxu0 %v6615
      %6681 = vmatprep.subr.bf16.mxu0 %v6618
      %6682 = vmatpush1.bf16.msra.mxu0 %v6617
      %6683 = vmatprep.subr.bf16.mxu0 %v6620
      %6684 = vmatpush1.bf16.msra.mxu0 %v6619
      %6685 = vmatprep.subr.bf16.mxu0 %v6622
      %6686 = vmatpush1.bf16.msra.mxu0 %v6621
      %6687 = vmatprep.subr.bf16.mxu0 %v6624
      %6688 = vmatpush1.bf16.msra.mxu0 %v6623
      %6689 = vmatprep.subr.bf16.mxu0 %v6626
      %6690 = vmatpush1.bf16.msra.mxu0 %v6625
      %6691 = vmatprep.subr.bf16.mxu0 %v6628
      %6692 = vmatpush1.bf16.msra.mxu0 %v6627
      %6693 = vmatprep.subr.bf16.mxu0 %v6630
      %6694 = vmatpush1.bf16.msra.mxu0 %v6629
      %6695 = vmatprep.subr.bf16.mxu0 %v6632
      %6696 = vmatpush1.bf16.msra.mxu0 %v6631
      %6697 = vmatprep.mubr.bf16.mxu0 %v1605
      %6698 = vmatmul.mubr.bf16.gmra.mrb[0].mxu0 %v1604
      %v6699 = vpop.f32.mrb[0].mxu0
      %v6700 = vadd.f32 0.0, %v6699
      %v6701 = vpop.f32.mrb[0].mxu0
      %v6702 = vadd.f32 0.0, %v6701
      %v6703 = vpop.f32.mrb[0].mxu0
      %v6704 = vadd.f32 0.0, %v6703
      %v6705 = vpop.f32.mrb[0].mxu0
      %v6706 = vadd.f32 0.0, %v6705
      %6707 = vmatprep.mubr.bf16.mxu0 %v1607
      %6708 = vmatmul.mubr.bf16.gmra.mrb[0].mxu0 %v1606
      %v6709 = vpop.f32.mrb[0].mxu0
      %v6710 = vadd.f32 0.0, %v6709
      %v6711 = vpop.f32.mrb[0].mxu0
      %v6712 = vadd.f32 0.0, %v6711
      %v6713 = vpop.f32.mrb[0].mxu0
      %v6714 = vadd.f32 0.0, %v6713
      %v6715 = vpop.f32.mrb[0].mxu0
      %v6716 = vadd.f32 0.0, %v6715
      %6717 = vmatprep.mubr.bf16.mxu0 %v1609
      %6718 = vmatmul.mubr.bf16.gmra.mrb[0].mxu0 %v1608
      %v6719 = vpop.f32.mrb[0].mxu0
      %v6720 = vadd.f32 0.0, %v6719
      %v6721 = vpop.f32.mrb[0].mxu0
      %v6722 = vadd.f32 0.0, %v6721
      %v6723 = vpop.f32.mrb[0].mxu0
      %v6724 = vadd.f32 0.0, %v6723
      %v6725 = vpop.f32.mrb[0].mxu0
      %v6726 = vadd.f32 0.0, %v6725
      %6727 = vmatprep.mubr.bf16.mxu0 %v1611
      %6728 = vmatmul.mubr.bf16.gmra.mrb[0].mxu0 %v1610
      %v6729 = vpop.f32.mrb[0].mxu0
      %v6730 = vadd.f32 0.0, %v6729
      %v6731 = vpop.f32.mrb[0].mxu0
      %v6732 = vadd.f32 0.0, %v6731
      %v6733 = vpop.f32.mrb[0].mxu0
      %v6734 = vadd.f32 0.0, %v6733
      %v6735 = vpop.f32.mrb[0].mxu0
      %v6736 = vadd.f32 0.0, %v6735
      %6737 = vdwg.mxu0
      %v6738 = vpack.c.bf16 %v6704, %v6700
      %v6739 = vpack.c.bf16 %v6706, %v6702
      %v6740 = vpack.c.bf16 %v6714, %v6710
      %v6741 = vpack.c.bf16 %v6716, %v6712
      %v6742 = vpack.c.bf16 %v6724, %v6720
      %v6743 = vpack.c.bf16 %v6726, %v6722
      %v6744 = vpack.c.bf16 %v6734, %v6730
      %v6745 = vpack.c.bf16 %v6736, %v6732
      %s6746 = scalar_lea.vmem %s4, 192
      %v6747 = vld [vmem:[%s6746] sm:$0xf]
      %v6748 = vld [vmem:[%s6746 + $0x4] sm:$0xf]
      %v6749 = vld [vmem:[%s6746 + $0x8] sm:$0xf]
      %v6750 = vld [vmem:[%s6746 + $0xc] sm:$0xf]
      %v6751 = vld [vmem:[%s6746 + $0x10] sm:$0xf]
      %v6752 = vld [vmem:[%s6746 + $0x14] sm:$0xf]
      %v6753 = vld [vmem:[%s6746 + $0x18] sm:$0xf]
      %v6754 = vld [vmem:[%s6746 + $0x1c] sm:$0xf]
      %v6755 = vld [vmem:[#allocation2] sm:$0xff]
      %v6756 = vld [vmem:[#allocation2 + $0x8] sm:$0xff]
      %v6757 = vld [vmem:[#allocation2 + $0x10] sm:$0xff]
      %v6758 = vld [vmem:[#allocation2 + $0x18] sm:$0xff]
      %v6759 = vld [vmem:[#allocation2 + $0x20] sm:$0xff]
      %v6760 = vld [vmem:[#allocation2 + $0x28] sm:$0xff]
      %v6761 = vld [vmem:[#allocation2 + $0x30] sm:$0xff]
      %v6762 = vld [vmem:[#allocation2 + $0x38] sm:$0xff]
      %v6763 = vld [vmem:[#allocation2 + $0x40] sm:$0xff]
      %v6764 = vld [vmem:[#allocation2 + $0x48] sm:$0xff]
      %v6765 = vld [vmem:[#allocation2 + $0x50] sm:$0xff]
      %v6766 = vld [vmem:[#allocation2 + $0x58] sm:$0xff]
      %v6767 = vld [vmem:[#allocation2 + $0x60] sm:$0xff]
      %v6768 = vld [vmem:[#allocation2 + $0x68] sm:$0xff]
      %v6769 = vld [vmem:[#allocation2 + $0x70] sm:$0xff]
      %v6770 = vld [vmem:[#allocation2 + $0x78] sm:$0xff]
      %v6779 = vunpack.c.l.b16 %v6747
      %v6780 = vunpack.c.l.b16 %v6748
      %v6781 = vunpack.c.l.b16 %v6749
      %v6782 = vunpack.c.l.b16 %v6750
      %v6783 = vunpack.c.l.b16 %v6751
      %v6784 = vunpack.c.l.b16 %v6752
      %v6785 = vunpack.c.l.b16 %v6753
      %v6786 = vunpack.c.l.b16 %v6754
      %v6787 = vpack.c.b16 %v6780, %v6779
      %v6788 = vpack.c.b16 %v6782, %v6781
      %v6789 = vpack.c.b16 %v6784, %v6783
      %v6790 = vpack.c.b16 %v6786, %v6785
      %v6792 = vsel %vm1993, %v6787, 0
      %v6795 = vsel %vm1993, %v6788, 0
      %v6798 = vsel %vm1993, %v6789, 0
      %v6801 = vsel %vm1993, %v6790, 0
      %6803 = vmatprep.subr.bf16.mxu0 %v6739
      %6804 = vmatpush1.bf16.msra.mxu0 %v6738
      %6805 = vmatprep.subr.bf16.mxu0 0
      %6806 = vmatpush1.bf16.msra.mxu0 0
      %6807 = vmatprep.subr.bf16.mxu0 0
      %6808 = vmatpush1.bf16.msra.mxu0 0
      %6809 = vmatprep.subr.bf16.mxu0 0
      %6810 = vmatpush1.bf16.msra.mxu0 0
      %6811 = vmatprep.subr.bf16.mxu0 0
      %6812 = vmatpush1.bf16.msra.mxu0 0
      %6813 = vmatprep.subr.bf16.mxu0 0
      %6814 = vmatpush1.bf16.msra.mxu0 0
      %6815 = vmatprep.subr.bf16.mxu0 0
      %6816 = vmatpush1.bf16.msra.mxu0 0
      %6817 = vmatprep.subr.bf16.mxu0 0
      %6818 = vmatpush1.bf16.msra.mxu0 0
      %6819 = vmatprep.subr.bf16.mxu0 0
      %6820 = vmatpush1.bf16.msra.mxu0 0
      %6821 = vmatprep.subr.bf16.mxu0 0
      %6822 = vmatpush1.bf16.msra.mxu0 0
      %6823 = vmatprep.subr.bf16.mxu0 0
      %6824 = vmatpush1.bf16.msra.mxu0 0
      %6825 = vmatprep.subr.bf16.mxu0 0
      %6826 = vmatpush1.bf16.msra.mxu0 0
      %6827 = vmatprep.subr.bf16.mxu0 0
      %6828 = vmatpush1.bf16.msra.mxu0 0
      %6829 = vmatprep.subr.bf16.mxu0 0
      %6830 = vmatpush1.bf16.msra.mxu0 0
      %6831 = vmatprep.subr.bf16.mxu0 0
      %6832 = vmatpush1.bf16.msra.mxu0 0
      %6833 = vmatprep.subr.bf16.mxu0 0
      %6834 = vmatpush1.bf16.msra.mxu0 0
      %6835 = vmatprep.mubr.bf16.mxu0 0
      %6836 = vmatmul.mubr.bf16.gmra.mrb[0].mxu0 %v6792
      %v6837 = vpop.f32.mrb[0].mxu0
      %v6838 = vadd.f32 0.0, %v6837
      %v6839 = vpop.f32.mrb[0].mxu0
      %v6840 = vadd.f32 0.0, %v6839
      %v6841 = vpop.f32.mrb[0].mxu0
      %v6842 = vadd.f32 0.0, %v6841
      %v6843 = vpop.f32.mrb[0].mxu0
      %v6844 = vadd.f32 0.0, %v6843
      %6845 = vmatprep.mubr.bf16.mxu0 0
      %6846 = vmatmul.mubr.bf16.gmra.mrb[0].mxu0 %v6795
      %v6847 = vpop.f32.mrb[0].mxu0
      %v6848 = vadd.f32 0.0, %v6847
      %v6849 = vpop.f32.mrb[0].mxu0
      %v6850 = vadd.f32 0.0, %v6849
      %v6851 = vpop.f32.mrb[0].mxu0
      %v6852 = vadd.f32 0.0, %v6851
      %v6853 = vpop.f32.mrb[0].mxu0
      %v6854 = vadd.f32 0.0, %v6853
      %6855 = vmatprep.mubr.bf16.mxu0 0
      %6856 = vmatmul.mubr.bf16.gmra.mrb[0].mxu0 %v6798
      %v6857 = vpop.f32.mrb[0].mxu0
      %v6858 = vadd.f32 0.0, %v6857
      %v6859 = vpop.f32.mrb[0].mxu0
      %v6860 = vadd.f32 0.0, %v6859
      %v6861 = vpop.f32.mrb[0].mxu0
      %v6862 = vadd.f32 0.0, %v6861
      %v6863 = vpop.f32.mrb[0].mxu0
      %v6864 = vadd.f32 0.0, %v6863
      %6865 = vmatprep.mubr.bf16.mxu0 0
      %6866 = vmatmul.mubr.bf16.gmra.mrb[0].mxu0 %v6801
      %v6867 = vpop.f32.mrb[0].mxu0
      %v6868 = vadd.f32 0.0, %v6867
      %v6869 = vpop.f32.mrb[0].mxu0
      %v6870 = vadd.f32 0.0, %v6869
      %v6871 = vpop.f32.mrb[0].mxu0
      %v6872 = vadd.f32 0.0, %v6871
      %v6873 = vpop.f32.mrb[0].mxu0
      %v6874 = vadd.f32 0.0, %v6873
      %6875 = vdwg.mxu0
      %v6876 = vadd.f32 %v6755, %v6838
      %v6877 = vadd.f32 %v6756, %v6840
      %v6878 = vadd.f32 %v6757, %v6842
      %v6879 = vadd.f32 %v6758, %v6844
      %v6880 = vadd.f32 %v6759, %v6848
      %v6881 = vadd.f32 %v6760, %v6850
      %v6882 = vadd.f32 %v6761, %v6852
      %v6883 = vadd.f32 %v6762, %v6854
      %v6884 = vadd.f32 %v6763, %v6858
      %v6885 = vadd.f32 %v6764, %v6860
      %v6886 = vadd.f32 %v6765, %v6862
      %v6887 = vadd.f32 %v6766, %v6864
      %v6888 = vadd.f32 %v6767, %v6868
      %v6889 = vadd.f32 %v6768, %v6870
      %v6890 = vadd.f32 %v6769, %v6872
      %v6891 = vadd.f32 %v6770, %v6874
      %6892 = vst [vmem:[#allocation2] sm:$0xff] %v6876
      %6893 = vst [vmem:[#allocation2 + $0x8] sm:$0xff] %v6877
      %6894 = vst [vmem:[#allocation2 + $0x10] sm:$0xff] %v6878
      %6895 = vst [vmem:[#allocation2 + $0x18] sm:$0xff] %v6879
      %6896 = vst [vmem:[#allocation2 + $0x20] sm:$0xff] %v6880
      %6897 = vst [vmem:[#allocation2 + $0x28] sm:$0xff] %v6881
      %6898 = vst [vmem:[#allocation2 + $0x30] sm:$0xff] %v6882
      %6899 = vst [vmem:[#allocation2 + $0x38] sm:$0xff] %v6883
      %6900 = vst [vmem:[#allocation2 + $0x40] sm:$0xff] %v6884
      %6901 = vst [vmem:[#allocation2 + $0x48] sm:$0xff] %v6885
      %6902 = vst [vmem:[#allocation2 + $0x50] sm:$0xff] %v6886
      %6903 = vst [vmem:[#allocation2 + $0x58] sm:$0xff] %v6887
      %6904 = vst [vmem:[#allocation2 + $0x60] sm:$0xff] %v6888
      %6905 = vst [vmem:[#allocation2 + $0x68] sm:$0xff] %v6889
      %6906 = vst [vmem:[#allocation2 + $0x70] sm:$0xff] %v6890
      %6907 = vst [vmem:[#allocation2 + $0x78] sm:$0xff] %v6891
      %v6908 = vld [vmem:[%s2111] sm:$0xff]
      %v6909 = vld [vmem:[%s2111 + $0x8] sm:$0xff]
      %v6910 = vld [vmem:[%s2111 + $0x10] sm:$0xff]
      %v6911 = vld [vmem:[%s2111 + $0x18] sm:$0xff]
      %v6912 = vld [vmem:[%s2111 + $0x20] sm:$0xff]
      %v6913 = vld [vmem:[%s2111 + $0x28] sm:$0xff]
      %v6914 = vld [vmem:[%s2111 + $0x30] sm:$0xff]
      %v6915 = vld [vmem:[%s2111 + $0x38] sm:$0xff]
      %v6916 = vld [vmem:[%s2111 + $0x40] sm:$0xff]
      %v6917 = vld [vmem:[%s2111 + $0x48] sm:$0xff]
      %v6918 = vld [vmem:[%s2111 + $0x50] sm:$0xff]
      %v6919 = vld [vmem:[%s2111 + $0x58] sm:$0xff]
      %v6920 = vld [vmem:[%s2111 + $0x60] sm:$0xff]
      %v6921 = vld [vmem:[%s2111 + $0x68] sm:$0xff]
      %v6922 = vld [vmem:[%s2111 + $0x70] sm:$0xff]
      %v6923 = vld [vmem:[%s2111 + $0x78] sm:$0xff]
      %6924 = vmatprep.subr.bf16.mxu0 %v6741
      %6925 = vmatpush1.bf16.msra.mxu0 %v6740
      %6926 = vmatprep.subr.bf16.mxu0 0
      %6927 = vmatpush1.bf16.msra.mxu0 0
      %6928 = vmatprep.subr.bf16.mxu0 0
      %6929 = vmatpush1.bf16.msra.mxu0 0
      %6930 = vmatprep.subr.bf16.mxu0 0
      %6931 = vmatpush1.bf16.msra.mxu0 0
      %6932 = vmatprep.subr.bf16.mxu0 0
      %6933 = vmatpush1.bf16.msra.mxu0 0
      %6934 = vmatprep.subr.bf16.mxu0 0
      %6935 = vmatpush1.bf16.msra.mxu0 0
      %6936 = vmatprep.subr.bf16.mxu0 0
      %6937 = vmatpush1.bf16.msra.mxu0 0
      %6938 = vmatprep.subr.bf16.mxu0 0
      %6939 = vmatpush1.bf16.msra.mxu0 0
      %6940 = vmatprep.subr.bf16.mxu0 0
      %6941 = vmatpush1.bf16.msra.mxu0 0
      %6942 = vmatprep.subr.bf16.mxu0 0
      %6943 = vmatpush1.bf16.msra.mxu0 0
      %6944 = vmatprep.subr.bf16.mxu0 0
      %6945 = vmatpush1.bf16.msra.mxu0 0
      %6946 = vmatprep.subr.bf16.mxu0 0
      %6947 = vmatpush1.bf16.msra.mxu0 0
      %6948 = vmatprep.subr.bf16.mxu0 0
      %6949 = vmatpush1.bf16.msra.mxu0 0
      %6950 = vmatprep.subr.bf16.mxu0 0
      %6951 = vmatpush1.bf16.msra.mxu0 0
      %6952 = vmatprep.subr.bf16.mxu0 0
      %6953 = vmatpush1.bf16.msra.mxu0 0
      %6954 = vmatprep.subr.bf16.mxu0 0
      %6955 = vmatpush1.bf16.msra.mxu0 0
      %6956 = vmatprep.mubr.bf16.mxu0 0
      %6957 = vmatmul.mubr.bf16.gmra.mrb[0].mxu0 %v6792
      %v6958 = vpop.f32.mrb[0].mxu0
      %v6959 = vadd.f32 0.0, %v6958
      %v6960 = vpop.f32.mrb[0].mxu0
      %v6961 = vadd.f32 0.0, %v6960
      %v6962 = vpop.f32.mrb[0].mxu0
      %v6963 = vadd.f32 0.0, %v6962
      %v6964 = vpop.f32.mrb[0].mxu0
      %v6965 = vadd.f32 0.0, %v6964
      %6966 = vmatprep.mubr.bf16.mxu0 0
      %6967 = vmatmul.mubr.bf16.gmra.mrb[0].mxu0 %v6795
      %v6968 = vpop.f32.mrb[0].mxu0
      %v6969 = vadd.f32 0.0, %v6968
      %v6970 = vpop.f32.mrb[0].mxu0
      %v6971 = vadd.f32 0.0, %v6970
      %v6972 = vpop.f32.mrb[0].mxu0
      %v6973 = vadd.f32 0.0, %v6972
      %v6974 = vpop.f32.mrb[0].mxu0
      %v6975 = vadd.f32 0.0, %v6974
      %6976 = vmatprep.mubr.bf16.mxu0 0
      %6977 = vmatmul.mubr.bf16.gmra.mrb[0].mxu0 %v6798
      %v6978 = vpop.f32.mrb[0].mxu0
      %v6979 = vadd.f32 0.0, %v6978
      %v6980 = vpop.f32.mrb[0].mxu0
      %v6981 = vadd.f32 0.0, %v6980
      %v6982 = vpop.f32.mrb[0].mxu0
      %v6983 = vadd.f32 0.0, %v6982
      %v6984 = vpop.f32.mrb[0].mxu0
      %v6985 = vadd.f32 0.0, %v6984
      %6986 = vmatprep.mubr.bf16.mxu0 0
      %6987 = vmatmul.mubr.bf16.gmra.mrb[0].mxu0 %v6801
      %v6988 = vpop.f32.mrb[0].mxu0
      %v6989 = vadd.f32 0.0, %v6988
      %v6990 = vpop.f32.mrb[0].mxu0
      %v6991 = vadd.f32 0.0, %v6990
      %v6992 = vpop.f32.mrb[0].mxu0
      %v6993 = vadd.f32 0.0, %v6992
      %v6994 = vpop.f32.mrb[0].mxu0
      %v6995 = vadd.f32 0.0, %v6994
      %6996 = vdwg.mxu0
      %v6997 = vadd.f32 %v6908, %v6959
      %v6998 = vadd.f32 %v6909, %v6961
      %v6999 = vadd.f32 %v6910, %v6963
      %v7000 = vadd.f32 %v6911, %v6965
      %v7001 = vadd.f32 %v6912, %v6969
      %v7002 = vadd.f32 %v6913, %v6971
      %v7003 = vadd.f32 %v6914, %v6973
      %v7004 = vadd.f32 %v6915, %v6975
      %v7005 = vadd.f32 %v6916, %v6979
      %v7006 = vadd.f32 %v6917, %v6981
      %v7007 = vadd.f32 %v6918, %v6983
      %v7008 = vadd.f32 %v6919, %v6985
      %v7009 = vadd.f32 %v6920, %v6989
      %v7010 = vadd.f32 %v6921, %v6991
      %v7011 = vadd.f32 %v6922, %v6993
      %v7012 = vadd.f32 %v6923, %v6995
      %7013 = vst [vmem:[%s2111] sm:$0xff] %v6997
      %7014 = vst [vmem:[%s2111 + $0x8] sm:$0xff] %v6998
      %7015 = vst [vmem:[%s2111 + $0x10] sm:$0xff] %v6999
      %7016 = vst [vmem:[%s2111 + $0x18] sm:$0xff] %v7000
      %7017 = vst [vmem:[%s2111 + $0x20] sm:$0xff] %v7001
      %7018 = vst [vmem:[%s2111 + $0x28] sm:$0xff] %v7002
      %7019 = vst [vmem:[%s2111 + $0x30] sm:$0xff] %v7003
      %7020 = vst [vmem:[%s2111 + $0x38] sm:$0xff] %v7004
      %7021 = vst [vmem:[%s2111 + $0x40] sm:$0xff] %v7005
      %7022 = vst [vmem:[%s2111 + $0x48] sm:$0xff] %v7006
      %7023 = vst [vmem:[%s2111 + $0x50] sm:$0xff] %v7007
      %7024 = vst [vmem:[%s2111 + $0x58] sm:$0xff] %v7008
      %7025 = vst [vmem:[%s2111 + $0x60] sm:$0xff] %v7009
      %7026 = vst [vmem:[%s2111 + $0x68] sm:$0xff] %v7010
      %7027 = vst [vmem:[%s2111 + $0x70] sm:$0xff] %v7011
      %7028 = vst [vmem:[%s2111 + $0x78] sm:$0xff] %v7012
      %v7029 = vld [vmem:[%s2233] sm:$0xff]
      %v7030 = vld [vmem:[%s2233 + $0x8] sm:$0xff]
      %v7031 = vld [vmem:[%s2233 + $0x10] sm:$0xff]
      %v7032 = vld [vmem:[%s2233 + $0x18] sm:$0xff]
      %v7033 = vld [vmem:[%s2233 + $0x20] sm:$0xff]
      %v7034 = vld [vmem:[%s2233 + $0x28] sm:$0xff]
      %v7035 = vld [vmem:[%s2233 + $0x30] sm:$0xff]
      %v7036 = vld [vmem:[%s2233 + $0x38] sm:$0xff]
      %v7037 = vld [vmem:[%s2233 + $0x40] sm:$0xff]
      %v7038 = vld [vmem:[%s2233 + $0x48] sm:$0xff]
      %v7039 = vld [vmem:[%s2233 + $0x50] sm:$0xff]
      %v7040 = vld [vmem:[%s2233 + $0x58] sm:$0xff]
      %v7041 = vld [vmem:[%s2233 + $0x60] sm:$0xff]
      %v7042 = vld [vmem:[%s2233 + $0x68] sm:$0xff]
      %v7043 = vld [vmem:[%s2233 + $0x70] sm:$0xff]
      %v7044 = vld [vmem:[%s2233 + $0x78] sm:$0xff]
      %7045 = vmatprep.subr.bf16.mxu0 %v6743
      %7046 = vmatpush1.bf16.msra.mxu0 %v6742
      %7047 = vmatprep.subr.bf16.mxu0 0
      %7048 = vmatpush1.bf16.msra.mxu0 0
      %7049 = vmatprep.subr.bf16.mxu0 0
      %7050 = vmatpush1.bf16.msra.mxu0 0
      %7051 = vmatprep.subr.bf16.mxu0 0
      %7052 = vmatpush1.bf16.msra.mxu0 0
      %7053 = vmatprep.subr.bf16.mxu0 0
      %7054 = vmatpush1.bf16.msra.mxu0 0
      %7055 = vmatprep.subr.bf16.mxu0 0
      %7056 = vmatpush1.bf16.msra.mxu0 0
      %7057 = vmatprep.subr.bf16.mxu0 0
      %7058 = vmatpush1.bf16.msra.mxu0 0
      %7059 = vmatprep.subr.bf16.mxu0 0
      %7060 = vmatpush1.bf16.msra.mxu0 0
      %7061 = vmatprep.subr.bf16.mxu0 0
      %7062 = vmatpush1.bf16.msra.mxu0 0
      %7063 = vmatprep.subr.bf16.mxu0 0
      %7064 = vmatpush1.bf16.msra.mxu0 0
      %7065 = vmatprep.subr.bf16.mxu0 0
      %7066 = vmatpush1.bf16.msra.mxu0 0
      %7067 = vmatprep.subr.bf16.mxu0 0
      %7068 = vmatpush1.bf16.msra.mxu0 0
      %7069 = vmatprep.subr.bf16.mxu0 0
      %7070 = vmatpush1.bf16.msra.mxu0 0
      %7071 = vmatprep.subr.bf16.mxu0 0
      %7072 = vmatpush1.bf16.msra.mxu0 0
      %7073 = vmatprep.subr.bf16.mxu0 0
      %7074 = vmatpush1.bf16.msra.mxu0 0
      %7075 = vmatprep.subr.bf16.mxu0 0
      %7076 = vmatpush1.bf16.msra.mxu0 0
      %7077 = vmatprep.mubr.bf16.mxu0 0
      %7078 = vmatmul.mubr.bf16.gmra.mrb[0].mxu0 %v6792
      %v7079 = vpop.f32.mrb[0].mxu0
      %v7080 = vadd.f32 0.0, %v7079
      %v7081 = vpop.f32.mrb[0].mxu0
      %v7082 = vadd.f32 0.0, %v7081
      %v7083 = vpop.f32.mrb[0].mxu0
      %v7084 = vadd.f32 0.0, %v7083
      %v7085 = vpop.f32.mrb[0].mxu0
      %v7086 = vadd.f32 0.0, %v7085
      %7087 = vmatprep.mubr.bf16.mxu0 0
      %7088 = vmatmul.mubr.bf16.gmra.mrb[0].mxu0 %v6795
      %v7089 = vpop.f32.mrb[0].mxu0
      %v7090 = vadd.f32 0.0, %v7089
      %v7091 = vpop.f32.mrb[0].mxu0
      %v7092 = vadd.f32 0.0, %v7091
      %v7093 = vpop.f32.mrb[0].mxu0
      %v7094 = vadd.f32 0.0, %v7093
      %v7095 = vpop.f32.mrb[0].mxu0
      %v7096 = vadd.f32 0.0, %v7095
      %7097 = vmatprep.mubr.bf16.mxu0 0
      %7098 = vmatmul.mubr.bf16.gmra.mrb[0].mxu0 %v6798
      %v7099 = vpop.f32.mrb[0].mxu0
      %v7100 = vadd.f32 0.0, %v7099
      %v7101 = vpop.f32.mrb[0].mxu0
      %v7102 = vadd.f32 0.0, %v7101
      %v7103 = vpop.f32.mrb[0].mxu0
      %v7104 = vadd.f32 0.0, %v7103
      %v7105 = vpop.f32.mrb[0].mxu0
      %v7106 = vadd.f32 0.0, %v7105
      %7107 = vmatprep.mubr.bf16.mxu0 0
      %7108 = vmatmul.mubr.bf16.gmra.mrb[0].mxu0 %v6801
      %v7109 = vpop.f32.mrb[0].mxu0
      %v7110 = vadd.f32 0.0, %v7109
      %v7111 = vpop.f32.mrb[0].mxu0
      %v7112 = vadd.f32 0.0, %v7111
      %v7113 = vpop.f32.mrb[0].mxu0
      %v7114 = vadd.f32 0.0, %v7113
      %v7115 = vpop.f32.mrb[0].mxu0
      %v7116 = vadd.f32 0.0, %v7115
      %7117 = vdwg.mxu0
      %v7118 = vadd.f32 %v7029, %v7080
      %v7119 = vadd.f32 %v7030, %v7082
      %v7120 = vadd.f32 %v7031, %v7084
      %v7121 = vadd.f32 %v7032, %v7086
      %v7122 = vadd.f32 %v7033, %v7090
      %v7123 = vadd.f32 %v7034, %v7092
      %v7124 = vadd.f32 %v7035, %v7094
      %v7125 = vadd.f32 %v7036, %v7096
      %v7126 = vadd.f32 %v7037, %v7100
      %v7127 = vadd.f32 %v7038, %v7102
      %v7128 = vadd.f32 %v7039, %v7104
      %v7129 = vadd.f32 %v7040, %v7106
      %v7130 = vadd.f32 %v7041, %v7110
      %v7131 = vadd.f32 %v7042, %v7112
      %v7132 = vadd.f32 %v7043, %v7114
      %v7133 = vadd.f32 %v7044, %v7116
      %7134 = vst [vmem:[%s2233] sm:$0xff] %v7118
      %7135 = vst [vmem:[%s2233 + $0x8] sm:$0xff] %v7119
      %7136 = vst [vmem:[%s2233 + $0x10] sm:$0xff] %v7120
      %7137 = vst [vmem:[%s2233 + $0x18] sm:$0xff] %v7121
      %7138 = vst [vmem:[%s2233 + $0x20] sm:$0xff] %v7122
      %7139 = vst [vmem:[%s2233 + $0x28] sm:$0xff] %v7123
      %7140 = vst [vmem:[%s2233 + $0x30] sm:$0xff] %v7124
      %7141 = vst [vmem:[%s2233 + $0x38] sm:$0xff] %v7125
      %7142 = vst [vmem:[%s2233 + $0x40] sm:$0xff] %v7126
      %7143 = vst [vmem:[%s2233 + $0x48] sm:$0xff] %v7127
      %7144 = vst [vmem:[%s2233 + $0x50] sm:$0xff] %v7128
      %7145 = vst [vmem:[%s2233 + $0x58] sm:$0xff] %v7129
      %7146 = vst [vmem:[%s2233 + $0x60] sm:$0xff] %v7130
      %7147 = vst [vmem:[%s2233 + $0x68] sm:$0xff] %v7131
      %7148 = vst [vmem:[%s2233 + $0x70] sm:$0xff] %v7132
      %7149 = vst [vmem:[%s2233 + $0x78] sm:$0xff] %v7133
      %v7150 = vld [vmem:[%s2355] sm:$0xff]
      %v7151 = vld [vmem:[%s2355 + $0x8] sm:$0xff]
      %v7152 = vld [vmem:[%s2355 + $0x10] sm:$0xff]
      %v7153 = vld [vmem:[%s2355 + $0x18] sm:$0xff]
      %v7154 = vld [vmem:[%s2355 + $0x20] sm:$0xff]
      %v7155 = vld [vmem:[%s2355 + $0x28] sm:$0xff]
      %v7156 = vld [vmem:[%s2355 + $0x30] sm:$0xff]
      %v7157 = vld [vmem:[%s2355 + $0x38] sm:$0xff]
      %v7158 = vld [vmem:[%s2355 + $0x40] sm:$0xff]
      %v7159 = vld [vmem:[%s2355 + $0x48] sm:$0xff]
      %v7160 = vld [vmem:[%s2355 + $0x50] sm:$0xff]
      %v7161 = vld [vmem:[%s2355 + $0x58] sm:$0xff]
      %v7162 = vld [vmem:[%s2355 + $0x60] sm:$0xff]
      %v7163 = vld [vmem:[%s2355 + $0x68] sm:$0xff]
      %v7164 = vld [vmem:[%s2355 + $0x70] sm:$0xff]
      %v7165 = vld [vmem:[%s2355 + $0x78] sm:$0xff]
      %7166 = vmatprep.subr.bf16.mxu0 %v6745
      %7167 = vmatpush1.bf16.msra.mxu0 %v6744
      %7168 = vmatprep.subr.bf16.mxu0 0
      %7169 = vmatpush1.bf16.msra.mxu0 0
      %7170 = vmatprep.subr.bf16.mxu0 0
      %7171 = vmatpush1.bf16.msra.mxu0 0
      %7172 = vmatprep.subr.bf16.mxu0 0
      %7173 = vmatpush1.bf16.msra.mxu0 0
      %7174 = vmatprep.subr.bf16.mxu0 0
      %7175 = vmatpush1.bf16.msra.mxu0 0
      %7176 = vmatprep.subr.bf16.mxu0 0
      %7177 = vmatpush1.bf16.msra.mxu0 0
      %7178 = vmatprep.subr.bf16.mxu0 0
      %7179 = vmatpush1.bf16.msra.mxu0 0
      %7180 = vmatprep.subr.bf16.mxu0 0
      %7181 = vmatpush1.bf16.msra.mxu0 0
      %7182 = vmatprep.subr.bf16.mxu0 0
      %7183 = vmatpush1.bf16.msra.mxu0 0
      %7184 = vmatprep.subr.bf16.mxu0 0
      %7185 = vmatpush1.bf16.msra.mxu0 0
      %7186 = vmatprep.subr.bf16.mxu0 0
      %7187 = vmatpush1.bf16.msra.mxu0 0
      %7188 = vmatprep.subr.bf16.mxu0 0
      %7189 = vmatpush1.bf16.msra.mxu0 0
      %7190 = vmatprep.subr.bf16.mxu0 0
      %7191 = vmatpush1.bf16.msra.mxu0 0
      %7192 = vmatprep.subr.bf16.mxu0 0
      %7193 = vmatpush1.bf16.msra.mxu0 0
      %7194 = vmatprep.subr.bf16.mxu0 0
      %7195 = vmatpush1.bf16.msra.mxu0 0
      %7196 = vmatprep.subr.bf16.mxu0 0
      %7197 = vmatpush1.bf16.msra.mxu0 0
      %7198 = vmatprep.mubr.bf16.mxu0 0
      %7199 = vmatmul.mubr.bf16.gmra.mrb[0].mxu0 %v6792
      %v7200 = vpop.f32.mrb[0].mxu0
      %v7201 = vadd.f32 0.0, %v7200
      %v7202 = vpop.f32.mrb[0].mxu0
      %v7203 = vadd.f32 0.0, %v7202
      %v7204 = vpop.f32.mrb[0].mxu0
      %v7205 = vadd.f32 0.0, %v7204
      %v7206 = vpop.f32.mrb[0].mxu0
      %v7207 = vadd.f32 0.0, %v7206
      %7208 = vmatprep.mubr.bf16.mxu0 0
      %7209 = vmatmul.mubr.bf16.gmra.mrb[0].mxu0 %v6795
      %v7210 = vpop.f32.mrb[0].mxu0
      %v7211 = vadd.f32 0.0, %v7210
      %v7212 = vpop.f32.mrb[0].mxu0
      %v7213 = vadd.f32 0.0, %v7212
      %v7214 = vpop.f32.mrb[0].mxu0
      %v7215 = vadd.f32 0.0, %v7214
      %v7216 = vpop.f32.mrb[0].mxu0
      %v7217 = vadd.f32 0.0, %v7216
      %7218 = vmatprep.mubr.bf16.mxu0 0
      %7219 = vmatmul.mubr.bf16.gmra.mrb[0].mxu0 %v6798
      %v7220 = vpop.f32.mrb[0].mxu0
      %v7221 = vadd.f32 0.0, %v7220
      %v7222 = vpop.f32.mrb[0].mxu0
      %v7223 = vadd.f32 0.0, %v7222
      %v7224 = vpop.f32.mrb[0].mxu0
      %v7225 = vadd.f32 0.0, %v7224
      %v7226 = vpop.f32.mrb[0].mxu0
      %v7227 = vadd.f32 0.0, %v7226
      %7228 = vmatprep.mubr.bf16.mxu0 0
      %7229 = vmatmul.mubr.bf16.gmra.mrb[0].mxu0 %v6801
      %v7230 = vpop.f32.mrb[0].mxu0
      %v7231 = vadd.f32 0.0, %v7230
      %v7232 = vpop.f32.mrb[0].mxu0
      %v7233 = vadd.f32 0.0, %v7232
      %v7234 = vpop.f32.mrb[0].mxu0
      %v7235 = vadd.f32 0.0, %v7234
      %v7236 = vpop.f32.mrb[0].mxu0
      %v7237 = vadd.f32 0.0, %v7236
      %7238 = vdwg.mxu0
      %v7239 = vadd.f32 %v7150, %v7201
      %v7240 = vadd.f32 %v7151, %v7203
      %v7241 = vadd.f32 %v7152, %v7205
      %v7242 = vadd.f32 %v7153, %v7207
      %v7243 = vadd.f32 %v7154, %v7211
      %v7244 = vadd.f32 %v7155, %v7213
      %v7245 = vadd.f32 %v7156, %v7215
      %v7246 = vadd.f32 %v7157, %v7217
      %v7247 = vadd.f32 %v7158, %v7221
      %v7248 = vadd.f32 %v7159, %v7223
      %v7249 = vadd.f32 %v7160, %v7225
      %v7250 = vadd.f32 %v7161, %v7227
      %v7251 = vadd.f32 %v7162, %v7231
      %v7252 = vadd.f32 %v7163, %v7233
      %v7253 = vadd.f32 %v7164, %v7235
      %v7254 = vadd.f32 %v7165, %v7237
      %7255 = vst [vmem:[%s2355] sm:$0xff] %v7239
      %7256 = vst [vmem:[%s2355 + $0x8] sm:$0xff] %v7240
      %7257 = vst [vmem:[%s2355 + $0x10] sm:$0xff] %v7241
      %7258 = vst [vmem:[%s2355 + $0x18] sm:$0xff] %v7242
      %7259 = vst [vmem:[%s2355 + $0x20] sm:$0xff] %v7243
      %7260 = vst [vmem:[%s2355 + $0x28] sm:$0xff] %v7244
      %7261 = vst [vmem:[%s2355 + $0x30] sm:$0xff] %v7245
      %7262 = vst [vmem:[%s2355 + $0x38] sm:$0xff] %v7246
      %7263 = vst [vmem:[%s2355 + $0x40] sm:$0xff] %v7247
      %7264 = vst [vmem:[%s2355 + $0x48] sm:$0xff] %v7248
      %7265 = vst [vmem:[%s2355 + $0x50] sm:$0xff] %v7249
      %7266 = vst [vmem:[%s2355 + $0x58] sm:$0xff] %v7250
      %7267 = vst [vmem:[%s2355 + $0x60] sm:$0xff] %v7251
      %7268 = vst [vmem:[%s2355 + $0x68] sm:$0xff] %v7252
      %7269 = vst [vmem:[%s2355 + $0x70] sm:$0xff] %v7253
      %7270 = vst [vmem:[%s2355 + $0x78] sm:$0xff] %v7254
      %s7271 = scalar_lea.vmem %s5, 1792
      %v7272 = vld [vmem:[%s7271] sm:$0xff]
      %v7273 = vld [vmem:[%s7271 + $0x8] sm:$0xff]
      %v7274 = vld [vmem:[%s7271 + $0x10] sm:$0xff]
      %v7275 = vld [vmem:[%s7271 + $0x18] sm:$0xff]
      %v7276 = vld [vmem:[%s7271 + $0x20] sm:$0xff]
      %v7277 = vld [vmem:[%s7271 + $0x28] sm:$0xff]
      %v7278 = vld [vmem:[%s7271 + $0x30] sm:$0xff]
      %v7279 = vld [vmem:[%s7271 + $0x38] sm:$0xff]
      %v7280 = vld [vmem:[%s7271 + $0x40] sm:$0xff]
      %v7281 = vld [vmem:[%s7271 + $0x48] sm:$0xff]
      %v7282 = vld [vmem:[%s7271 + $0x50] sm:$0xff]
      %v7283 = vld [vmem:[%s7271 + $0x58] sm:$0xff]
      %v7284 = vld [vmem:[%s7271 + $0x60] sm:$0xff]
      %v7285 = vld [vmem:[%s7271 + $0x68] sm:$0xff]
      %v7286 = vld [vmem:[%s7271 + $0x70] sm:$0xff]
      %v7287 = vld [vmem:[%s7271 + $0x78] sm:$0xff]
      %v7288 = vld [vmem:[%s7271 + $0x80] sm:$0xff]
      %v7289 = vld [vmem:[%s7271 + $0x88] sm:$0xff]
      %v7290 = vld [vmem:[%s7271 + $0x90] sm:$0xff]
      %v7291 = vld [vmem:[%s7271 + $0x98] sm:$0xff]
      %v7292 = vld [vmem:[%s7271 + $0xa0] sm:$0xff]
      %v7293 = vld [vmem:[%s7271 + $0xa8] sm:$0xff]
      %v7294 = vld [vmem:[%s7271 + $0xb0] sm:$0xff]
      %v7295 = vld [vmem:[%s7271 + $0xb8] sm:$0xff]
      %v7296 = vld [vmem:[%s7271 + $0xc0] sm:$0xff]
      %v7297 = vld [vmem:[%s7271 + $0xc8] sm:$0xff]
      %v7298 = vld [vmem:[%s7271 + $0xd0] sm:$0xff]
      %v7299 = vld [vmem:[%s7271 + $0xd8] sm:$0xff]
      %v7300 = vld [vmem:[%s7271 + $0xe0] sm:$0xff]
      %v7301 = vld [vmem:[%s7271 + $0xe8] sm:$0xff]
      %v7302 = vld [vmem:[%s7271 + $0xf0] sm:$0xff]
      %v7303 = vld [vmem:[%s7271 + $0xf8] sm:$0xff]
      %v7336 = vunpack.c.l.b16 %v7272
      %v7337 = vunpack.c.h.b16 %v7272
      %v7338 = vunpack.c.l.b16 %v7273
      %v7339 = vunpack.c.h.b16 %v7273
      %v7340 = vunpack.c.l.b16 %v7274
      %v7341 = vunpack.c.h.b16 %v7274
      %v7342 = vunpack.c.l.b16 %v7275
      %v7343 = vunpack.c.h.b16 %v7275
      %v7344 = vunpack.c.l.b16 %v7276
      %v7345 = vunpack.c.h.b16 %v7276
      %v7346 = vunpack.c.l.b16 %v7277
      %v7347 = vunpack.c.h.b16 %v7277
      %v7348 = vunpack.c.l.b16 %v7278
      %v7349 = vunpack.c.h.b16 %v7278
      %v7350 = vunpack.c.l.b16 %v7279
      %v7351 = vunpack.c.h.b16 %v7279
      %v7352 = vunpack.c.l.b16 %v7280
      %v7353 = vunpack.c.h.b16 %v7280
      %v7354 = vunpack.c.l.b16 %v7281
      %v7355 = vunpack.c.h.b16 %v7281
      %v7356 = vunpack.c.l.b16 %v7282
      %v7357 = vunpack.c.h.b16 %v7282
      %v7358 = vunpack.c.l.b16 %v7283
      %v7359 = vunpack.c.h.b16 %v7283
      %v7360 = vunpack.c.l.b16 %v7284
      %v7361 = vunpack.c.h.b16 %v7284
      %v7362 = vunpack.c.l.b16 %v7285
      %v7363 = vunpack.c.h.b16 %v7285
      %v7364 = vunpack.c.l.b16 %v7286
      %v7365 = vunpack.c.h.b16 %v7286
      %v7366 = vunpack.c.l.b16 %v7287
      %v7367 = vunpack.c.h.b16 %v7287
      %v7368 = vunpack.c.l.b16 %v7288
      %v7369 = vunpack.c.h.b16 %v7288
      %v7370 = vunpack.c.l.b16 %v7289
      %v7371 = vunpack.c.h.b16 %v7289
      %v7372 = vunpack.c.l.b16 %v7290
      %v7373 = vunpack.c.h.b16 %v7290
      %v7374 = vunpack.c.l.b16 %v7291
      %v7375 = vunpack.c.h.b16 %v7291
      %v7376 = vunpack.c.l.b16 %v7292
      %v7377 = vunpack.c.h.b16 %v7292
      %v7378 = vunpack.c.l.b16 %v7293
      %v7379 = vunpack.c.h.b16 %v7293
      %v7380 = vunpack.c.l.b16 %v7294
      %v7381 = vunpack.c.h.b16 %v7294
      %v7382 = vunpack.c.l.b16 %v7295
      %v7383 = vunpack.c.h.b16 %v7295
      %v7384 = vunpack.c.l.b16 %v7296
      %v7385 = vunpack.c.h.b16 %v7296
      %v7386 = vunpack.c.l.b16 %v7297
      %v7387 = vunpack.c.h.b16 %v7297
      %v7388 = vunpack.c.l.b16 %v7298
      %v7389 = vunpack.c.h.b16 %v7298
      %v7390 = vunpack.c.l.b16 %v7299
      %v7391 = vunpack.c.h.b16 %v7299
      %v7392 = vunpack.c.l.b16 %v7300
      %v7393 = vunpack.c.h.b16 %v7300
      %v7394 = vunpack.c.l.b16 %v7301
      %v7395 = vunpack.c.h.b16 %v7301
      %v7396 = vunpack.c.l.b16 %v7302
      %v7397 = vunpack.c.h.b16 %v7302
      %v7398 = vunpack.c.l.b16 %v7303
      %v7399 = vunpack.c.h.b16 %v7303
      %v7400 = vpack.c.b16 %v7338, %v7336
      %v7401 = vpack.c.b16 %v7339, %v7337
      %v7402 = vpack.c.b16 %v7342, %v7340
      %v7403 = vpack.c.b16 %v7343, %v7341
      %v7404 = vpack.c.b16 %v7346, %v7344
      %v7405 = vpack.c.b16 %v7347, %v7345
      %v7406 = vpack.c.b16 %v7350, %v7348
      %v7407 = vpack.c.b16 %v7351, %v7349
      %v7408 = vpack.c.b16 %v7354, %v7352
      %v7409 = vpack.c.b16 %v7355, %v7353
      %v7410 = vpack.c.b16 %v7358, %v7356
      %v7411 = vpack.c.b16 %v7359, %v7357
      %v7412 = vpack.c.b16 %v7362, %v7360
      %v7413 = vpack.c.b16 %v7363, %v7361
      %v7414 = vpack.c.b16 %v7366, %v7364
      %v7415 = vpack.c.b16 %v7367, %v7365
      %v7416 = vpack.c.b16 %v7370, %v7368
      %v7417 = vpack.c.b16 %v7371, %v7369
      %v7418 = vpack.c.b16 %v7374, %v7372
      %v7419 = vpack.c.b16 %v7375, %v7373
      %v7420 = vpack.c.b16 %v7378, %v7376
      %v7421 = vpack.c.b16 %v7379, %v7377
      %v7422 = vpack.c.b16 %v7382, %v7380
      %v7423 = vpack.c.b16 %v7383, %v7381
      %v7424 = vpack.c.b16 %v7386, %v7384
      %v7425 = vpack.c.b16 %v7387, %v7385
      %v7426 = vpack.c.b16 %v7390, %v7388
      %v7427 = vpack.c.b16 %v7391, %v7389
      %v7428 = vpack.c.b16 %v7394, %v7392
      %v7429 = vpack.c.b16 %v7395, %v7393
      %v7430 = vpack.c.b16 %v7398, %v7396
      %v7431 = vpack.c.b16 %v7399, %v7397
      %7464 = vmatprep.subr.bf16.mxu0 %v7401
      %7465 = vmatpush1.bf16.msra.mxu0 %v7400
      %7466 = vmatprep.subr.bf16.mxu0 %v7403
      %7467 = vmatpush1.bf16.msra.mxu0 %v7402
      %7468 = vmatprep.subr.bf16.mxu0 %v7405
      %7469 = vmatpush1.bf16.msra.mxu0 %v7404
      %7470 = vmatprep.subr.bf16.mxu0 %v7407
      %7471 = vmatpush1.bf16.msra.mxu0 %v7406
      %7472 = vmatprep.subr.bf16.mxu0 %v7409
      %7473 = vmatpush1.bf16.msra.mxu0 %v7408
      %7474 = vmatprep.subr.bf16.mxu0 %v7411
      %7475 = vmatpush1.bf16.msra.mxu0 %v7410
      %7476 = vmatprep.subr.bf16.mxu0 %v7413
      %7477 = vmatpush1.bf16.msra.mxu0 %v7412
      %7478 = vmatprep.subr.bf16.mxu0 %v7415
      %7479 = vmatpush1.bf16.msra.mxu0 %v7414
      %7480 = vmatprep.subr.bf16.mxu0 %v7417
      %7481 = vmatpush1.bf16.msra.mxu0 %v7416
      %7482 = vmatprep.subr.bf16.mxu0 %v7419
      %7483 = vmatpush1.bf16.msra.mxu0 %v7418
      %7484 = vmatprep.subr.bf16.mxu0 %v7421
      %7485 = vmatpush1.bf16.msra.mxu0 %v7420
      %7486 = vmatprep.subr.bf16.mxu0 %v7423
      %7487 = vmatpush1.bf16.msra.mxu0 %v7422
      %7488 = vmatprep.subr.bf16.mxu0 %v7425
      %7489 = vmatpush1.bf16.msra.mxu0 %v7424
      %7490 = vmatprep.subr.bf16.mxu0 %v7427
      %7491 = vmatpush1.bf16.msra.mxu0 %v7426
      %7492 = vmatprep.subr.bf16.mxu0 %v7429
      %7493 = vmatpush1.bf16.msra.mxu0 %v7428
      %7494 = vmatprep.subr.bf16.mxu0 %v7431
      %7495 = vmatpush1.bf16.msra.mxu0 %v7430
      %7496 = vmatprep.mubr.bf16.mxu0 %v1605
      %7497 = vmatmul.mubr.bf16.gmra.mrb[0].mxu0 %v1604
      %v7498 = vpop.f32.mrb[0].mxu0
      %v7499 = vadd.f32 0.0, %v7498
      %v7500 = vpop.f32.mrb[0].mxu0
      %v7501 = vadd.f32 0.0, %v7500
      %v7502 = vpop.f32.mrb[0].mxu0
      %v7503 = vadd.f32 0.0, %v7502
      %v7504 = vpop.f32.mrb[0].mxu0
      %v7505 = vadd.f32 0.0, %v7504
      %7506 = vmatprep.mubr.bf16.mxu0 %v1607
      %7507 = vmatmul.mubr.bf16.gmra.mrb[0].mxu0 %v1606
      %v7508 = vpop.f32.mrb[0].mxu0
      %v7509 = vadd.f32 0.0, %v7508
      %v7510 = vpop.f32.mrb[0].mxu0
      %v7511 = vadd.f32 0.0, %v7510
      %v7512 = vpop.f32.mrb[0].mxu0
      %v7513 = vadd.f32 0.0, %v7512
      %v7514 = vpop.f32.mrb[0].mxu0
      %v7515 = vadd.f32 0.0, %v7514
      %7516 = vmatprep.mubr.bf16.mxu0 %v1609
      %7517 = vmatmul.mubr.bf16.gmra.mrb[0].mxu0 %v1608
      %v7518 = vpop.f32.mrb[0].mxu0
      %v7519 = vadd.f32 0.0, %v7518
      %v7520 = vpop.f32.mrb[0].mxu0
      %v7521 = vadd.f32 0.0, %v7520
      %v7522 = vpop.f32.mrb[0].mxu0
      %v7523 = vadd.f32 0.0, %v7522
      %v7524 = vpop.f32.mrb[0].mxu0
      %v7525 = vadd.f32 0.0, %v7524
      %7526 = vmatprep.mubr.bf16.mxu0 %v1611
      %7527 = vmatmul.mubr.bf16.gmra.mrb[0].mxu0 %v1610
      %v7528 = vpop.f32.mrb[0].mxu0
      %v7529 = vadd.f32 0.0, %v7528
      %v7530 = vpop.f32.mrb[0].mxu0
      %v7531 = vadd.f32 0.0, %v7530
      %v7532 = vpop.f32.mrb[0].mxu0
      %v7533 = vadd.f32 0.0, %v7532
      %v7534 = vpop.f32.mrb[0].mxu0
      %v7535 = vadd.f32 0.0, %v7534
      %7536 = vdwg.mxu0
      %v7537 = vpack.c.bf16 %v7503, %v7499
      %v7538 = vpack.c.bf16 %v7505, %v7501
      %v7539 = vpack.c.bf16 %v7513, %v7509
      %v7540 = vpack.c.bf16 %v7515, %v7511
      %v7541 = vpack.c.bf16 %v7523, %v7519
      %v7542 = vpack.c.bf16 %v7525, %v7521
      %v7543 = vpack.c.bf16 %v7533, %v7529
      %v7544 = vpack.c.bf16 %v7535, %v7531
      %s7545 = scalar_lea.vmem %s4, 224
      %v7546 = vld [vmem:[%s7545] sm:$0xf]
      %v7547 = vld [vmem:[%s7545 + $0x4] sm:$0xf]
      %v7548 = vld [vmem:[%s7545 + $0x8] sm:$0xf]
      %v7549 = vld [vmem:[%s7545 + $0xc] sm:$0xf]
      %v7550 = vld [vmem:[%s7545 + $0x10] sm:$0xf]
      %v7551 = vld [vmem:[%s7545 + $0x14] sm:$0xf]
      %v7552 = vld [vmem:[%s7545 + $0x18] sm:$0xf]
      %v7553 = vld [vmem:[%s7545 + $0x1c] sm:$0xf]
      %v7554 = vld [vmem:[#allocation2] sm:$0xff]
      %v7555 = vld [vmem:[#allocation2 + $0x8] sm:$0xff]
      %v7556 = vld [vmem:[#allocation2 + $0x10] sm:$0xff]
      %v7557 = vld [vmem:[#allocation2 + $0x18] sm:$0xff]
      %v7558 = vld [vmem:[#allocation2 + $0x20] sm:$0xff]
      %v7559 = vld [vmem:[#allocation2 + $0x28] sm:$0xff]
      %v7560 = vld [vmem:[#allocation2 + $0x30] sm:$0xff]
      %v7561 = vld [vmem:[#allocation2 + $0x38] sm:$0xff]
      %v7562 = vld [vmem:[#allocation2 + $0x40] sm:$0xff]
      %v7563 = vld [vmem:[#allocation2 + $0x48] sm:$0xff]
      %v7564 = vld [vmem:[#allocation2 + $0x50] sm:$0xff]
      %v7565 = vld [vmem:[#allocation2 + $0x58] sm:$0xff]
      %v7566 = vld [vmem:[#allocation2 + $0x60] sm:$0xff]
      %v7567 = vld [vmem:[#allocation2 + $0x68] sm:$0xff]
      %v7568 = vld [vmem:[#allocation2 + $0x70] sm:$0xff]
      %v7569 = vld [vmem:[#allocation2 + $0x78] sm:$0xff]
      %v7578 = vunpack.c.l.b16 %v7546
      %v7579 = vunpack.c.l.b16 %v7547
      %v7580 = vunpack.c.l.b16 %v7548
      %v7581 = vunpack.c.l.b16 %v7549
      %v7582 = vunpack.c.l.b16 %v7550
      %v7583 = vunpack.c.l.b16 %v7551
      %v7584 = vunpack.c.l.b16 %v7552
      %v7585 = vunpack.c.l.b16 %v7553
      %v7586 = vpack.c.b16 %v7579, %v7578
      %v7587 = vpack.c.b16 %v7581, %v7580
      %v7588 = vpack.c.b16 %v7583, %v7582
      %v7589 = vpack.c.b16 %v7585, %v7584
      %v7591 = vsel %vm1993, %v7586, 0
      %v7594 = vsel %vm1993, %v7587, 0
      %v7597 = vsel %vm1993, %v7588, 0
      %v7600 = vsel %vm1993, %v7589, 0
      %7602 = vmatprep.subr.bf16.mxu0 %v7538
      %7603 = vmatpush1.bf16.msra.mxu0 %v7537
      %7604 = vmatprep.subr.bf16.mxu0 0
      %7605 = vmatpush1.bf16.msra.mxu0 0
      %7606 = vmatprep.subr.bf16.mxu0 0
      %7607 = vmatpush1.bf16.msra.mxu0 0
      %7608 = vmatprep.subr.bf16.mxu0 0
      %7609 = vmatpush1.bf16.msra.mxu0 0
      %7610 = vmatprep.subr.bf16.mxu0 0
      %7611 = vmatpush1.bf16.msra.mxu0 0
      %7612 = vmatprep.subr.bf16.mxu0 0
      %7613 = vmatpush1.bf16.msra.mxu0 0
      %7614 = vmatprep.subr.bf16.mxu0 0
      %7615 = vmatpush1.bf16.msra.mxu0 0
      %7616 = vmatprep.subr.bf16.mxu0 0
      %7617 = vmatpush1.bf16.msra.mxu0 0
      %7618 = vmatprep.subr.bf16.mxu0 0
      %7619 = vmatpush1.bf16.msra.mxu0 0
      %7620 = vmatprep.subr.bf16.mxu0 0
      %7621 = vmatpush1.bf16.msra.mxu0 0
      %7622 = vmatprep.subr.bf16.mxu0 0
      %7623 = vmatpush1.bf16.msra.mxu0 0
      %7624 = vmatprep.subr.bf16.mxu0 0
      %7625 = vmatpush1.bf16.msra.mxu0 0
      %7626 = vmatprep.subr.bf16.mxu0 0
      %7627 = vmatpush1.bf16.msra.mxu0 0
      %7628 = vmatprep.subr.bf16.mxu0 0
      %7629 = vmatpush1.bf16.msra.mxu0 0
      %7630 = vmatprep.subr.bf16.mxu0 0
      %7631 = vmatpush1.bf16.msra.mxu0 0
      %7632 = vmatprep.subr.bf16.mxu0 0
      %7633 = vmatpush1.bf16.msra.mxu0 0
      %7634 = vmatprep.mubr.bf16.mxu0 0
      %7635 = vmatmul.mubr.bf16.gmra.mrb[0].mxu0 %v7591
      %v7636 = vpop.f32.mrb[0].mxu0
      %v7637 = vadd.f32 0.0, %v7636
      %v7638 = vpop.f32.mrb[0].mxu0
      %v7639 = vadd.f32 0.0, %v7638
      %v7640 = vpop.f32.mrb[0].mxu0
      %v7641 = vadd.f32 0.0, %v7640
      %v7642 = vpop.f32.mrb[0].mxu0
      %v7643 = vadd.f32 0.0, %v7642
      %7644 = vmatprep.mubr.bf16.mxu0 0
      %7645 = vmatmul.mubr.bf16.gmra.mrb[0].mxu0 %v7594
      %v7646 = vpop.f32.mrb[0].mxu0
      %v7647 = vadd.f32 0.0, %v7646
      %v7648 = vpop.f32.mrb[0].mxu0
      %v7649 = vadd.f32 0.0, %v7648
      %v7650 = vpop.f32.mrb[0].mxu0
      %v7651 = vadd.f32 0.0, %v7650
      %v7652 = vpop.f32.mrb[0].mxu0
      %v7653 = vadd.f32 0.0, %v7652
      %7654 = vmatprep.mubr.bf16.mxu0 0
      %7655 = vmatmul.mubr.bf16.gmra.mrb[0].mxu0 %v7597
      %v7656 = vpop.f32.mrb[0].mxu0
      %v7657 = vadd.f32 0.0, %v7656
      %v7658 = vpop.f32.mrb[0].mxu0
      %v7659 = vadd.f32 0.0, %v7658
      %v7660 = vpop.f32.mrb[0].mxu0
      %v7661 = vadd.f32 0.0, %v7660
      %v7662 = vpop.f32.mrb[0].mxu0
      %v7663 = vadd.f32 0.0, %v7662
      %7664 = vmatprep.mubr.bf16.mxu0 0
      %7665 = vmatmul.mubr.bf16.gmra.mrb[0].mxu0 %v7600
      %v7666 = vpop.f32.mrb[0].mxu0
      %v7667 = vadd.f32 0.0, %v7666
      %v7668 = vpop.f32.mrb[0].mxu0
      %v7669 = vadd.f32 0.0, %v7668
      %v7670 = vpop.f32.mrb[0].mxu0
      %v7671 = vadd.f32 0.0, %v7670
      %v7672 = vpop.f32.mrb[0].mxu0
      %v7673 = vadd.f32 0.0, %v7672
      %7674 = vdwg.mxu0
      %v7675 = vadd.f32 %v7554, %v7637
      %v7676 = vadd.f32 %v7555, %v7639
      %v7677 = vadd.f32 %v7556, %v7641
      %v7678 = vadd.f32 %v7557, %v7643
      %v7679 = vadd.f32 %v7558, %v7647
      %v7680 = vadd.f32 %v7559, %v7649
      %v7681 = vadd.f32 %v7560, %v7651
      %v7682 = vadd.f32 %v7561, %v7653
      %v7683 = vadd.f32 %v7562, %v7657
      %v7684 = vadd.f32 %v7563, %v7659
      %v7685 = vadd.f32 %v7564, %v7661
      %v7686 = vadd.f32 %v7565, %v7663
      %v7687 = vadd.f32 %v7566, %v7667
      %v7688 = vadd.f32 %v7567, %v7669
      %v7689 = vadd.f32 %v7568, %v7671
      %v7690 = vadd.f32 %v7569, %v7673
      %7691 = vst [vmem:[#allocation2] sm:$0xff] %v7675
      %7692 = vst [vmem:[#allocation2 + $0x8] sm:$0xff] %v7676
      %7693 = vst [vmem:[#allocation2 + $0x10] sm:$0xff] %v7677
      %7694 = vst [vmem:[#allocation2 + $0x18] sm:$0xff] %v7678
      %7695 = vst [vmem:[#allocation2 + $0x20] sm:$0xff] %v7679
      %7696 = vst [vmem:[#allocation2 + $0x28] sm:$0xff] %v7680
      %7697 = vst [vmem:[#allocation2 + $0x30] sm:$0xff] %v7681
      %7698 = vst [vmem:[#allocation2 + $0x38] sm:$0xff] %v7682
      %7699 = vst [vmem:[#allocation2 + $0x40] sm:$0xff] %v7683
      %7700 = vst [vmem:[#allocation2 + $0x48] sm:$0xff] %v7684
      %7701 = vst [vmem:[#allocation2 + $0x50] sm:$0xff] %v7685
      %7702 = vst [vmem:[#allocation2 + $0x58] sm:$0xff] %v7686
      %7703 = vst [vmem:[#allocation2 + $0x60] sm:$0xff] %v7687
      %7704 = vst [vmem:[#allocation2 + $0x68] sm:$0xff] %v7688
      %7705 = vst [vmem:[#allocation2 + $0x70] sm:$0xff] %v7689
      %7706 = vst [vmem:[#allocation2 + $0x78] sm:$0xff] %v7690
      %v7707 = vld [vmem:[%s2111] sm:$0xff]
      %v7708 = vld [vmem:[%s2111 + $0x8] sm:$0xff]
      %v7709 = vld [vmem:[%s2111 + $0x10] sm:$0xff]
      %v7710 = vld [vmem:[%s2111 + $0x18] sm:$0xff]
      %v7711 = vld [vmem:[%s2111 + $0x20] sm:$0xff]
      %v7712 = vld [vmem:[%s2111 + $0x28] sm:$0xff]
      %v7713 = vld [vmem:[%s2111 + $0x30] sm:$0xff]
      %v7714 = vld [vmem:[%s2111 + $0x38] sm:$0xff]
      %v7715 = vld [vmem:[%s2111 + $0x40] sm:$0xff]
      %v7716 = vld [vmem:[%s2111 + $0x48] sm:$0xff]
      %v7717 = vld [vmem:[%s2111 + $0x50] sm:$0xff]
      %v7718 = vld [vmem:[%s2111 + $0x58] sm:$0xff]
      %v7719 = vld [vmem:[%s2111 + $0x60] sm:$0xff]
      %v7720 = vld [vmem:[%s2111 + $0x68] sm:$0xff]
      %v7721 = vld [vmem:[%s2111 + $0x70] sm:$0xff]
      %v7722 = vld [vmem:[%s2111 + $0x78] sm:$0xff]
      %7723 = vmatprep.subr.bf16.mxu0 %v7540
      %7724 = vmatpush1.bf16.msra.mxu0 %v7539
      %7725 = vmatprep.subr.bf16.mxu0 0
      %7726 = vmatpush1.bf16.msra.mxu0 0
      %7727 = vmatprep.subr.bf16.mxu0 0
      %7728 = vmatpush1.bf16.msra.mxu0 0
      %7729 = vmatprep.subr.bf16.mxu0 0
      %7730 = vmatpush1.bf16.msra.mxu0 0
      %7731 = vmatprep.subr.bf16.mxu0 0
      %7732 = vmatpush1.bf16.msra.mxu0 0
      %7733 = vmatprep.subr.bf16.mxu0 0
      %7734 = vmatpush1.bf16.msra.mxu0 0
      %7735 = vmatprep.subr.bf16.mxu0 0
      %7736 = vmatpush1.bf16.msra.mxu0 0
      %7737 = vmatprep.subr.bf16.mxu0 0
      %7738 = vmatpush1.bf16.msra.mxu0 0
      %7739 = vmatprep.subr.bf16.mxu0 0
      %7740 = vmatpush1.bf16.msra.mxu0 0
      %7741 = vmatprep.subr.bf16.mxu0 0
      %7742 = vmatpush1.bf16.msra.mxu0 0
      %7743 = vmatprep.subr.bf16.mxu0 0
      %7744 = vmatpush1.bf16.msra.mxu0 0
      %7745 = vmatprep.subr.bf16.mxu0 0
      %7746 = vmatpush1.bf16.msra.mxu0 0
      %7747 = vmatprep.subr.bf16.mxu0 0
      %7748 = vmatpush1.bf16.msra.mxu0 0
      %7749 = vmatprep.subr.bf16.mxu0 0
      %7750 = vmatpush1.bf16.msra.mxu0 0
      %7751 = vmatprep.subr.bf16.mxu0 0
      %7752 = vmatpush1.bf16.msra.mxu0 0
      %7753 = vmatprep.subr.bf16.mxu0 0
      %7754 = vmatpush1.bf16.msra.mxu0 0
      %7755 = vmatprep.mubr.bf16.mxu0 0
      %7756 = vmatmul.mubr.bf16.gmra.mrb[0].mxu0 %v7591
      %v7757 = vpop.f32.mrb[0].mxu0
      %v7758 = vadd.f32 0.0, %v7757
      %v7759 = vpop.f32.mrb[0].mxu0
      %v7760 = vadd.f32 0.0, %v7759
      %v7761 = vpop.f32.mrb[0].mxu0
      %v7762 = vadd.f32 0.0, %v7761
      %v7763 = vpop.f32.mrb[0].mxu0
      %v7764 = vadd.f32 0.0, %v7763
      %7765 = vmatprep.mubr.bf16.mxu0 0
      %7766 = vmatmul.mubr.bf16.gmra.mrb[0].mxu0 %v7594
      %v7767 = vpop.f32.mrb[0].mxu0
      %v7768 = vadd.f32 0.0, %v7767
      %v7769 = vpop.f32.mrb[0].mxu0
      %v7770 = vadd.f32 0.0, %v7769
      %v7771 = vpop.f32.mrb[0].mxu0
      %v7772 = vadd.f32 0.0, %v7771
      %v7773 = vpop.f32.mrb[0].mxu0
      %v7774 = vadd.f32 0.0, %v7773
      %7775 = vmatprep.mubr.bf16.mxu0 0
      %7776 = vmatmul.mubr.bf16.gmra.mrb[0].mxu0 %v7597
      %v7777 = vpop.f32.mrb[0].mxu0
      %v7778 = vadd.f32 0.0, %v7777
      %v7779 = vpop.f32.mrb[0].mxu0
      %v7780 = vadd.f32 0.0, %v7779
      %v7781 = vpop.f32.mrb[0].mxu0
      %v7782 = vadd.f32 0.0, %v7781
      %v7783 = vpop.f32.mrb[0].mxu0
      %v7784 = vadd.f32 0.0, %v7783
      %7785 = vmatprep.mubr.bf16.mxu0 0
      %7786 = vmatmul.mubr.bf16.gmra.mrb[0].mxu0 %v7600
      %v7787 = vpop.f32.mrb[0].mxu0
      %v7788 = vadd.f32 0.0, %v7787
      %v7789 = vpop.f32.mrb[0].mxu0
      %v7790 = vadd.f32 0.0, %v7789
      %v7791 = vpop.f32.mrb[0].mxu0
      %v7792 = vadd.f32 0.0, %v7791
      %v7793 = vpop.f32.mrb[0].mxu0
      %v7794 = vadd.f32 0.0, %v7793
      %7795 = vdwg.mxu0
      %v7796 = vadd.f32 %v7707, %v7758
      %v7797 = vadd.f32 %v7708, %v7760
      %v7798 = vadd.f32 %v7709, %v7762
      %v7799 = vadd.f32 %v7710, %v7764
      %v7800 = vadd.f32 %v7711, %v7768
      %v7801 = vadd.f32 %v7712, %v7770
      %v7802 = vadd.f32 %v7713, %v7772
      %v7803 = vadd.f32 %v7714, %v7774
      %v7804 = vadd.f32 %v7715, %v7778
      %v7805 = vadd.f32 %v7716, %v7780
      %v7806 = vadd.f32 %v7717, %v7782
      %v7807 = vadd.f32 %v7718, %v7784
      %v7808 = vadd.f32 %v7719, %v7788
      %v7809 = vadd.f32 %v7720, %v7790
      %v7810 = vadd.f32 %v7721, %v7792
      %v7811 = vadd.f32 %v7722, %v7794
      %7812 = vst [vmem:[%s2111] sm:$0xff] %v7796
      %7813 = vst [vmem:[%s2111 + $0x8] sm:$0xff] %v7797
      %7814 = vst [vmem:[%s2111 + $0x10] sm:$0xff] %v7798
      %7815 = vst [vmem:[%s2111 + $0x18] sm:$0xff] %v7799
      %7816 = vst [vmem:[%s2111 + $0x20] sm:$0xff] %v7800
      %7817 = vst [vmem:[%s2111 + $0x28] sm:$0xff] %v7801
      %7818 = vst [vmem:[%s2111 + $0x30] sm:$0xff] %v7802
      %7819 = vst [vmem:[%s2111 + $0x38] sm:$0xff] %v7803
      %7820 = vst [vmem:[%s2111 + $0x40] sm:$0xff] %v7804
      %7821 = vst [vmem:[%s2111 + $0x48] sm:$0xff] %v7805
      %7822 = vst [vmem:[%s2111 + $0x50] sm:$0xff] %v7806
      %7823 = vst [vmem:[%s2111 + $0x58] sm:$0xff] %v7807
      %7824 = vst [vmem:[%s2111 + $0x60] sm:$0xff] %v7808
      %7825 = vst [vmem:[%s2111 + $0x68] sm:$0xff] %v7809
      %7826 = vst [vmem:[%s2111 + $0x70] sm:$0xff] %v7810
      %7827 = vst [vmem:[%s2111 + $0x78] sm:$0xff] %v7811
      %v7828 = vld [vmem:[%s2233] sm:$0xff]
      %v7829 = vld [vmem:[%s2233 + $0x8] sm:$0xff]
      %v7830 = vld [vmem:[%s2233 + $0x10] sm:$0xff]
      %v7831 = vld [vmem:[%s2233 + $0x18] sm:$0xff]
      %v7832 = vld [vmem:[%s2233 + $0x20] sm:$0xff]
      %v7833 = vld [vmem:[%s2233 + $0x28] sm:$0xff]
      %v7834 = vld [vmem:[%s2233 + $0x30] sm:$0xff]
      %v7835 = vld [vmem:[%s2233 + $0x38] sm:$0xff]
      %v7836 = vld [vmem:[%s2233 + $0x40] sm:$0xff]
      %v7837 = vld [vmem:[%s2233 + $0x48] sm:$0xff]
      %v7838 = vld [vmem:[%s2233 + $0x50] sm:$0xff]
      %v7839 = vld [vmem:[%s2233 + $0x58] sm:$0xff]
      %v7840 = vld [vmem:[%s2233 + $0x60] sm:$0xff]
      %v7841 = vld [vmem:[%s2233 + $0x68] sm:$0xff]
      %v7842 = vld [vmem:[%s2233 + $0x70] sm:$0xff]
      %v7843 = vld [vmem:[%s2233 + $0x78] sm:$0xff]
      %7844 = vmatprep.subr.bf16.mxu0 %v7542
      %7845 = vmatpush1.bf16.msra.mxu0 %v7541
      %7846 = vmatprep.subr.bf16.mxu0 0
      %7847 = vmatpush1.bf16.msra.mxu0 0
      %7848 = vmatprep.subr.bf16.mxu0 0
      %7849 = vmatpush1.bf16.msra.mxu0 0
      %7850 = vmatprep.subr.bf16.mxu0 0
      %7851 = vmatpush1.bf16.msra.mxu0 0
      %7852 = vmatprep.subr.bf16.mxu0 0
      %7853 = vmatpush1.bf16.msra.mxu0 0
      %7854 = vmatprep.subr.bf16.mxu0 0
      %7855 = vmatpush1.bf16.msra.mxu0 0
      %7856 = vmatprep.subr.bf16.mxu0 0
      %7857 = vmatpush1.bf16.msra.mxu0 0
      %7858 = vmatprep.subr.bf16.mxu0 0
      %7859 = vmatpush1.bf16.msra.mxu0 0
      %7860 = vmatprep.subr.bf16.mxu0 0
      %7861 = vmatpush1.bf16.msra.mxu0 0
      %7862 = vmatprep.subr.bf16.mxu0 0
      %7863 = vmatpush1.bf16.msra.mxu0 0
      %7864 = vmatprep.subr.bf16.mxu0 0
      %7865 = vmatpush1.bf16.msra.mxu0 0
      %7866 = vmatprep.subr.bf16.mxu0 0
      %7867 = vmatpush1.bf16.msra.mxu0 0
      %7868 = vmatprep.subr.bf16.mxu0 0
      %7869 = vmatpush1.bf16.msra.mxu0 0
      %7870 = vmatprep.subr.bf16.mxu0 0
      %7871 = vmatpush1.bf16.msra.mxu0 0
      %7872 = vmatprep.subr.bf16.mxu0 0
      %7873 = vmatpush1.bf16.msra.mxu0 0
      %7874 = vmatprep.subr.bf16.mxu0 0
      %7875 = vmatpush1.bf16.msra.mxu0 0
      %7876 = vmatprep.mubr.bf16.mxu0 0
      %7877 = vmatmul.mubr.bf16.gmra.mrb[0].mxu0 %v7591
      %v7878 = vpop.f32.mrb[0].mxu0
      %v7879 = vadd.f32 0.0, %v7878
      %v7880 = vpop.f32.mrb[0].mxu0
      %v7881 = vadd.f32 0.0, %v7880
      %v7882 = vpop.f32.mrb[0].mxu0
      %v7883 = vadd.f32 0.0, %v7882
      %v7884 = vpop.f32.mrb[0].mxu0
      %v7885 = vadd.f32 0.0, %v7884
      %7886 = vmatprep.mubr.bf16.mxu0 0
      %7887 = vmatmul.mubr.bf16.gmra.mrb[0].mxu0 %v7594
      %v7888 = vpop.f32.mrb[0].mxu0
      %v7889 = vadd.f32 0.0, %v7888
      %v7890 = vpop.f32.mrb[0].mxu0
      %v7891 = vadd.f32 0.0, %v7890
      %v7892 = vpop.f32.mrb[0].mxu0
      %v7893 = vadd.f32 0.0, %v7892
      %v7894 = vpop.f32.mrb[0].mxu0
      %v7895 = vadd.f32 0.0, %v7894
      %7896 = vmatprep.mubr.bf16.mxu0 0
      %7897 = vmatmul.mubr.bf16.gmra.mrb[0].mxu0 %v7597
      %v7898 = vpop.f32.mrb[0].mxu0
      %v7899 = vadd.f32 0.0, %v7898
      %v7900 = vpop.f32.mrb[0].mxu0
      %v7901 = vadd.f32 0.0, %v7900
      %v7902 = vpop.f32.mrb[0].mxu0
      %v7903 = vadd.f32 0.0, %v7902
      %v7904 = vpop.f32.mrb[0].mxu0
      %v7905 = vadd.f32 0.0, %v7904
      %7906 = vmatprep.mubr.bf16.mxu0 0
      %7907 = vmatmul.mubr.bf16.gmra.mrb[0].mxu0 %v7600
      %v7908 = vpop.f32.mrb[0].mxu0
      %v7909 = vadd.f32 0.0, %v7908
      %v7910 = vpop.f32.mrb[0].mxu0
      %v7911 = vadd.f32 0.0, %v7910
      %v7912 = vpop.f32.mrb[0].mxu0
      %v7913 = vadd.f32 0.0, %v7912
      %v7914 = vpop.f32.mrb[0].mxu0
      %v7915 = vadd.f32 0.0, %v7914
      %7916 = vdwg.mxu0
      %v7917 = vadd.f32 %v7828, %v7879
      %v7918 = vadd.f32 %v7829, %v7881
      %v7919 = vadd.f32 %v7830, %v7883
      %v7920 = vadd.f32 %v7831, %v7885
      %v7921 = vadd.f32 %v7832, %v7889
      %v7922 = vadd.f32 %v7833, %v7891
      %v7923 = vadd.f32 %v7834, %v7893
      %v7924 = vadd.f32 %v7835, %v7895
      %v7925 = vadd.f32 %v7836, %v7899
      %v7926 = vadd.f32 %v7837, %v7901
      %v7927 = vadd.f32 %v7838, %v7903
      %v7928 = vadd.f32 %v7839, %v7905
      %v7929 = vadd.f32 %v7840, %v7909
      %v7930 = vadd.f32 %v7841, %v7911
      %v7931 = vadd.f32 %v7842, %v7913
      %v7932 = vadd.f32 %v7843, %v7915
      %7933 = vst [vmem:[%s2233] sm:$0xff] %v7917
      %7934 = vst [vmem:[%s2233 + $0x8] sm:$0xff] %v7918
      %7935 = vst [vmem:[%s2233 + $0x10] sm:$0xff] %v7919
      %7936 = vst [vmem:[%s2233 + $0x18] sm:$0xff] %v7920
      %7937 = vst [vmem:[%s2233 + $0x20] sm:$0xff] %v7921
      %7938 = vst [vmem:[%s2233 + $0x28] sm:$0xff] %v7922
      %7939 = vst [vmem:[%s2233 + $0x30] sm:$0xff] %v7923
      %7940 = vst [vmem:[%s2233 + $0x38] sm:$0xff] %v7924
      %7941 = vst [vmem:[%s2233 + $0x40] sm:$0xff] %v7925
      %7942 = vst [vmem:[%s2233 + $0x48] sm:$0xff] %v7926
      %7943 = vst [vmem:[%s2233 + $0x50] sm:$0xff] %v7927
      %7944 = vst [vmem:[%s2233 + $0x58] sm:$0xff] %v7928
      %7945 = vst [vmem:[%s2233 + $0x60] sm:$0xff] %v7929
      %7946 = vst [vmem:[%s2233 + $0x68] sm:$0xff] %v7930
      %7947 = vst [vmem:[%s2233 + $0x70] sm:$0xff] %v7931
      %7948 = vst [vmem:[%s2233 + $0x78] sm:$0xff] %v7932
      %v7949 = vld [vmem:[%s2355] sm:$0xff]
      %v7950 = vld [vmem:[%s2355 + $0x8] sm:$0xff]
      %v7951 = vld [vmem:[%s2355 + $0x10] sm:$0xff]
      %v7952 = vld [vmem:[%s2355 + $0x18] sm:$0xff]
      %v7953 = vld [vmem:[%s2355 + $0x20] sm:$0xff]
      %v7954 = vld [vmem:[%s2355 + $0x28] sm:$0xff]
      %v7955 = vld [vmem:[%s2355 + $0x30] sm:$0xff]
      %v7956 = vld [vmem:[%s2355 + $0x38] sm:$0xff]
      %v7957 = vld [vmem:[%s2355 + $0x40] sm:$0xff]
      %v7958 = vld [vmem:[%s2355 + $0x48] sm:$0xff]
      %v7959 = vld [vmem:[%s2355 + $0x50] sm:$0xff]
      %v7960 = vld [vmem:[%s2355 + $0x58] sm:$0xff]
      %v7961 = vld [vmem:[%s2355 + $0x60] sm:$0xff]
      %v7962 = vld [vmem:[%s2355 + $0x68] sm:$0xff]
      %v7963 = vld [vmem:[%s2355 + $0x70] sm:$0xff]
      %v7964 = vld [vmem:[%s2355 + $0x78] sm:$0xff]
      %7965 = vmatprep.subr.bf16.mxu0 %v7544
      %7966 = vmatpush1.bf16.msra.mxu0 %v7543
      %7967 = vmatprep.subr.bf16.mxu0 0
      %7968 = vmatpush1.bf16.msra.mxu0 0
      %7969 = vmatprep.subr.bf16.mxu0 0
      %7970 = vmatpush1.bf16.msra.mxu0 0
      %7971 = vmatprep.subr.bf16.mxu0 0
      %7972 = vmatpush1.bf16.msra.mxu0 0
      %7973 = vmatprep.subr.bf16.mxu0 0
      %7974 = vmatpush1.bf16.msra.mxu0 0
      %7975 = vmatprep.subr.bf16.mxu0 0
      %7976 = vmatpush1.bf16.msra.mxu0 0
      %7977 = vmatprep.subr.bf16.mxu0 0
      %7978 = vmatpush1.bf16.msra.mxu0 0
      %7979 = vmatprep.subr.bf16.mxu0 0
      %7980 = vmatpush1.bf16.msra.mxu0 0
      %7981 = vmatprep.subr.bf16.mxu0 0
      %7982 = vmatpush1.bf16.msra.mxu0 0
      %7983 = vmatprep.subr.bf16.mxu0 0
      %7984 = vmatpush1.bf16.msra.mxu0 0
      %7985 = vmatprep.subr.bf16.mxu0 0
      %7986 = vmatpush1.bf16.msra.mxu0 0
      %7987 = vmatprep.subr.bf16.mxu0 0
      %7988 = vmatpush1.bf16.msra.mxu0 0
      %7989 = vmatprep.subr.bf16.mxu0 0
      %7990 = vmatpush1.bf16.msra.mxu0 0
      %7991 = vmatprep.subr.bf16.mxu0 0
      %7992 = vmatpush1.bf16.msra.mxu0 0
      %7993 = vmatprep.subr.bf16.mxu0 0
      %7994 = vmatpush1.bf16.msra.mxu0 0
      %7995 = vmatprep.subr.bf16.mxu0 0
      %7996 = vmatpush1.bf16.msra.mxu0 0
      %7997 = vmatprep.mubr.bf16.mxu0 0
      %7998 = vmatmul.mubr.bf16.gmra.mrb[0].mxu0 %v7591
      %v7999 = vpop.f32.mrb[0].mxu0
      %v8000 = vadd.f32 0.0, %v7999
      %v8001 = vpop.f32.mrb[0].mxu0
      %v8002 = vadd.f32 0.0, %v8001
      %v8003 = vpop.f32.mrb[0].mxu0
      %v8004 = vadd.f32 0.0, %v8003
      %v8005 = vpop.f32.mrb[0].mxu0
      %v8006 = vadd.f32 0.0, %v8005
      %8007 = vmatprep.mubr.bf16.mxu0 0
      %8008 = vmatmul.mubr.bf16.gmra.mrb[0].mxu0 %v7594
      %v8009 = vpop.f32.mrb[0].mxu0
      %v8010 = vadd.f32 0.0, %v8009
      %v8011 = vpop.f32.mrb[0].mxu0
      %v8012 = vadd.f32 0.0, %v8011
      %v8013 = vpop.f32.mrb[0].mxu0
      %v8014 = vadd.f32 0.0, %v8013
      %v8015 = vpop.f32.mrb[0].mxu0
      %v8016 = vadd.f32 0.0, %v8015
      %8017 = vmatprep.mubr.bf16.mxu0 0
      %8018 = vmatmul.mubr.bf16.gmra.mrb[0].mxu0 %v7597
      %v8019 = vpop.f32.mrb[0].mxu0
      %v8020 = vadd.f32 0.0, %v8019
      %v8021 = vpop.f32.mrb[0].mxu0
      %v8022 = vadd.f32 0.0, %v8021
      %v8023 = vpop.f32.mrb[0].mxu0
      %v8024 = vadd.f32 0.0, %v8023
      %v8025 = vpop.f32.mrb[0].mxu0
      %v8026 = vadd.f32 0.0, %v8025
      %8027 = vmatprep.mubr.bf16.mxu0 0
      %8028 = vmatmul.mubr.bf16.gmra.mrb[0].mxu0 %v7600
      %v8029 = vpop.f32.mrb[0].mxu0
      %v8030 = vadd.f32 0.0, %v8029
      %v8031 = vpop.f32.mrb[0].mxu0
      %v8032 = vadd.f32 0.0, %v8031
      %v8033 = vpop.f32.mrb[0].mxu0
      %v8034 = vadd.f32 0.0, %v8033
      %v8035 = vpop.f32.mrb[0].mxu0
      %v8036 = vadd.f32 0.0, %v8035
      %8037 = vdwg.mxu0
      %v8038 = vadd.f32 %v7949, %v8000
      %v8039 = vadd.f32 %v7950, %v8002
      %v8040 = vadd.f32 %v7951, %v8004
      %v8041 = vadd.f32 %v7952, %v8006
      %v8042 = vadd.f32 %v7953, %v8010
      %v8043 = vadd.f32 %v7954, %v8012
      %v8044 = vadd.f32 %v7955, %v8014
      %v8045 = vadd.f32 %v7956, %v8016
      %v8046 = vadd.f32 %v7957, %v8020
      %v8047 = vadd.f32 %v7958, %v8022
      %v8048 = vadd.f32 %v7959, %v8024
      %v8049 = vadd.f32 %v7960, %v8026
      %v8050 = vadd.f32 %v7961, %v8030
      %v8051 = vadd.f32 %v7962, %v8032
      %v8052 = vadd.f32 %v7963, %v8034
      %v8053 = vadd.f32 %v7964, %v8036
      %8054 = vst [vmem:[%s2355] sm:$0xff] %v8038
      %8055 = vst [vmem:[%s2355 + $0x8] sm:$0xff] %v8039
      %8056 = vst [vmem:[%s2355 + $0x10] sm:$0xff] %v8040
      %8057 = vst [vmem:[%s2355 + $0x18] sm:$0xff] %v8041
      %8058 = vst [vmem:[%s2355 + $0x20] sm:$0xff] %v8042
      %8059 = vst [vmem:[%s2355 + $0x28] sm:$0xff] %v8043
      %8060 = vst [vmem:[%s2355 + $0x30] sm:$0xff] %v8044
      %8061 = vst [vmem:[%s2355 + $0x38] sm:$0xff] %v8045
      %8062 = vst [vmem:[%s2355 + $0x40] sm:$0xff] %v8046
      %8063 = vst [vmem:[%s2355 + $0x48] sm:$0xff] %v8047
      %8064 = vst [vmem:[%s2355 + $0x50] sm:$0xff] %v8048
      %8065 = vst [vmem:[%s2355 + $0x58] sm:$0xff] %v8049
      %8066 = vst [vmem:[%s2355 + $0x60] sm:$0xff] %v8050
      %8067 = vst [vmem:[%s2355 + $0x68] sm:$0xff] %v8051
      %8068 = vst [vmem:[%s2355 + $0x70] sm:$0xff] %v8052
      %8069 = vst [vmem:[%s2355 + $0x78] sm:$0xff] %v8053
      %s8070 = scalar_lea.vmem %s5, 2048
      %v8071 = vld [vmem:[%s8070] sm:$0xff]
      %v8072 = vld [vmem:[%s8070 + $0x8] sm:$0xff]
      %v8073 = vld [vmem:[%s8070 + $0x10] sm:$0xff]
      %v8074 = vld [vmem:[%s8070 + $0x18] sm:$0xff]
      %v8075 = vld [vmem:[%s8070 + $0x20] sm:$0xff]
      %v8076 = vld [vmem:[%s8070 + $0x28] sm:$0xff]
      %v8077 = vld [vmem:[%s8070 + $0x30] sm:$0xff]
      %v8078 = vld [vmem:[%s8070 + $0x38] sm:$0xff]
      %v8079 = vld [vmem:[%s8070 + $0x40] sm:$0xff]
      %v8080 = vld [vmem:[%s8070 + $0x48] sm:$0xff]
      %v8081 = vld [vmem:[%s8070 + $0x50] sm:$0xff]
      %v8082 = vld [vmem:[%s8070 + $0x58] sm:$0xff]
      %v8083 = vld [vmem:[%s8070 + $0x60] sm:$0xff]
      %v8084 = vld [vmem:[%s8070 + $0x68] sm:$0xff]
      %v8085 = vld [vmem:[%s8070 + $0x70] sm:$0xff]
      %v8086 = vld [vmem:[%s8070 + $0x78] sm:$0xff]
      %v8087 = vld [vmem:[%s8070 + $0x80] sm:$0xff]
      %v8088 = vld [vmem:[%s8070 + $0x88] sm:$0xff]
      %v8089 = vld [vmem:[%s8070 + $0x90] sm:$0xff]
      %v8090 = vld [vmem:[%s8070 + $0x98] sm:$0xff]
      %v8091 = vld [vmem:[%s8070 + $0xa0] sm:$0xff]
      %v8092 = vld [vmem:[%s8070 + $0xa8] sm:$0xff]
      %v8093 = vld [vmem:[%s8070 + $0xb0] sm:$0xff]
      %v8094 = vld [vmem:[%s8070 + $0xb8] sm:$0xff]
      %v8095 = vld [vmem:[%s8070 + $0xc0] sm:$0xff]
      %v8096 = vld [vmem:[%s8070 + $0xc8] sm:$0xff]
      %v8097 = vld [vmem:[%s8070 + $0xd0] sm:$0xff]
      %v8098 = vld [vmem:[%s8070 + $0xd8] sm:$0xff]
      %v8099 = vld [vmem:[%s8070 + $0xe0] sm:$0xff]
      %v8100 = vld [vmem:[%s8070 + $0xe8] sm:$0xff]
      %v8101 = vld [vmem:[%s8070 + $0xf0] sm:$0xff]
      %v8102 = vld [vmem:[%s8070 + $0xf8] sm:$0xff]
      %v8135 = vunpack.c.l.b16 %v8071
      %v8136 = vunpack.c.h.b16 %v8071
      %v8137 = vunpack.c.l.b16 %v8072
      %v8138 = vunpack.c.h.b16 %v8072
      %v8139 = vunpack.c.l.b16 %v8073
      %v8140 = vunpack.c.h.b16 %v8073
      %v8141 = vunpack.c.l.b16 %v8074
      %v8142 = vunpack.c.h.b16 %v8074
      %v8143 = vunpack.c.l.b16 %v8075
      %v8144 = vunpack.c.h.b16 %v8075
      %v8145 = vunpack.c.l.b16 %v8076
      %v8146 = vunpack.c.h.b16 %v8076
      %v8147 = vunpack.c.l.b16 %v8077
      %v8148 = vunpack.c.h.b16 %v8077
      %v8149 = vunpack.c.l.b16 %v8078
      %v8150 = vunpack.c.h.b16 %v8078
      %v8151 = vunpack.c.l.b16 %v8079
      %v8152 = vunpack.c.h.b16 %v8079
      %v8153 = vunpack.c.l.b16 %v8080
      %v8154 = vunpack.c.h.b16 %v8080
      %v8155 = vunpack.c.l.b16 %v8081
      %v8156 = vunpack.c.h.b16 %v8081
      %v8157 = vunpack.c.l.b16 %v8082
      %v8158 = vunpack.c.h.b16 %v8082
      %v8159 = vunpack.c.l.b16 %v8083
      %v8160 = vunpack.c.h.b16 %v8083
      %v8161 = vunpack.c.l.b16 %v8084
      %v8162 = vunpack.c.h.b16 %v8084
      %v8163 = vunpack.c.l.b16 %v8085
      %v8164 = vunpack.c.h.b16 %v8085
      %v8165 = vunpack.c.l.b16 %v8086
      %v8166 = vunpack.c.h.b16 %v8086
      %v8167 = vunpack.c.l.b16 %v8087
      %v8168 = vunpack.c.h.b16 %v8087
      %v8169 = vunpack.c.l.b16 %v8088
      %v8170 = vunpack.c.h.b16 %v8088
      %v8171 = vunpack.c.l.b16 %v8089
      %v8172 = vunpack.c.h.b16 %v8089
      %v8173 = vunpack.c.l.b16 %v8090
      %v8174 = vunpack.c.h.b16 %v8090
      %v8175 = vunpack.c.l.b16 %v8091
      %v8176 = vunpack.c.h.b16 %v8091
      %v8177 = vunpack.c.l.b16 %v8092
      %v8178 = vunpack.c.h.b16 %v8092
      %v8179 = vunpack.c.l.b16 %v8093
      %v8180 = vunpack.c.h.b16 %v8093
      %v8181 = vunpack.c.l.b16 %v8094
      %v8182 = vunpack.c.h.b16 %v8094
      %v8183 = vunpack.c.l.b16 %v8095
      %v8184 = vunpack.c.h.b16 %v8095
      %v8185 = vunpack.c.l.b16 %v8096
      %v8186 = vunpack.c.h.b16 %v8096
      %v8187 = vunpack.c.l.b16 %v8097
      %v8188 = vunpack.c.h.b16 %v8097
      %v8189 = vunpack.c.l.b16 %v8098
      %v8190 = vunpack.c.h.b16 %v8098
      %v8191 = vunpack.c.l.b16 %v8099
      %v8192 = vunpack.c.h.b16 %v8099
      %v8193 = vunpack.c.l.b16 %v8100
      %v8194 = vunpack.c.h.b16 %v8100
      %v8195 = vunpack.c.l.b16 %v8101
      %v8196 = vunpack.c.h.b16 %v8101
      %v8197 = vunpack.c.l.b16 %v8102
      %v8198 = vunpack.c.h.b16 %v8102
      %v8199 = vpack.c.b16 %v8137, %v8135
      %v8200 = vpack.c.b16 %v8138, %v8136
      %v8201 = vpack.c.b16 %v8141, %v8139
      %v8202 = vpack.c.b16 %v8142, %v8140
      %v8203 = vpack.c.b16 %v8145, %v8143
      %v8204 = vpack.c.b16 %v8146, %v8144
      %v8205 = vpack.c.b16 %v8149, %v8147
      %v8206 = vpack.c.b16 %v8150, %v8148
      %v8207 = vpack.c.b16 %v8153, %v8151
      %v8208 = vpack.c.b16 %v8154, %v8152
      %v8209 = vpack.c.b16 %v8157, %v8155
      %v8210 = vpack.c.b16 %v8158, %v8156
      %v8211 = vpack.c.b16 %v8161, %v8159
      %v8212 = vpack.c.b16 %v8162, %v8160
      %v8213 = vpack.c.b16 %v8165, %v8163
      %v8214 = vpack.c.b16 %v8166, %v8164
      %v8215 = vpack.c.b16 %v8169, %v8167
      %v8216 = vpack.c.b16 %v8170, %v8168
      %v8217 = vpack.c.b16 %v8173, %v8171
      %v8218 = vpack.c.b16 %v8174, %v8172
      %v8219 = vpack.c.b16 %v8177, %v8175
      %v8220 = vpack.c.b16 %v8178, %v8176
      %v8221 = vpack.c.b16 %v8181, %v8179
      %v8222 = vpack.c.b16 %v8182, %v8180
      %v8223 = vpack.c.b16 %v8185, %v8183
      %v8224 = vpack.c.b16 %v8186, %v8184
      %v8225 = vpack.c.b16 %v8189, %v8187
      %v8226 = vpack.c.b16 %v8190, %v8188
      %v8227 = vpack.c.b16 %v8193, %v8191
      %v8228 = vpack.c.b16 %v8194, %v8192
      %v8229 = vpack.c.b16 %v8197, %v8195
      %v8230 = vpack.c.b16 %v8198, %v8196
      %8263 = vmatprep.subr.bf16.mxu0 %v8200
      %8264 = vmatpush1.bf16.msra.mxu0 %v8199
      %8265 = vmatprep.subr.bf16.mxu0 %v8202
      %8266 = vmatpush1.bf16.msra.mxu0 %v8201
      %8267 = vmatprep.subr.bf16.mxu0 %v8204
      %8268 = vmatpush1.bf16.msra.mxu0 %v8203
      %8269 = vmatprep.subr.bf16.mxu0 %v8206
      %8270 = vmatpush1.bf16.msra.mxu0 %v8205
      %8271 = vmatprep.subr.bf16.mxu0 %v8208
      %8272 = vmatpush1.bf16.msra.mxu0 %v8207
      %8273 = vmatprep.subr.bf16.mxu0 %v8210
      %8274 = vmatpush1.bf16.msra.mxu0 %v8209
      %8275 = vmatprep.subr.bf16.mxu0 %v8212
      %8276 = vmatpush1.bf16.msra.mxu0 %v8211
      %8277 = vmatprep.subr.bf16.mxu0 %v8214
      %8278 = vmatpush1.bf16.msra.mxu0 %v8213
      %8279 = vmatprep.subr.bf16.mxu0 %v8216
      %8280 = vmatpush1.bf16.msra.mxu0 %v8215
      %8281 = vmatprep.subr.bf16.mxu0 %v8218
      %8282 = vmatpush1.bf16.msra.mxu0 %v8217
      %8283 = vmatprep.subr.bf16.mxu0 %v8220
      %8284 = vmatpush1.bf16.msra.mxu0 %v8219
      %8285 = vmatprep.subr.bf16.mxu0 %v8222
      %8286 = vmatpush1.bf16.msra.mxu0 %v8221
      %8287 = vmatprep.subr.bf16.mxu0 %v8224
      %8288 = vmatpush1.bf16.msra.mxu0 %v8223
      %8289 = vmatprep.subr.bf16.mxu0 %v8226
      %8290 = vmatpush1.bf16.msra.mxu0 %v8225
      %8291 = vmatprep.subr.bf16.mxu0 %v8228
      %8292 = vmatpush1.bf16.msra.mxu0 %v8227
      %8293 = vmatprep.subr.bf16.mxu0 %v8230
      %8294 = vmatpush1.bf16.msra.mxu0 %v8229
      %8295 = vmatprep.mubr.bf16.mxu0 %v1605
      %8296 = vmatmul.mubr.bf16.gmra.mrb[0].mxu0 %v1604
      %v8297 = vpop.f32.mrb[0].mxu0
      %v8298 = vadd.f32 0.0, %v8297
      %v8299 = vpop.f32.mrb[0].mxu0
      %v8300 = vadd.f32 0.0, %v8299
      %v8301 = vpop.f32.mrb[0].mxu0
      %v8302 = vadd.f32 0.0, %v8301
      %v8303 = vpop.f32.mrb[0].mxu0
      %v8304 = vadd.f32 0.0, %v8303
      %8305 = vmatprep.mubr.bf16.mxu0 %v1607
      %8306 = vmatmul.mubr.bf16.gmra.mrb[0].mxu0 %v1606
      %v8307 = vpop.f32.mrb[0].mxu0
      %v8308 = vadd.f32 0.0, %v8307
      %v8309 = vpop.f32.mrb[0].mxu0
      %v8310 = vadd.f32 0.0, %v8309
      %v8311 = vpop.f32.mrb[0].mxu0
      %v8312 = vadd.f32 0.0, %v8311
      %v8313 = vpop.f32.mrb[0].mxu0
      %v8314 = vadd.f32 0.0, %v8313
      %8315 = vmatprep.mubr.bf16.mxu0 %v1609
      %8316 = vmatmul.mubr.bf16.gmra.mrb[0].mxu0 %v1608
      %v8317 = vpop.f32.mrb[0].mxu0
      %v8318 = vadd.f32 0.0, %v8317
      %v8319 = vpop.f32.mrb[0].mxu0
      %v8320 = vadd.f32 0.0, %v8319
      %v8321 = vpop.f32.mrb[0].mxu0
      %v8322 = vadd.f32 0.0, %v8321
      %v8323 = vpop.f32.mrb[0].mxu0
      %v8324 = vadd.f32 0.0, %v8323
      %8325 = vmatprep.mubr.bf16.mxu0 %v1611
      %8326 = vmatmul.mubr.bf16.gmra.mrb[0].mxu0 %v1610
      %v8327 = vpop.f32.mrb[0].mxu0
      %v8328 = vadd.f32 0.0, %v8327
      %v8329 = vpop.f32.mrb[0].mxu0
      %v8330 = vadd.f32 0.0, %v8329
      %v8331 = vpop.f32.mrb[0].mxu0
      %v8332 = vadd.f32 0.0, %v8331
      %v8333 = vpop.f32.mrb[0].mxu0
      %v8334 = vadd.f32 0.0, %v8333
      %8335 = vdwg.mxu0
      %v8336 = vpack.c.bf16 %v8302, %v8298
      %v8337 = vpack.c.bf16 %v8304, %v8300
      %v8338 = vpack.c.bf16 %v8312, %v8308
      %v8339 = vpack.c.bf16 %v8314, %v8310
      %v8340 = vpack.c.bf16 %v8322, %v8318
      %v8341 = vpack.c.bf16 %v8324, %v8320
      %v8342 = vpack.c.bf16 %v8332, %v8328
      %v8343 = vpack.c.bf16 %v8334, %v8330
      %s8344 = scalar_lea.vmem %s4, 256
      %v8345 = vld [vmem:[%s8344] sm:$0xf]
      %v8346 = vld [vmem:[%s8344 + $0x4] sm:$0xf]
      %v8347 = vld [vmem:[%s8344 + $0x8] sm:$0xf]
      %v8348 = vld [vmem:[%s8344 + $0xc] sm:$0xf]
      %v8349 = vld [vmem:[%s8344 + $0x10] sm:$0xf]
      %v8350 = vld [vmem:[%s8344 + $0x14] sm:$0xf]
      %v8351 = vld [vmem:[%s8344 + $0x18] sm:$0xf]
      %v8352 = vld [vmem:[%s8344 + $0x1c] sm:$0xf]
      %v8353 = vld [vmem:[#allocation2] sm:$0xff]
      %v8354 = vld [vmem:[#allocation2 + $0x8] sm:$0xff]
      %v8355 = vld [vmem:[#allocation2 + $0x10] sm:$0xff]
      %v8356 = vld [vmem:[#allocation2 + $0x18] sm:$0xff]
      %v8357 = vld [vmem:[#allocation2 + $0x20] sm:$0xff]
      %v8358 = vld [vmem:[#allocation2 + $0x28] sm:$0xff]
      %v8359 = vld [vmem:[#allocation2 + $0x30] sm:$0xff]
      %v8360 = vld [vmem:[#allocation2 + $0x38] sm:$0xff]
      %v8361 = vld [vmem:[#allocation2 + $0x40] sm:$0xff]
      %v8362 = vld [vmem:[#allocation2 + $0x48] sm:$0xff]
      %v8363 = vld [vmem:[#allocation2 + $0x50] sm:$0xff]
      %v8364 = vld [vmem:[#allocation2 + $0x58] sm:$0xff]
      %v8365 = vld [vmem:[#allocation2 + $0x60] sm:$0xff]
      %v8366 = vld [vmem:[#allocation2 + $0x68] sm:$0xff]
      %v8367 = vld [vmem:[#allocation2 + $0x70] sm:$0xff]
      %v8368 = vld [vmem:[#allocation2 + $0x78] sm:$0xff]
      %v8377 = vunpack.c.l.b16 %v8345
      %v8378 = vunpack.c.l.b16 %v8346
      %v8379 = vunpack.c.l.b16 %v8347
      %v8380 = vunpack.c.l.b16 %v8348
      %v8381 = vunpack.c.l.b16 %v8349
      %v8382 = vunpack.c.l.b16 %v8350
      %v8383 = vunpack.c.l.b16 %v8351
      %v8384 = vunpack.c.l.b16 %v8352
      %v8385 = vpack.c.b16 %v8378, %v8377
      %v8386 = vpack.c.b16 %v8380, %v8379
      %v8387 = vpack.c.b16 %v8382, %v8381
      %v8388 = vpack.c.b16 %v8384, %v8383
      %v8390 = vsel %vm1993, %v8385, 0
      %v8393 = vsel %vm1993, %v8386, 0
      %v8396 = vsel %vm1993, %v8387, 0
      %v8399 = vsel %vm1993, %v8388, 0
      %8401 = vmatprep.subr.bf16.mxu0 %v8337
      %8402 = vmatpush1.bf16.msra.mxu0 %v8336
      %8403 = vmatprep.subr.bf16.mxu0 0
      %8404 = vmatpush1.bf16.msra.mxu0 0
      %8405 = vmatprep.subr.bf16.mxu0 0
      %8406 = vmatpush1.bf16.msra.mxu0 0
      %8407 = vmatprep.subr.bf16.mxu0 0
      %8408 = vmatpush1.bf16.msra.mxu0 0
      %8409 = vmatprep.subr.bf16.mxu0 0
      %8410 = vmatpush1.bf16.msra.mxu0 0
      %8411 = vmatprep.subr.bf16.mxu0 0
      %8412 = vmatpush1.bf16.msra.mxu0 0
      %8413 = vmatprep.subr.bf16.mxu0 0
      %8414 = vmatpush1.bf16.msra.mxu0 0
      %8415 = vmatprep.subr.bf16.mxu0 0
      %8416 = vmatpush1.bf16.msra.mxu0 0
      %8417 = vmatprep.subr.bf16.mxu0 0
      %8418 = vmatpush1.bf16.msra.mxu0 0
      %8419 = vmatprep.subr.bf16.mxu0 0
      %8420 = vmatpush1.bf16.msra.mxu0 0
      %8421 = vmatprep.subr.bf16.mxu0 0
      %8422 = vmatpush1.bf16.msra.mxu0 0
      %8423 = vmatprep.subr.bf16.mxu0 0
      %8424 = vmatpush1.bf16.msra.mxu0 0
      %8425 = vmatprep.subr.bf16.mxu0 0
      %8426 = vmatpush1.bf16.msra.mxu0 0
      %8427 = vmatprep.subr.bf16.mxu0 0
      %8428 = vmatpush1.bf16.msra.mxu0 0
      %8429 = vmatprep.subr.bf16.mxu0 0
      %8430 = vmatpush1.bf16.msra.mxu0 0
      %8431 = vmatprep.subr.bf16.mxu0 0
      %8432 = vmatpush1.bf16.msra.mxu0 0
      %8433 = vmatprep.mubr.bf16.mxu0 0
      %8434 = vmatmul.mubr.bf16.gmra.mrb[0].mxu0 %v8390
      %v8435 = vpop.f32.mrb[0].mxu0
      %v8436 = vadd.f32 0.0, %v8435
      %v8437 = vpop.f32.mrb[0].mxu0
      %v8438 = vadd.f32 0.0, %v8437
      %v8439 = vpop.f32.mrb[0].mxu0
      %v8440 = vadd.f32 0.0, %v8439
      %v8441 = vpop.f32.mrb[0].mxu0
      %v8442 = vadd.f32 0.0, %v8441
      %8443 = vmatprep.mubr.bf16.mxu0 0
      %8444 = vmatmul.mubr.bf16.gmra.mrb[0].mxu0 %v8393
      %v8445 = vpop.f32.mrb[0].mxu0
      %v8446 = vadd.f32 0.0, %v8445
      %v8447 = vpop.f32.mrb[0].mxu0
      %v8448 = vadd.f32 0.0, %v8447
      %v8449 = vpop.f32.mrb[0].mxu0
      %v8450 = vadd.f32 0.0, %v8449
      %v8451 = vpop.f32.mrb[0].mxu0
      %v8452 = vadd.f32 0.0, %v8451
      %8453 = vmatprep.mubr.bf16.mxu0 0
      %8454 = vmatmul.mubr.bf16.gmra.mrb[0].mxu0 %v8396
      %v8455 = vpop.f32.mrb[0].mxu0
      %v8456 = vadd.f32 0.0, %v8455
      %v8457 = vpop.f32.mrb[0].mxu0
      %v8458 = vadd.f32 0.0, %v8457
      %v8459 = vpop.f32.mrb[0].mxu0
      %v8460 = vadd.f32 0.0, %v8459
      %v8461 = vpop.f32.mrb[0].mxu0
      %v8462 = vadd.f32 0.0, %v8461
      %8463 = vmatprep.mubr.bf16.mxu0 0
      %8464 = vmatmul.mubr.bf16.gmra.mrb[0].mxu0 %v8399
      %v8465 = vpop.f32.mrb[0].mxu0
      %v8466 = vadd.f32 0.0, %v8465
      %v8467 = vpop.f32.mrb[0].mxu0
      %v8468 = vadd.f32 0.0, %v8467
      %v8469 = vpop.f32.mrb[0].mxu0
      %v8470 = vadd.f32 0.0, %v8469
      %v8471 = vpop.f32.mrb[0].mxu0
      %v8472 = vadd.f32 0.0, %v8471
      %8473 = vdwg.mxu0
      %v8474 = vadd.f32 %v8353, %v8436
      %v8475 = vadd.f32 %v8354, %v8438
      %v8476 = vadd.f32 %v8355, %v8440
      %v8477 = vadd.f32 %v8356, %v8442
      %v8478 = vadd.f32 %v8357, %v8446
      %v8479 = vadd.f32 %v8358, %v8448
      %v8480 = vadd.f32 %v8359, %v8450
      %v8481 = vadd.f32 %v8360, %v8452
      %v8482 = vadd.f32 %v8361, %v8456
      %v8483 = vadd.f32 %v8362, %v8458
      %v8484 = vadd.f32 %v8363, %v8460
      %v8485 = vadd.f32 %v8364, %v8462
      %v8486 = vadd.f32 %v8365, %v8466
      %v8487 = vadd.f32 %v8366, %v8468
      %v8488 = vadd.f32 %v8367, %v8470
      %v8489 = vadd.f32 %v8368, %v8472
      %8490 = vst [vmem:[#allocation2] sm:$0xff] %v8474
      %8491 = vst [vmem:[#allocation2 + $0x8] sm:$0xff] %v8475
      %8492 = vst [vmem:[#allocation2 + $0x10] sm:$0xff] %v8476
      %8493 = vst [vmem:[#allocation2 + $0x18] sm:$0xff] %v8477
      %8494 = vst [vmem:[#allocation2 + $0x20] sm:$0xff] %v8478
      %8495 = vst [vmem:[#allocation2 + $0x28] sm:$0xff] %v8479
      %8496 = vst [vmem:[#allocation2 + $0x30] sm:$0xff] %v8480
      %8497 = vst [vmem:[#allocation2 + $0x38] sm:$0xff] %v8481
      %8498 = vst [vmem:[#allocation2 + $0x40] sm:$0xff] %v8482
      %8499 = vst [vmem:[#allocation2 + $0x48] sm:$0xff] %v8483
      %8500 = vst [vmem:[#allocation2 + $0x50] sm:$0xff] %v8484
      %8501 = vst [vmem:[#allocation2 + $0x58] sm:$0xff] %v8485
      %8502 = vst [vmem:[#allocation2 + $0x60] sm:$0xff] %v8486
      %8503 = vst [vmem:[#allocation2 + $0x68] sm:$0xff] %v8487
      %8504 = vst [vmem:[#allocation2 + $0x70] sm:$0xff] %v8488
      %8505 = vst [vmem:[#allocation2 + $0x78] sm:$0xff] %v8489
      %v8506 = vld [vmem:[%s2111] sm:$0xff]
      %v8507 = vld [vmem:[%s2111 + $0x8] sm:$0xff]
      %v8508 = vld [vmem:[%s2111 + $0x10] sm:$0xff]
      %v8509 = vld [vmem:[%s2111 + $0x18] sm:$0xff]
      %v8510 = vld [vmem:[%s2111 + $0x20] sm:$0xff]
      %v8511 = vld [vmem:[%s2111 + $0x28] sm:$0xff]
      %v8512 = vld [vmem:[%s2111 + $0x30] sm:$0xff]
      %v8513 = vld [vmem:[%s2111 + $0x38] sm:$0xff]
      %v8514 = vld [vmem:[%s2111 + $0x40] sm:$0xff]
      %v8515 = vld [vmem:[%s2111 + $0x48] sm:$0xff]
      %v8516 = vld [vmem:[%s2111 + $0x50] sm:$0xff]
      %v8517 = vld [vmem:[%s2111 + $0x58] sm:$0xff]
      %v8518 = vld [vmem:[%s2111 + $0x60] sm:$0xff]
      %v8519 = vld [vmem:[%s2111 + $0x68] sm:$0xff]
      %v8520 = vld [vmem:[%s2111 + $0x70] sm:$0xff]
      %v8521 = vld [vmem:[%s2111 + $0x78] sm:$0xff]
      %8522 = vmatprep.subr.bf16.mxu0 %v8339
      %8523 = vmatpush1.bf16.msra.mxu0 %v8338
      %8524 = vmatprep.subr.bf16.mxu0 0
      %8525 = vmatpush1.bf16.msra.mxu0 0
      %8526 = vmatprep.subr.bf16.mxu0 0
      %8527 = vmatpush1.bf16.msra.mxu0 0
      %8528 = vmatprep.subr.bf16.mxu0 0
      %8529 = vmatpush1.bf16.msra.mxu0 0
      %8530 = vmatprep.subr.bf16.mxu0 0
      %8531 = vmatpush1.bf16.msra.mxu0 0
      %8532 = vmatprep.subr.bf16.mxu0 0
      %8533 = vmatpush1.bf16.msra.mxu0 0
      %8534 = vmatprep.subr.bf16.mxu0 0
      %8535 = vmatpush1.bf16.msra.mxu0 0
      %8536 = vmatprep.subr.bf16.mxu0 0
      %8537 = vmatpush1.bf16.msra.mxu0 0
      %8538 = vmatprep.subr.bf16.mxu0 0
      %8539 = vmatpush1.bf16.msra.mxu0 0
      %8540 = vmatprep.subr.bf16.mxu0 0
      %8541 = vmatpush1.bf16.msra.mxu0 0
      %8542 = vmatprep.subr.bf16.mxu0 0
      %8543 = vmatpush1.bf16.msra.mxu0 0
      %8544 = vmatprep.subr.bf16.mxu0 0
      %8545 = vmatpush1.bf16.msra.mxu0 0
      %8546 = vmatprep.subr.bf16.mxu0 0
      %8547 = vmatpush1.bf16.msra.mxu0 0
      %8548 = vmatprep.subr.bf16.mxu0 0
      %8549 = vmatpush1.bf16.msra.mxu0 0
      %8550 = vmatprep.subr.bf16.mxu0 0
      %8551 = vmatpush1.bf16.msra.mxu0 0
      %8552 = vmatprep.subr.bf16.mxu0 0
      %8553 = vmatpush1.bf16.msra.mxu0 0
      %8554 = vmatprep.mubr.bf16.mxu0 0
      %8555 = vmatmul.mubr.bf16.gmra.mrb[0].mxu0 %v8390
      %v8556 = vpop.f32.mrb[0].mxu0
      %v8557 = vadd.f32 0.0, %v8556
      %v8558 = vpop.f32.mrb[0].mxu0
      %v8559 = vadd.f32 0.0, %v8558
      %v8560 = vpop.f32.mrb[0].mxu0
      %v8561 = vadd.f32 0.0, %v8560
      %v8562 = vpop.f32.mrb[0].mxu0
      %v8563 = vadd.f32 0.0, %v8562
      %8564 = vmatprep.mubr.bf16.mxu0 0
      %8565 = vmatmul.mubr.bf16.gmra.mrb[0].mxu0 %v8393
      %v8566 = vpop.f32.mrb[0].mxu0
      %v8567 = vadd.f32 0.0, %v8566
      %v8568 = vpop.f32.mrb[0].mxu0
      %v8569 = vadd.f32 0.0, %v8568
      %v8570 = vpop.f32.mrb[0].mxu0
      %v8571 = vadd.f32 0.0, %v8570
      %v8572 = vpop.f32.mrb[0].mxu0
      %v8573 = vadd.f32 0.0, %v8572
      %8574 = vmatprep.mubr.bf16.mxu0 0
      %8575 = vmatmul.mubr.bf16.gmra.mrb[0].mxu0 %v8396
      %v8576 = vpop.f32.mrb[0].mxu0
      %v8577 = vadd.f32 0.0, %v8576
      %v8578 = vpop.f32.mrb[0].mxu0
      %v8579 = vadd.f32 0.0, %v8578
      %v8580 = vpop.f32.mrb[0].mxu0
      %v8581 = vadd.f32 0.0, %v8580
      %v8582 = vpop.f32.mrb[0].mxu0
      %v8583 = vadd.f32 0.0, %v8582
      %8584 = vmatprep.mubr.bf16.mxu0 0
      %8585 = vmatmul.mubr.bf16.gmra.mrb[0].mxu0 %v8399
      %v8586 = vpop.f32.mrb[0].mxu0
      %v8587 = vadd.f32 0.0, %v8586
      %v8588 = vpop.f32.mrb[0].mxu0
      %v8589 = vadd.f32 0.0, %v8588
      %v8590 = vpop.f32.mrb[0].mxu0
      %v8591 = vadd.f32 0.0, %v8590
      %v8592 = vpop.f32.mrb[0].mxu0
      %v8593 = vadd.f32 0.0, %v8592
      %8594 = vdwg.mxu0
      %v8595 = vadd.f32 %v8506, %v8557
      %v8596 = vadd.f32 %v8507, %v8559
      %v8597 = vadd.f32 %v8508, %v8561
      %v8598 = vadd.f32 %v8509, %v8563
      %v8599 = vadd.f32 %v8510, %v8567
      %v8600 = vadd.f32 %v8511, %v8569
      %v8601 = vadd.f32 %v8512, %v8571
      %v8602 = vadd.f32 %v8513, %v8573
      %v8603 = vadd.f32 %v8514, %v8577
      %v8604 = vadd.f32 %v8515, %v8579
      %v8605 = vadd.f32 %v8516, %v8581
      %v8606 = vadd.f32 %v8517, %v8583
      %v8607 = vadd.f32 %v8518, %v8587
      %v8608 = vadd.f32 %v8519, %v8589
      %v8609 = vadd.f32 %v8520, %v8591
      %v8610 = vadd.f32 %v8521, %v8593
      %8611 = vst [vmem:[%s2111] sm:$0xff] %v8595
      %8612 = vst [vmem:[%s2111 + $0x8] sm:$0xff] %v8596
      %8613 = vst [vmem:[%s2111 + $0x10] sm:$0xff] %v8597
      %8614 = vst [vmem:[%s2111 + $0x18] sm:$0xff] %v8598
      %8615 = vst [vmem:[%s2111 + $0x20] sm:$0xff] %v8599
      %8616 = vst [vmem:[%s2111 + $0x28] sm:$0xff] %v8600
      %8617 = vst [vmem:[%s2111 + $0x30] sm:$0xff] %v8601
      %8618 = vst [vmem:[%s2111 + $0x38] sm:$0xff] %v8602
      %8619 = vst [vmem:[%s2111 + $0x40] sm:$0xff] %v8603
      %8620 = vst [vmem:[%s2111 + $0x48] sm:$0xff] %v8604
      %8621 = vst [vmem:[%s2111 + $0x50] sm:$0xff] %v8605
      %8622 = vst [vmem:[%s2111 + $0x58] sm:$0xff] %v8606
      %8623 = vst [vmem:[%s2111 + $0x60] sm:$0xff] %v8607
      %8624 = vst [vmem:[%s2111 + $0x68] sm:$0xff] %v8608
      %8625 = vst [vmem:[%s2111 + $0x70] sm:$0xff] %v8609
      %8626 = vst [vmem:[%s2111 + $0x78] sm:$0xff] %v8610
      %v8627 = vld [vmem:[%s2233] sm:$0xff]
      %v8628 = vld [vmem:[%s2233 + $0x8] sm:$0xff]
      %v8629 = vld [vmem:[%s2233 + $0x10] sm:$0xff]
      %v8630 = vld [vmem:[%s2233 + $0x18] sm:$0xff]
      %v8631 = vld [vmem:[%s2233 + $0x20] sm:$0xff]
      %v8632 = vld [vmem:[%s2233 + $0x28] sm:$0xff]
      %v8633 = vld [vmem:[%s2233 + $0x30] sm:$0xff]
      %v8634 = vld [vmem:[%s2233 + $0x38] sm:$0xff]
      %v8635 = vld [vmem:[%s2233 + $0x40] sm:$0xff]
      %v8636 = vld [vmem:[%s2233 + $0x48] sm:$0xff]
      %v8637 = vld [vmem:[%s2233 + $0x50] sm:$0xff]
      %v8638 = vld [vmem:[%s2233 + $0x58] sm:$0xff]
      %v8639 = vld [vmem:[%s2233 + $0x60] sm:$0xff]
      %v8640 = vld [vmem:[%s2233 + $0x68] sm:$0xff]
      %v8641 = vld [vmem:[%s2233 + $0x70] sm:$0xff]
      %v8642 = vld [vmem:[%s2233 + $0x78] sm:$0xff]
      %8643 = vmatprep.subr.bf16.mxu0 %v8341
      %8644 = vmatpush1.bf16.msra.mxu0 %v8340
      %8645 = vmatprep.subr.bf16.mxu0 0
      %8646 = vmatpush1.bf16.msra.mxu0 0
      %8647 = vmatprep.subr.bf16.mxu0 0
      %8648 = vmatpush1.bf16.msra.mxu0 0
      %8649 = vmatprep.subr.bf16.mxu0 0
      %8650 = vmatpush1.bf16.msra.mxu0 0
      %8651 = vmatprep.subr.bf16.mxu0 0
      %8652 = vmatpush1.bf16.msra.mxu0 0
      %8653 = vmatprep.subr.bf16.mxu0 0
      %8654 = vmatpush1.bf16.msra.mxu0 0
      %8655 = vmatprep.subr.bf16.mxu0 0
      %8656 = vmatpush1.bf16.msra.mxu0 0
      %8657 = vmatprep.subr.bf16.mxu0 0
      %8658 = vmatpush1.bf16.msra.mxu0 0
      %8659 = vmatprep.subr.bf16.mxu0 0
      %8660 = vmatpush1.bf16.msra.mxu0 0
      %8661 = vmatprep.subr.bf16.mxu0 0
      %8662 = vmatpush1.bf16.msra.mxu0 0
      %8663 = vmatprep.subr.bf16.mxu0 0
      %8664 = vmatpush1.bf16.msra.mxu0 0
      %8665 = vmatprep.subr.bf16.mxu0 0
      %8666 = vmatpush1.bf16.msra.mxu0 0
      %8667 = vmatprep.subr.bf16.mxu0 0
      %8668 = vmatpush1.bf16.msra.mxu0 0
      %8669 = vmatprep.subr.bf16.mxu0 0
      %8670 = vmatpush1.bf16.msra.mxu0 0
      %8671 = vmatprep.subr.bf16.mxu0 0
      %8672 = vmatpush1.bf16.msra.mxu0 0
      %8673 = vmatprep.subr.bf16.mxu0 0
      %8674 = vmatpush1.bf16.msra.mxu0 0
      %8675 = vmatprep.mubr.bf16.mxu0 0
      %8676 = vmatmul.mubr.bf16.gmra.mrb[0].mxu0 %v8390
      %v8677 = vpop.f32.mrb[0].mxu0
      %v8678 = vadd.f32 0.0, %v8677
      %v8679 = vpop.f32.mrb[0].mxu0
      %v8680 = vadd.f32 0.0, %v8679
      %v8681 = vpop.f32.mrb[0].mxu0
      %v8682 = vadd.f32 0.0, %v8681
      %v8683 = vpop.f32.mrb[0].mxu0
      %v8684 = vadd.f32 0.0, %v8683
      %8685 = vmatprep.mubr.bf16.mxu0 0
      %8686 = vmatmul.mubr.bf16.gmra.mrb[0].mxu0 %v8393
      %v8687 = vpop.f32.mrb[0].mxu0
      %v8688 = vadd.f32 0.0, %v8687
      %v8689 = vpop.f32.mrb[0].mxu0
      %v8690 = vadd.f32 0.0, %v8689
      %v8691 = vpop.f32.mrb[0].mxu0
      %v8692 = vadd.f32 0.0, %v8691
      %v8693 = vpop.f32.mrb[0].mxu0
      %v8694 = vadd.f32 0.0, %v8693
      %8695 = vmatprep.mubr.bf16.mxu0 0
      %8696 = vmatmul.mubr.bf16.gmra.mrb[0].mxu0 %v8396
      %v8697 = vpop.f32.mrb[0].mxu0
      %v8698 = vadd.f32 0.0, %v8697
      %v8699 = vpop.f32.mrb[0].mxu0
      %v8700 = vadd.f32 0.0, %v8699
      %v8701 = vpop.f32.mrb[0].mxu0
      %v8702 = vadd.f32 0.0, %v8701
      %v8703 = vpop.f32.mrb[0].mxu0
      %v8704 = vadd.f32 0.0, %v8703
      %8705 = vmatprep.mubr.bf16.mxu0 0
      %8706 = vmatmul.mubr.bf16.gmra.mrb[0].mxu0 %v8399
      %v8707 = vpop.f32.mrb[0].mxu0
      %v8708 = vadd.f32 0.0, %v8707
      %v8709 = vpop.f32.mrb[0].mxu0
      %v8710 = vadd.f32 0.0, %v8709
      %v8711 = vpop.f32.mrb[0].mxu0
      %v8712 = vadd.f32 0.0, %v8711
      %v8713 = vpop.f32.mrb[0].mxu0
      %v8714 = vadd.f32 0.0, %v8713
      %8715 = vdwg.mxu0
      %v8716 = vadd.f32 %v8627, %v8678
      %v8717 = vadd.f32 %v8628, %v8680
      %v8718 = vadd.f32 %v8629, %v8682
      %v8719 = vadd.f32 %v8630, %v8684
      %v8720 = vadd.f32 %v8631, %v8688
      %v8721 = vadd.f32 %v8632, %v8690
      %v8722 = vadd.f32 %v8633, %v8692
      %v8723 = vadd.f32 %v8634, %v8694
      %v8724 = vadd.f32 %v8635, %v8698
      %v8725 = vadd.f32 %v8636, %v8700
      %v8726 = vadd.f32 %v8637, %v8702
      %v8727 = vadd.f32 %v8638, %v8704
      %v8728 = vadd.f32 %v8639, %v8708
      %v8729 = vadd.f32 %v8640, %v8710
      %v8730 = vadd.f32 %v8641, %v8712
      %v8731 = vadd.f32 %v8642, %v8714
      %8732 = vst [vmem:[%s2233] sm:$0xff] %v8716
      %8733 = vst [vmem:[%s2233 + $0x8] sm:$0xff] %v8717
      %8734 = vst [vmem:[%s2233 + $0x10] sm:$0xff] %v8718
      %8735 = vst [vmem:[%s2233 + $0x18] sm:$0xff] %v8719
      %8736 = vst [vmem:[%s2233 + $0x20] sm:$0xff] %v8720
      %8737 = vst [vmem:[%s2233 + $0x28] sm:$0xff] %v8721
      %8738 = vst [vmem:[%s2233 + $0x30] sm:$0xff] %v8722
      %8739 = vst [vmem:[%s2233 + $0x38] sm:$0xff] %v8723
      %8740 = vst [vmem:[%s2233 + $0x40] sm:$0xff] %v8724
      %8741 = vst [vmem:[%s2233 + $0x48] sm:$0xff] %v8725
      %8742 = vst [vmem:[%s2233 + $0x50] sm:$0xff] %v8726
      %8743 = vst [vmem:[%s2233 + $0x58] sm:$0xff] %v8727
      %8744 = vst [vmem:[%s2233 + $0x60] sm:$0xff] %v8728
      %8745 = vst [vmem:[%s2233 + $0x68] sm:$0xff] %v8729
      %8746 = vst [vmem:[%s2233 + $0x70] sm:$0xff] %v8730
      %8747 = vst [vmem:[%s2233 + $0x78] sm:$0xff] %v8731
      %v8748 = vld [vmem:[%s2355] sm:$0xff]
      %v8749 = vld [vmem:[%s2355 + $0x8] sm:$0xff]
      %v8750 = vld [vmem:[%s2355 + $0x10] sm:$0xff]
      %v8751 = vld [vmem:[%s2355 + $0x18] sm:$0xff]
      %v8752 = vld [vmem:[%s2355 + $0x20] sm:$0xff]
      %v8753 = vld [vmem:[%s2355 + $0x28] sm:$0xff]
      %v8754 = vld [vmem:[%s2355 + $0x30] sm:$0xff]
      %v8755 = vld [vmem:[%s2355 + $0x38] sm:$0xff]
      %v8756 = vld [vmem:[%s2355 + $0x40] sm:$0xff]
      %v8757 = vld [vmem:[%s2355 + $0x48] sm:$0xff]
      %v8758 = vld [vmem:[%s2355 + $0x50] sm:$0xff]
      %v8759 = vld [vmem:[%s2355 + $0x58] sm:$0xff]
      %v8760 = vld [vmem:[%s2355 + $0x60] sm:$0xff]
      %v8761 = vld [vmem:[%s2355 + $0x68] sm:$0xff]
      %v8762 = vld [vmem:[%s2355 + $0x70] sm:$0xff]
      %v8763 = vld [vmem:[%s2355 + $0x78] sm:$0xff]
      %8764 = vmatprep.subr.bf16.mxu0 %v8343
      %8765 = vmatpush1.bf16.msra.mxu0 %v8342
      %8766 = vmatprep.subr.bf16.mxu0 0
      %8767 = vmatpush1.bf16.msra.mxu0 0
      %8768 = vmatprep.subr.bf16.mxu0 0
      %8769 = vmatpush1.bf16.msra.mxu0 0
      %8770 = vmatprep.subr.bf16.mxu0 0
      %8771 = vmatpush1.bf16.msra.mxu0 0
      %8772 = vmatprep.subr.bf16.mxu0 0
      %8773 = vmatpush1.bf16.msra.mxu0 0
      %8774 = vmatprep.subr.bf16.mxu0 0
      %8775 = vmatpush1.bf16.msra.mxu0 0
      %8776 = vmatprep.subr.bf16.mxu0 0
      %8777 = vmatpush1.bf16.msra.mxu0 0
      %8778 = vmatprep.subr.bf16.mxu0 0
      %8779 = vmatpush1.bf16.msra.mxu0 0
      %8780 = vmatprep.subr.bf16.mxu0 0
      %8781 = vmatpush1.bf16.msra.mxu0 0
      %8782 = vmatprep.subr.bf16.mxu0 0
      %8783 = vmatpush1.bf16.msra.mxu0 0
      %8784 = vmatprep.subr.bf16.mxu0 0
      %8785 = vmatpush1.bf16.msra.mxu0 0
      %8786 = vmatprep.subr.bf16.mxu0 0
      %8787 = vmatpush1.bf16.msra.mxu0 0
      %8788 = vmatprep.subr.bf16.mxu0 0
      %8789 = vmatpush1.bf16.msra.mxu0 0
      %8790 = vmatprep.subr.bf16.mxu0 0
      %8791 = vmatpush1.bf16.msra.mxu0 0
      %8792 = vmatprep.subr.bf16.mxu0 0
      %8793 = vmatpush1.bf16.msra.mxu0 0
      %8794 = vmatprep.subr.bf16.mxu0 0
      %8795 = vmatpush1.bf16.msra.mxu0 0
      %8796 = vmatprep.mubr.bf16.mxu0 0
      %8797 = vmatmul.mubr.bf16.gmra.mrb[0].mxu0 %v8390
      %v8798 = vpop.f32.mrb[0].mxu0
      %v8799 = vadd.f32 0.0, %v8798
      %v8800 = vpop.f32.mrb[0].mxu0
      %v8801 = vadd.f32 0.0, %v8800
      %v8802 = vpop.f32.mrb[0].mxu0
      %v8803 = vadd.f32 0.0, %v8802
      %v8804 = vpop.f32.mrb[0].mxu0
      %v8805 = vadd.f32 0.0, %v8804
      %8806 = vmatprep.mubr.bf16.mxu0 0
      %8807 = vmatmul.mubr.bf16.gmra.mrb[0].mxu0 %v8393
      %v8808 = vpop.f32.mrb[0].mxu0
      %v8809 = vadd.f32 0.0, %v8808
      %v8810 = vpop.f32.mrb[0].mxu0
      %v8811 = vadd.f32 0.0, %v8810
      %v8812 = vpop.f32.mrb[0].mxu0
      %v8813 = vadd.f32 0.0, %v8812
      %v8814 = vpop.f32.mrb[0].mxu0
      %v8815 = vadd.f32 0.0, %v8814
      %8816 = vmatprep.mubr.bf16.mxu0 0
      %8817 = vmatmul.mubr.bf16.gmra.mrb[0].mxu0 %v8396
      %v8818 = vpop.f32.mrb[0].mxu0
      %v8819 = vadd.f32 0.0, %v8818
      %v8820 = vpop.f32.mrb[0].mxu0
      %v8821 = vadd.f32 0.0, %v8820
      %v8822 = vpop.f32.mrb[0].mxu0
      %v8823 = vadd.f32 0.0, %v8822
      %v8824 = vpop.f32.mrb[0].mxu0
      %v8825 = vadd.f32 0.0, %v8824
      %8826 = vmatprep.mubr.bf16.mxu0 0
      %8827 = vmatmul.mubr.bf16.gmra.mrb[0].mxu0 %v8399
      %v8828 = vpop.f32.mrb[0].mxu0
      %v8829 = vadd.f32 0.0, %v8828
      %v8830 = vpop.f32.mrb[0].mxu0
      %v8831 = vadd.f32 0.0, %v8830
      %v8832 = vpop.f32.mrb[0].mxu0
      %v8833 = vadd.f32 0.0, %v8832
      %v8834 = vpop.f32.mrb[0].mxu0
      %v8835 = vadd.f32 0.0, %v8834
      %8836 = vdwg.mxu0
      %v8837 = vadd.f32 %v8748, %v8799
      %v8838 = vadd.f32 %v8749, %v8801
      %v8839 = vadd.f32 %v8750, %v8803
      %v8840 = vadd.f32 %v8751, %v8805
      %v8841 = vadd.f32 %v8752, %v8809
      %v8842 = vadd.f32 %v8753, %v8811
      %v8843 = vadd.f32 %v8754, %v8813
      %v8844 = vadd.f32 %v8755, %v8815
      %v8845 = vadd.f32 %v8756, %v8819
      %v8846 = vadd.f32 %v8757, %v8821
      %v8847 = vadd.f32 %v8758, %v8823
      %v8848 = vadd.f32 %v8759, %v8825
      %v8849 = vadd.f32 %v8760, %v8829
      %v8850 = vadd.f32 %v8761, %v8831
      %v8851 = vadd.f32 %v8762, %v8833
      %v8852 = vadd.f32 %v8763, %v8835
      %8853 = vst [vmem:[%s2355] sm:$0xff] %v8837
      %8854 = vst [vmem:[%s2355 + $0x8] sm:$0xff] %v8838
      %8855 = vst [vmem:[%s2355 + $0x10] sm:$0xff] %v8839
      %8856 = vst [vmem:[%s2355 + $0x18] sm:$0xff] %v8840
      %8857 = vst [vmem:[%s2355 + $0x20] sm:$0xff] %v8841
      %8858 = vst [vmem:[%s2355 + $0x28] sm:$0xff] %v8842
      %8859 = vst [vmem:[%s2355 + $0x30] sm:$0xff] %v8843
      %8860 = vst [vmem:[%s2355 + $0x38] sm:$0xff] %v8844
      %8861 = vst [vmem:[%s2355 + $0x40] sm:$0xff] %v8845
      %8862 = vst [vmem:[%s2355 + $0x48] sm:$0xff] %v8846
      %8863 = vst [vmem:[%s2355 + $0x50] sm:$0xff] %v8847
      %8864 = vst [vmem:[%s2355 + $0x58] sm:$0xff] %v8848
      %8865 = vst [vmem:[%s2355 + $0x60] sm:$0xff] %v8849
      %8866 = vst [vmem:[%s2355 + $0x68] sm:$0xff] %v8850
      %8867 = vst [vmem:[%s2355 + $0x70] sm:$0xff] %v8851
      %8868 = vst [vmem:[%s2355 + $0x78] sm:$0xff] %v8852
      %v8869 = vld [vmem:[%s6] sm:$0x3]
      %v8870 = vld [vmem:[#allocation2] sm:$0xff]
      %v8871 = vld [vmem:[#allocation2 + $0x8] sm:$0xff]
      %v8872 = vld [vmem:[#allocation2 + $0x10] sm:$0xff]
      %v8873 = vld [vmem:[#allocation2 + $0x18] sm:$0xff]
      %v8874 = vld [vmem:[#allocation2 + $0x20] sm:$0xff]
      %v8875 = vld [vmem:[#allocation2 + $0x28] sm:$0xff]
      %v8876 = vld [vmem:[#allocation2 + $0x30] sm:$0xff]
      %v8877 = vld [vmem:[#allocation2 + $0x38] sm:$0xff]
      %v8878 = vld [vmem:[#allocation2 + $0x40] sm:$0xff]
      %v8879 = vld [vmem:[#allocation2 + $0x48] sm:$0xff]
      %v8880 = vld [vmem:[#allocation2 + $0x50] sm:$0xff]
      %v8881 = vld [vmem:[#allocation2 + $0x58] sm:$0xff]
      %v8882 = vld [vmem:[#allocation2 + $0x60] sm:$0xff]
      %v8883 = vld [vmem:[#allocation2 + $0x68] sm:$0xff]
      %v8884 = vld [vmem:[#allocation2 + $0x70] sm:$0xff]
      %v8885 = vld [vmem:[#allocation2 + $0x78] sm:$0xff]
      %v8887 = vlaneseq
      %v8888 = vshrl.u32 %v8887, 7
      %v8889 = vsub.s32 0, %v8888
      %v8890 = vrot.slane %v8869, %v8889
      %v8891 = vlaneseq
      %v8892 = vshrl.u32 %v8891, 7
      %v8893 = vsub.s32 1, %v8892
      %v8894 = vrot.slane %v8869, %v8893
      %v8897 = vadd.f32 %v8870, %v8890
      %v8898 = vadd.f32 %v8871, %v8894
      %v8899 = vadd.f32 %v8872, %v8890
      %v8900 = vadd.f32 %v8873, %v8894
      %v8901 = vadd.f32 %v8874, %v8890
      %v8902 = vadd.f32 %v8875, %v8894
      %v8903 = vadd.f32 %v8876, %v8890
      %v8904 = vadd.f32 %v8877, %v8894
      %v8905 = vadd.f32 %v8878, %v8890
      %v8906 = vadd.f32 %v8879, %v8894
      %v8907 = vadd.f32 %v8880, %v8890
      %v8908 = vadd.f32 %v8881, %v8894
      %v8909 = vadd.f32 %v8882, %v8890
      %v8910 = vadd.f32 %v8883, %v8894
      %v8911 = vadd.f32 %v8884, %v8890
      %v8912 = vadd.f32 %v8885, %v8894
      %v8913 = vmax.f32 %v8897, 0.0
      %v8914 = vmax.f32 %v8898, 0.0
      %v8915 = vmax.f32 %v8899, 0.0
      %v8916 = vmax.f32 %v8900, 0.0
      %v8917 = vmax.f32 %v8901, 0.0
      %v8918 = vmax.f32 %v8902, 0.0
      %v8919 = vmax.f32 %v8903, 0.0
      %v8920 = vmax.f32 %v8904, 0.0
      %v8921 = vmax.f32 %v8905, 0.0
      %v8922 = vmax.f32 %v8906, 0.0
      %v8923 = vmax.f32 %v8907, 0.0
      %v8924 = vmax.f32 %v8908, 0.0
      %v8925 = vmax.f32 %v8909, 0.0
      %v8926 = vmax.f32 %v8910, 0.0
      %v8927 = vmax.f32 %v8911, 0.0
      %v8928 = vmax.f32 %v8912, 0.0
      %v8929 = vpack.c.bf16 %v8915, %v8913
      %v8930 = vpack.c.bf16 %v8916, %v8914
      %v8931 = vpack.c.bf16 %v8919, %v8917
      %v8932 = vpack.c.bf16 %v8920, %v8918
      %v8933 = vpack.c.bf16 %v8923, %v8921
      %v8934 = vpack.c.bf16 %v8924, %v8922
      %v8935 = vpack.c.bf16 %v8927, %v8925
      %v8936 = vpack.c.bf16 %v8928, %v8926
      %v8945 = vunpack.c.l.b16 %v8929
      %v8946 = vunpack.c.l.b16 %v8930
      %v8947 = vunpack.c.h.b16 %v8929
      %v8948 = vunpack.c.h.b16 %v8930
      %v8949 = vunpack.c.l.b16 %v8931
      %v8950 = vunpack.c.l.b16 %v8932
      %v8951 = vunpack.c.h.b16 %v8931
      %v8952 = vunpack.c.h.b16 %v8932
      %v8953 = vunpack.c.l.b16 %v8933
      %v8954 = vunpack.c.l.b16 %v8934
      %v8955 = vunpack.c.h.b16 %v8933
      %v8956 = vunpack.c.h.b16 %v8934
      %v8957 = vunpack.c.l.b16 %v8935
      %v8958 = vunpack.c.l.b16 %v8936
      %v8959 = vunpack.c.h.b16 %v8935
      %v8960 = vunpack.c.h.b16 %v8936
      %v8961 = vpack.c.b16 %v8946, %v8945
      %v8962 = vpack.c.b16 %v8948, %v8947
      %v8963 = vpack.c.b16 %v8950, %v8949
      %v8964 = vpack.c.b16 %v8952, %v8951
      %v8965 = vpack.c.b16 %v8954, %v8953
      %v8966 = vpack.c.b16 %v8956, %v8955
      %v8967 = vpack.c.b16 %v8958, %v8957
      %v8968 = vpack.c.b16 %v8960, %v8959
      %8977 = vst [vmem:[%s285] sm:$0xff] %v8961
      %8978 = vst [vmem:[%s285 + $0x8] sm:$0xff] %v8962
      %8979 = vst [vmem:[%s285 + $0x10] sm:$0xff] %v8963
      %8980 = vst [vmem:[%s285 + $0x18] sm:$0xff] %v8964
      %8981 = vst [vmem:[%s285 + $0x20] sm:$0xff] %v8965
      %8982 = vst [vmem:[%s285 + $0x28] sm:$0xff] %v8966
      %8983 = vst [vmem:[%s285 + $0x30] sm:$0xff] %v8967
      %8984 = vst [vmem:[%s285 + $0x38] sm:$0xff] %v8968
      %v8985 = vld [vmem:[%s2111] sm:$0xff]
      %v8986 = vld [vmem:[%s2111 + $0x8] sm:$0xff]
      %v8987 = vld [vmem:[%s2111 + $0x10] sm:$0xff]
      %v8988 = vld [vmem:[%s2111 + $0x18] sm:$0xff]
      %v8989 = vld [vmem:[%s2111 + $0x20] sm:$0xff]
      %v8990 = vld [vmem:[%s2111 + $0x28] sm:$0xff]
      %v8991 = vld [vmem:[%s2111 + $0x30] sm:$0xff]
      %v8992 = vld [vmem:[%s2111 + $0x38] sm:$0xff]
      %v8993 = vld [vmem:[%s2111 + $0x40] sm:$0xff]
      %v8994 = vld [vmem:[%s2111 + $0x48] sm:$0xff]
      %v8995 = vld [vmem:[%s2111 + $0x50] sm:$0xff]
      %v8996 = vld [vmem:[%s2111 + $0x58] sm:$0xff]
      %v8997 = vld [vmem:[%s2111 + $0x60] sm:$0xff]
      %v8998 = vld [vmem:[%s2111 + $0x68] sm:$0xff]
      %v8999 = vld [vmem:[%s2111 + $0x70] sm:$0xff]
      %v9000 = vld [vmem:[%s2111 + $0x78] sm:$0xff]
      %v9001 = vadd.f32 %v8985, %v8890
      %v9002 = vadd.f32 %v8986, %v8894
      %v9003 = vadd.f32 %v8987, %v8890
      %v9004 = vadd.f32 %v8988, %v8894
      %v9005 = vadd.f32 %v8989, %v8890
      %v9006 = vadd.f32 %v8990, %v8894
      %v9007 = vadd.f32 %v8991, %v8890
      %v9008 = vadd.f32 %v8992, %v8894
      %v9009 = vadd.f32 %v8993, %v8890
      %v9010 = vadd.f32 %v8994, %v8894
      %v9011 = vadd.f32 %v8995, %v8890
      %v9012 = vadd.f32 %v8996, %v8894
      %v9013 = vadd.f32 %v8997, %v8890
      %v9014 = vadd.f32 %v8998, %v8894
      %v9015 = vadd.f32 %v8999, %v8890
      %v9016 = vadd.f32 %v9000, %v8894
      %v9017 = vmax.f32 %v9001, 0.0
      %v9018 = vmax.f32 %v9002, 0.0
      %v9019 = vmax.f32 %v9003, 0.0
      %v9020 = vmax.f32 %v9004, 0.0
      %v9021 = vmax.f32 %v9005, 0.0
      %v9022 = vmax.f32 %v9006, 0.0
      %v9023 = vmax.f32 %v9007, 0.0
      %v9024 = vmax.f32 %v9008, 0.0
      %v9025 = vmax.f32 %v9009, 0.0
      %v9026 = vmax.f32 %v9010, 0.0
      %v9027 = vmax.f32 %v9011, 0.0
      %v9028 = vmax.f32 %v9012, 0.0
      %v9029 = vmax.f32 %v9013, 0.0
      %v9030 = vmax.f32 %v9014, 0.0
      %v9031 = vmax.f32 %v9015, 0.0
      %v9032 = vmax.f32 %v9016, 0.0
      %v9033 = vpack.c.bf16 %v9019, %v9017
      %v9034 = vpack.c.bf16 %v9020, %v9018
      %v9035 = vpack.c.bf16 %v9023, %v9021
      %v9036 = vpack.c.bf16 %v9024, %v9022
      %v9037 = vpack.c.bf16 %v9027, %v9025
      %v9038 = vpack.c.bf16 %v9028, %v9026
      %v9039 = vpack.c.bf16 %v9031, %v9029
      %v9040 = vpack.c.bf16 %v9032, %v9030
      %v9049 = vunpack.c.l.b16 %v9033
      %v9050 = vunpack.c.l.b16 %v9034
      %v9051 = vunpack.c.h.b16 %v9033
      %v9052 = vunpack.c.h.b16 %v9034
      %v9053 = vunpack.c.l.b16 %v9035
      %v9054 = vunpack.c.l.b16 %v9036
      %v9055 = vunpack.c.h.b16 %v9035
      %v9056 = vunpack.c.h.b16 %v9036
      %v9057 = vunpack.c.l.b16 %v9037
      %v9058 = vunpack.c.l.b16 %v9038
      %v9059 = vunpack.c.h.b16 %v9037
      %v9060 = vunpack.c.h.b16 %v9038
      %v9061 = vunpack.c.l.b16 %v9039
      %v9062 = vunpack.c.l.b16 %v9040
      %v9063 = vunpack.c.h.b16 %v9039
      %v9064 = vunpack.c.h.b16 %v9040
      %v9065 = vpack.c.b16 %v9050, %v9049
      %v9066 = vpack.c.b16 %v9052, %v9051
      %v9067 = vpack.c.b16 %v9054, %v9053
      %v9068 = vpack.c.b16 %v9056, %v9055
      %v9069 = vpack.c.b16 %v9058, %v9057
      %v9070 = vpack.c.b16 %v9060, %v9059
      %v9071 = vpack.c.b16 %v9062, %v9061
      %v9072 = vpack.c.b16 %v9064, %v9063
      %s9081 = scalar_lea.vmem %s285, 64
      %9082 = vst [vmem:[%s9081] sm:$0xff] %v9065
      %9083 = vst [vmem:[%s9081 + $0x8] sm:$0xff] %v9066
      %9084 = vst [vmem:[%s9081 + $0x10] sm:$0xff] %v9067
      %9085 = vst [vmem:[%s9081 + $0x18] sm:$0xff] %v9068
      %9086 = vst [vmem:[%s9081 + $0x20] sm:$0xff] %v9069
      %9087 = vst [vmem:[%s9081 + $0x28] sm:$0xff] %v9070
      %9088 = vst [vmem:[%s9081 + $0x30] sm:$0xff] %v9071
      %9089 = vst [vmem:[%s9081 + $0x38] sm:$0xff] %v9072
      %v9090 = vld [vmem:[%s2233] sm:$0xff]
      %v9091 = vld [vmem:[%s2233 + $0x8] sm:$0xff]
      %v9092 = vld [vmem:[%s2233 + $0x10] sm:$0xff]
      %v9093 = vld [vmem:[%s2233 + $0x18] sm:$0xff]
      %v9094 = vld [vmem:[%s2233 + $0x20] sm:$0xff]
      %v9095 = vld [vmem:[%s2233 + $0x28] sm:$0xff]
      %v9096 = vld [vmem:[%s2233 + $0x30] sm:$0xff]
      %v9097 = vld [vmem:[%s2233 + $0x38] sm:$0xff]
      %v9098 = vld [vmem:[%s2233 + $0x40] sm:$0xff]
      %v9099 = vld [vmem:[%s2233 + $0x48] sm:$0xff]
      %v9100 = vld [vmem:[%s2233 + $0x50] sm:$0xff]
      %v9101 = vld [vmem:[%s2233 + $0x58] sm:$0xff]
      %v9102 = vld [vmem:[%s2233 + $0x60] sm:$0xff]
      %v9103 = vld [vmem:[%s2233 + $0x68] sm:$0xff]
      %v9104 = vld [vmem:[%s2233 + $0x70] sm:$0xff]
      %v9105 = vld [vmem:[%s2233 + $0x78] sm:$0xff]
      %v9106 = vadd.f32 %v9090, %v8890
      %v9107 = vadd.f32 %v9091, %v8894
      %v9108 = vadd.f32 %v9092, %v8890
      %v9109 = vadd.f32 %v9093, %v8894
      %v9110 = vadd.f32 %v9094, %v8890
      %v9111 = vadd.f32 %v9095, %v8894
      %v9112 = vadd.f32 %v9096, %v8890
      %v9113 = vadd.f32 %v9097, %v8894
      %v9114 = vadd.f32 %v9098, %v8890
      %v9115 = vadd.f32 %v9099, %v8894
      %v9116 = vadd.f32 %v9100, %v8890
      %v9117 = vadd.f32 %v9101, %v8894
      %v9118 = vadd.f32 %v9102, %v8890
      %v9119 = vadd.f32 %v9103, %v8894
      %v9120 = vadd.f32 %v9104, %v8890
      %v9121 = vadd.f32 %v9105, %v8894
      %v9122 = vmax.f32 %v9106, 0.0
      %v9123 = vmax.f32 %v9107, 0.0
      %v9124 = vmax.f32 %v9108, 0.0
      %v9125 = vmax.f32 %v9109, 0.0
      %v9126 = vmax.f32 %v9110, 0.0
      %v9127 = vmax.f32 %v9111, 0.0
      %v9128 = vmax.f32 %v9112, 0.0
      %v9129 = vmax.f32 %v9113, 0.0
      %v9130 = vmax.f32 %v9114, 0.0
      %v9131 = vmax.f32 %v9115, 0.0
      %v9132 = vmax.f32 %v9116, 0.0
      %v9133 = vmax.f32 %v9117, 0.0
      %v9134 = vmax.f32 %v9118, 0.0
      %v9135 = vmax.f32 %v9119, 0.0
      %v9136 = vmax.f32 %v9120, 0.0
      %v9137 = vmax.f32 %v9121, 0.0
      %v9138 = vpack.c.bf16 %v9124, %v9122
      %v9139 = vpack.c.bf16 %v9125, %v9123
      %v9140 = vpack.c.bf16 %v9128, %v9126
      %v9141 = vpack.c.bf16 %v9129, %v9127
      %v9142 = vpack.c.bf16 %v9132, %v9130
      %v9143 = vpack.c.bf16 %v9133, %v9131
      %v9144 = vpack.c.bf16 %v9136, %v9134
      %v9145 = vpack.c.bf16 %v9137, %v9135
      %v9154 = vunpack.c.l.b16 %v9138
      %v9155 = vunpack.c.l.b16 %v9139
      %v9156 = vunpack.c.h.b16 %v9138
      %v9157 = vunpack.c.h.b16 %v9139
      %v9158 = vunpack.c.l.b16 %v9140
      %v9159 = vunpack.c.l.b16 %v9141
      %v9160 = vunpack.c.h.b16 %v9140
      %v9161 = vunpack.c.h.b16 %v9141
      %v9162 = vunpack.c.l.b16 %v9142
      %v9163 = vunpack.c.l.b16 %v9143
      %v9164 = vunpack.c.h.b16 %v9142
      %v9165 = vunpack.c.h.b16 %v9143
      %v9166 = vunpack.c.l.b16 %v9144
      %v9167 = vunpack.c.l.b16 %v9145
      %v9168 = vunpack.c.h.b16 %v9144
      %v9169 = vunpack.c.h.b16 %v9145
      %v9170 = vpack.c.b16 %v9155, %v9154
      %v9171 = vpack.c.b16 %v9157, %v9156
      %v9172 = vpack.c.b16 %v9159, %v9158
      %v9173 = vpack.c.b16 %v9161, %v9160
      %v9174 = vpack.c.b16 %v9163, %v9162
      %v9175 = vpack.c.b16 %v9165, %v9164
      %v9176 = vpack.c.b16 %v9167, %v9166
      %v9177 = vpack.c.b16 %v9169, %v9168
      %s9186 = scalar_lea.vmem %s285, 128
      %9187 = vst [vmem:[%s9186] sm:$0xff] %v9170
      %9188 = vst [vmem:[%s9186 + $0x8] sm:$0xff] %v9171
      %9189 = vst [vmem:[%s9186 + $0x10] sm:$0xff] %v9172
      %9190 = vst [vmem:[%s9186 + $0x18] sm:$0xff] %v9173
      %9191 = vst [vmem:[%s9186 + $0x20] sm:$0xff] %v9174
      %9192 = vst [vmem:[%s9186 + $0x28] sm:$0xff] %v9175
      %9193 = vst [vmem:[%s9186 + $0x30] sm:$0xff] %v9176
      %9194 = vst [vmem:[%s9186 + $0x38] sm:$0xff] %v9177
      %v9195 = vld [vmem:[%s2355] sm:$0xff]
      %v9196 = vld [vmem:[%s2355 + $0x8] sm:$0xff]
      %v9197 = vld [vmem:[%s2355 + $0x10] sm:$0xff]
      %v9198 = vld [vmem:[%s2355 + $0x18] sm:$0xff]
      %v9199 = vld [vmem:[%s2355 + $0x20] sm:$0xff]
      %v9200 = vld [vmem:[%s2355 + $0x28] sm:$0xff]
      %v9201 = vld [vmem:[%s2355 + $0x30] sm:$0xff]
      %v9202 = vld [vmem:[%s2355 + $0x38] sm:$0xff]
      %v9203 = vld [vmem:[%s2355 + $0x40] sm:$0xff]
      %v9204 = vld [vmem:[%s2355 + $0x48] sm:$0xff]
      %v9205 = vld [vmem:[%s2355 + $0x50] sm:$0xff]
      %v9206 = vld [vmem:[%s2355 + $0x58] sm:$0xff]
      %v9207 = vld [vmem:[%s2355 + $0x60] sm:$0xff]
      %v9208 = vld [vmem:[%s2355 + $0x68] sm:$0xff]
      %v9209 = vld [vmem:[%s2355 + $0x70] sm:$0xff]
      %v9210 = vld [vmem:[%s2355 + $0x78] sm:$0xff]
      %v9211 = vadd.f32 %v9195, %v8890
      %v9212 = vadd.f32 %v9196, %v8894
      %v9213 = vadd.f32 %v9197, %v8890
      %v9214 = vadd.f32 %v9198, %v8894
      %v9215 = vadd.f32 %v9199, %v8890
      %v9216 = vadd.f32 %v9200, %v8894
      %v9217 = vadd.f32 %v9201, %v8890
      %v9218 = vadd.f32 %v9202, %v8894
      %v9219 = vadd.f32 %v9203, %v8890
      %v9220 = vadd.f32 %v9204, %v8894
      %v9221 = vadd.f32 %v9205, %v8890
      %v9222 = vadd.f32 %v9206, %v8894
      %v9223 = vadd.f32 %v9207, %v8890
      %v9224 = vadd.f32 %v9208, %v8894
      %v9225 = vadd.f32 %v9209, %v8890
      %v9226 = vadd.f32 %v9210, %v8894
      %v9227 = vmax.f32 %v9211, 0.0
      %v9228 = vmax.f32 %v9212, 0.0
      %v9229 = vmax.f32 %v9213, 0.0
      %v9230 = vmax.f32 %v9214, 0.0
      %v9231 = vmax.f32 %v9215, 0.0
      %v9232 = vmax.f32 %v9216, 0.0
      %v9233 = vmax.f32 %v9217, 0.0
      %v9234 = vmax.f32 %v9218, 0.0
      %v9235 = vmax.f32 %v9219, 0.0
      %v9236 = vmax.f32 %v9220, 0.0
      %v9237 = vmax.f32 %v9221, 0.0
      %v9238 = vmax.f32 %v9222, 0.0
      %v9239 = vmax.f32 %v9223, 0.0
      %v9240 = vmax.f32 %v9224, 0.0
      %v9241 = vmax.f32 %v9225, 0.0
      %v9242 = vmax.f32 %v9226, 0.0
      %v9243 = vpack.c.bf16 %v9229, %v9227
      %v9244 = vpack.c.bf16 %v9230, %v9228
      %v9245 = vpack.c.bf16 %v9233, %v9231
      %v9246 = vpack.c.bf16 %v9234, %v9232
      %v9247 = vpack.c.bf16 %v9237, %v9235
      %v9248 = vpack.c.bf16 %v9238, %v9236
      %v9249 = vpack.c.bf16 %v9241, %v9239
      %v9250 = vpack.c.bf16 %v9242, %v9240
      %v9259 = vunpack.c.l.b16 %v9243
      %v9260 = vunpack.c.l.b16 %v9244
      %v9261 = vunpack.c.h.b16 %v9243
      %v9262 = vunpack.c.h.b16 %v9244
      %v9263 = vunpack.c.l.b16 %v9245
      %v9264 = vunpack.c.l.b16 %v9246
      %v9265 = vunpack.c.h.b16 %v9245
      %v9266 = vunpack.c.h.b16 %v9246
      %v9267 = vunpack.c.l.b16 %v9247
      %v9268 = vunpack.c.l.b16 %v9248
      %v9269 = vunpack.c.h.b16 %v9247
      %v9270 = vunpack.c.h.b16 %v9248
      %v9271 = vunpack.c.l.b16 %v9249
      %v9272 = vunpack.c.l.b16 %v9250
      %v9273 = vunpack.c.h.b16 %v9249
      %v9274 = vunpack.c.h.b16 %v9250
      %v9275 = vpack.c.b16 %v9260, %v9259
      %v9276 = vpack.c.b16 %v9262, %v9261
      %v9277 = vpack.c.b16 %v9264, %v9263
      %v9278 = vpack.c.b16 %v9266, %v9265
      %v9279 = vpack.c.b16 %v9268, %v9267
      %v9280 = vpack.c.b16 %v9270, %v9269
      %v9281 = vpack.c.b16 %v9272, %v9271
      %v9282 = vpack.c.b16 %v9274, %v9273
      %s9291 = scalar_lea.vmem %s285, 192
      %9292 = vst [vmem:[%s9291] sm:$0xff] %v9275
      %9293 = vst [vmem:[%s9291 + $0x8] sm:$0xff] %v9276
      %9294 = vst [vmem:[%s9291 + $0x10] sm:$0xff] %v9277
      %9295 = vst [vmem:[%s9291 + $0x18] sm:$0xff] %v9278
      %9296 = vst [vmem:[%s9291 + $0x20] sm:$0xff] %v9279
      %9297 = vst [vmem:[%s9291 + $0x28] sm:$0xff] %v9280
      %9298 = vst [vmem:[%s9291 + $0x30] sm:$0xff] %v9281
      %9299 = vst [vmem:[%s9291 + $0x38] sm:$0xff] %v9282
      %s9300 = smul.u32 4, %s18
      %p9301 = scmp.lt.s32.totalorder %s9300, 7
      %s9302 = scalar_select %p9301, %s9300, 7
      %s9303 = smul.addr %s9302, 16
      %s9304 = smul.addr %s9303, 4
      %s9305 = scalar_lea.vmem %s7, %s9304
      // Predicated region
      $region49: #{scale_block_forward.1} parent=47 // pred_check
        %p9306 = pneg %p188
      $region50: #{scale_block_forward.1} parent=47 // pred_check_branch
        %9308 = sbr.rel (%p9306) target = $region52
      $region51: #{scale_block_forward.1} parent=47 // pred_region
        %s9309 = smul.u32 4, %s18
      $region52: #{scale_block_forward.1} parent=47 // pred_fallthru
        _
    $region48: #{scale_block_forward.1} parent=5 // pred_fallthru
      _
    %p9310 = scmp.le.s32.totalorder 2, %s13
    // Predicated region
    $region53: #{scale_block_forward.1} parent=5 // pred_check
      %p9311 = pneg %p9310
    $region54: #{scale_block_forward.1} parent=5 // pred_check_branch
      %9313 = sbr.rel (%p9311) target = $region56
    $region55: #{scale_block_forward.1} parent=5 // pred_region
      %s9314 = ssub.s32 %s13, 2
      // Predicated region
      $region57: #{scale_block_forward.1} parent=55 // pred_check
        %p9315 = pneg %p194
      $region58: #{scale_block_forward.1} parent=55 // pred_check_branch
        %9317 = sbr.rel (%p9315) target = $region60
      $region59: #{scale_block_forward.1} parent=55 // pred_region
        %s9318 = smul.u32 4, %s19
        %p9319 = scmp.lt.s32.totalorder %s9318, 7
        %s9320 = scalar_select %p9319, %s9318, 7
        %s9321 = smul.addr %s9320, 16
        %s9322 = smul.addr %s9321, 4
        %s9323 = scalar_lea.vmem %s7, %s9322
      $region60: #{scale_block_forward.1} parent=55 // pred_fallthru
        _
    $region56: #{scale_block_forward.1} parent=5 // pred_fallthru
      _
  $region6: #{scale_block_forward.1} parent=0 // loop_footer
    %s17 = sadd.s32 1, %s13
  $region7: #{scale_block_forward.1} parent=0 // loop_footer_branch
    %12 = sbr.rel target = $region3
  $region8: #{scale_block_forward.1} parent=0 // loop_exit
    _

</llo_original>
